<compile_context>
chip_gen: v6e
topology: v6e:2x2x1
jax: 0.10.0
libtpu: 0.0.40
codegen_flags: <defaults>
</compile_context>

<pallas_src>
import functools

import jax
import jax.numpy as jnp
from jax import lax
from jax.experimental import pallas as pl
from jax.experimental.pallas import tpu as pltpu


BN_EPS = 1e-5


def _round_up(v, mult):
    return (v + mult - 1) // mult * mult


def _conv_image(x_ref, w_ref, *, kh, kw, oh, ow, stride):
    """In-kernel im2col conv of one padded NHWC image resident in VMEM.

    x_ref: [Hp, Wp, Cin] f32, w_ref: [KH*KW, Cin, OCP] f32.
    Returns the bias-free conv as f32 [OH*OW, OCP] (MXU matmuls, f32 accum).
    """
    c_in = x_ref.shape[-1]
    acc = None
    for i in range(kh):            # KH*KW is small & static -> fully unrolled
        for j in range(kw):
            if stride == 1:
                xs = x_ref[pl.ds(i, oh), pl.ds(j, ow), :]
            else:
                xs = x_ref[pl.ds(i, oh, stride), pl.ds(j, ow, stride), :]
            part = jnp.dot(xs.reshape(oh * ow, c_in), w_ref[i * kw + j],
                           preferred_element_type=jnp.float32)
            acc = part if acc is None else acc + part
    return acc


def _conv_stats_kernel(x_ref, w_ref, stats_ref, *, kh, kw, oh, ow, stride):
    """Per-image partial BN statistics of the bias-free conv."""
    conv = _conv_image(x_ref, w_ref, kh=kh, kw=kw, oh=oh, ow=ow, stride=stride)
    stats_ref[0, 0:1, :] = jnp.sum(conv, axis=0, keepdims=True)
    stats_ref[0, 1:2, :] = jnp.sum(conv * conv, axis=0, keepdims=True)


def _conv_norm_relu_kernel(x_ref, w_ref, scale_ref, shift_ref, o_ref, *,
                           kh, kw, oh, ow, stride, oc_store):
    """relu(conv * scale + shift), stored channels-major [OC_store, OH*OW]."""
    conv = _conv_image(x_ref, w_ref, kh=kh, kw=kw, oh=oh, ow=ow, stride=stride)
    y = jnp.maximum(conv * scale_ref[...] + shift_ref[...], 0.0)
    # Channels-major lane-dense store (lane dim = OH*OW); the transpose rides
    # the otherwise-idle XLU slot and removes the wrapper-side NCHW transpose.
    o_ref[0] = jnp.transpose(y)[:oc_store, :].astype(o_ref.dtype)


@functools.partial(jax.jit, static_argnames=("stride", "padding"))
def new_conv_layer(x, weight, bias, gamma, beta, *, stride=1, padding=0):
    """NewConvLayer.forward: Conv2d -> BatchNorm2d (training stats) -> ReLU.

    x: [N, Cin, H, W], weight: [OC, Cin, KH, KW], bias/gamma/beta: [OC].
    Returns [N, OC, OH, OW] float32.
    """
    n, c_in, h, w = x.shape
    oc, _, kh, kw = weight.shape
    hp, wp = h + 2 * padding, w + 2 * padding
    oh = (hp - kh) // stride + 1
    ow = (wp - kw) // stride + 1
    m = n * oh * ow

    ocp = _round_up(oc, 128)      # MXU column / lane width for the matmul
    oc_store = _round_up(oc, 8)   # sublane-aligned channel count actually stored

    # --- small wrapper-side layout prep (all O(input)-sized; no 9x im2col) ----
    x_nhwc = jnp.transpose(x, (0, 2, 3, 1)).astype(jnp.float32)
    xp = jnp.pad(x_nhwc, ((0, 0), (padding, padding), (padding, padding), (0, 0)))
    xp = xp.reshape(n * hp, wp, c_in)                        # [N*Hp, Wp, Cin]

    w_r = jnp.transpose(weight, (2, 3, 1, 0)).reshape(kh * kw, c_in, oc)
    w_r = jnp.pad(w_r.astype(jnp.float32), ((0, 0), (0, 0), (0, ocp - oc)))

    bias_p = jnp.pad(bias.astype(jnp.float32), (0, ocp - oc))
    gamma_p = jnp.pad(gamma.astype(jnp.float32), (0, ocp - oc))
    beta_p = jnp.pad(beta.astype(jnp.float32), (0, ocp - oc))

    cparams = pltpu.CompilerParams(dimension_semantics=("parallel",))
    conv_flops = 2 * m * (c_in * kh * kw) * ocp
    img_bytes = n * hp * wp * c_in * 4 + kh * kw * c_in * ocp * 4
    conv_kw = dict(kh=kh, kw=kw, oh=oh, ow=ow, stride=stride)

    # --- pass 1: per-image partial sum / sum-of-squares of the bias-free conv -
    stats = pl.pallas_call(
        functools.partial(_conv_stats_kernel, **conv_kw),
        out_shape=jax.ShapeDtypeStruct((n, 2, ocp), jnp.float32),
        grid=(n,),
        in_specs=[
            pl.BlockSpec((hp, wp, c_in), lambda i: (i, 0, 0)),
            pl.BlockSpec((kh * kw, c_in, ocp), lambda i: (0, 0, 0)),
        ],
        out_specs=pl.BlockSpec((1, 2, ocp), lambda i: (i, 0, 0)),
        compiler_params=cparams,
        cost_estimate=pl.CostEstimate(
            flops=conv_flops, transcendentals=0,
            bytes_accessed=img_bytes + n * 2 * ocp * 4),
    )(xp, w_r)

    # --- tiny per-channel combine: bias folded into the mean, var is bias-free -
    s1 = jnp.sum(stats[:, 0, :], axis=0)                      # [OCP]
    s2 = jnp.sum(stats[:, 1, :], axis=0)
    mean_raw = s1 / m
    mean = mean_raw + bias_p                 # batch mean of (conv + bias)
    var = s2 / m - mean_raw * mean_raw       # biased var; shift-invariant
    inv_std = lax.rsqrt(var + BN_EPS)
    scale = gamma_p * inv_std
    shift = beta_p + (bias_p - mean) * scale

    # --- pass 2: recompute conv, scale/shift + ReLU, channels-major store -----
    out_cm = pl.pallas_call(
        functools.partial(_conv_norm_relu_kernel, oc_store=oc_store, **conv_kw),
        out_shape=jax.ShapeDtypeStruct((n, oc_store, oh * ow), jnp.float32),
        grid=(n,),
        in_specs=[
            pl.BlockSpec((hp, wp, c_in), lambda i: (i, 0, 0)),
            pl.BlockSpec((kh * kw, c_in, ocp), lambda i: (0, 0, 0)),
            pl.BlockSpec((1, ocp), lambda i: (0, 0)),
            pl.BlockSpec((1, ocp), lambda i: (0, 0)),
        ],
        out_specs=pl.BlockSpec((1, oc_store, oh * ow), lambda i: (i, 0, 0)),
        compiler_params=cparams,
        cost_estimate=pl.CostEstimate(
            flops=conv_flops, transcendentals=0,
            bytes_accessed=img_bytes + 2 * ocp * 4 + n * oc_store * oh * ow * 4),
    )(xp, w_r, scale.reshape(1, ocp), shift.reshape(1, ocp))

    out = out_cm.reshape(n, oc_store, oh, ow)                 # metadata reshape
    return out[:, :oc] if oc_store != oc else out             # already NCHW


def _reference(x, weight, bias, gamma, beta, stride, padding):
    """Pure-XLA f32 reference: Conv2d + bias -> training-mode BN -> ReLU."""
    conv = lax.conv_general_dilated(
        x, weight, window_strides=(stride, stride),
        padding=((padding, padding), (padding, padding)),
        dimension_numbers=("NCHW", "OIHW", "NCHW"),
        preferred_element_type=jnp.float32,
    ) + bias.reshape(1, -1, 1, 1)
    mean = jnp.mean(conv, axis=(0, 2, 3), keepdims=True)
    var = jnp.mean((conv - mean) ** 2, axis=(0, 2, 3), keepdims=True)
    norm = (conv - mean) * lax.rsqrt(var + BN_EPS)
    out = norm * gamma.reshape(1, -1, 1, 1) + beta.reshape(1, -1, 1, 1)
    return jnp.maximum(out, 0.0)


if __name__ == "__main__":
    # NewConvLayer(in_channels=4, out_channels=8, kernel_size=3, stride=1,
    # padding=1) applied to input [2, 4, 16, 16].
    key = jax.random.PRNGKey(0)
    k_x, k_w, k_b, k_g, k_beta = jax.random.split(key, 5)

    N, C_IN, H, W = 2, 4, 16, 16
    OC, KH, KW = 8, 3, 3
    STRIDE, PAD = 1, 1

    x = jax.random.normal(k_x, (N, C_IN, H, W), dtype=jnp.float32)
    weight = jax.random.normal(k_w, (OC, C_IN, KH, KW), dtype=jnp.float32) * 0.1
    bias = jax.random.normal(k_b, (OC,), dtype=jnp.float32) * 0.1
    gamma = 1.0 + 0.1 * jax.random.normal(k_g, (OC,), dtype=jnp.float32)
    beta = 0.1 * jax.random.normal(k_beta, (OC,), dtype=jnp.float32)

    out = new_conv_layer(x, weight, bias, gamma, beta, stride=STRIDE, padding=PAD)
    out = jax.block_until_ready(out)
    assert out.shape == (N, OC, H, W), out.shape

    ref = _reference(x, weight, bias, gamma, beta, STRIDE, PAD)
    max_err = float(jnp.max(jnp.abs(out - ref)))
    assert jnp.allclose(out, ref, rtol=2e-3, atol=2e-3), max_err

    print("KERNEL_OK")
</pallas_src>

<mosaic_0001>
module attributes {stable_mosaic.version = 11 : i64} {
  func.func @_conv_stats_kernel(%arg0: i32, %arg1: memref<18x18x4xf32, #tpu.memory_space<vmem>>, %arg2: memref<9x4x128xf32, #tpu.memory_space<vmem>>, %arg3: memref<1x2x128xf32, #tpu.memory_space<vmem>>) attributes {dimension_semantics = [#tpu.dimension_semantics<parallel>], iteration_bounds = array<i64: 2>, scalar_prefetch = 0 : i64, scratch_operands = 0 : i64, tpu.core_type = #tpu.core_type<tc>, window_params = [{transform_indices = @transform_0, window_bounds = array<i64: 18, 18, 4>}, {pipeline_mode = #tpu.pipeline_mode<synchronous>, transform_indices = @transform_1, window_bounds = array<i64: 9, 4, 128>}, {transform_indices = @transform_2, window_bounds = array<i64: 1, 2, 128>}]} {
    %c0 = arith.constant 0 : index
    %c0_0 = arith.constant 0 : index
    %c0_1 = arith.constant 0 : index
    %0 = vector.load %arg1[%c0, %c0_0, %c0_1] : memref<18x18x4xf32, #tpu.memory_space<vmem>>, vector<16x16x4xf32>
    %1 = vector.shape_cast %0 : vector<16x16x4xf32> to vector<256x4xf32>
    %c0_2 = arith.constant 0 : index
    %c0_3 = arith.constant 0 : index
    %c0_4 = arith.constant 0 : index
    %2 = vector.load %arg2[%c0_2, %c0_3, %c0_4] : memref<9x4x128xf32, #tpu.memory_space<vmem>>, vector<1x4x128xf32>
    %3 = vector.shape_cast %2 : vector<1x4x128xf32> to vector<4x128xf32>
    %cst = arith.constant dense<0.000000e+00> : vector<256x128xf32>
    %4 = tpu.matmul %1, %3, %cst {dimension_numbers = #tpu.dot_dimension_numbers<[1], [0], [0], [1], [0, 0, 1, 1], [], []>} : vector<256x4xf32>, vector<4x128xf32>, vector<256x128xf32> -> vector<256x128xf32>
    %c0_5 = arith.constant 0 : index
    %c1 = arith.constant 1 : index
    %c0_6 = arith.constant 0 : index
    %5 = vector.load %arg1[%c0_5, %c1, %c0_6] : memref<18x18x4xf32, #tpu.memory_space<vmem>>, vector<16x16x4xf32>
    %6 = vector.shape_cast %5 : vector<16x16x4xf32> to vector<256x4xf32>
    %c1_7 = arith.constant 1 : index
    %c0_8 = arith.constant 0 : index
    %c0_9 = arith.constant 0 : index
    %7 = vector.load %arg2[%c1_7, %c0_8, %c0_9] : memref<9x4x128xf32, #tpu.memory_space<vmem>>, vector<1x4x128xf32>
    %8 = vector.shape_cast %7 : vector<1x4x128xf32> to vector<4x128xf32>
    %cst_10 = arith.constant dense<0.000000e+00> : vector<256x128xf32>
    %9 = tpu.matmul %6, %8, %cst_10 {dimension_numbers = #tpu.dot_dimension_numbers<[1], [0], [0], [1], [0, 0, 1, 1], [], []>} : vector<256x4xf32>, vector<4x128xf32>, vector<256x128xf32> -> vector<256x128xf32>
    %10 = arith.addf %4, %9 : vector<256x128xf32>
    %c0_11 = arith.constant 0 : index
    %c2 = arith.constant 2 : index
    %c0_12 = arith.constant 0 : index
    %11 = vector.load %arg1[%c0_11, %c2, %c0_12] : memref<18x18x4xf32, #tpu.memory_space<vmem>>, vector<16x16x4xf32>
    %12 = vector.shape_cast %11 : vector<16x16x4xf32> to vector<256x4xf32>
    %c2_13 = arith.constant 2 : index
    %c0_14 = arith.constant 0 : index
    %c0_15 = arith.constant 0 : index
    %13 = vector.load %arg2[%c2_13, %c0_14, %c0_15] : memref<9x4x128xf32, #tpu.memory_space<vmem>>, vector<1x4x128xf32>
    %14 = vector.shape_cast %13 : vector<1x4x128xf32> to vector<4x128xf32>
    %cst_16 = arith.constant dense<0.000000e+00> : vector<256x128xf32>
    %15 = tpu.matmul %12, %14, %cst_16 {dimension_numbers = #tpu.dot_dimension_numbers<[1], [0], [0], [1], [0, 0, 1, 1], [], []>} : vector<256x4xf32>, vector<4x128xf32>, vector<256x128xf32> -> vector<256x128xf32>
    %16 = arith.addf %10, %15 : vector<256x128xf32>
    %c1_17 = arith.constant 1 : index
    %c0_18 = arith.constant 0 : index
    %c0_19 = arith.constant 0 : index
    %17 = vector.load %arg1[%c1_17, %c0_18, %c0_19] : memref<18x18x4xf32, #tpu.memory_space<vmem>>, vector<16x16x4xf32>
    %18 = vector.shape_cast %17 : vector<16x16x4xf32> to vector<256x4xf32>
    %c3 = arith.constant 3 : index
    %c0_20 = arith.constant 0 : index
    %c0_21 = arith.constant 0 : index
    %19 = vector.load %arg2[%c3, %c0_20, %c0_21] : memref<9x4x128xf32, #tpu.memory_space<vmem>>, vector<1x4x128xf32>
    %20 = vector.shape_cast %19 : vector<1x4x128xf32> to vector<4x128xf32>
    %cst_22 = arith.constant dense<0.000000e+00> : vector<256x128xf32>
    %21 = tpu.matmul %18, %20, %cst_22 {dimension_numbers = #tpu.dot_dimension_numbers<[1], [0], [0], [1], [0, 0, 1, 1], [], []>} : vector<256x4xf32>, vector<4x128xf32>, vector<256x128xf32> -> vector<256x128xf32>
    %22 = arith.addf %16, %21 : vector<256x128xf32>
    %c1_23 = arith.constant 1 : index
    %c1_24 = arith.constant 1 : index
    %c0_25 = arith.constant 0 : index
    %23 = vector.load %arg1[%c1_23, %c1_24, %c0_25] : memref<18x18x4xf32, #tpu.memory_space<vmem>>, vector<16x16x4xf32>
    %24 = vector.shape_cast %23 : vector<16x16x4xf32> to vector<256x4xf32>
    %c4 = arith.constant 4 : index
    %c0_26 = arith.constant 0 : index
    %c0_27 = arith.constant 0 : index
    %25 = vector.load %arg2[%c4, %c0_26, %c0_27] : memref<9x4x128xf32, #tpu.memory_space<vmem>>, vector<1x4x128xf32>
    %26 = vector.shape_cast %25 : vector<1x4x128xf32> to vector<4x128xf32>
    %cst_28 = arith.constant dense<0.000000e+00> : vector<256x128xf32>
    %27 = tpu.matmul %24, %26, %cst_28 {dimension_numbers = #tpu.dot_dimension_numbers<[1], [0], [0], [1], [0, 0, 1, 1], [], []>} : vector<256x4xf32>, vector<4x128xf32>, vector<256x128xf32> -> vector<256x128xf32>
    %28 = arith.addf %22, %27 : vector<256x128xf32>
    %c1_29 = arith.constant 1 : index
    %c2_30 = arith.constant 2 : index
    %c0_31 = arith.constant 0 : index
    %29 = vector.load %arg1[%c1_29, %c2_30, %c0_31] : memref<18x18x4xf32, #tpu.memory_space<vmem>>, vector<16x16x4xf32>
    %30 = vector.shape_cast %29 : vector<16x16x4xf32> to vector<256x4xf32>
    %c5 = arith.constant 5 : index
    %c0_32 = arith.constant 0 : index
    %c0_33 = arith.constant 0 : index
    %31 = vector.load %arg2[%c5, %c0_32, %c0_33] : memref<9x4x128xf32, #tpu.memory_space<vmem>>, vector<1x4x128xf32>
    %32 = vector.shape_cast %31 : vector<1x4x128xf32> to vector<4x128xf32>
    %cst_34 = arith.constant dense<0.000000e+00> : vector<256x128xf32>
    %33 = tpu.matmul %30, %32, %cst_34 {dimension_numbers = #tpu.dot_dimension_numbers<[1], [0], [0], [1], [0, 0, 1, 1], [], []>} : vector<256x4xf32>, vector<4x128xf32>, vector<256x128xf32> -> vector<256x128xf32>
    %34 = arith.addf %28, %33 : vector<256x128xf32>
    %c2_35 = arith.constant 2 : index
    %c0_36 = arith.constant 0 : index
    %c0_37 = arith.constant 0 : index
    %35 = vector.load %arg1[%c2_35, %c0_36, %c0_37] : memref<18x18x4xf32, #tpu.memory_space<vmem>>, vector<16x16x4xf32>
    %36 = vector.shape_cast %35 : vector<16x16x4xf32> to vector<256x4xf32>
    %c6 = arith.constant 6 : index
    %c0_38 = arith.constant 0 : index
    %c0_39 = arith.constant 0 : index
    %37 = vector.load %arg2[%c6, %c0_38, %c0_39] : memref<9x4x128xf32, #tpu.memory_space<vmem>>, vector<1x4x128xf32>
    %38 = vector.shape_cast %37 : vector<1x4x128xf32> to vector<4x128xf32>
    %cst_40 = arith.constant dense<0.000000e+00> : vector<256x128xf32>
    %39 = tpu.matmul %36, %38, %cst_40 {dimension_numbers = #tpu.dot_dimension_numbers<[1], [0], [0], [1], [0, 0, 1, 1], [], []>} : vector<256x4xf32>, vector<4x128xf32>, vector<256x128xf32> -> vector<256x128xf32>
    %40 = arith.addf %34, %39 : vector<256x128xf32>
    %c2_41 = arith.constant 2 : index
    %c1_42 = arith.constant 1 : index
    %c0_43 = arith.constant 0 : index
    %41 = vector.load %arg1[%c2_41, %c1_42, %c0_43] : memref<18x18x4xf32, #tpu.memory_space<vmem>>, vector<16x16x4xf32>
    %42 = vector.shape_cast %41 : vector<16x16x4xf32> to vector<256x4xf32>
    %c7 = arith.constant 7 : index
    %c0_44 = arith.constant 0 : index
    %c0_45 = arith.constant 0 : index
    %43 = vector.load %arg2[%c7, %c0_44, %c0_45] : memref<9x4x128xf32, #tpu.memory_space<vmem>>, vector<1x4x128xf32>
    %44 = vector.shape_cast %43 : vector<1x4x128xf32> to vector<4x128xf32>
    %cst_46 = arith.constant dense<0.000000e+00> : vector<256x128xf32>
    %45 = tpu.matmul %42, %44, %cst_46 {dimension_numbers = #tpu.dot_dimension_numbers<[1], [0], [0], [1], [0, 0, 1, 1], [], []>} : vector<256x4xf32>, vector<4x128xf32>, vector<256x128xf32> -> vector<256x128xf32>
    %46 = arith.addf %40, %45 : vector<256x128xf32>
    %c2_47 = arith.constant 2 : index
    %c2_48 = arith.constant 2 : index
    %c0_49 = arith.constant 0 : index
    %47 = vector.load %arg1[%c2_47, %c2_48, %c0_49] : memref<18x18x4xf32, #tpu.memory_space<vmem>>, vector<16x16x4xf32>
    %48 = vector.shape_cast %47 : vector<16x16x4xf32> to vector<256x4xf32>
    %c8 = arith.constant 8 : index
    %c0_50 = arith.constant 0 : index
    %c0_51 = arith.constant 0 : index
    %49 = vector.load %arg2[%c8, %c0_50, %c0_51] : memref<9x4x128xf32, #tpu.memory_space<vmem>>, vector<1x4x128xf32>
    %50 = vector.shape_cast %49 : vector<1x4x128xf32> to vector<4x128xf32>
    %cst_52 = arith.constant dense<0.000000e+00> : vector<256x128xf32>
    %51 = tpu.matmul %48, %50, %cst_52 {dimension_numbers = #tpu.dot_dimension_numbers<[1], [0], [0], [1], [0, 0, 1, 1], [], []>} : vector<256x4xf32>, vector<4x128xf32>, vector<256x128xf32> -> vector<256x128xf32>
    %52 = arith.addf %46, %51 : vector<256x128xf32>
    %cst_53 = arith.constant dense<0.000000e+00> : vector<128xf32>
    %53 = vector.multi_reduction <add>, %52, %cst_53 [0] : vector<256x128xf32> to vector<128xf32>
    %54 = vector.shape_cast %53 : vector<128xf32> to vector<1x128xf32>
    %c0_54 = arith.constant 0 : index
    %c0_55 = arith.constant 0 : index
    %c0_56 = arith.constant 0 : index
    %55 = vector.load %arg3[%c0_54, %c0_55, %c0_56] : memref<1x2x128xf32, #tpu.memory_space<vmem>>, vector<1x1x128xf32>
    %56 = vector.shape_cast %55 : vector<1x1x128xf32> to vector<1x128xf32>
    %57 = vector.shape_cast %54 : vector<1x128xf32> to vector<1x1x128xf32>
    tpu.vector_store %arg3[%c0_54, %c0_55, %c0_56], %57 {strides = array<i32>} : memref<1x2x128xf32, #tpu.memory_space<vmem>>, vector<1x1x128xf32>,
    %58 = arith.mulf %52, %52 : vector<256x128xf32>
    %cst_57 = arith.constant dense<0.000000e+00> : vector<128xf32>
    %59 = vector.multi_reduction <add>, %58, %cst_57 [0] : vector<256x128xf32> to vector<128xf32>
    %60 = vector.shape_cast %59 : vector<128xf32> to vector<1x128xf32>
    %c0_58 = arith.constant 0 : index
    %c1_59 = arith.constant 1 : index
    %c0_60 = arith.constant 0 : index
    %61 = vector.load %arg3[%c0_58, %c1_59, %c0_60] : memref<1x2x128xf32, #tpu.memory_space<vmem>>, vector<1x1x128xf32>
    %62 = vector.shape_cast %61 : vector<1x1x128xf32> to vector<1x128xf32>
    %63 = vector.shape_cast %60 : vector<1x128xf32> to vector<1x1x128xf32>
    tpu.vector_store %arg3[%c0_58, %c1_59, %c0_60], %63 {strides = array<i32>} : memref<1x2x128xf32, #tpu.memory_space<vmem>>, vector<1x1x128xf32>,
    return
  }
  func.func @transform_0(%arg0: i32) -> (i32, i32, i32) {
    %c0_i32 = arith.constant 0 : i32
    %c0_i32_0 = arith.constant 0 : i32
    %c0_i32_1 = arith.constant 0 : i32
    return %arg0, %c0_i32, %c0_i32_0 : i32, i32, i32
  }
  func.func @transform_1(%arg0: i32) -> (i32, i32, i32) {
    %c0_i32 = arith.constant 0 : i32
    %c0_i32_0 = arith.constant 0 : i32
    %c0_i32_1 = arith.constant 0 : i32
    %c0_i32_2 = arith.constant 0 : i32
    return %c0_i32, %c0_i32_0, %c0_i32_1 : i32, i32, i32
  }
  func.func @transform_2(%arg0: i32) -> (i32, i32, i32) {
    %c0_i32 = arith.constant 0 : i32
    %c0_i32_0 = arith.constant 0 : i32
    %c0_i32_1 = arith.constant 0 : i32
    return %arg0, %c0_i32, %c0_i32_0 : i32, i32, i32
  }
}

module attributes {stable_mosaic.version = 11 : i64} {
  func.func @_conv_norm_relu_kernel(%arg0: i32, %arg1: memref<18x18x4xf32, #tpu.memory_space<vmem>>, %arg2: memref<9x4x128xf32, #tpu.memory_space<vmem>>, %arg3: memref<1x128xf32, #tpu.memory_space<vmem>>, %arg4: memref<1x128xf32, #tpu.memory_space<vmem>>, %arg5: memref<1x8x256xf32, #tpu.memory_space<vmem>>) attributes {dimension_semantics = [#tpu.dimension_semantics<parallel>], iteration_bounds = array<i64: 2>, scalar_prefetch = 0 : i64, scratch_operands = 0 : i64, tpu.core_type = #tpu.core_type<tc>, window_params = [{transform_indices = @transform_0, window_bounds = array<i64: 18, 18, 4>}, {pipeline_mode = #tpu.pipeline_mode<synchronous>, transform_indices = @transform_1, window_bounds = array<i64: 9, 4, 128>}, {pipeline_mode = #tpu.pipeline_mode<synchronous>, transform_indices = @transform_2, window_bounds = array<i64: 1, 128>}, {pipeline_mode = #tpu.pipeline_mode<synchronous>, transform_indices = @transform_3, window_bounds = array<i64: 1, 128>}, {transform_indices = @transform_4, window_bounds = array<i64: 1, 8, 256>}]} {
    %c0 = arith.constant 0 : index
    %c0_0 = arith.constant 0 : index
    %c0_1 = arith.constant 0 : index
    %0 = vector.load %arg1[%c0, %c0_0, %c0_1] : memref<18x18x4xf32, #tpu.memory_space<vmem>>, vector<16x16x4xf32>
    %1 = vector.shape_cast %0 : vector<16x16x4xf32> to vector<256x4xf32>
    %c0_2 = arith.constant 0 : index
    %c0_3 = arith.constant 0 : index
    %c0_4 = arith.constant 0 : index
    %2 = vector.load %arg2[%c0_2, %c0_3, %c0_4] : memref<9x4x128xf32, #tpu.memory_space<vmem>>, vector<1x4x128xf32>
    %3 = vector.shape_cast %2 : vector<1x4x128xf32> to vector<4x128xf32>
    %cst = arith.constant dense<0.000000e+00> : vector<256x128xf32>
    %4 = tpu.matmul %1, %3, %cst {dimension_numbers = #tpu.dot_dimension_numbers<[1], [0], [0], [1], [0, 0, 1, 1], [], []>} : vector<256x4xf32>, vector<4x128xf32>, vector<256x128xf32> -> vector<256x128xf32>
    %c0_5 = arith.constant 0 : index
    %c1 = arith.constant 1 : index
    %c0_6 = arith.constant 0 : index
    %5 = vector.load %arg1[%c0_5, %c1, %c0_6] : memref<18x18x4xf32, #tpu.memory_space<vmem>>, vector<16x16x4xf32>
    %6 = vector.shape_cast %5 : vector<16x16x4xf32> to vector<256x4xf32>
    %c1_7 = arith.constant 1 : index
    %c0_8 = arith.constant 0 : index
    %c0_9 = arith.constant 0 : index
    %7 = vector.load %arg2[%c1_7, %c0_8, %c0_9] : memref<9x4x128xf32, #tpu.memory_space<vmem>>, vector<1x4x128xf32>
    %8 = vector.shape_cast %7 : vector<1x4x128xf32> to vector<4x128xf32>
    %cst_10 = arith.constant dense<0.000000e+00> : vector<256x128xf32>
    %9 = tpu.matmul %6, %8, %cst_10 {dimension_numbers = #tpu.dot_dimension_numbers<[1], [0], [0], [1], [0, 0, 1, 1], [], []>} : vector<256x4xf32>, vector<4x128xf32>, vector<256x128xf32> -> vector<256x128xf32>
    %10 = arith.addf %4, %9 : vector<256x128xf32>
    %c0_11 = arith.constant 0 : index
    %c2 = arith.constant 2 : index
    %c0_12 = arith.constant 0 : index
    %11 = vector.load %arg1[%c0_11, %c2, %c0_12] : memref<18x18x4xf32, #tpu.memory_space<vmem>>, vector<16x16x4xf32>
    %12 = vector.shape_cast %11 : vector<16x16x4xf32> to vector<256x4xf32>
    %c2_13 = arith.constant 2 : index
    %c0_14 = arith.constant 0 : index
    %c0_15 = arith.constant 0 : index
    %13 = vector.load %arg2[%c2_13, %c0_14, %c0_15] : memref<9x4x128xf32, #tpu.memory_space<vmem>>, vector<1x4x128xf32>
    %14 = vector.shape_cast %13 : vector<1x4x128xf32> to vector<4x128xf32>
    %cst_16 = arith.constant dense<0.000000e+00> : vector<256x128xf32>
    %15 = tpu.matmul %12, %14, %cst_16 {dimension_numbers = #tpu.dot_dimension_numbers<[1], [0], [0], [1], [0, 0, 1, 1], [], []>} : vector<256x4xf32>, vector<4x128xf32>, vector<256x128xf32> -> vector<256x128xf32>
    %16 = arith.addf %10, %15 : vector<256x128xf32>
    %c1_17 = arith.constant 1 : index
    %c0_18 = arith.constant 0 : index
    %c0_19 = arith.constant 0 : index
    %17 = vector.load %arg1[%c1_17, %c0_18, %c0_19] : memref<18x18x4xf32, #tpu.memory_space<vmem>>, vector<16x16x4xf32>
    %18 = vector.shape_cast %17 : vector<16x16x4xf32> to vector<256x4xf32>
    %c3 = arith.constant 3 : index
    %c0_20 = arith.constant 0 : index
    %c0_21 = arith.constant 0 : index
    %19 = vector.load %arg2[%c3, %c0_20, %c0_21] : memref<9x4x128xf32, #tpu.memory_space<vmem>>, vector<1x4x128xf32>
    %20 = vector.shape_cast %19 : vector<1x4x128xf32> to vector<4x128xf32>
    %cst_22 = arith.constant dense<0.000000e+00> : vector<256x128xf32>
    %21 = tpu.matmul %18, %20, %cst_22 {dimension_numbers = #tpu.dot_dimension_numbers<[1], [0], [0], [1], [0, 0, 1, 1], [], []>} : vector<256x4xf32>, vector<4x128xf32>, vector<256x128xf32> -> vector<256x128xf32>
    %22 = arith.addf %16, %21 : vector<256x128xf32>
    %c1_23 = arith.constant 1 : index
    %c1_24 = arith.constant 1 : index
    %c0_25 = arith.constant 0 : index
    %23 = vector.load %arg1[%c1_23, %c1_24, %c0_25] : memref<18x18x4xf32, #tpu.memory_space<vmem>>, vector<16x16x4xf32>
    %24 = vector.shape_cast %23 : vector<16x16x4xf32> to vector<256x4xf32>
    %c4 = arith.constant 4 : index
    %c0_26 = arith.constant 0 : index
    %c0_27 = arith.constant 0 : index
    %25 = vector.load %arg2[%c4, %c0_26, %c0_27] : memref<9x4x128xf32, #tpu.memory_space<vmem>>, vector<1x4x128xf32>
    %26 = vector.shape_cast %25 : vector<1x4x128xf32> to vector<4x128xf32>
    %cst_28 = arith.constant dense<0.000000e+00> : vector<256x128xf32>
    %27 = tpu.matmul %24, %26, %cst_28 {dimension_numbers = #tpu.dot_dimension_numbers<[1], [0], [0], [1], [0, 0, 1, 1], [], []>} : vector<256x4xf32>, vector<4x128xf32>, vector<256x128xf32> -> vector<256x128xf32>
    %28 = arith.addf %22, %27 : vector<256x128xf32>
    %c1_29 = arith.constant 1 : index
    %c2_30 = arith.constant 2 : index
    %c0_31 = arith.constant 0 : index
    %29 = vector.load %arg1[%c1_29, %c2_30, %c0_31] : memref<18x18x4xf32, #tpu.memory_space<vmem>>, vector<16x16x4xf32>
    %30 = vector.shape_cast %29 : vector<16x16x4xf32> to vector<256x4xf32>
    %c5 = arith.constant 5 : index
    %c0_32 = arith.constant 0 : index
    %c0_33 = arith.constant 0 : index
    %31 = vector.load %arg2[%c5, %c0_32, %c0_33] : memref<9x4x128xf32, #tpu.memory_space<vmem>>, vector<1x4x128xf32>
    %32 = vector.shape_cast %31 : vector<1x4x128xf32> to vector<4x128xf32>
    %cst_34 = arith.constant dense<0.000000e+00> : vector<256x128xf32>
    %33 = tpu.matmul %30, %32, %cst_34 {dimension_numbers = #tpu.dot_dimension_numbers<[1], [0], [0], [1], [0, 0, 1, 1], [], []>} : vector<256x4xf32>, vector<4x128xf32>, vector<256x128xf32> -> vector<256x128xf32>
    %34 = arith.addf %28, %33 : vector<256x128xf32>
    %c2_35 = arith.constant 2 : index
    %c0_36 = arith.constant 0 : index
    %c0_37 = arith.constant 0 : index
    %35 = vector.load %arg1[%c2_35, %c0_36, %c0_37] : memref<18x18x4xf32, #tpu.memory_space<vmem>>, vector<16x16x4xf32>
    %36 = vector.shape_cast %35 : vector<16x16x4xf32> to vector<256x4xf32>
    %c6 = arith.constant 6 : index
    %c0_38 = arith.constant 0 : index
    %c0_39 = arith.constant 0 : index
    %37 = vector.load %arg2[%c6, %c0_38, %c0_39] : memref<9x4x128xf32, #tpu.memory_space<vmem>>, vector<1x4x128xf32>
    %38 = vector.shape_cast %37 : vector<1x4x128xf32> to vector<4x128xf32>
    %cst_40 = arith.constant dense<0.000000e+00> : vector<256x128xf32>
    %39 = tpu.matmul %36, %38, %cst_40 {dimension_numbers = #tpu.dot_dimension_numbers<[1], [0], [0], [1], [0, 0, 1, 1], [], []>} : vector<256x4xf32>, vector<4x128xf32>, vector<256x128xf32> -> vector<256x128xf32>
    %40 = arith.addf %34, %39 : vector<256x128xf32>
    %c2_41 = arith.constant 2 : index
    %c1_42 = arith.constant 1 : index
    %c0_43 = arith.constant 0 : index
    %41 = vector.load %arg1[%c2_41, %c1_42, %c0_43] : memref<18x18x4xf32, #tpu.memory_space<vmem>>, vector<16x16x4xf32>
    %42 = vector.shape_cast %41 : vector<16x16x4xf32> to vector<256x4xf32>
    %c7 = arith.constant 7 : index
    %c0_44 = arith.constant 0 : index
    %c0_45 = arith.constant 0 : index
    %43 = vector.load %arg2[%c7, %c0_44, %c0_45] : memref<9x4x128xf32, #tpu.memory_space<vmem>>, vector<1x4x128xf32>
    %44 = vector.shape_cast %43 : vector<1x4x128xf32> to vector<4x128xf32>
    %cst_46 = arith.constant dense<0.000000e+00> : vector<256x128xf32>
    %45 = tpu.matmul %42, %44, %cst_46 {dimension_numbers = #tpu.dot_dimension_numbers<[1], [0], [0], [1], [0, 0, 1, 1], [], []>} : vector<256x4xf32>, vector<4x128xf32>, vector<256x128xf32> -> vector<256x128xf32>
    %46 = arith.addf %40, %45 : vector<256x128xf32>
    %c2_47 = arith.constant 2 : index
    %c2_48 = arith.constant 2 : index
    %c0_49 = arith.constant 0 : index
    %47 = vector.load %arg1[%c2_47, %c2_48, %c0_49] : memref<18x18x4xf32, #tpu.memory_space<vmem>>, vector<16x16x4xf32>
    %48 = vector.shape_cast %47 : vector<16x16x4xf32> to vector<256x4xf32>
    %c8 = arith.constant 8 : index
    %c0_50 = arith.constant 0 : index
    %c0_51 = arith.constant 0 : index
    %49 = vector.load %arg2[%c8, %c0_50, %c0_51] : memref<9x4x128xf32, #tpu.memory_space<vmem>>, vector<1x4x128xf32>
    %50 = vector.shape_cast %49 : vector<1x4x128xf32> to vector<4x128xf32>
    %cst_52 = arith.constant dense<0.000000e+00> : vector<256x128xf32>
    %51 = tpu.matmul %48, %50, %cst_52 {dimension_numbers = #tpu.dot_dimension_numbers<[1], [0], [0], [1], [0, 0, 1, 1], [], []>} : vector<256x4xf32>, vector<4x128xf32>, vector<256x128xf32> -> vector<256x128xf32>
    %52 = arith.addf %46, %51 : vector<256x128xf32>
    %c0_53 = arith.constant 0 : index
    %c0_54 = arith.constant 0 : index
    %53 = vector.load %arg3[%c0_53, %c0_54] : memref<1x128xf32, #tpu.memory_space<vmem>>, vector<1x128xf32>
    %54 = vector.broadcast %53 : vector<1x128xf32> to vector<256x128xf32>
    %55 = arith.mulf %52, %54 : vector<256x128xf32>
    %c0_55 = arith.constant 0 : index
    %c0_56 = arith.constant 0 : index
    %56 = vector.load %arg4[%c0_55, %c0_56] : memref<1x128xf32, #tpu.memory_space<vmem>>, vector<1x128xf32>
    %57 = vector.broadcast %56 : vector<1x128xf32> to vector<256x128xf32>
    %58 = arith.addf %55, %57 : vector<256x128xf32>
    %cst_57 = arith.constant 0.000000e+00 : f32
    %59 = vector.broadcast %cst_57 : f32 to vector<256x128xf32>
    %60 = arith.maximumf %58, %59 : vector<256x128xf32>
    %61 = tpu.transpose %60, [1, 0] : vector<256x128xf32> -> vector<128x256xf32>
    %62 = vector.extract_strided_slice %61 {offsets = [0, 0], sizes = [8, 256], strides = [1, 1]} : vector<128x256xf32> to vector<8x256xf32>
    %c0_58 = arith.constant 0 : index
    %c0_59 = arith.constant 0 : index
    %c0_60 = arith.constant 0 : index
    %63 = vector.load %arg5[%c0_58, %c0_59, %c0_60] : memref<1x8x256xf32, #tpu.memory_space<vmem>>, vector<1x8x256xf32>
    %64 = vector.shape_cast %63 : vector<1x8x256xf32> to vector<8x256xf32>
    %65 = vector.shape_cast %62 : vector<8x256xf32> to vector<1x8x256xf32>
    tpu.vector_store %arg5[%c0_58, %c0_59, %c0_60], %65 {strides = array<i32>} : memref<1x8x256xf32, #tpu.memory_space<vmem>>, vector<1x8x256xf32>,
    return
  }
  func.func @transform_0(%arg0: i32) -> (i32, i32, i32) {
    %c0_i32 = arith.constant 0 : i32
    %c0_i32_0 = arith.constant 0 : i32
    %c0_i32_1 = arith.constant 0 : i32
    return %arg0, %c0_i32, %c0_i32_0 : i32, i32, i32
  }
  func.func @transform_1(%arg0: i32) -> (i32, i32, i32) {
    %c0_i32 = arith.constant 0 : i32
    %c0_i32_0 = arith.constant 0 : i32
    %c0_i32_1 = arith.constant 0 : i32
    %c0_i32_2 = arith.constant 0 : i32
    return %c0_i32, %c0_i32_0, %c0_i32_1 : i32, i32, i32
  }
  func.func @transform_2(%arg0: i32) -> (i32, i32) {
    %c0_i32 = arith.constant 0 : i32
    %c0_i32_0 = arith.constant 0 : i32
    %c0_i32_1 = arith.constant 0 : i32
    return %c0_i32, %c0_i32_0 : i32, i32
  }
  func.func @transform_3(%arg0: i32) -> (i32, i32) {
    %c0_i32 = arith.constant 0 : i32
    %c0_i32_0 = arith.constant 0 : i32
    %c0_i32_1 = arith.constant 0 : i32
    return %c0_i32, %c0_i32_0 : i32, i32
  }
  func.func @transform_4(%arg0: i32) -> (i32, i32, i32) {
    %c0_i32 = arith.constant 0 : i32
    %c0_i32_0 = arith.constant 0 : i32
    %c0_i32_1 = arith.constant 0 : i32
    return %arg0, %c0_i32, %c0_i32_0 : i32, i32, i32
  }
}

</mosaic_0001>

<llo_original>
// kernel: new_conv_layer.2
$region0: #{new_conv_layer.2}
  #allocation0 [shape = 'u32[]', space=smem, size = 0x4, offset = 0x4, fixed_abs, tag = 'smem constant byte address 0x4 - core index']
  #allocation1 [shape = 'u32[144,128]{1,0:T(1,128)}', space=vmem, size = 0x12000, scoped, tag = 'internal scratch']
  %s0 = inlined_call_operand.vmem [shape: f32[36,18,4], index: 0, kind: input, shape index: {}]
  %s1 = inlined_call_operand.vmem [shape: f32[9,4,128], index: 1, kind: input, shape index: {}]
  %s2 = inlined_call_operand.vmem [shape: f32[2,2,128], index: 2, kind: output, shape index: {}]
  %s3 = sld [smem:[#allocation0]]
  $region41: #{new_conv_layer.2} parent=0
    _
  %s5 = ssub.s32 1, %s3
  %s6 = scalar_select 0, %s5, %s3
  loop: start=0, step=1, limit=4
  $region2: #{new_conv_layer.2} parent=0 // loop_pre_header
    _
  $region3: #{new_conv_layer.2} parent=0 // loop_header
    %s8 = sphi 0, %s12
    %p9 = scmp.ge.s32.totalorder %s8, 4
    %s18 = sphi 0, %s20
    %s21 = sphi 0, %s18
    %s22 = sphi 0, %s21
    %s38 = sphi 0, %s22
    %s42 = sphi 0, %s42
    %s44 = sphi 0, %s42
    %s45 = sphi 0, %s44
    %s59 = sphi 0, %s45
    %s65 = sphi 0, %s67
    %s68 = sphi 0, %s65
    %s69 = sphi 0, %s68
    %s85 = sphi 0, %s69
  $region4: #{new_conv_layer.2} parent=0 // loop_header_branch
    %11 = sbr.rel (%p9) target = $region8
  $region5: #{new_conv_layer.2} parent=0 // loop_body
    %s13 = ssub.s32 %s8, 1
    %s14 = ssub.s32 %s8, 2
    %s15 = sadd.s32 %s8, 1
    %s16 = ssub.s32 %s8, %s15
    %p17 = scmp.eq.s32.totalorder %s16, 0
    %s19 = sadd.s32 %s18, 1
    %s20 = scalar_select %p17, %s18, %s19
    %p23 = pneg %p17
    %p24 = scmp.eq.s32.totalorder %s8, 1
    %p25 = por %p23, %p24
    %p26 = scmp.ne.s32.totalorder %s18, %s21
    %p27 = scmp.eq.s32.totalorder %s8, 0
    %p28 = por %p26, %p27
    %p29 = scmp.ne.s32.totalorder %s18, %s21
    %p30 = scmp.eq.s32.totalorder %s13, 1
    %p31 = por %p29, %p30
    %p32 = scmp.ne.s32.totalorder %s21, %s22
    %p33 = scmp.eq.s32.totalorder %s13, 0
    %p34 = por %p32, %p33
    %p35 = scmp.ne.s32.totalorder %s21, %s22
    %p36 = scmp.eq.s32.totalorder %s14, 1
    %p37 = por %p35, %p36
    %p39 = scmp.ne.s32.totalorder %s22, %s38
    %p40 = scmp.eq.s32.totalorder %s14, 0
    %p41 = por %p39, %p40
    %s43 = sadd.s32 %s42, 1
    %p46 = scmp.eq.s32.totalorder %s8, 1
    %p47 = scmp.ne.s32.totalorder %s42, %s44
    %p48 = scmp.eq.s32.totalorder %s8, 0
    %p49 = por %p47, %p48
    %p50 = scmp.ne.s32.totalorder %s42, %s44
    %p51 = scmp.eq.s32.totalorder %s13, 1
    %p52 = por %p50, %p51
    %p53 = scmp.ne.s32.totalorder %s44, %s45
    %p54 = scmp.eq.s32.totalorder %s13, 0
    %p55 = por %p53, %p54
    %p56 = scmp.ne.s32.totalorder %s44, %s45
    %p57 = scmp.eq.s32.totalorder %s14, 1
    %p58 = por %p56, %p57
    %p60 = scmp.ne.s32.totalorder %s45, %s59
    %p61 = scmp.eq.s32.totalorder %s14, 0
    %p62 = por %p60, %p61
    %s63 = ssub.s32 %s8, %s15
    %p64 = scmp.eq.s32.totalorder %s63, 0
    %s66 = sadd.s32 %s65, 1
    %s67 = scalar_select %p64, %s65, %s66
    %p70 = pneg %p64
    %p71 = scmp.eq.s32.totalorder %s8, 1
    %p72 = por %p70, %p71
    %p73 = scmp.ne.s32.totalorder %s65, %s68
    %p74 = scmp.eq.s32.totalorder %s8, 0
    %p75 = por %p73, %p74
    %p76 = scmp.ne.s32.totalorder %s65, %s68
    %p77 = scmp.eq.s32.totalorder %s13, 1
    %p78 = por %p76, %p77
    %p79 = scmp.ne.s32.totalorder %s68, %s69
    %p80 = scmp.eq.s32.totalorder %s13, 0
    %p81 = por %p79, %p80
    %p82 = scmp.ne.s32.totalorder %s68, %s69
    %p83 = scmp.eq.s32.totalorder %s14, 1
    %p84 = por %p82, %p83
    %p86 = scmp.ne.s32.totalorder %s69, %s85
    %p87 = scmp.eq.s32.totalorder %s14, 0
    %p88 = por %p86, %p87
    %p89 = scmp.le.s32.totalorder 1, %s8
    %p90 = scmp.lt.s32.totalorder %s8, 3
    %p91 = pnand %p89, %p90
    %p92 = pneg %p91
    // Predicated region
    $region9: #{new_conv_layer.2} parent=5 // pred_check
      _
    $region10: #{new_conv_layer.2} parent=5 // pred_check_branch
      %94 = sbr.rel (%p91) target = $region12
    $region11: #{new_conv_layer.2} parent=5 // pred_region
      %s95 = ssub.s32 %s8, 1
      // Predicated region
      $region13: #{new_conv_layer.2} parent=11 // pred_check
        %p96 = pneg %p55
      $region14: #{new_conv_layer.2} parent=11 // pred_check_branch
        %98 = sbr.rel (%p96) target = $region16
      $region15: #{new_conv_layer.2} parent=11 // pred_region
        _
      $region16: #{new_conv_layer.2} parent=11 // pred_fallthru
        _
    $region12: #{new_conv_layer.2} parent=5 // pred_fallthru
      _
    %p99 = scmp.lt.s32.totalorder %s8, 2
    // Predicated region
    $region17: #{new_conv_layer.2} parent=5 // pred_check
      %p100 = pneg %p99
    $region18: #{new_conv_layer.2} parent=5 // pred_check_branch
      %102 = sbr.rel (%p100) target = $region20
    $region19: #{new_conv_layer.2} parent=5 // pred_region
      // Predicated region
      $region21: #{new_conv_layer.2} parent=19 // pred_check
        %p103 = pneg %p28
      $region22: #{new_conv_layer.2} parent=19 // pred_check_branch
        %105 = sbr.rel (%p103) target = $region24
      $region23: #{new_conv_layer.2} parent=19 // pred_region
        %s106 = smul.u32 18, %s8
        %p107 = scmp.lt.s32.totalorder %s106, 35
        %s108 = scalar_select %p107, %s106, 35
        %s109 = smul.addr %s108, 3
        %s110 = smul.addr %s109, 8
        %s111 = scalar_lea.vmem %s0, %s110
        %s112 = smul.u32 18, %s8
      $region24: #{new_conv_layer.2} parent=19 // pred_fallthru
        _
    $region20: #{new_conv_layer.2} parent=5 // pred_fallthru
      _
    %p113 = scmp.le.s32.totalorder 1, %s8
    %p114 = scmp.lt.s32.totalorder %s8, 3
    %p115 = pnand %p113, %p114
    %p116 = pneg %p115
    // Predicated region
    $region25: #{new_conv_layer.2} parent=5 // pred_check
      _
    $region26: #{new_conv_layer.2} parent=5 // pred_check_branch
      %118 = sbr.rel (%p115) target = $region28
    $region27: #{new_conv_layer.2} parent=5 // pred_region
      %s119 = ssub.s32 %s8, 1
      %s120 = smul.u32 18, %s13
      %p121 = scmp.lt.s32.totalorder %s120, 35
      %s122 = scalar_select %p121, %s120, 35
      %s123 = smul.addr %s122, 3
      %s124 = smul.addr %s123, 8
      %s125 = scalar_lea.vmem %s0, %s124
      %p126 = pneg %p34
      %p127 = pneg %p31
      %p128 = pneg %p55
      %p129 = pneg %p52
      %p130 = pneg %p81
      %p131 = pneg %p78
      %p132 = scmp.lt.s32.totalorder %s13, 1
      %s133 = scalar_select %p132, %s13, 1
      %s134 = smul.addr %s133, 2
      %s135 = scalar_lea.vmem %s2, %s134
      %s136 = smul.u32 18, %s13
      %p137 = scmp.lt.s32.totalorder %s136, 35
      %s138 = scalar_select %p137, %s136, 35
      %s139 = smul.addr %s138, 3
      %s140 = smul.addr %s139, 8
      %s141 = scalar_lea.vmem %s0, %s140
      %s142 = smul.u32 18, %s13
      %p143 = scmp.lt.s32.totalorder %s13, 1
      %s144 = scalar_select %p143, %s13, 1
      %s145 = smul.addr %s144, 2
      %s146 = scalar_lea.vmem %s2, %s145
      %v147 = vld [vmem:[%s141] sm:$0xff]
      %v148 = vld [vmem:[%s141 + $0x8] sm:$0xff]
      %v149 = vld [vmem:[%s141 + $0x18] sm:$0xff]
      %v150 = vld [vmem:[%s141 + $0x20] sm:$0xff]
      %v151 = vld [vmem:[%s141 + $0x30] sm:$0xff]
      %v152 = vld [vmem:[%s141 + $0x38] sm:$0xff]
      %v153 = vld [vmem:[%s141 + $0x48] sm:$0xff]
      %v154 = vld [vmem:[%s141 + $0x50] sm:$0xff]
      %v155 = vld [vmem:[%s141 + $0x60] sm:$0xff]
      %v156 = vld [vmem:[%s141 + $0x68] sm:$0xff]
      %v157 = vld [vmem:[%s141 + $0x78] sm:$0xff]
      %v158 = vld [vmem:[%s141 + $0x80] sm:$0xff]
      %v159 = vld [vmem:[%s141 + $0x90] sm:$0xff]
      %v160 = vld [vmem:[%s141 + $0x98] sm:$0xff]
      %v161 = vld [vmem:[%s141 + $0xa8] sm:$0xff]
      %v162 = vld [vmem:[%s141 + $0xb0] sm:$0xff]
      %v163 = vld [vmem:[%s141 + $0xc0] sm:$0xff]
      %v164 = vld [vmem:[%s141 + $0xc8] sm:$0xff]
      %v165 = vld [vmem:[%s141 + $0xd8] sm:$0xff]
      %v166 = vld [vmem:[%s141 + $0xe0] sm:$0xff]
      %v167 = vld [vmem:[%s141 + $0xf0] sm:$0xff]
      %v168 = vld [vmem:[%s141 + $0xf8] sm:$0xff]
      %v169 = vld [vmem:[%s141 + $0x108] sm:$0xff]
      %v170 = vld [vmem:[%s141 + $0x110] sm:$0xff]
      %v171 = vld [vmem:[%s141 + $0x120] sm:$0xff]
      %v172 = vld [vmem:[%s141 + $0x128] sm:$0xff]
      %v173 = vld [vmem:[%s141 + $0x138] sm:$0xff]
      %v174 = vld [vmem:[%s141 + $0x140] sm:$0xff]
      %v175 = vld [vmem:[%s141 + $0x150] sm:$0xff]
      %v176 = vld [vmem:[%s141 + $0x158] sm:$0xff]
      %v177 = vld [vmem:[%s141 + $0x168] sm:$0xff]
      %v178 = vld [vmem:[%s141 + $0x170] sm:$0xff]
      %v179 = vld [vmem:[%s1] sm:$0xf]
      %v180 = vld [vmem:[%s141 + $0x1] sm:$0xff]
      %v181 = vld [vmem:[%s141 + $0x9] sm:$0xff]
      %v182 = vld [vmem:[%s141 + $0x19] sm:$0xff]
      %v183 = vld [vmem:[%s141 + $0x21] sm:$0xff]
      %v184 = vld [vmem:[%s141 + $0x31] sm:$0xff]
      %v185 = vld [vmem:[%s141 + $0x39] sm:$0xff]
      %v186 = vld [vmem:[%s141 + $0x49] sm:$0xff]
      %v187 = vld [vmem:[%s141 + $0x51] sm:$0xff]
      %v188 = vld [vmem:[%s141 + $0x61] sm:$0xff]
      %v189 = vld [vmem:[%s141 + $0x69] sm:$0xff]
      %v190 = vld [vmem:[%s141 + $0x79] sm:$0xff]
      %v191 = vld [vmem:[%s141 + $0x81] sm:$0xff]
      %v192 = vld [vmem:[%s141 + $0x91] sm:$0xff]
      %v193 = vld [vmem:[%s141 + $0x99] sm:$0xff]
      %v194 = vld [vmem:[%s141 + $0xa9] sm:$0xff]
      %v195 = vld [vmem:[%s141 + $0xb1] sm:$0xff]
      %v196 = vld [vmem:[%s141 + $0xc1] sm:$0xff]
      %v197 = vld [vmem:[%s141 + $0xc9] sm:$0xff]
      %v198 = vld [vmem:[%s141 + $0xd9] sm:$0xff]
      %v199 = vld [vmem:[%s141 + $0xe1] sm:$0xff]
      %v200 = vld [vmem:[%s141 + $0xf1] sm:$0xff]
      %v201 = vld [vmem:[%s141 + $0xf9] sm:$0xff]
      %v202 = vld [vmem:[%s141 + $0x109] sm:$0xff]
      %v203 = vld [vmem:[%s141 + $0x111] sm:$0xff]
      %v204 = vld [vmem:[%s141 + $0x121] sm:$0xff]
      %v205 = vld [vmem:[%s141 + $0x129] sm:$0xff]
      %v206 = vld [vmem:[%s141 + $0x139] sm:$0xff]
      %v207 = vld [vmem:[%s141 + $0x141] sm:$0xff]
      %v208 = vld [vmem:[%s141 + $0x151] sm:$0xff]
      %v209 = vld [vmem:[%s141 + $0x159] sm:$0xff]
      %v210 = vld [vmem:[%s141 + $0x169] sm:$0xff]
      %v211 = vld [vmem:[%s141 + $0x171] sm:$0xff]
      %s212 = scalar_lea.vmem %s1, 4
      %v213 = vld [vmem:[%s212] sm:$0xf]
      %vm214 = vcmask 31744
      %v216 = vsel %vm214, %v180, 0
      %v219 = vsel %vm214, %v181, 0
      %v222 = vsel %vm214, %v182, 0
      %v225 = vsel %vm214, %v183, 0
      %v228 = vsel %vm214, %v184, 0
      %v231 = vsel %vm214, %v185, 0
      %v234 = vsel %vm214, %v186, 0
      %v237 = vsel %vm214, %v187, 0
      %v240 = vsel %vm214, %v188, 0
      %v243 = vsel %vm214, %v189, 0
      %v246 = vsel %vm214, %v190, 0
      %v249 = vsel %vm214, %v191, 0
      %v252 = vsel %vm214, %v192, 0
      %v255 = vsel %vm214, %v193, 0
      %v258 = vsel %vm214, %v194, 0
      %v261 = vsel %vm214, %v195, 0
      %v264 = vsel %vm214, %v196, 0
      %v267 = vsel %vm214, %v197, 0
      %v270 = vsel %vm214, %v198, 0
      %v273 = vsel %vm214, %v199, 0
      %v276 = vsel %vm214, %v200, 0
      %v279 = vsel %vm214, %v201, 0
      %v282 = vsel %vm214, %v202, 0
      %v285 = vsel %vm214, %v203, 0
      %v288 = vsel %vm214, %v204, 0
      %v291 = vsel %vm214, %v205, 0
      %v294 = vsel %vm214, %v206, 0
      %v297 = vsel %vm214, %v207, 0
      %v300 = vsel %vm214, %v208, 0
      %v303 = vsel %vm214, %v209, 0
      %v306 = vsel %vm214, %v210, 0
      %v309 = vsel %vm214, %v211, 0
      %vm311 = vcmask 1043456
      %v313 = vsel %vm311, %v213, 0
      %315 = vmatprep.subr.mxu0 0.0
      %316 = vmatpush1.msra.mxu0 0.0
      %317 = vmatprep.subr.mxu0 0.0
      %318 = vmatpush1.msra.mxu0 0.0
      %319 = vmatprep.subr.mxu0 0.0
      %320 = vmatpush1.msra.mxu0 0.0
      %321 = vmatprep.subr.mxu0 0.0
      %322 = vmatpush1.msra.mxu0 0.0
      %323 = vmatprep.subr.mxu0 0.0
      %324 = vmatpush1.msra.mxu0 0.0
      %325 = vmatprep.subr.mxu0 0.0
      %326 = vmatpush1.msra.mxu0 0.0
      %327 = vmatprep.subr.mxu0 0.0
      %328 = vmatpush1.msra.mxu0 0.0
      %329 = vmatprep.subr.mxu0 0.0
      %330 = vmatpush1.msra.mxu0 0.0
      %331 = vmatprep.subr.mxu0 0.0
      %332 = vmatpush1.msra.mxu0 0.0
      %333 = vmatprep.subr.mxu0 0.0
      %334 = vmatpush1.msra.mxu0 0.0
      %335 = vmatprep.subr.mxu0 0.0
      %336 = vmatpush1.msra.mxu0 0.0
      %337 = vmatprep.subr.mxu0 0.0
      %338 = vmatpush1.msra.mxu0 0.0
      %339 = vmatprep.subr.mxu0 0.0
      %340 = vmatpush1.msra.mxu0 0.0
      %341 = vmatprep.subr.mxu0 0.0
      %342 = vmatpush1.msra.mxu0 0.0
      %343 = vmatprep.subr.mxu0 0.0
      %344 = vmatpush1.msra.mxu0 0.0
      %345 = vmatprep.subr.mxu0 0.0
      %346 = vmatpush1.msra.mxu0 %v313
      %347 = vmatprep.subr.mxu0 0.0
      %348 = vmatpush2.msra.mxu0 0.0
      %349 = vmatprep.subr.mxu0 0.0
      %350 = vmatpush2.msra.mxu0 0.0
      %351 = vmatprep.subr.mxu0 0.0
      %352 = vmatpush2.msra.mxu0 0.0
      %353 = vmatprep.subr.mxu0 0.0
      %354 = vmatpush2.msra.mxu0 0.0
      %355 = vmatprep.subr.mxu0 0.0
      %356 = vmatpush2.msra.mxu0 0.0
      %357 = vmatprep.subr.mxu0 0.0
      %358 = vmatpush2.msra.mxu0 0.0
      %359 = vmatprep.subr.mxu0 0.0
      %360 = vmatpush2.msra.mxu0 0.0
      %361 = vmatprep.subr.mxu0 0.0
      %362 = vmatpush2.msra.mxu0 0.0
      %363 = vmatprep.subr.mxu0 0.0
      %364 = vmatpush2.msra.mxu0 0.0
      %365 = vmatprep.subr.mxu0 0.0
      %366 = vmatpush2.msra.mxu0 0.0
      %367 = vmatprep.subr.mxu0 0.0
      %368 = vmatpush2.msra.mxu0 0.0
      %369 = vmatprep.subr.mxu0 0.0
      %370 = vmatpush2.msra.mxu0 0.0
      %371 = vmatprep.subr.mxu0 0.0
      %372 = vmatpush2.msra.mxu0 0.0
      %373 = vmatprep.subr.mxu0 0.0
      %374 = vmatpush2.msra.mxu0 0.0
      %375 = vmatprep.subr.mxu0 0.0
      %376 = vmatpush2.msra.mxu0 0.0
      %377 = vmatprep.subr.mxu0 0.0
      %378 = vmatpush2.msra.mxu0 0.0
      %379 = vmatprep.mubr.f32.mxu0 0.0
      %380 = vmatmul.mubr.f32.gmra.mxu0 %v216
      %v381 = vpop.f32.mrf.mxu0
      %v382 = vadd.f32 0.0, %v381
      %v383 = vpop.f32.mrf.mxu0
      %384 = vmatprep.mubr.f32.mxu0 0.0
      %385 = vmatmul.mubr.f32.gmra.mxu0 %v219
      %v386 = vpop.f32.mrf.mxu0
      %v387 = vadd.f32 0.0, %v386
      %v388 = vpop.f32.mrf.mxu0
      %389 = vmatprep.mubr.f32.mxu0 0.0
      %390 = vmatmul.mubr.f32.gmra.mxu0 %v222
      %v391 = vpop.f32.mrf.mxu0
      %v392 = vadd.f32 0.0, %v391
      %v393 = vpop.f32.mrf.mxu0
      %394 = vmatprep.mubr.f32.mxu0 0.0
      %395 = vmatmul.mubr.f32.gmra.mxu0 %v225
      %v396 = vpop.f32.mrf.mxu0
      %v397 = vadd.f32 0.0, %v396
      %v398 = vpop.f32.mrf.mxu0
      %399 = vmatprep.mubr.f32.mxu0 0.0
      %400 = vmatmul.mubr.f32.gmra.mxu0 %v228
      %v401 = vpop.f32.mrf.mxu0
      %v402 = vadd.f32 0.0, %v401
      %v403 = vpop.f32.mrf.mxu0
      %404 = vmatprep.mubr.f32.mxu0 0.0
      %405 = vmatmul.mubr.f32.gmra.mxu0 %v231
      %v406 = vpop.f32.mrf.mxu0
      %v407 = vadd.f32 0.0, %v406
      %v408 = vpop.f32.mrf.mxu0
      %409 = vmatprep.mubr.f32.mxu0 0.0
      %410 = vmatmul.mubr.f32.gmra.mxu0 %v234
      %v411 = vpop.f32.mrf.mxu0
      %v412 = vadd.f32 0.0, %v411
      %v413 = vpop.f32.mrf.mxu0
      %414 = vmatprep.mubr.f32.mxu0 0.0
      %415 = vmatmul.mubr.f32.gmra.mxu0 %v237
      %v416 = vpop.f32.mrf.mxu0
      %v417 = vadd.f32 0.0, %v416
      %v418 = vpop.f32.mrf.mxu0
      %419 = vmatprep.mubr.f32.mxu0 0.0
      %420 = vmatmul.mubr.f32.gmra.mxu0 %v240
      %v421 = vpop.f32.mrf.mxu0
      %v422 = vadd.f32 0.0, %v421
      %v423 = vpop.f32.mrf.mxu0
      %424 = vmatprep.mubr.f32.mxu0 0.0
      %425 = vmatmul.mubr.f32.gmra.mxu0 %v243
      %v426 = vpop.f32.mrf.mxu0
      %v427 = vadd.f32 0.0, %v426
      %v428 = vpop.f32.mrf.mxu0
      %429 = vmatprep.mubr.f32.mxu0 0.0
      %430 = vmatmul.mubr.f32.gmra.mxu0 %v246
      %v431 = vpop.f32.mrf.mxu0
      %v432 = vadd.f32 0.0, %v431
      %v433 = vpop.f32.mrf.mxu0
      %434 = vmatprep.mubr.f32.mxu0 0.0
      %435 = vmatmul.mubr.f32.gmra.mxu0 %v249
      %v436 = vpop.f32.mrf.mxu0
      %v437 = vadd.f32 0.0, %v436
      %v438 = vpop.f32.mrf.mxu0
      %439 = vmatprep.mubr.f32.mxu0 0.0
      %440 = vmatmul.mubr.f32.gmra.mxu0 %v252
      %v441 = vpop.f32.mrf.mxu0
      %v442 = vadd.f32 0.0, %v441
      %v443 = vpop.f32.mrf.mxu0
      %444 = vmatprep.mubr.f32.mxu0 0.0
      %445 = vmatmul.mubr.f32.gmra.mxu0 %v255
      %v446 = vpop.f32.mrf.mxu0
      %v447 = vadd.f32 0.0, %v446
      %v448 = vpop.f32.mrf.mxu0
      %449 = vmatprep.mubr.f32.mxu0 0.0
      %450 = vmatmul.mubr.f32.gmra.mxu0 %v258
      %v451 = vpop.f32.mrf.mxu0
      %v452 = vadd.f32 0.0, %v451
      %v453 = vpop.f32.mrf.mxu0
      %454 = vmatprep.mubr.f32.mxu0 0.0
      %455 = vmatmul.mubr.f32.gmra.mxu0 %v261
      %v456 = vpop.f32.mrf.mxu0
      %v457 = vadd.f32 0.0, %v456
      %v458 = vpop.f32.mrf.mxu0
      %459 = vmatprep.mubr.f32.mxu0 0.0
      %460 = vmatmul.mubr.f32.gmra.mxu0 %v264
      %v461 = vpop.f32.mrf.mxu0
      %v462 = vadd.f32 0.0, %v461
      %v463 = vpop.f32.mrf.mxu0
      %464 = vmatprep.mubr.f32.mxu0 0.0
      %465 = vmatmul.mubr.f32.gmra.mxu0 %v267
      %v466 = vpop.f32.mrf.mxu0
      %v467 = vadd.f32 0.0, %v466
      %v468 = vpop.f32.mrf.mxu0
      %469 = vmatprep.mubr.f32.mxu0 0.0
      %470 = vmatmul.mubr.f32.gmra.mxu0 %v270
      %v471 = vpop.f32.mrf.mxu0
      %v472 = vadd.f32 0.0, %v471
      %v473 = vpop.f32.mrf.mxu0
      %474 = vmatprep.mubr.f32.mxu0 0.0
      %475 = vmatmul.mubr.f32.gmra.mxu0 %v273
      %v476 = vpop.f32.mrf.mxu0
      %v477 = vadd.f32 0.0, %v476
      %v478 = vpop.f32.mrf.mxu0
      %479 = vmatprep.mubr.f32.mxu0 0.0
      %480 = vmatmul.mubr.f32.gmra.mxu0 %v276
      %v481 = vpop.f32.mrf.mxu0
      %v482 = vadd.f32 0.0, %v481
      %v483 = vpop.f32.mrf.mxu0
      %484 = vmatprep.mubr.f32.mxu0 0.0
      %485 = vmatmul.mubr.f32.gmra.mxu0 %v279
      %v486 = vpop.f32.mrf.mxu0
      %v487 = vadd.f32 0.0, %v486
      %v488 = vpop.f32.mrf.mxu0
      %489 = vmatprep.mubr.f32.mxu0 0.0
      %490 = vmatmul.mubr.f32.gmra.mxu0 %v282
      %v491 = vpop.f32.mrf.mxu0
      %v492 = vadd.f32 0.0, %v491
      %v493 = vpop.f32.mrf.mxu0
      %494 = vmatprep.mubr.f32.mxu0 0.0
      %495 = vmatmul.mubr.f32.gmra.mxu0 %v285
      %v496 = vpop.f32.mrf.mxu0
      %v497 = vadd.f32 0.0, %v496
      %v498 = vpop.f32.mrf.mxu0
      %499 = vmatprep.mubr.f32.mxu0 0.0
      %500 = vmatmul.mubr.f32.gmra.mxu0 %v288
      %v501 = vpop.f32.mrf.mxu0
      %v502 = vadd.f32 0.0, %v501
      %v503 = vpop.f32.mrf.mxu0
      %504 = vmatprep.mubr.f32.mxu0 0.0
      %505 = vmatmul.mubr.f32.gmra.mxu0 %v291
      %v506 = vpop.f32.mrf.mxu0
      %v507 = vadd.f32 0.0, %v506
      %v508 = vpop.f32.mrf.mxu0
      %509 = vmatprep.mubr.f32.mxu0 0.0
      %510 = vmatmul.mubr.f32.gmra.mxu0 %v294
      %v511 = vpop.f32.mrf.mxu0
      %v512 = vadd.f32 0.0, %v511
      %v513 = vpop.f32.mrf.mxu0
      %514 = vmatprep.mubr.f32.mxu0 0.0
      %515 = vmatmul.mubr.f32.gmra.mxu0 %v297
      %v516 = vpop.f32.mrf.mxu0
      %v517 = vadd.f32 0.0, %v516
      %v518 = vpop.f32.mrf.mxu0
      %519 = vmatprep.mubr.f32.mxu0 0.0
      %520 = vmatmul.mubr.f32.gmra.mxu0 %v300
      %v521 = vpop.f32.mrf.mxu0
      %v522 = vadd.f32 0.0, %v521
      %v523 = vpop.f32.mrf.mxu0
      %524 = vmatprep.mubr.f32.mxu0 0.0
      %525 = vmatmul.mubr.f32.gmra.mxu0 %v303
      %v526 = vpop.f32.mrf.mxu0
      %v527 = vadd.f32 0.0, %v526
      %v528 = vpop.f32.mrf.mxu0
      %529 = vmatprep.mubr.f32.mxu0 0.0
      %530 = vmatmul.mubr.f32.gmra.mxu0 %v306
      %v531 = vpop.f32.mrf.mxu0
      %v532 = vadd.f32 0.0, %v531
      %v533 = vpop.f32.mrf.mxu0
      %534 = vmatprep.mubr.f32.mxu0 0.0
      %535 = vmatmul.mubr.f32.gmra.mxu0 %v309
      %v536 = vpop.f32.mrf.mxu0
      %v537 = vadd.f32 0.0, %v536
      %v538 = vpop.f32.mrf.mxu0
      %539 = vdwg.mxu0
      %v541 = vsel %vm214, %v147, 0
      %v544 = vsel %vm214, %v148, 0
      %v547 = vsel %vm214, %v149, 0
      %v550 = vsel %vm214, %v150, 0
      %v553 = vsel %vm214, %v151, 0
      %v556 = vsel %vm214, %v152, 0
      %v559 = vsel %vm214, %v153, 0
      %v562 = vsel %vm214, %v154, 0
      %v565 = vsel %vm214, %v155, 0
      %v568 = vsel %vm214, %v156, 0
      %v571 = vsel %vm214, %v157, 0
      %v574 = vsel %vm214, %v158, 0
      %v577 = vsel %vm214, %v159, 0
      %v580 = vsel %vm214, %v160, 0
      %v583 = vsel %vm214, %v161, 0
      %v586 = vsel %vm214, %v162, 0
      %v589 = vsel %vm214, %v163, 0
      %v592 = vsel %vm214, %v164, 0
      %v595 = vsel %vm214, %v165, 0
      %v598 = vsel %vm214, %v166, 0
      %v601 = vsel %vm214, %v167, 0
      %v604 = vsel %vm214, %v168, 0
      %v607 = vsel %vm214, %v169, 0
      %v610 = vsel %vm214, %v170, 0
      %v613 = vsel %vm214, %v171, 0
      %v616 = vsel %vm214, %v172, 0
      %v619 = vsel %vm214, %v173, 0
      %v622 = vsel %vm214, %v174, 0
      %v625 = vsel %vm214, %v175, 0
      %v628 = vsel %vm214, %v176, 0
      %v631 = vsel %vm214, %v177, 0
      %v634 = vsel %vm214, %v178, 0
      %v637 = vsel %vm311, %v179, 0
      %639 = vmatprep.subr.mxu0 0.0
      %640 = vmatpush1.msra.mxu0 0.0
      %641 = vmatprep.subr.mxu0 0.0
      %642 = vmatpush1.msra.mxu0 0.0
      %643 = vmatprep.subr.mxu0 0.0
      %644 = vmatpush1.msra.mxu0 0.0
      %645 = vmatprep.subr.mxu0 0.0
      %646 = vmatpush1.msra.mxu0 0.0
      %647 = vmatprep.subr.mxu0 0.0
      %648 = vmatpush1.msra.mxu0 0.0
      %649 = vmatprep.subr.mxu0 0.0
      %650 = vmatpush1.msra.mxu0 0.0
      %651 = vmatprep.subr.mxu0 0.0
      %652 = vmatpush1.msra.mxu0 0.0
      %653 = vmatprep.subr.mxu0 0.0
      %654 = vmatpush1.msra.mxu0 0.0
      %655 = vmatprep.subr.mxu0 0.0
      %656 = vmatpush1.msra.mxu0 0.0
      %657 = vmatprep.subr.mxu0 0.0
      %658 = vmatpush1.msra.mxu0 0.0
      %659 = vmatprep.subr.mxu0 0.0
      %660 = vmatpush1.msra.mxu0 0.0
      %661 = vmatprep.subr.mxu0 0.0
      %662 = vmatpush1.msra.mxu0 0.0
      %663 = vmatprep.subr.mxu0 0.0
      %664 = vmatpush1.msra.mxu0 0.0
      %665 = vmatprep.subr.mxu0 0.0
      %666 = vmatpush1.msra.mxu0 0.0
      %667 = vmatprep.subr.mxu0 0.0
      %668 = vmatpush1.msra.mxu0 0.0
      %669 = vmatprep.subr.mxu0 0.0
      %670 = vmatpush1.msra.mxu0 %v637
      %671 = vmatprep.subr.mxu0 0.0
      %672 = vmatpush2.msra.mxu0 0.0
      %673 = vmatprep.subr.mxu0 0.0
      %674 = vmatpush2.msra.mxu0 0.0
      %675 = vmatprep.subr.mxu0 0.0
      %676 = vmatpush2.msra.mxu0 0.0
      %677 = vmatprep.subr.mxu0 0.0
      %678 = vmatpush2.msra.mxu0 0.0
      %679 = vmatprep.subr.mxu0 0.0
      %680 = vmatpush2.msra.mxu0 0.0
      %681 = vmatprep.subr.mxu0 0.0
      %682 = vmatpush2.msra.mxu0 0.0
      %683 = vmatprep.subr.mxu0 0.0
      %684 = vmatpush2.msra.mxu0 0.0
      %685 = vmatprep.subr.mxu0 0.0
      %686 = vmatpush2.msra.mxu0 0.0
      %687 = vmatprep.subr.mxu0 0.0
      %688 = vmatpush2.msra.mxu0 0.0
      %689 = vmatprep.subr.mxu0 0.0
      %690 = vmatpush2.msra.mxu0 0.0
      %691 = vmatprep.subr.mxu0 0.0
      %692 = vmatpush2.msra.mxu0 0.0
      %693 = vmatprep.subr.mxu0 0.0
      %694 = vmatpush2.msra.mxu0 0.0
      %695 = vmatprep.subr.mxu0 0.0
      %696 = vmatpush2.msra.mxu0 0.0
      %697 = vmatprep.subr.mxu0 0.0
      %698 = vmatpush2.msra.mxu0 0.0
      %699 = vmatprep.subr.mxu0 0.0
      %700 = vmatpush2.msra.mxu0 0.0
      %701 = vmatprep.subr.mxu0 0.0
      %702 = vmatpush2.msra.mxu0 0.0
      %703 = vmatprep.mubr.f32.mxu0 0.0
      %704 = vmatmul.mubr.f32.gmra.mxu0 %v541
      %v705 = vpop.f32.mrf.mxu0
      %v706 = vadd.f32 %v382, %v705
      %v707 = vpop.f32.mrf.mxu0
      %708 = vmatprep.mubr.f32.mxu0 0.0
      %709 = vmatmul.mubr.f32.gmra.mxu0 %v544
      %v710 = vpop.f32.mrf.mxu0
      %v711 = vadd.f32 %v387, %v710
      %v712 = vpop.f32.mrf.mxu0
      %713 = vmatprep.mubr.f32.mxu0 0.0
      %714 = vmatmul.mubr.f32.gmra.mxu0 %v547
      %v715 = vpop.f32.mrf.mxu0
      %v716 = vadd.f32 %v392, %v715
      %v717 = vpop.f32.mrf.mxu0
      %718 = vmatprep.mubr.f32.mxu0 0.0
      %719 = vmatmul.mubr.f32.gmra.mxu0 %v550
      %v720 = vpop.f32.mrf.mxu0
      %v721 = vadd.f32 %v397, %v720
      %v722 = vpop.f32.mrf.mxu0
      %723 = vmatprep.mubr.f32.mxu0 0.0
      %724 = vmatmul.mubr.f32.gmra.mxu0 %v553
      %v725 = vpop.f32.mrf.mxu0
      %v726 = vadd.f32 %v402, %v725
      %v727 = vpop.f32.mrf.mxu0
      %728 = vmatprep.mubr.f32.mxu0 0.0
      %729 = vmatmul.mubr.f32.gmra.mxu0 %v556
      %v730 = vpop.f32.mrf.mxu0
      %v731 = vadd.f32 %v407, %v730
      %v732 = vpop.f32.mrf.mxu0
      %733 = vmatprep.mubr.f32.mxu0 0.0
      %734 = vmatmul.mubr.f32.gmra.mxu0 %v559
      %v735 = vpop.f32.mrf.mxu0
      %v736 = vadd.f32 %v412, %v735
      %v737 = vpop.f32.mrf.mxu0
      %738 = vmatprep.mubr.f32.mxu0 0.0
      %739 = vmatmul.mubr.f32.gmra.mxu0 %v562
      %v740 = vpop.f32.mrf.mxu0
      %v741 = vadd.f32 %v417, %v740
      %v742 = vpop.f32.mrf.mxu0
      %743 = vmatprep.mubr.f32.mxu0 0.0
      %744 = vmatmul.mubr.f32.gmra.mxu0 %v565
      %v745 = vpop.f32.mrf.mxu0
      %v746 = vadd.f32 %v422, %v745
      %v747 = vpop.f32.mrf.mxu0
      %748 = vmatprep.mubr.f32.mxu0 0.0
      %749 = vmatmul.mubr.f32.gmra.mxu0 %v568
      %v750 = vpop.f32.mrf.mxu0
      %v751 = vadd.f32 %v427, %v750
      %v752 = vpop.f32.mrf.mxu0
      %753 = vmatprep.mubr.f32.mxu0 0.0
      %754 = vmatmul.mubr.f32.gmra.mxu0 %v571
      %v755 = vpop.f32.mrf.mxu0
      %v756 = vadd.f32 %v432, %v755
      %v757 = vpop.f32.mrf.mxu0
      %758 = vmatprep.mubr.f32.mxu0 0.0
      %759 = vmatmul.mubr.f32.gmra.mxu0 %v574
      %v760 = vpop.f32.mrf.mxu0
      %v761 = vadd.f32 %v437, %v760
      %v762 = vpop.f32.mrf.mxu0
      %763 = vmatprep.mubr.f32.mxu0 0.0
      %764 = vmatmul.mubr.f32.gmra.mxu0 %v577
      %v765 = vpop.f32.mrf.mxu0
      %v766 = vadd.f32 %v442, %v765
      %v767 = vpop.f32.mrf.mxu0
      %768 = vmatprep.mubr.f32.mxu0 0.0
      %769 = vmatmul.mubr.f32.gmra.mxu0 %v580
      %v770 = vpop.f32.mrf.mxu0
      %v771 = vadd.f32 %v447, %v770
      %v772 = vpop.f32.mrf.mxu0
      %773 = vmatprep.mubr.f32.mxu0 0.0
      %774 = vmatmul.mubr.f32.gmra.mxu0 %v583
      %v775 = vpop.f32.mrf.mxu0
      %v776 = vadd.f32 %v452, %v775
      %v777 = vpop.f32.mrf.mxu0
      %778 = vmatprep.mubr.f32.mxu0 0.0
      %779 = vmatmul.mubr.f32.gmra.mxu0 %v586
      %v780 = vpop.f32.mrf.mxu0
      %v781 = vadd.f32 %v457, %v780
      %v782 = vpop.f32.mrf.mxu0
      %783 = vmatprep.mubr.f32.mxu0 0.0
      %784 = vmatmul.mubr.f32.gmra.mxu0 %v589
      %v785 = vpop.f32.mrf.mxu0
      %v786 = vadd.f32 %v462, %v785
      %v787 = vpop.f32.mrf.mxu0
      %788 = vmatprep.mubr.f32.mxu0 0.0
      %789 = vmatmul.mubr.f32.gmra.mxu0 %v592
      %v790 = vpop.f32.mrf.mxu0
      %v791 = vadd.f32 %v467, %v790
      %v792 = vpop.f32.mrf.mxu0
      %793 = vmatprep.mubr.f32.mxu0 0.0
      %794 = vmatmul.mubr.f32.gmra.mxu0 %v595
      %v795 = vpop.f32.mrf.mxu0
      %v796 = vadd.f32 %v472, %v795
      %v797 = vpop.f32.mrf.mxu0
      %798 = vmatprep.mubr.f32.mxu0 0.0
      %799 = vmatmul.mubr.f32.gmra.mxu0 %v598
      %v800 = vpop.f32.mrf.mxu0
      %v801 = vadd.f32 %v477, %v800
      %v802 = vpop.f32.mrf.mxu0
      %803 = vmatprep.mubr.f32.mxu0 0.0
      %804 = vmatmul.mubr.f32.gmra.mxu0 %v601
      %v805 = vpop.f32.mrf.mxu0
      %v806 = vadd.f32 %v482, %v805
      %v807 = vpop.f32.mrf.mxu0
      %808 = vmatprep.mubr.f32.mxu0 0.0
      %809 = vmatmul.mubr.f32.gmra.mxu0 %v604
      %v810 = vpop.f32.mrf.mxu0
      %v811 = vadd.f32 %v487, %v810
      %v812 = vpop.f32.mrf.mxu0
      %813 = vmatprep.mubr.f32.mxu0 0.0
      %814 = vmatmul.mubr.f32.gmra.mxu0 %v607
      %v815 = vpop.f32.mrf.mxu0
      %v816 = vadd.f32 %v492, %v815
      %v817 = vpop.f32.mrf.mxu0
      %818 = vmatprep.mubr.f32.mxu0 0.0
      %819 = vmatmul.mubr.f32.gmra.mxu0 %v610
      %v820 = vpop.f32.mrf.mxu0
      %v821 = vadd.f32 %v497, %v820
      %v822 = vpop.f32.mrf.mxu0
      %823 = vmatprep.mubr.f32.mxu0 0.0
      %824 = vmatmul.mubr.f32.gmra.mxu0 %v613
      %v825 = vpop.f32.mrf.mxu0
      %v826 = vadd.f32 %v502, %v825
      %v827 = vpop.f32.mrf.mxu0
      %828 = vmatprep.mubr.f32.mxu0 0.0
      %829 = vmatmul.mubr.f32.gmra.mxu0 %v616
      %v830 = vpop.f32.mrf.mxu0
      %v831 = vadd.f32 %v507, %v830
      %v832 = vpop.f32.mrf.mxu0
      %833 = vmatprep.mubr.f32.mxu0 0.0
      %834 = vmatmul.mubr.f32.gmra.mxu0 %v619
      %v835 = vpop.f32.mrf.mxu0
      %v836 = vadd.f32 %v512, %v835
      %v837 = vpop.f32.mrf.mxu0
      %838 = vmatprep.mubr.f32.mxu0 0.0
      %839 = vmatmul.mubr.f32.gmra.mxu0 %v622
      %v840 = vpop.f32.mrf.mxu0
      %v841 = vadd.f32 %v517, %v840
      %v842 = vpop.f32.mrf.mxu0
      %843 = vmatprep.mubr.f32.mxu0 0.0
      %844 = vmatmul.mubr.f32.gmra.mxu0 %v625
      %v845 = vpop.f32.mrf.mxu0
      %v846 = vadd.f32 %v522, %v845
      %v847 = vpop.f32.mrf.mxu0
      %848 = vmatprep.mubr.f32.mxu0 0.0
      %849 = vmatmul.mubr.f32.gmra.mxu0 %v628
      %v850 = vpop.f32.mrf.mxu0
      %v851 = vadd.f32 %v527, %v850
      %v852 = vpop.f32.mrf.mxu0
      %853 = vmatprep.mubr.f32.mxu0 0.0
      %854 = vmatmul.mubr.f32.gmra.mxu0 %v631
      %v855 = vpop.f32.mrf.mxu0
      %v856 = vadd.f32 %v532, %v855
      %v857 = vpop.f32.mrf.mxu0
      %858 = vmatprep.mubr.f32.mxu0 0.0
      %859 = vmatmul.mubr.f32.gmra.mxu0 %v634
      %v860 = vpop.f32.mrf.mxu0
      %v861 = vadd.f32 %v537, %v860
      %v862 = vpop.f32.mrf.mxu0
      %863 = vdwg.mxu0
      %v864 = vld [vmem:[%s141 + $0x2] sm:$0xff]
      %v865 = vld [vmem:[%s141 + $0xa] sm:$0xff]
      %v866 = vld [vmem:[%s141 + $0x1a] sm:$0xff]
      %v867 = vld [vmem:[%s141 + $0x22] sm:$0xff]
      %v868 = vld [vmem:[%s141 + $0x32] sm:$0xff]
      %v869 = vld [vmem:[%s141 + $0x3a] sm:$0xff]
      %v870 = vld [vmem:[%s141 + $0x4a] sm:$0xff]
      %v871 = vld [vmem:[%s141 + $0x52] sm:$0xff]
      %v872 = vld [vmem:[%s141 + $0x62] sm:$0xff]
      %v873 = vld [vmem:[%s141 + $0x6a] sm:$0xff]
      %v874 = vld [vmem:[%s141 + $0x7a] sm:$0xff]
      %v875 = vld [vmem:[%s141 + $0x82] sm:$0xff]
      %v876 = vld [vmem:[%s141 + $0x92] sm:$0xff]
      %v877 = vld [vmem:[%s141 + $0x9a] sm:$0xff]
      %v878 = vld [vmem:[%s141 + $0xaa] sm:$0xff]
      %v879 = vld [vmem:[%s141 + $0xb2] sm:$0xff]
      %v880 = vld [vmem:[%s141 + $0xc2] sm:$0xff]
      %v881 = vld [vmem:[%s141 + $0xca] sm:$0xff]
      %v882 = vld [vmem:[%s141 + $0xda] sm:$0xff]
      %v883 = vld [vmem:[%s141 + $0xe2] sm:$0xff]
      %v884 = vld [vmem:[%s141 + $0xf2] sm:$0xff]
      %v885 = vld [vmem:[%s141 + $0xfa] sm:$0xff]
      %v886 = vld [vmem:[%s141 + $0x10a] sm:$0xff]
      %v887 = vld [vmem:[%s141 + $0x112] sm:$0xff]
      %v888 = vld [vmem:[%s141 + $0x122] sm:$0xff]
      %v889 = vld [vmem:[%s141 + $0x12a] sm:$0xff]
      %v890 = vld [vmem:[%s141 + $0x13a] sm:$0xff]
      %v891 = vld [vmem:[%s141 + $0x142] sm:$0xff]
      %v892 = vld [vmem:[%s141 + $0x152] sm:$0xff]
      %v893 = vld [vmem:[%s141 + $0x15a] sm:$0xff]
      %v894 = vld [vmem:[%s141 + $0x16a] sm:$0xff]
      %v895 = vld [vmem:[%s141 + $0x172] sm:$0xff]
      %s896 = scalar_lea.vmem %s1, 8
      %v897 = vld [vmem:[%s896] sm:$0xf]
      %v899 = vsel %vm214, %v864, 0
      %v902 = vsel %vm214, %v865, 0
      %v905 = vsel %vm214, %v866, 0
      %v908 = vsel %vm214, %v867, 0
      %v911 = vsel %vm214, %v868, 0
      %v914 = vsel %vm214, %v869, 0
      %v917 = vsel %vm214, %v870, 0
      %v920 = vsel %vm214, %v871, 0
      %v923 = vsel %vm214, %v872, 0
      %v926 = vsel %vm214, %v873, 0
      %v929 = vsel %vm214, %v874, 0
      %v932 = vsel %vm214, %v875, 0
      %v935 = vsel %vm214, %v876, 0
      %v938 = vsel %vm214, %v877, 0
      %v941 = vsel %vm214, %v878, 0
      %v944 = vsel %vm214, %v879, 0
      %v947 = vsel %vm214, %v880, 0
      %v950 = vsel %vm214, %v881, 0
      %v953 = vsel %vm214, %v882, 0
      %v956 = vsel %vm214, %v883, 0
      %v959 = vsel %vm214, %v884, 0
      %v962 = vsel %vm214, %v885, 0
      %v965 = vsel %vm214, %v886, 0
      %v968 = vsel %vm214, %v887, 0
      %v971 = vsel %vm214, %v888, 0
      %v974 = vsel %vm214, %v889, 0
      %v977 = vsel %vm214, %v890, 0
      %v980 = vsel %vm214, %v891, 0
      %v983 = vsel %vm214, %v892, 0
      %v986 = vsel %vm214, %v893, 0
      %v989 = vsel %vm214, %v894, 0
      %v992 = vsel %vm214, %v895, 0
      %v995 = vsel %vm311, %v897, 0
      %997 = vmatprep.subr.mxu0 0.0
      %998 = vmatpush1.msra.mxu0 0.0
      %999 = vmatprep.subr.mxu0 0.0
      %1000 = vmatpush1.msra.mxu0 0.0
      %1001 = vmatprep.subr.mxu0 0.0
      %1002 = vmatpush1.msra.mxu0 0.0
      %1003 = vmatprep.subr.mxu0 0.0
      %1004 = vmatpush1.msra.mxu0 0.0
      %1005 = vmatprep.subr.mxu0 0.0
      %1006 = vmatpush1.msra.mxu0 0.0
      %1007 = vmatprep.subr.mxu0 0.0
      %1008 = vmatpush1.msra.mxu0 0.0
      %1009 = vmatprep.subr.mxu0 0.0
      %1010 = vmatpush1.msra.mxu0 0.0
      %1011 = vmatprep.subr.mxu0 0.0
      %1012 = vmatpush1.msra.mxu0 0.0
      %1013 = vmatprep.subr.mxu0 0.0
      %1014 = vmatpush1.msra.mxu0 0.0
      %1015 = vmatprep.subr.mxu0 0.0
      %1016 = vmatpush1.msra.mxu0 0.0
      %1017 = vmatprep.subr.mxu0 0.0
      %1018 = vmatpush1.msra.mxu0 0.0
      %1019 = vmatprep.subr.mxu0 0.0
      %1020 = vmatpush1.msra.mxu0 0.0
      %1021 = vmatprep.subr.mxu0 0.0
      %1022 = vmatpush1.msra.mxu0 0.0
      %1023 = vmatprep.subr.mxu0 0.0
      %1024 = vmatpush1.msra.mxu0 0.0
      %1025 = vmatprep.subr.mxu0 0.0
      %1026 = vmatpush1.msra.mxu0 0.0
      %1027 = vmatprep.subr.mxu0 0.0
      %1028 = vmatpush1.msra.mxu0 %v995
      %1029 = vmatprep.subr.mxu0 0.0
      %1030 = vmatpush2.msra.mxu0 0.0
      %1031 = vmatprep.subr.mxu0 0.0
      %1032 = vmatpush2.msra.mxu0 0.0
      %1033 = vmatprep.subr.mxu0 0.0
      %1034 = vmatpush2.msra.mxu0 0.0
      %1035 = vmatprep.subr.mxu0 0.0
      %1036 = vmatpush2.msra.mxu0 0.0
      %1037 = vmatprep.subr.mxu0 0.0
      %1038 = vmatpush2.msra.mxu0 0.0
      %1039 = vmatprep.subr.mxu0 0.0
      %1040 = vmatpush2.msra.mxu0 0.0
      %1041 = vmatprep.subr.mxu0 0.0
      %1042 = vmatpush2.msra.mxu0 0.0
      %1043 = vmatprep.subr.mxu0 0.0
      %1044 = vmatpush2.msra.mxu0 0.0
      %1045 = vmatprep.subr.mxu0 0.0
      %1046 = vmatpush2.msra.mxu0 0.0
      %1047 = vmatprep.subr.mxu0 0.0
      %1048 = vmatpush2.msra.mxu0 0.0
      %1049 = vmatprep.subr.mxu0 0.0
      %1050 = vmatpush2.msra.mxu0 0.0
      %1051 = vmatprep.subr.mxu0 0.0
      %1052 = vmatpush2.msra.mxu0 0.0
      %1053 = vmatprep.subr.mxu0 0.0
      %1054 = vmatpush2.msra.mxu0 0.0
      %1055 = vmatprep.subr.mxu0 0.0
      %1056 = vmatpush2.msra.mxu0 0.0
      %1057 = vmatprep.subr.mxu0 0.0
      %1058 = vmatpush2.msra.mxu0 0.0
      %1059 = vmatprep.subr.mxu0 0.0
      %1060 = vmatpush2.msra.mxu0 0.0
      %1061 = vmatprep.mubr.f32.mxu0 0.0
      %1062 = vmatmul.mubr.f32.gmra.mxu0 %v899
      %v1063 = vpop.f32.mrf.mxu0
      %v1064 = vadd.f32 0.0, %v1063
      %v1065 = vpop.f32.mrf.mxu0
      %1066 = vmatprep.mubr.f32.mxu0 0.0
      %1067 = vmatmul.mubr.f32.gmra.mxu0 %v902
      %v1068 = vpop.f32.mrf.mxu0
      %v1069 = vadd.f32 0.0, %v1068
      %v1070 = vpop.f32.mrf.mxu0
      %1071 = vmatprep.mubr.f32.mxu0 0.0
      %1072 = vmatmul.mubr.f32.gmra.mxu0 %v905
      %v1073 = vpop.f32.mrf.mxu0
      %v1074 = vadd.f32 0.0, %v1073
      %v1075 = vpop.f32.mrf.mxu0
      %1076 = vmatprep.mubr.f32.mxu0 0.0
      %1077 = vmatmul.mubr.f32.gmra.mxu0 %v908
      %v1078 = vpop.f32.mrf.mxu0
      %v1079 = vadd.f32 0.0, %v1078
      %v1080 = vpop.f32.mrf.mxu0
      %1081 = vmatprep.mubr.f32.mxu0 0.0
      %1082 = vmatmul.mubr.f32.gmra.mxu0 %v911
      %v1083 = vpop.f32.mrf.mxu0
      %v1084 = vadd.f32 0.0, %v1083
      %v1085 = vpop.f32.mrf.mxu0
      %1086 = vmatprep.mubr.f32.mxu0 0.0
      %1087 = vmatmul.mubr.f32.gmra.mxu0 %v914
      %v1088 = vpop.f32.mrf.mxu0
      %v1089 = vadd.f32 0.0, %v1088
      %v1090 = vpop.f32.mrf.mxu0
      %1091 = vmatprep.mubr.f32.mxu0 0.0
      %1092 = vmatmul.mubr.f32.gmra.mxu0 %v917
      %v1093 = vpop.f32.mrf.mxu0
      %v1094 = vadd.f32 0.0, %v1093
      %v1095 = vpop.f32.mrf.mxu0
      %1096 = vmatprep.mubr.f32.mxu0 0.0
      %1097 = vmatmul.mubr.f32.gmra.mxu0 %v920
      %v1098 = vpop.f32.mrf.mxu0
      %v1099 = vadd.f32 0.0, %v1098
      %v1100 = vpop.f32.mrf.mxu0
      %1101 = vmatprep.mubr.f32.mxu0 0.0
      %1102 = vmatmul.mubr.f32.gmra.mxu0 %v923
      %v1103 = vpop.f32.mrf.mxu0
      %v1104 = vadd.f32 0.0, %v1103
      %v1105 = vpop.f32.mrf.mxu0
      %1106 = vmatprep.mubr.f32.mxu0 0.0
      %1107 = vmatmul.mubr.f32.gmra.mxu0 %v926
      %v1108 = vpop.f32.mrf.mxu0
      %v1109 = vadd.f32 0.0, %v1108
      %v1110 = vpop.f32.mrf.mxu0
      %1111 = vmatprep.mubr.f32.mxu0 0.0
      %1112 = vmatmul.mubr.f32.gmra.mxu0 %v929
      %v1113 = vpop.f32.mrf.mxu0
      %v1114 = vadd.f32 0.0, %v1113
      %v1115 = vpop.f32.mrf.mxu0
      %1116 = vmatprep.mubr.f32.mxu0 0.0
      %1117 = vmatmul.mubr.f32.gmra.mxu0 %v932
      %v1118 = vpop.f32.mrf.mxu0
      %v1119 = vadd.f32 0.0, %v1118
      %v1120 = vpop.f32.mrf.mxu0
      %1121 = vmatprep.mubr.f32.mxu0 0.0
      %1122 = vmatmul.mubr.f32.gmra.mxu0 %v935
      %v1123 = vpop.f32.mrf.mxu0
      %v1124 = vadd.f32 0.0, %v1123
      %v1125 = vpop.f32.mrf.mxu0
      %1126 = vmatprep.mubr.f32.mxu0 0.0
      %1127 = vmatmul.mubr.f32.gmra.mxu0 %v938
      %v1128 = vpop.f32.mrf.mxu0
      %v1129 = vadd.f32 0.0, %v1128
      %v1130 = vpop.f32.mrf.mxu0
      %1131 = vmatprep.mubr.f32.mxu0 0.0
      %1132 = vmatmul.mubr.f32.gmra.mxu0 %v941
      %v1133 = vpop.f32.mrf.mxu0
      %v1134 = vadd.f32 0.0, %v1133
      %v1135 = vpop.f32.mrf.mxu0
      %1136 = vmatprep.mubr.f32.mxu0 0.0
      %1137 = vmatmul.mubr.f32.gmra.mxu0 %v944
      %v1138 = vpop.f32.mrf.mxu0
      %v1139 = vadd.f32 0.0, %v1138
      %v1140 = vpop.f32.mrf.mxu0
      %1141 = vmatprep.mubr.f32.mxu0 0.0
      %1142 = vmatmul.mubr.f32.gmra.mxu0 %v947
      %v1143 = vpop.f32.mrf.mxu0
      %v1144 = vadd.f32 0.0, %v1143
      %v1145 = vpop.f32.mrf.mxu0
      %1146 = vmatprep.mubr.f32.mxu0 0.0
      %1147 = vmatmul.mubr.f32.gmra.mxu0 %v950
      %v1148 = vpop.f32.mrf.mxu0
      %v1149 = vadd.f32 0.0, %v1148
      %v1150 = vpop.f32.mrf.mxu0
      %1151 = vmatprep.mubr.f32.mxu0 0.0
      %1152 = vmatmul.mubr.f32.gmra.mxu0 %v953
      %v1153 = vpop.f32.mrf.mxu0
      %v1154 = vadd.f32 0.0, %v1153
      %v1155 = vpop.f32.mrf.mxu0
      %1156 = vmatprep.mubr.f32.mxu0 0.0
      %1157 = vmatmul.mubr.f32.gmra.mxu0 %v956
      %v1158 = vpop.f32.mrf.mxu0
      %v1159 = vadd.f32 0.0, %v1158
      %v1160 = vpop.f32.mrf.mxu0
      %1161 = vmatprep.mubr.f32.mxu0 0.0
      %1162 = vmatmul.mubr.f32.gmra.mxu0 %v959
      %v1163 = vpop.f32.mrf.mxu0
      %v1164 = vadd.f32 0.0, %v1163
      %v1165 = vpop.f32.mrf.mxu0
      %1166 = vmatprep.mubr.f32.mxu0 0.0
      %1167 = vmatmul.mubr.f32.gmra.mxu0 %v962
      %v1168 = vpop.f32.mrf.mxu0
      %v1169 = vadd.f32 0.0, %v1168
      %v1170 = vpop.f32.mrf.mxu0
      %1171 = vmatprep.mubr.f32.mxu0 0.0
      %1172 = vmatmul.mubr.f32.gmra.mxu0 %v965
      %v1173 = vpop.f32.mrf.mxu0
      %v1174 = vadd.f32 0.0, %v1173
      %v1175 = vpop.f32.mrf.mxu0
      %1176 = vmatprep.mubr.f32.mxu0 0.0
      %1177 = vmatmul.mubr.f32.gmra.mxu0 %v968
      %v1178 = vpop.f32.mrf.mxu0
      %v1179 = vadd.f32 0.0, %v1178
      %v1180 = vpop.f32.mrf.mxu0
      %1181 = vmatprep.mubr.f32.mxu0 0.0
      %1182 = vmatmul.mubr.f32.gmra.mxu0 %v971
      %v1183 = vpop.f32.mrf.mxu0
      %v1184 = vadd.f32 0.0, %v1183
      %v1185 = vpop.f32.mrf.mxu0
      %1186 = vmatprep.mubr.f32.mxu0 0.0
      %1187 = vmatmul.mubr.f32.gmra.mxu0 %v974
      %v1188 = vpop.f32.mrf.mxu0
      %v1189 = vadd.f32 0.0, %v1188
      %v1190 = vpop.f32.mrf.mxu0
      %1191 = vmatprep.mubr.f32.mxu0 0.0
      %1192 = vmatmul.mubr.f32.gmra.mxu0 %v977
      %v1193 = vpop.f32.mrf.mxu0
      %v1194 = vadd.f32 0.0, %v1193
      %v1195 = vpop.f32.mrf.mxu0
      %1196 = vmatprep.mubr.f32.mxu0 0.0
      %1197 = vmatmul.mubr.f32.gmra.mxu0 %v980
      %v1198 = vpop.f32.mrf.mxu0
      %v1199 = vadd.f32 0.0, %v1198
      %v1200 = vpop.f32.mrf.mxu0
      %1201 = vmatprep.mubr.f32.mxu0 0.0
      %1202 = vmatmul.mubr.f32.gmra.mxu0 %v983
      %v1203 = vpop.f32.mrf.mxu0
      %v1204 = vadd.f32 0.0, %v1203
      %v1205 = vpop.f32.mrf.mxu0
      %1206 = vmatprep.mubr.f32.mxu0 0.0
      %1207 = vmatmul.mubr.f32.gmra.mxu0 %v986
      %v1208 = vpop.f32.mrf.mxu0
      %v1209 = vadd.f32 0.0, %v1208
      %v1210 = vpop.f32.mrf.mxu0
      %1211 = vmatprep.mubr.f32.mxu0 0.0
      %1212 = vmatmul.mubr.f32.gmra.mxu0 %v989
      %v1213 = vpop.f32.mrf.mxu0
      %v1214 = vadd.f32 0.0, %v1213
      %v1215 = vpop.f32.mrf.mxu0
      %1216 = vmatprep.mubr.f32.mxu0 0.0
      %1217 = vmatmul.mubr.f32.gmra.mxu0 %v992
      %v1218 = vpop.f32.mrf.mxu0
      %v1219 = vadd.f32 0.0, %v1218
      %v1220 = vpop.f32.mrf.mxu0
      %1221 = vdwg.mxu0
      %v1222 = vadd.f32 %v706, %v1064
      %v1223 = vadd.f32 %v711, %v1069
      %v1224 = vadd.f32 %v716, %v1074
      %v1225 = vadd.f32 %v721, %v1079
      %v1226 = vadd.f32 %v726, %v1084
      %v1227 = vadd.f32 %v731, %v1089
      %v1228 = vadd.f32 %v736, %v1094
      %v1229 = vadd.f32 %v741, %v1099
      %v1230 = vadd.f32 %v746, %v1104
      %v1231 = vadd.f32 %v751, %v1109
      %v1232 = vadd.f32 %v756, %v1114
      %v1233 = vadd.f32 %v761, %v1119
      %v1234 = vadd.f32 %v766, %v1124
      %v1235 = vadd.f32 %v771, %v1129
      %v1236 = vadd.f32 %v776, %v1134
      %v1237 = vadd.f32 %v781, %v1139
      %v1238 = vadd.f32 %v786, %v1144
      %v1239 = vadd.f32 %v791, %v1149
      %v1240 = vadd.f32 %v796, %v1154
      %v1241 = vadd.f32 %v801, %v1159
      %v1242 = vadd.f32 %v806, %v1164
      %v1243 = vadd.f32 %v811, %v1169
      %v1244 = vadd.f32 %v816, %v1174
      %v1245 = vadd.f32 %v821, %v1179
      %v1246 = vadd.f32 %v826, %v1184
      %v1247 = vadd.f32 %v831, %v1189
      %v1248 = vadd.f32 %v836, %v1194
      %v1249 = vadd.f32 %v841, %v1199
      %v1250 = vadd.f32 %v846, %v1204
      %v1251 = vadd.f32 %v851, %v1209
      %v1252 = vadd.f32 %v856, %v1214
      %v1253 = vadd.f32 %v861, %v1219
      %s1254 = scalar_lea.vmem %s141, 24
      %v1255 = vld [vmem:[%s1254] sm:$0xff]
      %v1256 = vld [vmem:[%s1254 + $0x8] sm:$0xff]
      %v1257 = vld [vmem:[%s1254 + $0x18] sm:$0xff]
      %v1258 = vld [vmem:[%s1254 + $0x20] sm:$0xff]
      %v1259 = vld [vmem:[%s1254 + $0x30] sm:$0xff]
      %v1260 = vld [vmem:[%s1254 + $0x38] sm:$0xff]
      %v1261 = vld [vmem:[%s1254 + $0x48] sm:$0xff]
      %v1262 = vld [vmem:[%s1254 + $0x50] sm:$0xff]
      %v1263 = vld [vmem:[%s1254 + $0x60] sm:$0xff]
      %v1264 = vld [vmem:[%s1254 + $0x68] sm:$0xff]
      %v1265 = vld [vmem:[%s1254 + $0x78] sm:$0xff]
      %v1266 = vld [vmem:[%s1254 + $0x80] sm:$0xff]
      %v1267 = vld [vmem:[%s1254 + $0x90] sm:$0xff]
      %v1268 = vld [vmem:[%s1254 + $0x98] sm:$0xff]
      %v1269 = vld [vmem:[%s1254 + $0xa8] sm:$0xff]
      %v1270 = vld [vmem:[%s1254 + $0xb0] sm:$0xff]
      %v1271 = vld [vmem:[%s1254 + $0xc0] sm:$0xff]
      %v1272 = vld [vmem:[%s1254 + $0xc8] sm:$0xff]
      %v1273 = vld [vmem:[%s1254 + $0xd8] sm:$0xff]
      %v1274 = vld [vmem:[%s1254 + $0xe0] sm:$0xff]
      %v1275 = vld [vmem:[%s1254 + $0xf0] sm:$0xff]
      %v1276 = vld [vmem:[%s1254 + $0xf8] sm:$0xff]
      %v1277 = vld [vmem:[%s1254 + $0x108] sm:$0xff]
      %v1278 = vld [vmem:[%s1254 + $0x110] sm:$0xff]
      %v1279 = vld [vmem:[%s1254 + $0x120] sm:$0xff]
      %v1280 = vld [vmem:[%s1254 + $0x128] sm:$0xff]
      %v1281 = vld [vmem:[%s1254 + $0x138] sm:$0xff]
      %v1282 = vld [vmem:[%s1254 + $0x140] sm:$0xff]
      %v1283 = vld [vmem:[%s1254 + $0x150] sm:$0xff]
      %v1284 = vld [vmem:[%s1254 + $0x158] sm:$0xff]
      %v1285 = vld [vmem:[%s1254 + $0x168] sm:$0xff]
      %v1286 = vld [vmem:[%s1254 + $0x170] sm:$0xff]
      %s1287 = scalar_lea.vmem %s1, 12
      %v1288 = vld [vmem:[%s1287] sm:$0xf]
      %v1290 = vsel %vm214, %v1255, 0
      %v1293 = vsel %vm214, %v1256, 0
      %v1296 = vsel %vm214, %v1257, 0
      %v1299 = vsel %vm214, %v1258, 0
      %v1302 = vsel %vm214, %v1259, 0
      %v1305 = vsel %vm214, %v1260, 0
      %v1308 = vsel %vm214, %v1261, 0
      %v1311 = vsel %vm214, %v1262, 0
      %v1314 = vsel %vm214, %v1263, 0
      %v1317 = vsel %vm214, %v1264, 0
      %v1320 = vsel %vm214, %v1265, 0
      %v1323 = vsel %vm214, %v1266, 0
      %v1326 = vsel %vm214, %v1267, 0
      %v1329 = vsel %vm214, %v1268, 0
      %v1332 = vsel %vm214, %v1269, 0
      %v1335 = vsel %vm214, %v1270, 0
      %v1338 = vsel %vm214, %v1271, 0
      %v1341 = vsel %vm214, %v1272, 0
      %v1344 = vsel %vm214, %v1273, 0
      %v1347 = vsel %vm214, %v1274, 0
      %v1350 = vsel %vm214, %v1275, 0
      %v1353 = vsel %vm214, %v1276, 0
      %v1356 = vsel %vm214, %v1277, 0
      %v1359 = vsel %vm214, %v1278, 0
      %v1362 = vsel %vm214, %v1279, 0
      %v1365 = vsel %vm214, %v1280, 0
      %v1368 = vsel %vm214, %v1281, 0
      %v1371 = vsel %vm214, %v1282, 0
      %v1374 = vsel %vm214, %v1283, 0
      %v1377 = vsel %vm214, %v1284, 0
      %v1380 = vsel %vm214, %v1285, 0
      %v1383 = vsel %vm214, %v1286, 0
      %v1386 = vsel %vm311, %v1288, 0
      %1388 = vmatprep.subr.mxu0 0.0
      %1389 = vmatpush1.msra.mxu0 0.0
      %1390 = vmatprep.subr.mxu0 0.0
      %1391 = vmatpush1.msra.mxu0 0.0
      %1392 = vmatprep.subr.mxu0 0.0
      %1393 = vmatpush1.msra.mxu0 0.0
      %1394 = vmatprep.subr.mxu0 0.0
      %1395 = vmatpush1.msra.mxu0 0.0
      %1396 = vmatprep.subr.mxu0 0.0
      %1397 = vmatpush1.msra.mxu0 0.0
      %1398 = vmatprep.subr.mxu0 0.0
      %1399 = vmatpush1.msra.mxu0 0.0
      %1400 = vmatprep.subr.mxu0 0.0
      %1401 = vmatpush1.msra.mxu0 0.0
      %1402 = vmatprep.subr.mxu0 0.0
      %1403 = vmatpush1.msra.mxu0 0.0
      %1404 = vmatprep.subr.mxu0 0.0
      %1405 = vmatpush1.msra.mxu0 0.0
      %1406 = vmatprep.subr.mxu0 0.0
      %1407 = vmatpush1.msra.mxu0 0.0
      %1408 = vmatprep.subr.mxu0 0.0
      %1409 = vmatpush1.msra.mxu0 0.0
      %1410 = vmatprep.subr.mxu0 0.0
      %1411 = vmatpush1.msra.mxu0 0.0
      %1412 = vmatprep.subr.mxu0 0.0
      %1413 = vmatpush1.msra.mxu0 0.0
      %1414 = vmatprep.subr.mxu0 0.0
      %1415 = vmatpush1.msra.mxu0 0.0
      %1416 = vmatprep.subr.mxu0 0.0
      %1417 = vmatpush1.msra.mxu0 0.0
      %1418 = vmatprep.subr.mxu0 0.0
      %1419 = vmatpush1.msra.mxu0 %v1386
      %1420 = vmatprep.subr.mxu0 0.0
      %1421 = vmatpush2.msra.mxu0 0.0
      %1422 = vmatprep.subr.mxu0 0.0
      %1423 = vmatpush2.msra.mxu0 0.0
      %1424 = vmatprep.subr.mxu0 0.0
      %1425 = vmatpush2.msra.mxu0 0.0
      %1426 = vmatprep.subr.mxu0 0.0
      %1427 = vmatpush2.msra.mxu0 0.0
      %1428 = vmatprep.subr.mxu0 0.0
      %1429 = vmatpush2.msra.mxu0 0.0
      %1430 = vmatprep.subr.mxu0 0.0
      %1431 = vmatpush2.msra.mxu0 0.0
      %1432 = vmatprep.subr.mxu0 0.0
      %1433 = vmatpush2.msra.mxu0 0.0
      %1434 = vmatprep.subr.mxu0 0.0
      %1435 = vmatpush2.msra.mxu0 0.0
      %1436 = vmatprep.subr.mxu0 0.0
      %1437 = vmatpush2.msra.mxu0 0.0
      %1438 = vmatprep.subr.mxu0 0.0
      %1439 = vmatpush2.msra.mxu0 0.0
      %1440 = vmatprep.subr.mxu0 0.0
      %1441 = vmatpush2.msra.mxu0 0.0
      %1442 = vmatprep.subr.mxu0 0.0
      %1443 = vmatpush2.msra.mxu0 0.0
      %1444 = vmatprep.subr.mxu0 0.0
      %1445 = vmatpush2.msra.mxu0 0.0
      %1446 = vmatprep.subr.mxu0 0.0
      %1447 = vmatpush2.msra.mxu0 0.0
      %1448 = vmatprep.subr.mxu0 0.0
      %1449 = vmatpush2.msra.mxu0 0.0
      %1450 = vmatprep.subr.mxu0 0.0
      %1451 = vmatpush2.msra.mxu0 0.0
      %1452 = vmatprep.mubr.f32.mxu0 0.0
      %1453 = vmatmul.mubr.f32.gmra.mxu0 %v1290
      %v1454 = vpop.f32.mrf.mxu0
      %v1455 = vadd.f32 0.0, %v1454
      %v1456 = vpop.f32.mrf.mxu0
      %1457 = vmatprep.mubr.f32.mxu0 0.0
      %1458 = vmatmul.mubr.f32.gmra.mxu0 %v1293
      %v1459 = vpop.f32.mrf.mxu0
      %v1460 = vadd.f32 0.0, %v1459
      %v1461 = vpop.f32.mrf.mxu0
      %1462 = vmatprep.mubr.f32.mxu0 0.0
      %1463 = vmatmul.mubr.f32.gmra.mxu0 %v1296
      %v1464 = vpop.f32.mrf.mxu0
      %v1465 = vadd.f32 0.0, %v1464
      %v1466 = vpop.f32.mrf.mxu0
      %1467 = vmatprep.mubr.f32.mxu0 0.0
      %1468 = vmatmul.mubr.f32.gmra.mxu0 %v1299
      %v1469 = vpop.f32.mrf.mxu0
      %v1470 = vadd.f32 0.0, %v1469
      %v1471 = vpop.f32.mrf.mxu0
      %1472 = vmatprep.mubr.f32.mxu0 0.0
      %1473 = vmatmul.mubr.f32.gmra.mxu0 %v1302
      %v1474 = vpop.f32.mrf.mxu0
      %v1475 = vadd.f32 0.0, %v1474
      %v1476 = vpop.f32.mrf.mxu0
      %1477 = vmatprep.mubr.f32.mxu0 0.0
      %1478 = vmatmul.mubr.f32.gmra.mxu0 %v1305
      %v1479 = vpop.f32.mrf.mxu0
      %v1480 = vadd.f32 0.0, %v1479
      %v1481 = vpop.f32.mrf.mxu0
      %1482 = vmatprep.mubr.f32.mxu0 0.0
      %1483 = vmatmul.mubr.f32.gmra.mxu0 %v1308
      %v1484 = vpop.f32.mrf.mxu0
      %v1485 = vadd.f32 0.0, %v1484
      %v1486 = vpop.f32.mrf.mxu0
      %1487 = vmatprep.mubr.f32.mxu0 0.0
      %1488 = vmatmul.mubr.f32.gmra.mxu0 %v1311
      %v1489 = vpop.f32.mrf.mxu0
      %v1490 = vadd.f32 0.0, %v1489
      %v1491 = vpop.f32.mrf.mxu0
      %1492 = vmatprep.mubr.f32.mxu0 0.0
      %1493 = vmatmul.mubr.f32.gmra.mxu0 %v1314
      %v1494 = vpop.f32.mrf.mxu0
      %v1495 = vadd.f32 0.0, %v1494
      %v1496 = vpop.f32.mrf.mxu0
      %1497 = vmatprep.mubr.f32.mxu0 0.0
      %1498 = vmatmul.mubr.f32.gmra.mxu0 %v1317
      %v1499 = vpop.f32.mrf.mxu0
      %v1500 = vadd.f32 0.0, %v1499
      %v1501 = vpop.f32.mrf.mxu0
      %1502 = vmatprep.mubr.f32.mxu0 0.0
      %1503 = vmatmul.mubr.f32.gmra.mxu0 %v1320
      %v1504 = vpop.f32.mrf.mxu0
      %v1505 = vadd.f32 0.0, %v1504
      %v1506 = vpop.f32.mrf.mxu0
      %1507 = vmatprep.mubr.f32.mxu0 0.0
      %1508 = vmatmul.mubr.f32.gmra.mxu0 %v1323
      %v1509 = vpop.f32.mrf.mxu0
      %v1510 = vadd.f32 0.0, %v1509
      %v1511 = vpop.f32.mrf.mxu0
      %1512 = vmatprep.mubr.f32.mxu0 0.0
      %1513 = vmatmul.mubr.f32.gmra.mxu0 %v1326
      %v1514 = vpop.f32.mrf.mxu0
      %v1515 = vadd.f32 0.0, %v1514
      %v1516 = vpop.f32.mrf.mxu0
      %1517 = vmatprep.mubr.f32.mxu0 0.0
      %1518 = vmatmul.mubr.f32.gmra.mxu0 %v1329
      %v1519 = vpop.f32.mrf.mxu0
      %v1520 = vadd.f32 0.0, %v1519
      %v1521 = vpop.f32.mrf.mxu0
      %1522 = vmatprep.mubr.f32.mxu0 0.0
      %1523 = vmatmul.mubr.f32.gmra.mxu0 %v1332
      %v1524 = vpop.f32.mrf.mxu0
      %v1525 = vadd.f32 0.0, %v1524
      %v1526 = vpop.f32.mrf.mxu0
      %1527 = vmatprep.mubr.f32.mxu0 0.0
      %1528 = vmatmul.mubr.f32.gmra.mxu0 %v1335
      %v1529 = vpop.f32.mrf.mxu0
      %v1530 = vadd.f32 0.0, %v1529
      %v1531 = vpop.f32.mrf.mxu0
      %1532 = vmatprep.mubr.f32.mxu0 0.0
      %1533 = vmatmul.mubr.f32.gmra.mxu0 %v1338
      %v1534 = vpop.f32.mrf.mxu0
      %v1535 = vadd.f32 0.0, %v1534
      %v1536 = vpop.f32.mrf.mxu0
      %1537 = vmatprep.mubr.f32.mxu0 0.0
      %1538 = vmatmul.mubr.f32.gmra.mxu0 %v1341
      %v1539 = vpop.f32.mrf.mxu0
      %v1540 = vadd.f32 0.0, %v1539
      %v1541 = vpop.f32.mrf.mxu0
      %1542 = vmatprep.mubr.f32.mxu0 0.0
      %1543 = vmatmul.mubr.f32.gmra.mxu0 %v1344
      %v1544 = vpop.f32.mrf.mxu0
      %v1545 = vadd.f32 0.0, %v1544
      %v1546 = vpop.f32.mrf.mxu0
      %1547 = vmatprep.mubr.f32.mxu0 0.0
      %1548 = vmatmul.mubr.f32.gmra.mxu0 %v1347
      %v1549 = vpop.f32.mrf.mxu0
      %v1550 = vadd.f32 0.0, %v1549
      %v1551 = vpop.f32.mrf.mxu0
      %1552 = vmatprep.mubr.f32.mxu0 0.0
      %1553 = vmatmul.mubr.f32.gmra.mxu0 %v1350
      %v1554 = vpop.f32.mrf.mxu0
      %v1555 = vadd.f32 0.0, %v1554
      %v1556 = vpop.f32.mrf.mxu0
      %1557 = vmatprep.mubr.f32.mxu0 0.0
      %1558 = vmatmul.mubr.f32.gmra.mxu0 %v1353
      %v1559 = vpop.f32.mrf.mxu0
      %v1560 = vadd.f32 0.0, %v1559
      %v1561 = vpop.f32.mrf.mxu0
      %1562 = vmatprep.mubr.f32.mxu0 0.0
      %1563 = vmatmul.mubr.f32.gmra.mxu0 %v1356
      %v1564 = vpop.f32.mrf.mxu0
      %v1565 = vadd.f32 0.0, %v1564
      %v1566 = vpop.f32.mrf.mxu0
      %1567 = vmatprep.mubr.f32.mxu0 0.0
      %1568 = vmatmul.mubr.f32.gmra.mxu0 %v1359
      %v1569 = vpop.f32.mrf.mxu0
      %v1570 = vadd.f32 0.0, %v1569
      %v1571 = vpop.f32.mrf.mxu0
      %1572 = vmatprep.mubr.f32.mxu0 0.0
      %1573 = vmatmul.mubr.f32.gmra.mxu0 %v1362
      %v1574 = vpop.f32.mrf.mxu0
      %v1575 = vadd.f32 0.0, %v1574
      %v1576 = vpop.f32.mrf.mxu0
      %1577 = vmatprep.mubr.f32.mxu0 0.0
      %1578 = vmatmul.mubr.f32.gmra.mxu0 %v1365
      %v1579 = vpop.f32.mrf.mxu0
      %v1580 = vadd.f32 0.0, %v1579
      %v1581 = vpop.f32.mrf.mxu0
      %1582 = vmatprep.mubr.f32.mxu0 0.0
      %1583 = vmatmul.mubr.f32.gmra.mxu0 %v1368
      %v1584 = vpop.f32.mrf.mxu0
      %v1585 = vadd.f32 0.0, %v1584
      %v1586 = vpop.f32.mrf.mxu0
      %1587 = vmatprep.mubr.f32.mxu0 0.0
      %1588 = vmatmul.mubr.f32.gmra.mxu0 %v1371
      %v1589 = vpop.f32.mrf.mxu0
      %v1590 = vadd.f32 0.0, %v1589
      %v1591 = vpop.f32.mrf.mxu0
      %1592 = vmatprep.mubr.f32.mxu0 0.0
      %1593 = vmatmul.mubr.f32.gmra.mxu0 %v1374
      %v1594 = vpop.f32.mrf.mxu0
      %v1595 = vadd.f32 0.0, %v1594
      %v1596 = vpop.f32.mrf.mxu0
      %1597 = vmatprep.mubr.f32.mxu0 0.0
      %1598 = vmatmul.mubr.f32.gmra.mxu0 %v1377
      %v1599 = vpop.f32.mrf.mxu0
      %v1600 = vadd.f32 0.0, %v1599
      %v1601 = vpop.f32.mrf.mxu0
      %1602 = vmatprep.mubr.f32.mxu0 0.0
      %1603 = vmatmul.mubr.f32.gmra.mxu0 %v1380
      %v1604 = vpop.f32.mrf.mxu0
      %v1605 = vadd.f32 0.0, %v1604
      %v1606 = vpop.f32.mrf.mxu0
      %1607 = vmatprep.mubr.f32.mxu0 0.0
      %1608 = vmatmul.mubr.f32.gmra.mxu0 %v1383
      %v1609 = vpop.f32.mrf.mxu0
      %v1610 = vadd.f32 0.0, %v1609
      %v1611 = vpop.f32.mrf.mxu0
      %1612 = vdwg.mxu0
      %v1613 = vadd.f32 %v1222, %v1455
      %v1614 = vadd.f32 %v1223, %v1460
      %v1615 = vadd.f32 %v1224, %v1465
      %v1616 = vadd.f32 %v1225, %v1470
      %v1617 = vadd.f32 %v1226, %v1475
      %v1618 = vadd.f32 %v1227, %v1480
      %v1619 = vadd.f32 %v1228, %v1485
      %v1620 = vadd.f32 %v1229, %v1490
      %v1621 = vadd.f32 %v1230, %v1495
      %v1622 = vadd.f32 %v1231, %v1500
      %v1623 = vadd.f32 %v1232, %v1505
      %v1624 = vadd.f32 %v1233, %v1510
      %v1625 = vadd.f32 %v1234, %v1515
      %v1626 = vadd.f32 %v1235, %v1520
      %v1627 = vadd.f32 %v1236, %v1525
      %v1628 = vadd.f32 %v1237, %v1530
      %v1629 = vadd.f32 %v1238, %v1535
      %v1630 = vadd.f32 %v1239, %v1540
      %v1631 = vadd.f32 %v1240, %v1545
      %v1632 = vadd.f32 %v1241, %v1550
      %v1633 = vadd.f32 %v1242, %v1555
      %v1634 = vadd.f32 %v1243, %v1560
      %v1635 = vadd.f32 %v1244, %v1565
      %v1636 = vadd.f32 %v1245, %v1570
      %v1637 = vadd.f32 %v1246, %v1575
      %v1638 = vadd.f32 %v1247, %v1580
      %v1639 = vadd.f32 %v1248, %v1585
      %v1640 = vadd.f32 %v1249, %v1590
      %v1641 = vadd.f32 %v1250, %v1595
      %v1642 = vadd.f32 %v1251, %v1600
      %v1643 = vadd.f32 %v1252, %v1605
      %v1644 = vadd.f32 %v1253, %v1610
      %v1645 = vld [vmem:[%s1254 + $0x1] sm:$0xff]
      %v1646 = vld [vmem:[%s1254 + $0x9] sm:$0xff]
      %v1647 = vld [vmem:[%s1254 + $0x19] sm:$0xff]
      %v1648 = vld [vmem:[%s1254 + $0x21] sm:$0xff]
      %v1649 = vld [vmem:[%s1254 + $0x31] sm:$0xff]
      %v1650 = vld [vmem:[%s1254 + $0x39] sm:$0xff]
      %v1651 = vld [vmem:[%s1254 + $0x49] sm:$0xff]
      %v1652 = vld [vmem:[%s1254 + $0x51] sm:$0xff]
      %v1653 = vld [vmem:[%s1254 + $0x61] sm:$0xff]
      %v1654 = vld [vmem:[%s1254 + $0x69] sm:$0xff]
      %v1655 = vld [vmem:[%s1254 + $0x79] sm:$0xff]
      %v1656 = vld [vmem:[%s1254 + $0x81] sm:$0xff]
      %v1657 = vld [vmem:[%s1254 + $0x91] sm:$0xff]
      %v1658 = vld [vmem:[%s1254 + $0x99] sm:$0xff]
      %v1659 = vld [vmem:[%s1254 + $0xa9] sm:$0xff]
      %v1660 = vld [vmem:[%s1254 + $0xb1] sm:$0xff]
      %v1661 = vld [vmem:[%s1254 + $0xc1] sm:$0xff]
      %v1662 = vld [vmem:[%s1254 + $0xc9] sm:$0xff]
      %v1663 = vld [vmem:[%s1254 + $0xd9] sm:$0xff]
      %v1664 = vld [vmem:[%s1254 + $0xe1] sm:$0xff]
      %v1665 = vld [vmem:[%s1254 + $0xf1] sm:$0xff]
      %v1666 = vld [vmem:[%s1254 + $0xf9] sm:$0xff]
      %v1667 = vld [vmem:[%s1254 + $0x109] sm:$0xff]
      %v1668 = vld [vmem:[%s1254 + $0x111] sm:$0xff]
      %v1669 = vld [vmem:[%s1254 + $0x121] sm:$0xff]
      %v1670 = vld [vmem:[%s1254 + $0x129] sm:$0xff]
      %v1671 = vld [vmem:[%s1254 + $0x139] sm:$0xff]
      %v1672 = vld [vmem:[%s1254 + $0x141] sm:$0xff]
      %v1673 = vld [vmem:[%s1254 + $0x151] sm:$0xff]
      %v1674 = vld [vmem:[%s1254 + $0x159] sm:$0xff]
      %v1675 = vld [vmem:[%s1254 + $0x169] sm:$0xff]
      %v1676 = vld [vmem:[%s1254 + $0x171] sm:$0xff]
      %s1677 = scalar_lea.vmem %s1, 16
      %v1678 = vld [vmem:[%s1677] sm:$0xf]
      %v1680 = vsel %vm214, %v1645, 0
      %v1683 = vsel %vm214, %v1646, 0
      %v1686 = vsel %vm214, %v1647, 0
      %v1689 = vsel %vm214, %v1648, 0
      %v1692 = vsel %vm214, %v1649, 0
      %v1695 = vsel %vm214, %v1650, 0
      %v1698 = vsel %vm214, %v1651, 0
      %v1701 = vsel %vm214, %v1652, 0
      %v1704 = vsel %vm214, %v1653, 0
      %v1707 = vsel %vm214, %v1654, 0
      %v1710 = vsel %vm214, %v1655, 0
      %v1713 = vsel %vm214, %v1656, 0
      %v1716 = vsel %vm214, %v1657, 0
      %v1719 = vsel %vm214, %v1658, 0
      %v1722 = vsel %vm214, %v1659, 0
      %v1725 = vsel %vm214, %v1660, 0
      %v1728 = vsel %vm214, %v1661, 0
      %v1731 = vsel %vm214, %v1662, 0
      %v1734 = vsel %vm214, %v1663, 0
      %v1737 = vsel %vm214, %v1664, 0
      %v1740 = vsel %vm214, %v1665, 0
      %v1743 = vsel %vm214, %v1666, 0
      %v1746 = vsel %vm214, %v1667, 0
      %v1749 = vsel %vm214, %v1668, 0
      %v1752 = vsel %vm214, %v1669, 0
      %v1755 = vsel %vm214, %v1670, 0
      %v1758 = vsel %vm214, %v1671, 0
      %v1761 = vsel %vm214, %v1672, 0
      %v1764 = vsel %vm214, %v1673, 0
      %v1767 = vsel %vm214, %v1674, 0
      %v1770 = vsel %vm214, %v1675, 0
      %v1773 = vsel %vm214, %v1676, 0
      %v1776 = vsel %vm311, %v1678, 0
      %1778 = vmatprep.subr.mxu0 0.0
      %1779 = vmatpush1.msra.mxu0 0.0
      %1780 = vmatprep.subr.mxu0 0.0
      %1781 = vmatpush1.msra.mxu0 0.0
      %1782 = vmatprep.subr.mxu0 0.0
      %1783 = vmatpush1.msra.mxu0 0.0
      %1784 = vmatprep.subr.mxu0 0.0
      %1785 = vmatpush1.msra.mxu0 0.0
      %1786 = vmatprep.subr.mxu0 0.0
      %1787 = vmatpush1.msra.mxu0 0.0
      %1788 = vmatprep.subr.mxu0 0.0
      %1789 = vmatpush1.msra.mxu0 0.0
      %1790 = vmatprep.subr.mxu0 0.0
      %1791 = vmatpush1.msra.mxu0 0.0
      %1792 = vmatprep.subr.mxu0 0.0
      %1793 = vmatpush1.msra.mxu0 0.0
      %1794 = vmatprep.subr.mxu0 0.0
      %1795 = vmatpush1.msra.mxu0 0.0
      %1796 = vmatprep.subr.mxu0 0.0
      %1797 = vmatpush1.msra.mxu0 0.0
      %1798 = vmatprep.subr.mxu0 0.0
      %1799 = vmatpush1.msra.mxu0 0.0
      %1800 = vmatprep.subr.mxu0 0.0
      %1801 = vmatpush1.msra.mxu0 0.0
      %1802 = vmatprep.subr.mxu0 0.0
      %1803 = vmatpush1.msra.mxu0 0.0
      %1804 = vmatprep.subr.mxu0 0.0
      %1805 = vmatpush1.msra.mxu0 0.0
      %1806 = vmatprep.subr.mxu0 0.0
      %1807 = vmatpush1.msra.mxu0 0.0
      %1808 = vmatprep.subr.mxu0 0.0
      %1809 = vmatpush1.msra.mxu0 %v1776
      %1810 = vmatprep.subr.mxu0 0.0
      %1811 = vmatpush2.msra.mxu0 0.0
      %1812 = vmatprep.subr.mxu0 0.0
      %1813 = vmatpush2.msra.mxu0 0.0
      %1814 = vmatprep.subr.mxu0 0.0
      %1815 = vmatpush2.msra.mxu0 0.0
      %1816 = vmatprep.subr.mxu0 0.0
      %1817 = vmatpush2.msra.mxu0 0.0
      %1818 = vmatprep.subr.mxu0 0.0
      %1819 = vmatpush2.msra.mxu0 0.0
      %1820 = vmatprep.subr.mxu0 0.0
      %1821 = vmatpush2.msra.mxu0 0.0
      %1822 = vmatprep.subr.mxu0 0.0
      %1823 = vmatpush2.msra.mxu0 0.0
      %1824 = vmatprep.subr.mxu0 0.0
      %1825 = vmatpush2.msra.mxu0 0.0
      %1826 = vmatprep.subr.mxu0 0.0
      %1827 = vmatpush2.msra.mxu0 0.0
      %1828 = vmatprep.subr.mxu0 0.0
      %1829 = vmatpush2.msra.mxu0 0.0
      %1830 = vmatprep.subr.mxu0 0.0
      %1831 = vmatpush2.msra.mxu0 0.0
      %1832 = vmatprep.subr.mxu0 0.0
      %1833 = vmatpush2.msra.mxu0 0.0
      %1834 = vmatprep.subr.mxu0 0.0
      %1835 = vmatpush2.msra.mxu0 0.0
      %1836 = vmatprep.subr.mxu0 0.0
      %1837 = vmatpush2.msra.mxu0 0.0
      %1838 = vmatprep.subr.mxu0 0.0
      %1839 = vmatpush2.msra.mxu0 0.0
      %1840 = vmatprep.subr.mxu0 0.0
      %1841 = vmatpush2.msra.mxu0 0.0
      %1842 = vmatprep.mubr.f32.mxu0 0.0
      %1843 = vmatmul.mubr.f32.gmra.mxu0 %v1680
      %v1844 = vpop.f32.mrf.mxu0
      %v1845 = vadd.f32 0.0, %v1844
      %v1846 = vpop.f32.mrf.mxu0
      %1847 = vmatprep.mubr.f32.mxu0 0.0
      %1848 = vmatmul.mubr.f32.gmra.mxu0 %v1683
      %v1849 = vpop.f32.mrf.mxu0
      %v1850 = vadd.f32 0.0, %v1849
      %v1851 = vpop.f32.mrf.mxu0
      %1852 = vmatprep.mubr.f32.mxu0 0.0
      %1853 = vmatmul.mubr.f32.gmra.mxu0 %v1686
      %v1854 = vpop.f32.mrf.mxu0
      %v1855 = vadd.f32 0.0, %v1854
      %v1856 = vpop.f32.mrf.mxu0
      %1857 = vmatprep.mubr.f32.mxu0 0.0
      %1858 = vmatmul.mubr.f32.gmra.mxu0 %v1689
      %v1859 = vpop.f32.mrf.mxu0
      %v1860 = vadd.f32 0.0, %v1859
      %v1861 = vpop.f32.mrf.mxu0
      %1862 = vmatprep.mubr.f32.mxu0 0.0
      %1863 = vmatmul.mubr.f32.gmra.mxu0 %v1692
      %v1864 = vpop.f32.mrf.mxu0
      %v1865 = vadd.f32 0.0, %v1864
      %v1866 = vpop.f32.mrf.mxu0
      %1867 = vmatprep.mubr.f32.mxu0 0.0
      %1868 = vmatmul.mubr.f32.gmra.mxu0 %v1695
      %v1869 = vpop.f32.mrf.mxu0
      %v1870 = vadd.f32 0.0, %v1869
      %v1871 = vpop.f32.mrf.mxu0
      %1872 = vmatprep.mubr.f32.mxu0 0.0
      %1873 = vmatmul.mubr.f32.gmra.mxu0 %v1698
      %v1874 = vpop.f32.mrf.mxu0
      %v1875 = vadd.f32 0.0, %v1874
      %v1876 = vpop.f32.mrf.mxu0
      %1877 = vmatprep.mubr.f32.mxu0 0.0
      %1878 = vmatmul.mubr.f32.gmra.mxu0 %v1701
      %v1879 = vpop.f32.mrf.mxu0
      %v1880 = vadd.f32 0.0, %v1879
      %v1881 = vpop.f32.mrf.mxu0
      %1882 = vmatprep.mubr.f32.mxu0 0.0
      %1883 = vmatmul.mubr.f32.gmra.mxu0 %v1704
      %v1884 = vpop.f32.mrf.mxu0
      %v1885 = vadd.f32 0.0, %v1884
      %v1886 = vpop.f32.mrf.mxu0
      %1887 = vmatprep.mubr.f32.mxu0 0.0
      %1888 = vmatmul.mubr.f32.gmra.mxu0 %v1707
      %v1889 = vpop.f32.mrf.mxu0
      %v1890 = vadd.f32 0.0, %v1889
      %v1891 = vpop.f32.mrf.mxu0
      %1892 = vmatprep.mubr.f32.mxu0 0.0
      %1893 = vmatmul.mubr.f32.gmra.mxu0 %v1710
      %v1894 = vpop.f32.mrf.mxu0
      %v1895 = vadd.f32 0.0, %v1894
      %v1896 = vpop.f32.mrf.mxu0
      %1897 = vmatprep.mubr.f32.mxu0 0.0
      %1898 = vmatmul.mubr.f32.gmra.mxu0 %v1713
      %v1899 = vpop.f32.mrf.mxu0
      %v1900 = vadd.f32 0.0, %v1899
      %v1901 = vpop.f32.mrf.mxu0
      %1902 = vmatprep.mubr.f32.mxu0 0.0
      %1903 = vmatmul.mubr.f32.gmra.mxu0 %v1716
      %v1904 = vpop.f32.mrf.mxu0
      %v1905 = vadd.f32 0.0, %v1904
      %v1906 = vpop.f32.mrf.mxu0
      %1907 = vmatprep.mubr.f32.mxu0 0.0
      %1908 = vmatmul.mubr.f32.gmra.mxu0 %v1719
      %v1909 = vpop.f32.mrf.mxu0
      %v1910 = vadd.f32 0.0, %v1909
      %v1911 = vpop.f32.mrf.mxu0
      %1912 = vmatprep.mubr.f32.mxu0 0.0
      %1913 = vmatmul.mubr.f32.gmra.mxu0 %v1722
      %v1914 = vpop.f32.mrf.mxu0
      %v1915 = vadd.f32 0.0, %v1914
      %v1916 = vpop.f32.mrf.mxu0
      %1917 = vmatprep.mubr.f32.mxu0 0.0
      %1918 = vmatmul.mubr.f32.gmra.mxu0 %v1725
      %v1919 = vpop.f32.mrf.mxu0
      %v1920 = vadd.f32 0.0, %v1919
      %v1921 = vpop.f32.mrf.mxu0
      %1922 = vmatprep.mubr.f32.mxu0 0.0
      %1923 = vmatmul.mubr.f32.gmra.mxu0 %v1728
      %v1924 = vpop.f32.mrf.mxu0
      %v1925 = vadd.f32 0.0, %v1924
      %v1926 = vpop.f32.mrf.mxu0
      %1927 = vmatprep.mubr.f32.mxu0 0.0
      %1928 = vmatmul.mubr.f32.gmra.mxu0 %v1731
      %v1929 = vpop.f32.mrf.mxu0
      %v1930 = vadd.f32 0.0, %v1929
      %v1931 = vpop.f32.mrf.mxu0
      %1932 = vmatprep.mubr.f32.mxu0 0.0
      %1933 = vmatmul.mubr.f32.gmra.mxu0 %v1734
      %v1934 = vpop.f32.mrf.mxu0
      %v1935 = vadd.f32 0.0, %v1934
      %v1936 = vpop.f32.mrf.mxu0
      %1937 = vmatprep.mubr.f32.mxu0 0.0
      %1938 = vmatmul.mubr.f32.gmra.mxu0 %v1737
      %v1939 = vpop.f32.mrf.mxu0
      %v1940 = vadd.f32 0.0, %v1939
      %v1941 = vpop.f32.mrf.mxu0
      %1942 = vmatprep.mubr.f32.mxu0 0.0
      %1943 = vmatmul.mubr.f32.gmra.mxu0 %v1740
      %v1944 = vpop.f32.mrf.mxu0
      %v1945 = vadd.f32 0.0, %v1944
      %v1946 = vpop.f32.mrf.mxu0
      %1947 = vmatprep.mubr.f32.mxu0 0.0
      %1948 = vmatmul.mubr.f32.gmra.mxu0 %v1743
      %v1949 = vpop.f32.mrf.mxu0
      %v1950 = vadd.f32 0.0, %v1949
      %v1951 = vpop.f32.mrf.mxu0
      %1952 = vmatprep.mubr.f32.mxu0 0.0
      %1953 = vmatmul.mubr.f32.gmra.mxu0 %v1746
      %v1954 = vpop.f32.mrf.mxu0
      %v1955 = vadd.f32 0.0, %v1954
      %v1956 = vpop.f32.mrf.mxu0
      %1957 = vmatprep.mubr.f32.mxu0 0.0
      %1958 = vmatmul.mubr.f32.gmra.mxu0 %v1749
      %v1959 = vpop.f32.mrf.mxu0
      %v1960 = vadd.f32 0.0, %v1959
      %v1961 = vpop.f32.mrf.mxu0
      %1962 = vmatprep.mubr.f32.mxu0 0.0
      %1963 = vmatmul.mubr.f32.gmra.mxu0 %v1752
      %v1964 = vpop.f32.mrf.mxu0
      %v1965 = vadd.f32 0.0, %v1964
      %v1966 = vpop.f32.mrf.mxu0
      %1967 = vmatprep.mubr.f32.mxu0 0.0
      %1968 = vmatmul.mubr.f32.gmra.mxu0 %v1755
      %v1969 = vpop.f32.mrf.mxu0
      %v1970 = vadd.f32 0.0, %v1969
      %v1971 = vpop.f32.mrf.mxu0
      %1972 = vmatprep.mubr.f32.mxu0 0.0
      %1973 = vmatmul.mubr.f32.gmra.mxu0 %v1758
      %v1974 = vpop.f32.mrf.mxu0
      %v1975 = vadd.f32 0.0, %v1974
      %v1976 = vpop.f32.mrf.mxu0
      %1977 = vmatprep.mubr.f32.mxu0 0.0
      %1978 = vmatmul.mubr.f32.gmra.mxu0 %v1761
      %v1979 = vpop.f32.mrf.mxu0
      %v1980 = vadd.f32 0.0, %v1979
      %v1981 = vpop.f32.mrf.mxu0
      %1982 = vmatprep.mubr.f32.mxu0 0.0
      %1983 = vmatmul.mubr.f32.gmra.mxu0 %v1764
      %v1984 = vpop.f32.mrf.mxu0
      %v1985 = vadd.f32 0.0, %v1984
      %v1986 = vpop.f32.mrf.mxu0
      %1987 = vmatprep.mubr.f32.mxu0 0.0
      %1988 = vmatmul.mubr.f32.gmra.mxu0 %v1767
      %v1989 = vpop.f32.mrf.mxu0
      %v1990 = vadd.f32 0.0, %v1989
      %v1991 = vpop.f32.mrf.mxu0
      %1992 = vmatprep.mubr.f32.mxu0 0.0
      %1993 = vmatmul.mubr.f32.gmra.mxu0 %v1770
      %v1994 = vpop.f32.mrf.mxu0
      %v1995 = vadd.f32 0.0, %v1994
      %v1996 = vpop.f32.mrf.mxu0
      %1997 = vmatprep.mubr.f32.mxu0 0.0
      %1998 = vmatmul.mubr.f32.gmra.mxu0 %v1773
      %v1999 = vpop.f32.mrf.mxu0
      %v2000 = vadd.f32 0.0, %v1999
      %v2001 = vpop.f32.mrf.mxu0
      %2002 = vdwg.mxu0
      %v2003 = vadd.f32 %v1613, %v1845
      %v2004 = vadd.f32 %v1614, %v1850
      %v2005 = vadd.f32 %v1615, %v1855
      %v2006 = vadd.f32 %v1616, %v1860
      %v2007 = vadd.f32 %v1617, %v1865
      %v2008 = vadd.f32 %v1618, %v1870
      %v2009 = vadd.f32 %v1619, %v1875
      %v2010 = vadd.f32 %v1620, %v1880
      %v2011 = vadd.f32 %v1621, %v1885
      %v2012 = vadd.f32 %v1622, %v1890
      %v2013 = vadd.f32 %v1623, %v1895
      %v2014 = vadd.f32 %v1624, %v1900
      %v2015 = vadd.f32 %v1625, %v1905
      %v2016 = vadd.f32 %v1626, %v1910
      %v2017 = vadd.f32 %v1627, %v1915
      %v2018 = vadd.f32 %v1628, %v1920
      %v2019 = vadd.f32 %v1629, %v1925
      %v2020 = vadd.f32 %v1630, %v1930
      %v2021 = vadd.f32 %v1631, %v1935
      %v2022 = vadd.f32 %v1632, %v1940
      %v2023 = vadd.f32 %v1633, %v1945
      %v2024 = vadd.f32 %v1634, %v1950
      %v2025 = vadd.f32 %v1635, %v1955
      %v2026 = vadd.f32 %v1636, %v1960
      %v2027 = vadd.f32 %v1637, %v1965
      %v2028 = vadd.f32 %v1638, %v1970
      %v2029 = vadd.f32 %v1639, %v1975
      %v2030 = vadd.f32 %v1640, %v1980
      %v2031 = vadd.f32 %v1641, %v1985
      %v2032 = vadd.f32 %v1642, %v1990
      %v2033 = vadd.f32 %v1643, %v1995
      %v2034 = vadd.f32 %v1644, %v2000
      %v2035 = vld [vmem:[%s1254 + $0x2] sm:$0xff]
      %v2036 = vld [vmem:[%s1254 + $0xa] sm:$0xff]
      %v2037 = vld [vmem:[%s1254 + $0x1a] sm:$0xff]
      %v2038 = vld [vmem:[%s1254 + $0x22] sm:$0xff]
      %v2039 = vld [vmem:[%s1254 + $0x32] sm:$0xff]
      %v2040 = vld [vmem:[%s1254 + $0x3a] sm:$0xff]
      %v2041 = vld [vmem:[%s1254 + $0x4a] sm:$0xff]
      %v2042 = vld [vmem:[%s1254 + $0x52] sm:$0xff]
      %v2043 = vld [vmem:[%s1254 + $0x62] sm:$0xff]
      %v2044 = vld [vmem:[%s1254 + $0x6a] sm:$0xff]
      %v2045 = vld [vmem:[%s1254 + $0x7a] sm:$0xff]
      %v2046 = vld [vmem:[%s1254 + $0x82] sm:$0xff]
      %v2047 = vld [vmem:[%s1254 + $0x92] sm:$0xff]
      %v2048 = vld [vmem:[%s1254 + $0x9a] sm:$0xff]
      %v2049 = vld [vmem:[%s1254 + $0xaa] sm:$0xff]
      %v2050 = vld [vmem:[%s1254 + $0xb2] sm:$0xff]
      %v2051 = vld [vmem:[%s1254 + $0xc2] sm:$0xff]
      %v2052 = vld [vmem:[%s1254 + $0xca] sm:$0xff]
      %v2053 = vld [vmem:[%s1254 + $0xda] sm:$0xff]
      %v2054 = vld [vmem:[%s1254 + $0xe2] sm:$0xff]
      %v2055 = vld [vmem:[%s1254 + $0xf2] sm:$0xff]
      %v2056 = vld [vmem:[%s1254 + $0xfa] sm:$0xff]
      %v2057 = vld [vmem:[%s1254 + $0x10a] sm:$0xff]
      %v2058 = vld [vmem:[%s1254 + $0x112] sm:$0xff]
      %v2059 = vld [vmem:[%s1254 + $0x122] sm:$0xff]
      %v2060 = vld [vmem:[%s1254 + $0x12a] sm:$0xff]
      %v2061 = vld [vmem:[%s1254 + $0x13a] sm:$0xff]
      %v2062 = vld [vmem:[%s1254 + $0x142] sm:$0xff]
      %v2063 = vld [vmem:[%s1254 + $0x152] sm:$0xff]
      %v2064 = vld [vmem:[%s1254 + $0x15a] sm:$0xff]
      %v2065 = vld [vmem:[%s1254 + $0x16a] sm:$0xff]
      %v2066 = vld [vmem:[%s1254 + $0x172] sm:$0xff]
      %s2067 = scalar_lea.vmem %s1, 20
      %v2068 = vld [vmem:[%s2067] sm:$0xf]
      %v2070 = vsel %vm214, %v2035, 0
      %v2073 = vsel %vm214, %v2036, 0
      %v2076 = vsel %vm214, %v2037, 0
      %v2079 = vsel %vm214, %v2038, 0
      %v2082 = vsel %vm214, %v2039, 0
      %v2085 = vsel %vm214, %v2040, 0
      %v2088 = vsel %vm214, %v2041, 0
      %v2091 = vsel %vm214, %v2042, 0
      %v2094 = vsel %vm214, %v2043, 0
      %v2097 = vsel %vm214, %v2044, 0
      %v2100 = vsel %vm214, %v2045, 0
      %v2103 = vsel %vm214, %v2046, 0
      %v2106 = vsel %vm214, %v2047, 0
      %v2109 = vsel %vm214, %v2048, 0
      %v2112 = vsel %vm214, %v2049, 0
      %v2115 = vsel %vm214, %v2050, 0
      %v2118 = vsel %vm214, %v2051, 0
      %v2121 = vsel %vm214, %v2052, 0
      %v2124 = vsel %vm214, %v2053, 0
      %v2127 = vsel %vm214, %v2054, 0
      %v2130 = vsel %vm214, %v2055, 0
      %v2133 = vsel %vm214, %v2056, 0
      %v2136 = vsel %vm214, %v2057, 0
      %v2139 = vsel %vm214, %v2058, 0
      %v2142 = vsel %vm214, %v2059, 0
      %v2145 = vsel %vm214, %v2060, 0
      %v2148 = vsel %vm214, %v2061, 0
      %v2151 = vsel %vm214, %v2062, 0
      %v2154 = vsel %vm214, %v2063, 0
      %v2157 = vsel %vm214, %v2064, 0
      %v2160 = vsel %vm214, %v2065, 0
      %v2163 = vsel %vm214, %v2066, 0
      %v2166 = vsel %vm311, %v2068, 0
      %2168 = vmatprep.subr.mxu0 0.0
      %2169 = vmatpush1.msra.mxu0 0.0
      %2170 = vmatprep.subr.mxu0 0.0
      %2171 = vmatpush1.msra.mxu0 0.0
      %2172 = vmatprep.subr.mxu0 0.0
      %2173 = vmatpush1.msra.mxu0 0.0
      %2174 = vmatprep.subr.mxu0 0.0
      %2175 = vmatpush1.msra.mxu0 0.0
      %2176 = vmatprep.subr.mxu0 0.0
      %2177 = vmatpush1.msra.mxu0 0.0
      %2178 = vmatprep.subr.mxu0 0.0
      %2179 = vmatpush1.msra.mxu0 0.0
      %2180 = vmatprep.subr.mxu0 0.0
      %2181 = vmatpush1.msra.mxu0 0.0
      %2182 = vmatprep.subr.mxu0 0.0
      %2183 = vmatpush1.msra.mxu0 0.0
      %2184 = vmatprep.subr.mxu0 0.0
      %2185 = vmatpush1.msra.mxu0 0.0
      %2186 = vmatprep.subr.mxu0 0.0
      %2187 = vmatpush1.msra.mxu0 0.0
      %2188 = vmatprep.subr.mxu0 0.0
      %2189 = vmatpush1.msra.mxu0 0.0
      %2190 = vmatprep.subr.mxu0 0.0
      %2191 = vmatpush1.msra.mxu0 0.0
      %2192 = vmatprep.subr.mxu0 0.0
      %2193 = vmatpush1.msra.mxu0 0.0
      %2194 = vmatprep.subr.mxu0 0.0
      %2195 = vmatpush1.msra.mxu0 0.0
      %2196 = vmatprep.subr.mxu0 0.0
      %2197 = vmatpush1.msra.mxu0 0.0
      %2198 = vmatprep.subr.mxu0 0.0
      %2199 = vmatpush1.msra.mxu0 %v2166
      %2200 = vmatprep.subr.mxu0 0.0
      %2201 = vmatpush2.msra.mxu0 0.0
      %2202 = vmatprep.subr.mxu0 0.0
      %2203 = vmatpush2.msra.mxu0 0.0
      %2204 = vmatprep.subr.mxu0 0.0
      %2205 = vmatpush2.msra.mxu0 0.0
      %2206 = vmatprep.subr.mxu0 0.0
      %2207 = vmatpush2.msra.mxu0 0.0
      %2208 = vmatprep.subr.mxu0 0.0
      %2209 = vmatpush2.msra.mxu0 0.0
      %2210 = vmatprep.subr.mxu0 0.0
      %2211 = vmatpush2.msra.mxu0 0.0
      %2212 = vmatprep.subr.mxu0 0.0
      %2213 = vmatpush2.msra.mxu0 0.0
      %2214 = vmatprep.subr.mxu0 0.0
      %2215 = vmatpush2.msra.mxu0 0.0
      %2216 = vmatprep.subr.mxu0 0.0
      %2217 = vmatpush2.msra.mxu0 0.0
      %2218 = vmatprep.subr.mxu0 0.0
      %2219 = vmatpush2.msra.mxu0 0.0
      %2220 = vmatprep.subr.mxu0 0.0
      %2221 = vmatpush2.msra.mxu0 0.0
      %2222 = vmatprep.subr.mxu0 0.0
      %2223 = vmatpush2.msra.mxu0 0.0
      %2224 = vmatprep.subr.mxu0 0.0
      %2225 = vmatpush2.msra.mxu0 0.0
      %2226 = vmatprep.subr.mxu0 0.0
      %2227 = vmatpush2.msra.mxu0 0.0
      %2228 = vmatprep.subr.mxu0 0.0
      %2229 = vmatpush2.msra.mxu0 0.0
      %2230 = vmatprep.subr.mxu0 0.0
      %2231 = vmatpush2.msra.mxu0 0.0
      %2232 = vmatprep.mubr.f32.mxu0 0.0
      %2233 = vmatmul.mubr.f32.gmra.mxu0 %v2070
      %v2234 = vpop.f32.mrf.mxu0
      %v2235 = vadd.f32 0.0, %v2234
      %v2236 = vpop.f32.mrf.mxu0
      %2237 = vmatprep.mubr.f32.mxu0 0.0
      %2238 = vmatmul.mubr.f32.gmra.mxu0 %v2073
      %v2239 = vpop.f32.mrf.mxu0
      %v2240 = vadd.f32 0.0, %v2239
      %v2241 = vpop.f32.mrf.mxu0
      %2242 = vmatprep.mubr.f32.mxu0 0.0
      %2243 = vmatmul.mubr.f32.gmra.mxu0 %v2076
      %v2244 = vpop.f32.mrf.mxu0
      %v2245 = vadd.f32 0.0, %v2244
      %v2246 = vpop.f32.mrf.mxu0
      %2247 = vmatprep.mubr.f32.mxu0 0.0
      %2248 = vmatmul.mubr.f32.gmra.mxu0 %v2079
      %v2249 = vpop.f32.mrf.mxu0
      %v2250 = vadd.f32 0.0, %v2249
      %v2251 = vpop.f32.mrf.mxu0
      %2252 = vmatprep.mubr.f32.mxu0 0.0
      %2253 = vmatmul.mubr.f32.gmra.mxu0 %v2082
      %v2254 = vpop.f32.mrf.mxu0
      %v2255 = vadd.f32 0.0, %v2254
      %v2256 = vpop.f32.mrf.mxu0
      %2257 = vmatprep.mubr.f32.mxu0 0.0
      %2258 = vmatmul.mubr.f32.gmra.mxu0 %v2085
      %v2259 = vpop.f32.mrf.mxu0
      %v2260 = vadd.f32 0.0, %v2259
      %v2261 = vpop.f32.mrf.mxu0
      %2262 = vmatprep.mubr.f32.mxu0 0.0
      %2263 = vmatmul.mubr.f32.gmra.mxu0 %v2088
      %v2264 = vpop.f32.mrf.mxu0
      %v2265 = vadd.f32 0.0, %v2264
      %v2266 = vpop.f32.mrf.mxu0
      %2267 = vmatprep.mubr.f32.mxu0 0.0
      %2268 = vmatmul.mubr.f32.gmra.mxu0 %v2091
      %v2269 = vpop.f32.mrf.mxu0
      %v2270 = vadd.f32 0.0, %v2269
      %v2271 = vpop.f32.mrf.mxu0
      %2272 = vmatprep.mubr.f32.mxu0 0.0
      %2273 = vmatmul.mubr.f32.gmra.mxu0 %v2094
      %v2274 = vpop.f32.mrf.mxu0
      %v2275 = vadd.f32 0.0, %v2274
      %v2276 = vpop.f32.mrf.mxu0
      %2277 = vmatprep.mubr.f32.mxu0 0.0
      %2278 = vmatmul.mubr.f32.gmra.mxu0 %v2097
      %v2279 = vpop.f32.mrf.mxu0
      %v2280 = vadd.f32 0.0, %v2279
      %v2281 = vpop.f32.mrf.mxu0
      %2282 = vmatprep.mubr.f32.mxu0 0.0
      %2283 = vmatmul.mubr.f32.gmra.mxu0 %v2100
      %v2284 = vpop.f32.mrf.mxu0
      %v2285 = vadd.f32 0.0, %v2284
      %v2286 = vpop.f32.mrf.mxu0
      %2287 = vmatprep.mubr.f32.mxu0 0.0
      %2288 = vmatmul.mubr.f32.gmra.mxu0 %v2103
      %v2289 = vpop.f32.mrf.mxu0
      %v2290 = vadd.f32 0.0, %v2289
      %v2291 = vpop.f32.mrf.mxu0
      %2292 = vmatprep.mubr.f32.mxu0 0.0
      %2293 = vmatmul.mubr.f32.gmra.mxu0 %v2106
      %v2294 = vpop.f32.mrf.mxu0
      %v2295 = vadd.f32 0.0, %v2294
      %v2296 = vpop.f32.mrf.mxu0
      %2297 = vmatprep.mubr.f32.mxu0 0.0
      %2298 = vmatmul.mubr.f32.gmra.mxu0 %v2109
      %v2299 = vpop.f32.mrf.mxu0
      %v2300 = vadd.f32 0.0, %v2299
      %v2301 = vpop.f32.mrf.mxu0
      %2302 = vmatprep.mubr.f32.mxu0 0.0
      %2303 = vmatmul.mubr.f32.gmra.mxu0 %v2112
      %v2304 = vpop.f32.mrf.mxu0
      %v2305 = vadd.f32 0.0, %v2304
      %v2306 = vpop.f32.mrf.mxu0
      %2307 = vmatprep.mubr.f32.mxu0 0.0
      %2308 = vmatmul.mubr.f32.gmra.mxu0 %v2115
      %v2309 = vpop.f32.mrf.mxu0
      %v2310 = vadd.f32 0.0, %v2309
      %v2311 = vpop.f32.mrf.mxu0
      %2312 = vmatprep.mubr.f32.mxu0 0.0
      %2313 = vmatmul.mubr.f32.gmra.mxu0 %v2118
      %v2314 = vpop.f32.mrf.mxu0
      %v2315 = vadd.f32 0.0, %v2314
      %v2316 = vpop.f32.mrf.mxu0
      %2317 = vmatprep.mubr.f32.mxu0 0.0
      %2318 = vmatmul.mubr.f32.gmra.mxu0 %v2121
      %v2319 = vpop.f32.mrf.mxu0
      %v2320 = vadd.f32 0.0, %v2319
      %v2321 = vpop.f32.mrf.mxu0
      %2322 = vmatprep.mubr.f32.mxu0 0.0
      %2323 = vmatmul.mubr.f32.gmra.mxu0 %v2124
      %v2324 = vpop.f32.mrf.mxu0
      %v2325 = vadd.f32 0.0, %v2324
      %v2326 = vpop.f32.mrf.mxu0
      %2327 = vmatprep.mubr.f32.mxu0 0.0
      %2328 = vmatmul.mubr.f32.gmra.mxu0 %v2127
      %v2329 = vpop.f32.mrf.mxu0
      %v2330 = vadd.f32 0.0, %v2329
      %v2331 = vpop.f32.mrf.mxu0
      %2332 = vmatprep.mubr.f32.mxu0 0.0
      %2333 = vmatmul.mubr.f32.gmra.mxu0 %v2130
      %v2334 = vpop.f32.mrf.mxu0
      %v2335 = vadd.f32 0.0, %v2334
      %v2336 = vpop.f32.mrf.mxu0
      %2337 = vmatprep.mubr.f32.mxu0 0.0
      %2338 = vmatmul.mubr.f32.gmra.mxu0 %v2133
      %v2339 = vpop.f32.mrf.mxu0
      %v2340 = vadd.f32 0.0, %v2339
      %v2341 = vpop.f32.mrf.mxu0
      %2342 = vmatprep.mubr.f32.mxu0 0.0
      %2343 = vmatmul.mubr.f32.gmra.mxu0 %v2136
      %v2344 = vpop.f32.mrf.mxu0
      %v2345 = vadd.f32 0.0, %v2344
      %v2346 = vpop.f32.mrf.mxu0
      %2347 = vmatprep.mubr.f32.mxu0 0.0
      %2348 = vmatmul.mubr.f32.gmra.mxu0 %v2139
      %v2349 = vpop.f32.mrf.mxu0
      %v2350 = vadd.f32 0.0, %v2349
      %v2351 = vpop.f32.mrf.mxu0
      %2352 = vmatprep.mubr.f32.mxu0 0.0
      %2353 = vmatmul.mubr.f32.gmra.mxu0 %v2142
      %v2354 = vpop.f32.mrf.mxu0
      %v2355 = vadd.f32 0.0, %v2354
      %v2356 = vpop.f32.mrf.mxu0
      %2357 = vmatprep.mubr.f32.mxu0 0.0
      %2358 = vmatmul.mubr.f32.gmra.mxu0 %v2145
      %v2359 = vpop.f32.mrf.mxu0
      %v2360 = vadd.f32 0.0, %v2359
      %v2361 = vpop.f32.mrf.mxu0
      %2362 = vmatprep.mubr.f32.mxu0 0.0
      %2363 = vmatmul.mubr.f32.gmra.mxu0 %v2148
      %v2364 = vpop.f32.mrf.mxu0
      %v2365 = vadd.f32 0.0, %v2364
      %v2366 = vpop.f32.mrf.mxu0
      %2367 = vmatprep.mubr.f32.mxu0 0.0
      %2368 = vmatmul.mubr.f32.gmra.mxu0 %v2151
      %v2369 = vpop.f32.mrf.mxu0
      %v2370 = vadd.f32 0.0, %v2369
      %v2371 = vpop.f32.mrf.mxu0
      %2372 = vmatprep.mubr.f32.mxu0 0.0
      %2373 = vmatmul.mubr.f32.gmra.mxu0 %v2154
      %v2374 = vpop.f32.mrf.mxu0
      %v2375 = vadd.f32 0.0, %v2374
      %v2376 = vpop.f32.mrf.mxu0
      %2377 = vmatprep.mubr.f32.mxu0 0.0
      %2378 = vmatmul.mubr.f32.gmra.mxu0 %v2157
      %v2379 = vpop.f32.mrf.mxu0
      %v2380 = vadd.f32 0.0, %v2379
      %v2381 = vpop.f32.mrf.mxu0
      %2382 = vmatprep.mubr.f32.mxu0 0.0
      %2383 = vmatmul.mubr.f32.gmra.mxu0 %v2160
      %v2384 = vpop.f32.mrf.mxu0
      %v2385 = vadd.f32 0.0, %v2384
      %v2386 = vpop.f32.mrf.mxu0
      %2387 = vmatprep.mubr.f32.mxu0 0.0
      %2388 = vmatmul.mubr.f32.gmra.mxu0 %v2163
      %v2389 = vpop.f32.mrf.mxu0
      %v2390 = vadd.f32 0.0, %v2389
      %v2391 = vpop.f32.mrf.mxu0
      %2392 = vdwg.mxu0
      %v2393 = vadd.f32 %v2003, %v2235
      %v2394 = vadd.f32 %v2004, %v2240
      %v2395 = vadd.f32 %v2005, %v2245
      %v2396 = vadd.f32 %v2006, %v2250
      %v2397 = vadd.f32 %v2007, %v2255
      %v2398 = vadd.f32 %v2008, %v2260
      %v2399 = vadd.f32 %v2009, %v2265
      %v2400 = vadd.f32 %v2010, %v2270
      %v2401 = vadd.f32 %v2011, %v2275
      %v2402 = vadd.f32 %v2012, %v2280
      %v2403 = vadd.f32 %v2013, %v2285
      %v2404 = vadd.f32 %v2014, %v2290
      %v2405 = vadd.f32 %v2015, %v2295
      %v2406 = vadd.f32 %v2016, %v2300
      %v2407 = vadd.f32 %v2017, %v2305
      %v2408 = vadd.f32 %v2018, %v2310
      %v2409 = vadd.f32 %v2019, %v2315
      %v2410 = vadd.f32 %v2020, %v2320
      %v2411 = vadd.f32 %v2021, %v2325
      %v2412 = vadd.f32 %v2022, %v2330
      %v2413 = vadd.f32 %v2023, %v2335
      %v2414 = vadd.f32 %v2024, %v2340
      %v2415 = vadd.f32 %v2025, %v2345
      %v2416 = vadd.f32 %v2026, %v2350
      %v2417 = vadd.f32 %v2027, %v2355
      %v2418 = vadd.f32 %v2028, %v2360
      %v2419 = vadd.f32 %v2029, %v2365
      %v2420 = vadd.f32 %v2030, %v2370
      %v2421 = vadd.f32 %v2031, %v2375
      %v2422 = vadd.f32 %v2032, %v2380
      %v2423 = vadd.f32 %v2033, %v2385
      %v2424 = vadd.f32 %v2034, %v2390
      %s2425 = scalar_lea.vmem %s141, 48
      %v2426 = vld [vmem:[%s2425] sm:$0xff]
      %v2427 = vld [vmem:[%s2425 + $0x8] sm:$0xff]
      %v2428 = vld [vmem:[%s2425 + $0x18] sm:$0xff]
      %v2429 = vld [vmem:[%s2425 + $0x20] sm:$0xff]
      %v2430 = vld [vmem:[%s2425 + $0x30] sm:$0xff]
      %v2431 = vld [vmem:[%s2425 + $0x38] sm:$0xff]
      %v2432 = vld [vmem:[%s2425 + $0x48] sm:$0xff]
      %v2433 = vld [vmem:[%s2425 + $0x50] sm:$0xff]
      %v2434 = vld [vmem:[%s2425 + $0x60] sm:$0xff]
      %v2435 = vld [vmem:[%s2425 + $0x68] sm:$0xff]
      %v2436 = vld [vmem:[%s2425 + $0x78] sm:$0xff]
      %v2437 = vld [vmem:[%s2425 + $0x80] sm:$0xff]
      %v2438 = vld [vmem:[%s2425 + $0x90] sm:$0xff]
      %v2439 = vld [vmem:[%s2425 + $0x98] sm:$0xff]
      %v2440 = vld [vmem:[%s2425 + $0xa8] sm:$0xff]
      %v2441 = vld [vmem:[%s2425 + $0xb0] sm:$0xff]
      %v2442 = vld [vmem:[%s2425 + $0xc0] sm:$0xff]
      %v2443 = vld [vmem:[%s2425 + $0xc8] sm:$0xff]
      %v2444 = vld [vmem:[%s2425 + $0xd8] sm:$0xff]
      %v2445 = vld [vmem:[%s2425 + $0xe0] sm:$0xff]
      %v2446 = vld [vmem:[%s2425 + $0xf0] sm:$0xff]
      %v2447 = vld [vmem:[%s2425 + $0xf8] sm:$0xff]
      %v2448 = vld [vmem:[%s2425 + $0x108] sm:$0xff]
      %v2449 = vld [vmem:[%s2425 + $0x110] sm:$0xff]
      %v2450 = vld [vmem:[%s2425 + $0x120] sm:$0xff]
      %v2451 = vld [vmem:[%s2425 + $0x128] sm:$0xff]
      %v2452 = vld [vmem:[%s2425 + $0x138] sm:$0xff]
      %v2453 = vld [vmem:[%s2425 + $0x140] sm:$0xff]
      %v2454 = vld [vmem:[%s2425 + $0x150] sm:$0xff]
      %v2455 = vld [vmem:[%s2425 + $0x158] sm:$0xff]
      %v2456 = vld [vmem:[%s2425 + $0x168] sm:$0xff]
      %v2457 = vld [vmem:[%s2425 + $0x170] sm:$0xff]
      %s2458 = scalar_lea.vmem %s1, 24
      %v2459 = vld [vmem:[%s2458] sm:$0xf]
      %v2461 = vsel %vm214, %v2426, 0
      %v2464 = vsel %vm214, %v2427, 0
      %v2467 = vsel %vm214, %v2428, 0
      %v2470 = vsel %vm214, %v2429, 0
      %v2473 = vsel %vm214, %v2430, 0
      %v2476 = vsel %vm214, %v2431, 0
      %v2479 = vsel %vm214, %v2432, 0
      %v2482 = vsel %vm214, %v2433, 0
      %v2485 = vsel %vm214, %v2434, 0
      %v2488 = vsel %vm214, %v2435, 0
      %v2491 = vsel %vm214, %v2436, 0
      %v2494 = vsel %vm214, %v2437, 0
      %v2497 = vsel %vm214, %v2438, 0
      %v2500 = vsel %vm214, %v2439, 0
      %v2503 = vsel %vm214, %v2440, 0
      %v2506 = vsel %vm214, %v2441, 0
      %v2509 = vsel %vm214, %v2442, 0
      %v2512 = vsel %vm214, %v2443, 0
      %v2515 = vsel %vm214, %v2444, 0
      %v2518 = vsel %vm214, %v2445, 0
      %v2521 = vsel %vm214, %v2446, 0
      %v2524 = vsel %vm214, %v2447, 0
      %v2527 = vsel %vm214, %v2448, 0
      %v2530 = vsel %vm214, %v2449, 0
      %v2533 = vsel %vm214, %v2450, 0
      %v2536 = vsel %vm214, %v2451, 0
      %v2539 = vsel %vm214, %v2452, 0
      %v2542 = vsel %vm214, %v2453, 0
      %v2545 = vsel %vm214, %v2454, 0
      %v2548 = vsel %vm214, %v2455, 0
      %v2551 = vsel %vm214, %v2456, 0
      %v2554 = vsel %vm214, %v2457, 0
      %v2557 = vsel %vm311, %v2459, 0
      %2559 = vmatprep.subr.mxu0 0.0
      %2560 = vmatpush1.msra.mxu0 0.0
      %2561 = vmatprep.subr.mxu0 0.0
      %2562 = vmatpush1.msra.mxu0 0.0
      %2563 = vmatprep.subr.mxu0 0.0
      %2564 = vmatpush1.msra.mxu0 0.0
      %2565 = vmatprep.subr.mxu0 0.0
      %2566 = vmatpush1.msra.mxu0 0.0
      %2567 = vmatprep.subr.mxu0 0.0
      %2568 = vmatpush1.msra.mxu0 0.0
      %2569 = vmatprep.subr.mxu0 0.0
      %2570 = vmatpush1.msra.mxu0 0.0
      %2571 = vmatprep.subr.mxu0 0.0
      %2572 = vmatpush1.msra.mxu0 0.0
      %2573 = vmatprep.subr.mxu0 0.0
      %2574 = vmatpush1.msra.mxu0 0.0
      %2575 = vmatprep.subr.mxu0 0.0
      %2576 = vmatpush1.msra.mxu0 0.0
      %2577 = vmatprep.subr.mxu0 0.0
      %2578 = vmatpush1.msra.mxu0 0.0
      %2579 = vmatprep.subr.mxu0 0.0
      %2580 = vmatpush1.msra.mxu0 0.0
      %2581 = vmatprep.subr.mxu0 0.0
      %2582 = vmatpush1.msra.mxu0 0.0
      %2583 = vmatprep.subr.mxu0 0.0
      %2584 = vmatpush1.msra.mxu0 0.0
      %2585 = vmatprep.subr.mxu0 0.0
      %2586 = vmatpush1.msra.mxu0 0.0
      %2587 = vmatprep.subr.mxu0 0.0
      %2588 = vmatpush1.msra.mxu0 0.0
      %2589 = vmatprep.subr.mxu0 0.0
      %2590 = vmatpush1.msra.mxu0 %v2557
      %2591 = vmatprep.subr.mxu0 0.0
      %2592 = vmatpush2.msra.mxu0 0.0
      %2593 = vmatprep.subr.mxu0 0.0
      %2594 = vmatpush2.msra.mxu0 0.0
      %2595 = vmatprep.subr.mxu0 0.0
      %2596 = vmatpush2.msra.mxu0 0.0
      %2597 = vmatprep.subr.mxu0 0.0
      %2598 = vmatpush2.msra.mxu0 0.0
      %2599 = vmatprep.subr.mxu0 0.0
      %2600 = vmatpush2.msra.mxu0 0.0
      %2601 = vmatprep.subr.mxu0 0.0
      %2602 = vmatpush2.msra.mxu0 0.0
      %2603 = vmatprep.subr.mxu0 0.0
      %2604 = vmatpush2.msra.mxu0 0.0
      %2605 = vmatprep.subr.mxu0 0.0
      %2606 = vmatpush2.msra.mxu0 0.0
      %2607 = vmatprep.subr.mxu0 0.0
      %2608 = vmatpush2.msra.mxu0 0.0
      %2609 = vmatprep.subr.mxu0 0.0
      %2610 = vmatpush2.msra.mxu0 0.0
      %2611 = vmatprep.subr.mxu0 0.0
      %2612 = vmatpush2.msra.mxu0 0.0
      %2613 = vmatprep.subr.mxu0 0.0
      %2614 = vmatpush2.msra.mxu0 0.0
      %2615 = vmatprep.subr.mxu0 0.0
      %2616 = vmatpush2.msra.mxu0 0.0
      %2617 = vmatprep.subr.mxu0 0.0
      %2618 = vmatpush2.msra.mxu0 0.0
      %2619 = vmatprep.subr.mxu0 0.0
      %2620 = vmatpush2.msra.mxu0 0.0
      %2621 = vmatprep.subr.mxu0 0.0
      %2622 = vmatpush2.msra.mxu0 0.0
      %2623 = vmatprep.mubr.f32.mxu0 0.0
      %2624 = vmatmul.mubr.f32.gmra.mxu0 %v2461
      %v2625 = vpop.f32.mrf.mxu0
      %v2626 = vadd.f32 0.0, %v2625
      %v2627 = vpop.f32.mrf.mxu0
      %2628 = vmatprep.mubr.f32.mxu0 0.0
      %2629 = vmatmul.mubr.f32.gmra.mxu0 %v2464
      %v2630 = vpop.f32.mrf.mxu0
      %v2631 = vadd.f32 0.0, %v2630
      %v2632 = vpop.f32.mrf.mxu0
      %2633 = vmatprep.mubr.f32.mxu0 0.0
      %2634 = vmatmul.mubr.f32.gmra.mxu0 %v2467
      %v2635 = vpop.f32.mrf.mxu0
      %v2636 = vadd.f32 0.0, %v2635
      %v2637 = vpop.f32.mrf.mxu0
      %2638 = vmatprep.mubr.f32.mxu0 0.0
      %2639 = vmatmul.mubr.f32.gmra.mxu0 %v2470
      %v2640 = vpop.f32.mrf.mxu0
      %v2641 = vadd.f32 0.0, %v2640
      %v2642 = vpop.f32.mrf.mxu0
      %2643 = vmatprep.mubr.f32.mxu0 0.0
      %2644 = vmatmul.mubr.f32.gmra.mxu0 %v2473
      %v2645 = vpop.f32.mrf.mxu0
      %v2646 = vadd.f32 0.0, %v2645
      %v2647 = vpop.f32.mrf.mxu0
      %2648 = vmatprep.mubr.f32.mxu0 0.0
      %2649 = vmatmul.mubr.f32.gmra.mxu0 %v2476
      %v2650 = vpop.f32.mrf.mxu0
      %v2651 = vadd.f32 0.0, %v2650
      %v2652 = vpop.f32.mrf.mxu0
      %2653 = vmatprep.mubr.f32.mxu0 0.0
      %2654 = vmatmul.mubr.f32.gmra.mxu0 %v2479
      %v2655 = vpop.f32.mrf.mxu0
      %v2656 = vadd.f32 0.0, %v2655
      %v2657 = vpop.f32.mrf.mxu0
      %2658 = vmatprep.mubr.f32.mxu0 0.0
      %2659 = vmatmul.mubr.f32.gmra.mxu0 %v2482
      %v2660 = vpop.f32.mrf.mxu0
      %v2661 = vadd.f32 0.0, %v2660
      %v2662 = vpop.f32.mrf.mxu0
      %2663 = vmatprep.mubr.f32.mxu0 0.0
      %2664 = vmatmul.mubr.f32.gmra.mxu0 %v2485
      %v2665 = vpop.f32.mrf.mxu0
      %v2666 = vadd.f32 0.0, %v2665
      %v2667 = vpop.f32.mrf.mxu0
      %2668 = vmatprep.mubr.f32.mxu0 0.0
      %2669 = vmatmul.mubr.f32.gmra.mxu0 %v2488
      %v2670 = vpop.f32.mrf.mxu0
      %v2671 = vadd.f32 0.0, %v2670
      %v2672 = vpop.f32.mrf.mxu0
      %2673 = vmatprep.mubr.f32.mxu0 0.0
      %2674 = vmatmul.mubr.f32.gmra.mxu0 %v2491
      %v2675 = vpop.f32.mrf.mxu0
      %v2676 = vadd.f32 0.0, %v2675
      %v2677 = vpop.f32.mrf.mxu0
      %2678 = vmatprep.mubr.f32.mxu0 0.0
      %2679 = vmatmul.mubr.f32.gmra.mxu0 %v2494
      %v2680 = vpop.f32.mrf.mxu0
      %v2681 = vadd.f32 0.0, %v2680
      %v2682 = vpop.f32.mrf.mxu0
      %2683 = vmatprep.mubr.f32.mxu0 0.0
      %2684 = vmatmul.mubr.f32.gmra.mxu0 %v2497
      %v2685 = vpop.f32.mrf.mxu0
      %v2686 = vadd.f32 0.0, %v2685
      %v2687 = vpop.f32.mrf.mxu0
      %2688 = vmatprep.mubr.f32.mxu0 0.0
      %2689 = vmatmul.mubr.f32.gmra.mxu0 %v2500
      %v2690 = vpop.f32.mrf.mxu0
      %v2691 = vadd.f32 0.0, %v2690
      %v2692 = vpop.f32.mrf.mxu0
      %2693 = vmatprep.mubr.f32.mxu0 0.0
      %2694 = vmatmul.mubr.f32.gmra.mxu0 %v2503
      %v2695 = vpop.f32.mrf.mxu0
      %v2696 = vadd.f32 0.0, %v2695
      %v2697 = vpop.f32.mrf.mxu0
      %2698 = vmatprep.mubr.f32.mxu0 0.0
      %2699 = vmatmul.mubr.f32.gmra.mxu0 %v2506
      %v2700 = vpop.f32.mrf.mxu0
      %v2701 = vadd.f32 0.0, %v2700
      %v2702 = vpop.f32.mrf.mxu0
      %2703 = vmatprep.mubr.f32.mxu0 0.0
      %2704 = vmatmul.mubr.f32.gmra.mxu0 %v2509
      %v2705 = vpop.f32.mrf.mxu0
      %v2706 = vadd.f32 0.0, %v2705
      %v2707 = vpop.f32.mrf.mxu0
      %2708 = vmatprep.mubr.f32.mxu0 0.0
      %2709 = vmatmul.mubr.f32.gmra.mxu0 %v2512
      %v2710 = vpop.f32.mrf.mxu0
      %v2711 = vadd.f32 0.0, %v2710
      %v2712 = vpop.f32.mrf.mxu0
      %2713 = vmatprep.mubr.f32.mxu0 0.0
      %2714 = vmatmul.mubr.f32.gmra.mxu0 %v2515
      %v2715 = vpop.f32.mrf.mxu0
      %v2716 = vadd.f32 0.0, %v2715
      %v2717 = vpop.f32.mrf.mxu0
      %2718 = vmatprep.mubr.f32.mxu0 0.0
      %2719 = vmatmul.mubr.f32.gmra.mxu0 %v2518
      %v2720 = vpop.f32.mrf.mxu0
      %v2721 = vadd.f32 0.0, %v2720
      %v2722 = vpop.f32.mrf.mxu0
      %2723 = vmatprep.mubr.f32.mxu0 0.0
      %2724 = vmatmul.mubr.f32.gmra.mxu0 %v2521
      %v2725 = vpop.f32.mrf.mxu0
      %v2726 = vadd.f32 0.0, %v2725
      %v2727 = vpop.f32.mrf.mxu0
      %2728 = vmatprep.mubr.f32.mxu0 0.0
      %2729 = vmatmul.mubr.f32.gmra.mxu0 %v2524
      %v2730 = vpop.f32.mrf.mxu0
      %v2731 = vadd.f32 0.0, %v2730
      %v2732 = vpop.f32.mrf.mxu0
      %2733 = vmatprep.mubr.f32.mxu0 0.0
      %2734 = vmatmul.mubr.f32.gmra.mxu0 %v2527
      %v2735 = vpop.f32.mrf.mxu0
      %v2736 = vadd.f32 0.0, %v2735
      %v2737 = vpop.f32.mrf.mxu0
      %2738 = vmatprep.mubr.f32.mxu0 0.0
      %2739 = vmatmul.mubr.f32.gmra.mxu0 %v2530
      %v2740 = vpop.f32.mrf.mxu0
      %v2741 = vadd.f32 0.0, %v2740
      %v2742 = vpop.f32.mrf.mxu0
      %2743 = vmatprep.mubr.f32.mxu0 0.0
      %2744 = vmatmul.mubr.f32.gmra.mxu0 %v2533
      %v2745 = vpop.f32.mrf.mxu0
      %v2746 = vadd.f32 0.0, %v2745
      %v2747 = vpop.f32.mrf.mxu0
      %2748 = vmatprep.mubr.f32.mxu0 0.0
      %2749 = vmatmul.mubr.f32.gmra.mxu0 %v2536
      %v2750 = vpop.f32.mrf.mxu0
      %v2751 = vadd.f32 0.0, %v2750
      %v2752 = vpop.f32.mrf.mxu0
      %2753 = vmatprep.mubr.f32.mxu0 0.0
      %2754 = vmatmul.mubr.f32.gmra.mxu0 %v2539
      %v2755 = vpop.f32.mrf.mxu0
      %v2756 = vadd.f32 0.0, %v2755
      %v2757 = vpop.f32.mrf.mxu0
      %2758 = vmatprep.mubr.f32.mxu0 0.0
      %2759 = vmatmul.mubr.f32.gmra.mxu0 %v2542
      %v2760 = vpop.f32.mrf.mxu0
      %v2761 = vadd.f32 0.0, %v2760
      %v2762 = vpop.f32.mrf.mxu0
      %2763 = vmatprep.mubr.f32.mxu0 0.0
      %2764 = vmatmul.mubr.f32.gmra.mxu0 %v2545
      %v2765 = vpop.f32.mrf.mxu0
      %v2766 = vadd.f32 0.0, %v2765
      %v2767 = vpop.f32.mrf.mxu0
      %2768 = vmatprep.mubr.f32.mxu0 0.0
      %2769 = vmatmul.mubr.f32.gmra.mxu0 %v2548
      %v2770 = vpop.f32.mrf.mxu0
      %v2771 = vadd.f32 0.0, %v2770
      %v2772 = vpop.f32.mrf.mxu0
      %2773 = vmatprep.mubr.f32.mxu0 0.0
      %2774 = vmatmul.mubr.f32.gmra.mxu0 %v2551
      %v2775 = vpop.f32.mrf.mxu0
      %v2776 = vadd.f32 0.0, %v2775
      %v2777 = vpop.f32.mrf.mxu0
      %2778 = vmatprep.mubr.f32.mxu0 0.0
      %2779 = vmatmul.mubr.f32.gmra.mxu0 %v2554
      %v2780 = vpop.f32.mrf.mxu0
      %v2781 = vadd.f32 0.0, %v2780
      %v2782 = vpop.f32.mrf.mxu0
      %2783 = vdwg.mxu0
      %v2784 = vadd.f32 %v2393, %v2626
      %v2785 = vadd.f32 %v2394, %v2631
      %v2786 = vadd.f32 %v2395, %v2636
      %v2787 = vadd.f32 %v2396, %v2641
      %v2788 = vadd.f32 %v2397, %v2646
      %v2789 = vadd.f32 %v2398, %v2651
      %v2790 = vadd.f32 %v2399, %v2656
      %v2791 = vadd.f32 %v2400, %v2661
      %v2792 = vadd.f32 %v2401, %v2666
      %v2793 = vadd.f32 %v2402, %v2671
      %v2794 = vadd.f32 %v2403, %v2676
      %v2795 = vadd.f32 %v2404, %v2681
      %v2796 = vadd.f32 %v2405, %v2686
      %v2797 = vadd.f32 %v2406, %v2691
      %v2798 = vadd.f32 %v2407, %v2696
      %v2799 = vadd.f32 %v2408, %v2701
      %v2800 = vadd.f32 %v2409, %v2706
      %v2801 = vadd.f32 %v2410, %v2711
      %v2802 = vadd.f32 %v2411, %v2716
      %v2803 = vadd.f32 %v2412, %v2721
      %v2804 = vadd.f32 %v2413, %v2726
      %v2805 = vadd.f32 %v2414, %v2731
      %v2806 = vadd.f32 %v2415, %v2736
      %v2807 = vadd.f32 %v2416, %v2741
      %v2808 = vadd.f32 %v2417, %v2746
      %v2809 = vadd.f32 %v2418, %v2751
      %v2810 = vadd.f32 %v2419, %v2756
      %v2811 = vadd.f32 %v2420, %v2761
      %v2812 = vadd.f32 %v2421, %v2766
      %v2813 = vadd.f32 %v2422, %v2771
      %v2814 = vadd.f32 %v2423, %v2776
      %v2815 = vadd.f32 %v2424, %v2781
      %v2816 = vld [vmem:[%s2425 + $0x1] sm:$0xff]
      %v2817 = vld [vmem:[%s2425 + $0x9] sm:$0xff]
      %v2818 = vld [vmem:[%s2425 + $0x19] sm:$0xff]
      %v2819 = vld [vmem:[%s2425 + $0x21] sm:$0xff]
      %v2820 = vld [vmem:[%s2425 + $0x31] sm:$0xff]
      %v2821 = vld [vmem:[%s2425 + $0x39] sm:$0xff]
      %v2822 = vld [vmem:[%s2425 + $0x49] sm:$0xff]
      %v2823 = vld [vmem:[%s2425 + $0x51] sm:$0xff]
      %v2824 = vld [vmem:[%s2425 + $0x61] sm:$0xff]
      %v2825 = vld [vmem:[%s2425 + $0x69] sm:$0xff]
      %v2826 = vld [vmem:[%s2425 + $0x79] sm:$0xff]
      %v2827 = vld [vmem:[%s2425 + $0x81] sm:$0xff]
      %v2828 = vld [vmem:[%s2425 + $0x91] sm:$0xff]
      %v2829 = vld [vmem:[%s2425 + $0x99] sm:$0xff]
      %v2830 = vld [vmem:[%s2425 + $0xa9] sm:$0xff]
      %v2831 = vld [vmem:[%s2425 + $0xb1] sm:$0xff]
      %v2832 = vld [vmem:[%s2425 + $0xc1] sm:$0xff]
      %v2833 = vld [vmem:[%s2425 + $0xc9] sm:$0xff]
      %v2834 = vld [vmem:[%s2425 + $0xd9] sm:$0xff]
      %v2835 = vld [vmem:[%s2425 + $0xe1] sm:$0xff]
      %v2836 = vld [vmem:[%s2425 + $0xf1] sm:$0xff]
      %v2837 = vld [vmem:[%s2425 + $0xf9] sm:$0xff]
      %v2838 = vld [vmem:[%s2425 + $0x109] sm:$0xff]
      %v2839 = vld [vmem:[%s2425 + $0x111] sm:$0xff]
      %v2840 = vld [vmem:[%s2425 + $0x121] sm:$0xff]
      %v2841 = vld [vmem:[%s2425 + $0x129] sm:$0xff]
      %v2842 = vld [vmem:[%s2425 + $0x139] sm:$0xff]
      %v2843 = vld [vmem:[%s2425 + $0x141] sm:$0xff]
      %v2844 = vld [vmem:[%s2425 + $0x151] sm:$0xff]
      %v2845 = vld [vmem:[%s2425 + $0x159] sm:$0xff]
      %v2846 = vld [vmem:[%s2425 + $0x169] sm:$0xff]
      %v2847 = vld [vmem:[%s2425 + $0x171] sm:$0xff]
      %s2848 = scalar_lea.vmem %s1, 28
      %v2849 = vld [vmem:[%s2848] sm:$0xf]
      %v2851 = vsel %vm214, %v2816, 0
      %v2854 = vsel %vm214, %v2817, 0
      %v2857 = vsel %vm214, %v2818, 0
      %v2860 = vsel %vm214, %v2819, 0
      %v2863 = vsel %vm214, %v2820, 0
      %v2866 = vsel %vm214, %v2821, 0
      %v2869 = vsel %vm214, %v2822, 0
      %v2872 = vsel %vm214, %v2823, 0
      %v2875 = vsel %vm214, %v2824, 0
      %v2878 = vsel %vm214, %v2825, 0
      %v2881 = vsel %vm214, %v2826, 0
      %v2884 = vsel %vm214, %v2827, 0
      %v2887 = vsel %vm214, %v2828, 0
      %v2890 = vsel %vm214, %v2829, 0
      %v2893 = vsel %vm214, %v2830, 0
      %v2896 = vsel %vm214, %v2831, 0
      %v2899 = vsel %vm214, %v2832, 0
      %v2902 = vsel %vm214, %v2833, 0
      %v2905 = vsel %vm214, %v2834, 0
      %v2908 = vsel %vm214, %v2835, 0
      %v2911 = vsel %vm214, %v2836, 0
      %v2914 = vsel %vm214, %v2837, 0
      %v2917 = vsel %vm214, %v2838, 0
      %v2920 = vsel %vm214, %v2839, 0
      %v2923 = vsel %vm214, %v2840, 0
      %v2926 = vsel %vm214, %v2841, 0
      %v2929 = vsel %vm214, %v2842, 0
      %v2932 = vsel %vm214, %v2843, 0
      %v2935 = vsel %vm214, %v2844, 0
      %v2938 = vsel %vm214, %v2845, 0
      %v2941 = vsel %vm214, %v2846, 0
      %v2944 = vsel %vm214, %v2847, 0
      %v2947 = vsel %vm311, %v2849, 0
      %2949 = vmatprep.subr.mxu0 0.0
      %2950 = vmatpush1.msra.mxu0 0.0
      %2951 = vmatprep.subr.mxu0 0.0
      %2952 = vmatpush1.msra.mxu0 0.0
      %2953 = vmatprep.subr.mxu0 0.0
      %2954 = vmatpush1.msra.mxu0 0.0
      %2955 = vmatprep.subr.mxu0 0.0
      %2956 = vmatpush1.msra.mxu0 0.0
      %2957 = vmatprep.subr.mxu0 0.0
      %2958 = vmatpush1.msra.mxu0 0.0
      %2959 = vmatprep.subr.mxu0 0.0
      %2960 = vmatpush1.msra.mxu0 0.0
      %2961 = vmatprep.subr.mxu0 0.0
      %2962 = vmatpush1.msra.mxu0 0.0
      %2963 = vmatprep.subr.mxu0 0.0
      %2964 = vmatpush1.msra.mxu0 0.0
      %2965 = vmatprep.subr.mxu0 0.0
      %2966 = vmatpush1.msra.mxu0 0.0
      %2967 = vmatprep.subr.mxu0 0.0
      %2968 = vmatpush1.msra.mxu0 0.0
      %2969 = vmatprep.subr.mxu0 0.0
      %2970 = vmatpush1.msra.mxu0 0.0
      %2971 = vmatprep.subr.mxu0 0.0
      %2972 = vmatpush1.msra.mxu0 0.0
      %2973 = vmatprep.subr.mxu0 0.0
      %2974 = vmatpush1.msra.mxu0 0.0
      %2975 = vmatprep.subr.mxu0 0.0
      %2976 = vmatpush1.msra.mxu0 0.0
      %2977 = vmatprep.subr.mxu0 0.0
      %2978 = vmatpush1.msra.mxu0 0.0
      %2979 = vmatprep.subr.mxu0 0.0
      %2980 = vmatpush1.msra.mxu0 %v2947
      %2981 = vmatprep.subr.mxu0 0.0
      %2982 = vmatpush2.msra.mxu0 0.0
      %2983 = vmatprep.subr.mxu0 0.0
      %2984 = vmatpush2.msra.mxu0 0.0
      %2985 = vmatprep.subr.mxu0 0.0
      %2986 = vmatpush2.msra.mxu0 0.0
      %2987 = vmatprep.subr.mxu0 0.0
      %2988 = vmatpush2.msra.mxu0 0.0
      %2989 = vmatprep.subr.mxu0 0.0
      %2990 = vmatpush2.msra.mxu0 0.0
      %2991 = vmatprep.subr.mxu0 0.0
      %2992 = vmatpush2.msra.mxu0 0.0
      %2993 = vmatprep.subr.mxu0 0.0
      %2994 = vmatpush2.msra.mxu0 0.0
      %2995 = vmatprep.subr.mxu0 0.0
      %2996 = vmatpush2.msra.mxu0 0.0
      %2997 = vmatprep.subr.mxu0 0.0
      %2998 = vmatpush2.msra.mxu0 0.0
      %2999 = vmatprep.subr.mxu0 0.0
      %3000 = vmatpush2.msra.mxu0 0.0
      %3001 = vmatprep.subr.mxu0 0.0
      %3002 = vmatpush2.msra.mxu0 0.0
      %3003 = vmatprep.subr.mxu0 0.0
      %3004 = vmatpush2.msra.mxu0 0.0
      %3005 = vmatprep.subr.mxu0 0.0
      %3006 = vmatpush2.msra.mxu0 0.0
      %3007 = vmatprep.subr.mxu0 0.0
      %3008 = vmatpush2.msra.mxu0 0.0
      %3009 = vmatprep.subr.mxu0 0.0
      %3010 = vmatpush2.msra.mxu0 0.0
      %3011 = vmatprep.subr.mxu0 0.0
      %3012 = vmatpush2.msra.mxu0 0.0
      %3013 = vmatprep.mubr.f32.mxu0 0.0
      %3014 = vmatmul.mubr.f32.gmra.mxu0 %v2851
      %v3015 = vpop.f32.mrf.mxu0
      %v3016 = vadd.f32 0.0, %v3015
      %v3017 = vpop.f32.mrf.mxu0
      %3018 = vmatprep.mubr.f32.mxu0 0.0
      %3019 = vmatmul.mubr.f32.gmra.mxu0 %v2854
      %v3020 = vpop.f32.mrf.mxu0
      %v3021 = vadd.f32 0.0, %v3020
      %v3022 = vpop.f32.mrf.mxu0
      %3023 = vmatprep.mubr.f32.mxu0 0.0
      %3024 = vmatmul.mubr.f32.gmra.mxu0 %v2857
      %v3025 = vpop.f32.mrf.mxu0
      %v3026 = vadd.f32 0.0, %v3025
      %v3027 = vpop.f32.mrf.mxu0
      %3028 = vmatprep.mubr.f32.mxu0 0.0
      %3029 = vmatmul.mubr.f32.gmra.mxu0 %v2860
      %v3030 = vpop.f32.mrf.mxu0
      %v3031 = vadd.f32 0.0, %v3030
      %v3032 = vpop.f32.mrf.mxu0
      %3033 = vmatprep.mubr.f32.mxu0 0.0
      %3034 = vmatmul.mubr.f32.gmra.mxu0 %v2863
      %v3035 = vpop.f32.mrf.mxu0
      %v3036 = vadd.f32 0.0, %v3035
      %v3037 = vpop.f32.mrf.mxu0
      %3038 = vmatprep.mubr.f32.mxu0 0.0
      %3039 = vmatmul.mubr.f32.gmra.mxu0 %v2866
      %v3040 = vpop.f32.mrf.mxu0
      %v3041 = vadd.f32 0.0, %v3040
      %v3042 = vpop.f32.mrf.mxu0
      %3043 = vmatprep.mubr.f32.mxu0 0.0
      %3044 = vmatmul.mubr.f32.gmra.mxu0 %v2869
      %v3045 = vpop.f32.mrf.mxu0
      %v3046 = vadd.f32 0.0, %v3045
      %v3047 = vpop.f32.mrf.mxu0
      %3048 = vmatprep.mubr.f32.mxu0 0.0
      %3049 = vmatmul.mubr.f32.gmra.mxu0 %v2872
      %v3050 = vpop.f32.mrf.mxu0
      %v3051 = vadd.f32 0.0, %v3050
      %v3052 = vpop.f32.mrf.mxu0
      %3053 = vmatprep.mubr.f32.mxu0 0.0
      %3054 = vmatmul.mubr.f32.gmra.mxu0 %v2875
      %v3055 = vpop.f32.mrf.mxu0
      %v3056 = vadd.f32 0.0, %v3055
      %v3057 = vpop.f32.mrf.mxu0
      %3058 = vmatprep.mubr.f32.mxu0 0.0
      %3059 = vmatmul.mubr.f32.gmra.mxu0 %v2878
      %v3060 = vpop.f32.mrf.mxu0
      %v3061 = vadd.f32 0.0, %v3060
      %v3062 = vpop.f32.mrf.mxu0
      %3063 = vmatprep.mubr.f32.mxu0 0.0
      %3064 = vmatmul.mubr.f32.gmra.mxu0 %v2881
      %v3065 = vpop.f32.mrf.mxu0
      %v3066 = vadd.f32 0.0, %v3065
      %v3067 = vpop.f32.mrf.mxu0
      %3068 = vmatprep.mubr.f32.mxu0 0.0
      %3069 = vmatmul.mubr.f32.gmra.mxu0 %v2884
      %v3070 = vpop.f32.mrf.mxu0
      %v3071 = vadd.f32 0.0, %v3070
      %v3072 = vpop.f32.mrf.mxu0
      %3073 = vmatprep.mubr.f32.mxu0 0.0
      %3074 = vmatmul.mubr.f32.gmra.mxu0 %v2887
      %v3075 = vpop.f32.mrf.mxu0
      %v3076 = vadd.f32 0.0, %v3075
      %v3077 = vpop.f32.mrf.mxu0
      %3078 = vmatprep.mubr.f32.mxu0 0.0
      %3079 = vmatmul.mubr.f32.gmra.mxu0 %v2890
      %v3080 = vpop.f32.mrf.mxu0
      %v3081 = vadd.f32 0.0, %v3080
      %v3082 = vpop.f32.mrf.mxu0
      %3083 = vmatprep.mubr.f32.mxu0 0.0
      %3084 = vmatmul.mubr.f32.gmra.mxu0 %v2893
      %v3085 = vpop.f32.mrf.mxu0
      %v3086 = vadd.f32 0.0, %v3085
      %v3087 = vpop.f32.mrf.mxu0
      %3088 = vmatprep.mubr.f32.mxu0 0.0
      %3089 = vmatmul.mubr.f32.gmra.mxu0 %v2896
      %v3090 = vpop.f32.mrf.mxu0
      %v3091 = vadd.f32 0.0, %v3090
      %v3092 = vpop.f32.mrf.mxu0
      %3093 = vmatprep.mubr.f32.mxu0 0.0
      %3094 = vmatmul.mubr.f32.gmra.mxu0 %v2899
      %v3095 = vpop.f32.mrf.mxu0
      %v3096 = vadd.f32 0.0, %v3095
      %v3097 = vpop.f32.mrf.mxu0
      %3098 = vmatprep.mubr.f32.mxu0 0.0
      %3099 = vmatmul.mubr.f32.gmra.mxu0 %v2902
      %v3100 = vpop.f32.mrf.mxu0
      %v3101 = vadd.f32 0.0, %v3100
      %v3102 = vpop.f32.mrf.mxu0
      %3103 = vmatprep.mubr.f32.mxu0 0.0
      %3104 = vmatmul.mubr.f32.gmra.mxu0 %v2905
      %v3105 = vpop.f32.mrf.mxu0
      %v3106 = vadd.f32 0.0, %v3105
      %v3107 = vpop.f32.mrf.mxu0
      %3108 = vmatprep.mubr.f32.mxu0 0.0
      %3109 = vmatmul.mubr.f32.gmra.mxu0 %v2908
      %v3110 = vpop.f32.mrf.mxu0
      %v3111 = vadd.f32 0.0, %v3110
      %v3112 = vpop.f32.mrf.mxu0
      %3113 = vmatprep.mubr.f32.mxu0 0.0
      %3114 = vmatmul.mubr.f32.gmra.mxu0 %v2911
      %v3115 = vpop.f32.mrf.mxu0
      %v3116 = vadd.f32 0.0, %v3115
      %v3117 = vpop.f32.mrf.mxu0
      %3118 = vmatprep.mubr.f32.mxu0 0.0
      %3119 = vmatmul.mubr.f32.gmra.mxu0 %v2914
      %v3120 = vpop.f32.mrf.mxu0
      %v3121 = vadd.f32 0.0, %v3120
      %v3122 = vpop.f32.mrf.mxu0
      %3123 = vmatprep.mubr.f32.mxu0 0.0
      %3124 = vmatmul.mubr.f32.gmra.mxu0 %v2917
      %v3125 = vpop.f32.mrf.mxu0
      %v3126 = vadd.f32 0.0, %v3125
      %v3127 = vpop.f32.mrf.mxu0
      %3128 = vmatprep.mubr.f32.mxu0 0.0
      %3129 = vmatmul.mubr.f32.gmra.mxu0 %v2920
      %v3130 = vpop.f32.mrf.mxu0
      %v3131 = vadd.f32 0.0, %v3130
      %v3132 = vpop.f32.mrf.mxu0
      %3133 = vmatprep.mubr.f32.mxu0 0.0
      %3134 = vmatmul.mubr.f32.gmra.mxu0 %v2923
      %v3135 = vpop.f32.mrf.mxu0
      %v3136 = vadd.f32 0.0, %v3135
      %v3137 = vpop.f32.mrf.mxu0
      %3138 = vmatprep.mubr.f32.mxu0 0.0
      %3139 = vmatmul.mubr.f32.gmra.mxu0 %v2926
      %v3140 = vpop.f32.mrf.mxu0
      %v3141 = vadd.f32 0.0, %v3140
      %v3142 = vpop.f32.mrf.mxu0
      %3143 = vmatprep.mubr.f32.mxu0 0.0
      %3144 = vmatmul.mubr.f32.gmra.mxu0 %v2929
      %v3145 = vpop.f32.mrf.mxu0
      %v3146 = vadd.f32 0.0, %v3145
      %v3147 = vpop.f32.mrf.mxu0
      %3148 = vmatprep.mubr.f32.mxu0 0.0
      %3149 = vmatmul.mubr.f32.gmra.mxu0 %v2932
      %v3150 = vpop.f32.mrf.mxu0
      %v3151 = vadd.f32 0.0, %v3150
      %v3152 = vpop.f32.mrf.mxu0
      %3153 = vmatprep.mubr.f32.mxu0 0.0
      %3154 = vmatmul.mubr.f32.gmra.mxu0 %v2935
      %v3155 = vpop.f32.mrf.mxu0
      %v3156 = vadd.f32 0.0, %v3155
      %v3157 = vpop.f32.mrf.mxu0
      %3158 = vmatprep.mubr.f32.mxu0 0.0
      %3159 = vmatmul.mubr.f32.gmra.mxu0 %v2938
      %v3160 = vpop.f32.mrf.mxu0
      %v3161 = vadd.f32 0.0, %v3160
      %v3162 = vpop.f32.mrf.mxu0
      %3163 = vmatprep.mubr.f32.mxu0 0.0
      %3164 = vmatmul.mubr.f32.gmra.mxu0 %v2941
      %v3165 = vpop.f32.mrf.mxu0
      %v3166 = vadd.f32 0.0, %v3165
      %v3167 = vpop.f32.mrf.mxu0
      %3168 = vmatprep.mubr.f32.mxu0 0.0
      %3169 = vmatmul.mubr.f32.gmra.mxu0 %v2944
      %v3170 = vpop.f32.mrf.mxu0
      %v3171 = vadd.f32 0.0, %v3170
      %v3172 = vpop.f32.mrf.mxu0
      %3173 = vdwg.mxu0
      %v3174 = vadd.f32 %v2784, %v3016
      %v3175 = vadd.f32 %v2785, %v3021
      %v3176 = vadd.f32 %v2786, %v3026
      %v3177 = vadd.f32 %v2787, %v3031
      %v3178 = vadd.f32 %v2788, %v3036
      %v3179 = vadd.f32 %v2789, %v3041
      %v3180 = vadd.f32 %v2790, %v3046
      %v3181 = vadd.f32 %v2791, %v3051
      %v3182 = vadd.f32 %v2792, %v3056
      %v3183 = vadd.f32 %v2793, %v3061
      %v3184 = vadd.f32 %v2794, %v3066
      %v3185 = vadd.f32 %v2795, %v3071
      %v3186 = vadd.f32 %v2796, %v3076
      %v3187 = vadd.f32 %v2797, %v3081
      %v3188 = vadd.f32 %v2798, %v3086
      %v3189 = vadd.f32 %v2799, %v3091
      %v3190 = vadd.f32 %v2800, %v3096
      %v3191 = vadd.f32 %v2801, %v3101
      %v3192 = vadd.f32 %v2802, %v3106
      %v3193 = vadd.f32 %v2803, %v3111
      %v3194 = vadd.f32 %v2804, %v3116
      %v3195 = vadd.f32 %v2805, %v3121
      %v3196 = vadd.f32 %v2806, %v3126
      %v3197 = vadd.f32 %v2807, %v3131
      %v3198 = vadd.f32 %v2808, %v3136
      %v3199 = vadd.f32 %v2809, %v3141
      %v3200 = vadd.f32 %v2810, %v3146
      %v3201 = vadd.f32 %v2811, %v3151
      %v3202 = vadd.f32 %v2812, %v3156
      %v3203 = vadd.f32 %v2813, %v3161
      %v3204 = vadd.f32 %v2814, %v3166
      %v3205 = vadd.f32 %v2815, %v3171
      %v3206 = vld [vmem:[%s2425 + $0x2] sm:$0xff]
      %v3207 = vld [vmem:[%s2425 + $0xa] sm:$0xff]
      %v3208 = vld [vmem:[%s2425 + $0x1a] sm:$0xff]
      %v3209 = vld [vmem:[%s2425 + $0x22] sm:$0xff]
      %v3210 = vld [vmem:[%s2425 + $0x32] sm:$0xff]
      %v3211 = vld [vmem:[%s2425 + $0x3a] sm:$0xff]
      %v3212 = vld [vmem:[%s2425 + $0x4a] sm:$0xff]
      %v3213 = vld [vmem:[%s2425 + $0x52] sm:$0xff]
      %v3214 = vld [vmem:[%s2425 + $0x62] sm:$0xff]
      %v3215 = vld [vmem:[%s2425 + $0x6a] sm:$0xff]
      %v3216 = vld [vmem:[%s2425 + $0x7a] sm:$0xff]
      %v3217 = vld [vmem:[%s2425 + $0x82] sm:$0xff]
      %v3218 = vld [vmem:[%s2425 + $0x92] sm:$0xff]
      %v3219 = vld [vmem:[%s2425 + $0x9a] sm:$0xff]
      %v3220 = vld [vmem:[%s2425 + $0xaa] sm:$0xff]
      %v3221 = vld [vmem:[%s2425 + $0xb2] sm:$0xff]
      %v3222 = vld [vmem:[%s2425 + $0xc2] sm:$0xff]
      %v3223 = vld [vmem:[%s2425 + $0xca] sm:$0xff]
      %v3224 = vld [vmem:[%s2425 + $0xda] sm:$0xff]
      %v3225 = vld [vmem:[%s2425 + $0xe2] sm:$0xff]
      %v3226 = vld [vmem:[%s2425 + $0xf2] sm:$0xff]
      %v3227 = vld [vmem:[%s2425 + $0xfa] sm:$0xff]
      %v3228 = vld [vmem:[%s2425 + $0x10a] sm:$0xff]
      %v3229 = vld [vmem:[%s2425 + $0x112] sm:$0xff]
      %v3230 = vld [vmem:[%s2425 + $0x122] sm:$0xff]
      %v3231 = vld [vmem:[%s2425 + $0x12a] sm:$0xff]
      %v3232 = vld [vmem:[%s2425 + $0x13a] sm:$0xff]
      %v3233 = vld [vmem:[%s2425 + $0x142] sm:$0xff]
      %v3234 = vld [vmem:[%s2425 + $0x152] sm:$0xff]
      %v3235 = vld [vmem:[%s2425 + $0x15a] sm:$0xff]
      %v3236 = vld [vmem:[%s2425 + $0x16a] sm:$0xff]
      %v3237 = vld [vmem:[%s2425 + $0x172] sm:$0xff]
      %s3238 = scalar_lea.vmem %s1, 32
      %v3239 = vld [vmem:[%s3238] sm:$0xf]
      %v3241 = vsel %vm214, %v3206, 0
      %v3244 = vsel %vm214, %v3207, 0
      %v3247 = vsel %vm214, %v3208, 0
      %v3250 = vsel %vm214, %v3209, 0
      %v3253 = vsel %vm214, %v3210, 0
      %v3256 = vsel %vm214, %v3211, 0
      %v3259 = vsel %vm214, %v3212, 0
      %v3262 = vsel %vm214, %v3213, 0
      %v3265 = vsel %vm214, %v3214, 0
      %v3268 = vsel %vm214, %v3215, 0
      %v3271 = vsel %vm214, %v3216, 0
      %v3274 = vsel %vm214, %v3217, 0
      %v3277 = vsel %vm214, %v3218, 0
      %v3280 = vsel %vm214, %v3219, 0
      %v3283 = vsel %vm214, %v3220, 0
      %v3286 = vsel %vm214, %v3221, 0
      %v3289 = vsel %vm214, %v3222, 0
      %v3292 = vsel %vm214, %v3223, 0
      %v3295 = vsel %vm214, %v3224, 0
      %v3298 = vsel %vm214, %v3225, 0
      %v3301 = vsel %vm214, %v3226, 0
      %v3304 = vsel %vm214, %v3227, 0
      %v3307 = vsel %vm214, %v3228, 0
      %v3310 = vsel %vm214, %v3229, 0
      %v3313 = vsel %vm214, %v3230, 0
      %v3316 = vsel %vm214, %v3231, 0
      %v3319 = vsel %vm214, %v3232, 0
      %v3322 = vsel %vm214, %v3233, 0
      %v3325 = vsel %vm214, %v3234, 0
      %v3328 = vsel %vm214, %v3235, 0
      %v3331 = vsel %vm214, %v3236, 0
      %v3334 = vsel %vm214, %v3237, 0
      %v3337 = vsel %vm311, %v3239, 0
      %3339 = vmatprep.subr.mxu0 0.0
      %3340 = vmatpush1.msra.mxu0 0.0
      %3341 = vmatprep.subr.mxu0 0.0
      %3342 = vmatpush1.msra.mxu0 0.0
      %3343 = vmatprep.subr.mxu0 0.0
      %3344 = vmatpush1.msra.mxu0 0.0
      %3345 = vmatprep.subr.mxu0 0.0
      %3346 = vmatpush1.msra.mxu0 0.0
      %3347 = vmatprep.subr.mxu0 0.0
      %3348 = vmatpush1.msra.mxu0 0.0
      %3349 = vmatprep.subr.mxu0 0.0
      %3350 = vmatpush1.msra.mxu0 0.0
      %3351 = vmatprep.subr.mxu0 0.0
      %3352 = vmatpush1.msra.mxu0 0.0
      %3353 = vmatprep.subr.mxu0 0.0
      %3354 = vmatpush1.msra.mxu0 0.0
      %3355 = vmatprep.subr.mxu0 0.0
      %3356 = vmatpush1.msra.mxu0 0.0
      %3357 = vmatprep.subr.mxu0 0.0
      %3358 = vmatpush1.msra.mxu0 0.0
      %3359 = vmatprep.subr.mxu0 0.0
      %3360 = vmatpush1.msra.mxu0 0.0
      %3361 = vmatprep.subr.mxu0 0.0
      %3362 = vmatpush1.msra.mxu0 0.0
      %3363 = vmatprep.subr.mxu0 0.0
      %3364 = vmatpush1.msra.mxu0 0.0
      %3365 = vmatprep.subr.mxu0 0.0
      %3366 = vmatpush1.msra.mxu0 0.0
      %3367 = vmatprep.subr.mxu0 0.0
      %3368 = vmatpush1.msra.mxu0 0.0
      %3369 = vmatprep.subr.mxu0 0.0
      %3370 = vmatpush1.msra.mxu0 %v3337
      %3371 = vmatprep.subr.mxu0 0.0
      %3372 = vmatpush2.msra.mxu0 0.0
      %3373 = vmatprep.subr.mxu0 0.0
      %3374 = vmatpush2.msra.mxu0 0.0
      %3375 = vmatprep.subr.mxu0 0.0
      %3376 = vmatpush2.msra.mxu0 0.0
      %3377 = vmatprep.subr.mxu0 0.0
      %3378 = vmatpush2.msra.mxu0 0.0
      %3379 = vmatprep.subr.mxu0 0.0
      %3380 = vmatpush2.msra.mxu0 0.0
      %3381 = vmatprep.subr.mxu0 0.0
      %3382 = vmatpush2.msra.mxu0 0.0
      %3383 = vmatprep.subr.mxu0 0.0
      %3384 = vmatpush2.msra.mxu0 0.0
      %3385 = vmatprep.subr.mxu0 0.0
      %3386 = vmatpush2.msra.mxu0 0.0
      %3387 = vmatprep.subr.mxu0 0.0
      %3388 = vmatpush2.msra.mxu0 0.0
      %3389 = vmatprep.subr.mxu0 0.0
      %3390 = vmatpush2.msra.mxu0 0.0
      %3391 = vmatprep.subr.mxu0 0.0
      %3392 = vmatpush2.msra.mxu0 0.0
      %3393 = vmatprep.subr.mxu0 0.0
      %3394 = vmatpush2.msra.mxu0 0.0
      %3395 = vmatprep.subr.mxu0 0.0
      %3396 = vmatpush2.msra.mxu0 0.0
      %3397 = vmatprep.subr.mxu0 0.0
      %3398 = vmatpush2.msra.mxu0 0.0
      %3399 = vmatprep.subr.mxu0 0.0
      %3400 = vmatpush2.msra.mxu0 0.0
      %3401 = vmatprep.subr.mxu0 0.0
      %3402 = vmatpush2.msra.mxu0 0.0
      %3403 = vmatprep.mubr.f32.mxu0 0.0
      %3404 = vmatmul.mubr.f32.gmra.mxu0 %v3241
      %v3405 = vpop.f32.mrf.mxu0
      %v3406 = vadd.f32 0.0, %v3405
      %v3407 = vpop.f32.mrf.mxu0
      %3408 = vmatprep.mubr.f32.mxu0 0.0
      %3409 = vmatmul.mubr.f32.gmra.mxu0 %v3244
      %v3410 = vpop.f32.mrf.mxu0
      %v3411 = vadd.f32 0.0, %v3410
      %v3412 = vpop.f32.mrf.mxu0
      %3413 = vmatprep.mubr.f32.mxu0 0.0
      %3414 = vmatmul.mubr.f32.gmra.mxu0 %v3247
      %v3415 = vpop.f32.mrf.mxu0
      %v3416 = vadd.f32 0.0, %v3415
      %v3417 = vpop.f32.mrf.mxu0
      %3418 = vmatprep.mubr.f32.mxu0 0.0
      %3419 = vmatmul.mubr.f32.gmra.mxu0 %v3250
      %v3420 = vpop.f32.mrf.mxu0
      %v3421 = vadd.f32 0.0, %v3420
      %v3422 = vpop.f32.mrf.mxu0
      %3423 = vmatprep.mubr.f32.mxu0 0.0
      %3424 = vmatmul.mubr.f32.gmra.mxu0 %v3253
      %v3425 = vpop.f32.mrf.mxu0
      %v3426 = vadd.f32 0.0, %v3425
      %v3427 = vpop.f32.mrf.mxu0
      %3428 = vmatprep.mubr.f32.mxu0 0.0
      %3429 = vmatmul.mubr.f32.gmra.mxu0 %v3256
      %v3430 = vpop.f32.mrf.mxu0
      %v3431 = vadd.f32 0.0, %v3430
      %v3432 = vpop.f32.mrf.mxu0
      %3433 = vmatprep.mubr.f32.mxu0 0.0
      %3434 = vmatmul.mubr.f32.gmra.mxu0 %v3259
      %v3435 = vpop.f32.mrf.mxu0
      %v3436 = vadd.f32 0.0, %v3435
      %v3437 = vpop.f32.mrf.mxu0
      %3438 = vmatprep.mubr.f32.mxu0 0.0
      %3439 = vmatmul.mubr.f32.gmra.mxu0 %v3262
      %v3440 = vpop.f32.mrf.mxu0
      %v3441 = vadd.f32 0.0, %v3440
      %v3442 = vpop.f32.mrf.mxu0
      %3443 = vmatprep.mubr.f32.mxu0 0.0
      %3444 = vmatmul.mubr.f32.gmra.mxu0 %v3265
      %v3445 = vpop.f32.mrf.mxu0
      %v3446 = vadd.f32 0.0, %v3445
      %v3447 = vpop.f32.mrf.mxu0
      %3448 = vmatprep.mubr.f32.mxu0 0.0
      %3449 = vmatmul.mubr.f32.gmra.mxu0 %v3268
      %v3450 = vpop.f32.mrf.mxu0
      %v3451 = vadd.f32 0.0, %v3450
      %v3452 = vpop.f32.mrf.mxu0
      %3453 = vmatprep.mubr.f32.mxu0 0.0
      %3454 = vmatmul.mubr.f32.gmra.mxu0 %v3271
      %v3455 = vpop.f32.mrf.mxu0
      %v3456 = vadd.f32 0.0, %v3455
      %v3457 = vpop.f32.mrf.mxu0
      %3458 = vmatprep.mubr.f32.mxu0 0.0
      %3459 = vmatmul.mubr.f32.gmra.mxu0 %v3274
      %v3460 = vpop.f32.mrf.mxu0
      %v3461 = vadd.f32 0.0, %v3460
      %v3462 = vpop.f32.mrf.mxu0
      %3463 = vmatprep.mubr.f32.mxu0 0.0
      %3464 = vmatmul.mubr.f32.gmra.mxu0 %v3277
      %v3465 = vpop.f32.mrf.mxu0
      %v3466 = vadd.f32 0.0, %v3465
      %v3467 = vpop.f32.mrf.mxu0
      %3468 = vmatprep.mubr.f32.mxu0 0.0
      %3469 = vmatmul.mubr.f32.gmra.mxu0 %v3280
      %v3470 = vpop.f32.mrf.mxu0
      %v3471 = vadd.f32 0.0, %v3470
      %v3472 = vpop.f32.mrf.mxu0
      %3473 = vmatprep.mubr.f32.mxu0 0.0
      %3474 = vmatmul.mubr.f32.gmra.mxu0 %v3283
      %v3475 = vpop.f32.mrf.mxu0
      %v3476 = vadd.f32 0.0, %v3475
      %v3477 = vpop.f32.mrf.mxu0
      %3478 = vmatprep.mubr.f32.mxu0 0.0
      %3479 = vmatmul.mubr.f32.gmra.mxu0 %v3286
      %v3480 = vpop.f32.mrf.mxu0
      %v3481 = vadd.f32 0.0, %v3480
      %v3482 = vpop.f32.mrf.mxu0
      %3483 = vmatprep.mubr.f32.mxu0 0.0
      %3484 = vmatmul.mubr.f32.gmra.mxu0 %v3289
      %v3485 = vpop.f32.mrf.mxu0
      %v3486 = vadd.f32 0.0, %v3485
      %v3487 = vpop.f32.mrf.mxu0
      %3488 = vmatprep.mubr.f32.mxu0 0.0
      %3489 = vmatmul.mubr.f32.gmra.mxu0 %v3292
      %v3490 = vpop.f32.mrf.mxu0
      %v3491 = vadd.f32 0.0, %v3490
      %v3492 = vpop.f32.mrf.mxu0
      %3493 = vmatprep.mubr.f32.mxu0 0.0
      %3494 = vmatmul.mubr.f32.gmra.mxu0 %v3295
      %v3495 = vpop.f32.mrf.mxu0
      %v3496 = vadd.f32 0.0, %v3495
      %v3497 = vpop.f32.mrf.mxu0
      %3498 = vmatprep.mubr.f32.mxu0 0.0
      %3499 = vmatmul.mubr.f32.gmra.mxu0 %v3298
      %v3500 = vpop.f32.mrf.mxu0
      %v3501 = vadd.f32 0.0, %v3500
      %v3502 = vpop.f32.mrf.mxu0
      %3503 = vmatprep.mubr.f32.mxu0 0.0
      %3504 = vmatmul.mubr.f32.gmra.mxu0 %v3301
      %v3505 = vpop.f32.mrf.mxu0
      %v3506 = vadd.f32 0.0, %v3505
      %v3507 = vpop.f32.mrf.mxu0
      %3508 = vmatprep.mubr.f32.mxu0 0.0
      %3509 = vmatmul.mubr.f32.gmra.mxu0 %v3304
      %v3510 = vpop.f32.mrf.mxu0
      %v3511 = vadd.f32 0.0, %v3510
      %v3512 = vpop.f32.mrf.mxu0
      %3513 = vmatprep.mubr.f32.mxu0 0.0
      %3514 = vmatmul.mubr.f32.gmra.mxu0 %v3307
      %v3515 = vpop.f32.mrf.mxu0
      %v3516 = vadd.f32 0.0, %v3515
      %v3517 = vpop.f32.mrf.mxu0
      %3518 = vmatprep.mubr.f32.mxu0 0.0
      %3519 = vmatmul.mubr.f32.gmra.mxu0 %v3310
      %v3520 = vpop.f32.mrf.mxu0
      %v3521 = vadd.f32 0.0, %v3520
      %v3522 = vpop.f32.mrf.mxu0
      %3523 = vmatprep.mubr.f32.mxu0 0.0
      %3524 = vmatmul.mubr.f32.gmra.mxu0 %v3313
      %v3525 = vpop.f32.mrf.mxu0
      %v3526 = vadd.f32 0.0, %v3525
      %v3527 = vpop.f32.mrf.mxu0
      %3528 = vmatprep.mubr.f32.mxu0 0.0
      %3529 = vmatmul.mubr.f32.gmra.mxu0 %v3316
      %v3530 = vpop.f32.mrf.mxu0
      %v3531 = vadd.f32 0.0, %v3530
      %v3532 = vpop.f32.mrf.mxu0
      %3533 = vmatprep.mubr.f32.mxu0 0.0
      %3534 = vmatmul.mubr.f32.gmra.mxu0 %v3319
      %v3535 = vpop.f32.mrf.mxu0
      %v3536 = vadd.f32 0.0, %v3535
      %v3537 = vpop.f32.mrf.mxu0
      %3538 = vmatprep.mubr.f32.mxu0 0.0
      %3539 = vmatmul.mubr.f32.gmra.mxu0 %v3322
      %v3540 = vpop.f32.mrf.mxu0
      %v3541 = vadd.f32 0.0, %v3540
      %v3542 = vpop.f32.mrf.mxu0
      %3543 = vmatprep.mubr.f32.mxu0 0.0
      %3544 = vmatmul.mubr.f32.gmra.mxu0 %v3325
      %v3545 = vpop.f32.mrf.mxu0
      %v3546 = vadd.f32 0.0, %v3545
      %v3547 = vpop.f32.mrf.mxu0
      %3548 = vmatprep.mubr.f32.mxu0 0.0
      %3549 = vmatmul.mubr.f32.gmra.mxu0 %v3328
      %v3550 = vpop.f32.mrf.mxu0
      %v3551 = vadd.f32 0.0, %v3550
      %v3552 = vpop.f32.mrf.mxu0
      %3553 = vmatprep.mubr.f32.mxu0 0.0
      %3554 = vmatmul.mubr.f32.gmra.mxu0 %v3331
      %v3555 = vpop.f32.mrf.mxu0
      %v3556 = vadd.f32 0.0, %v3555
      %v3557 = vpop.f32.mrf.mxu0
      %3558 = vmatprep.mubr.f32.mxu0 0.0
      %3559 = vmatmul.mubr.f32.gmra.mxu0 %v3334
      %v3560 = vpop.f32.mrf.mxu0
      %v3561 = vadd.f32 0.0, %v3560
      %v3562 = vpop.f32.mrf.mxu0
      %3563 = vdwg.mxu0
      %v3564 = vadd.f32 %v3174, %v3406
      %v3565 = vadd.f32 %v3175, %v3411
      %v3566 = vadd.f32 %v3176, %v3416
      %v3567 = vadd.f32 %v3177, %v3421
      %v3568 = vadd.f32 %v3178, %v3426
      %v3569 = vadd.f32 %v3179, %v3431
      %v3570 = vadd.f32 %v3180, %v3436
      %v3571 = vadd.f32 %v3181, %v3441
      %v3572 = vadd.f32 %v3182, %v3446
      %v3573 = vadd.f32 %v3183, %v3451
      %v3574 = vadd.f32 %v3184, %v3456
      %v3575 = vadd.f32 %v3185, %v3461
      %v3576 = vadd.f32 %v3186, %v3466
      %v3577 = vadd.f32 %v3187, %v3471
      %v3578 = vadd.f32 %v3188, %v3476
      %v3579 = vadd.f32 %v3189, %v3481
      %v3580 = vadd.f32 %v3190, %v3486
      %v3581 = vadd.f32 %v3191, %v3491
      %v3582 = vadd.f32 %v3192, %v3496
      %v3583 = vadd.f32 %v3193, %v3501
      %v3584 = vadd.f32 %v3194, %v3506
      %v3585 = vadd.f32 %v3195, %v3511
      %v3586 = vadd.f32 %v3196, %v3516
      %v3587 = vadd.f32 %v3197, %v3521
      %v3588 = vadd.f32 %v3198, %v3526
      %v3589 = vadd.f32 %v3199, %v3531
      %v3590 = vadd.f32 %v3200, %v3536
      %v3591 = vadd.f32 %v3201, %v3541
      %v3592 = vadd.f32 %v3202, %v3546
      %v3593 = vadd.f32 %v3203, %v3551
      %v3594 = vadd.f32 %v3204, %v3556
      %v3595 = vadd.f32 %v3205, %v3561
      %v3596 = vadd.f32 %v3564, %v3565
      %v3597 = vadd.f32 %v3596, %v3566
      %v3598 = vadd.f32 %v3597, %v3567
      %v3599 = vadd.f32 %v3598, %v3568
      %v3600 = vadd.f32 %v3599, %v3569
      %v3601 = vadd.f32 %v3600, %v3570
      %v3602 = vadd.f32 %v3601, %v3571
      %v3603 = vadd.f32 %v3602, %v3572
      %v3604 = vadd.f32 %v3603, %v3573
      %v3605 = vadd.f32 %v3604, %v3574
      %v3606 = vadd.f32 %v3605, %v3575
      %v3607 = vadd.f32 %v3606, %v3576
      %v3608 = vadd.f32 %v3607, %v3577
      %v3609 = vadd.f32 %v3608, %v3578
      %v3610 = vadd.f32 %v3609, %v3579
      %v3611 = vadd.f32 %v3610, %v3580
      %v3612 = vadd.f32 %v3611, %v3581
      %v3613 = vadd.f32 %v3612, %v3582
      %v3614 = vadd.f32 %v3613, %v3583
      %v3615 = vadd.f32 %v3614, %v3584
      %v3616 = vadd.f32 %v3615, %v3585
      %v3617 = vadd.f32 %v3616, %v3586
      %v3618 = vadd.f32 %v3617, %v3587
      %v3619 = vadd.f32 %v3618, %v3588
      %v3620 = vadd.f32 %v3619, %v3589
      %v3621 = vadd.f32 %v3620, %v3590
      %v3622 = vadd.f32 %v3621, %v3591
      %v3623 = vadd.f32 %v3622, %v3592
      %v3624 = vadd.f32 %v3623, %v3593
      %v3625 = vadd.f32 %v3624, %v3594
      %v3626 = vadd.f32 %v3625, %v3595
      %v3627 = vrot.slane %v3626, 4
      %v3628 = vadd.f32 %v3626, %v3627
      %v3629 = vrot.slane %v3628, 2
      %v3630 = vadd.f32 %v3628, %v3629
      %v3631 = vrot.slane %v3630, 1
      %v3632 = vadd.f32 %v3630, %v3631
      %3633 = vst [vmem:[%s146] sm:$0x1] %v3632
      %v3634 = vmul.f32 %v3564, %v3564
      %v3635 = vmul.f32 %v3565, %v3565
      %v3636 = vmul.f32 %v3566, %v3566
      %v3637 = vmul.f32 %v3567, %v3567
      %v3638 = vmul.f32 %v3568, %v3568
      %v3639 = vmul.f32 %v3569, %v3569
      %v3640 = vmul.f32 %v3570, %v3570
      %v3641 = vmul.f32 %v3571, %v3571
      %v3642 = vmul.f32 %v3572, %v3572
      %v3643 = vmul.f32 %v3573, %v3573
      %v3644 = vmul.f32 %v3574, %v3574
      %v3645 = vmul.f32 %v3575, %v3575
      %v3646 = vmul.f32 %v3576, %v3576
      %v3647 = vmul.f32 %v3577, %v3577
      %v3648 = vmul.f32 %v3578, %v3578
      %v3649 = vmul.f32 %v3579, %v3579
      %v3650 = vmul.f32 %v3580, %v3580
      %v3651 = vmul.f32 %v3581, %v3581
      %v3652 = vmul.f32 %v3582, %v3582
      %v3653 = vmul.f32 %v3583, %v3583
      %v3654 = vmul.f32 %v3584, %v3584
      %v3655 = vmul.f32 %v3585, %v3585
      %v3656 = vmul.f32 %v3586, %v3586
      %v3657 = vmul.f32 %v3587, %v3587
      %v3658 = vmul.f32 %v3588, %v3588
      %v3659 = vmul.f32 %v3589, %v3589
      %v3660 = vmul.f32 %v3590, %v3590
      %v3661 = vmul.f32 %v3591, %v3591
      %v3662 = vmul.f32 %v3592, %v3592
      %v3663 = vmul.f32 %v3593, %v3593
      %v3664 = vmul.f32 %v3594, %v3594
      %v3665 = vmul.f32 %v3595, %v3595
      %v3666 = vadd.f32 %v3634, %v3635
      %v3667 = vadd.f32 %v3666, %v3636
      %v3668 = vadd.f32 %v3667, %v3637
      %v3669 = vadd.f32 %v3668, %v3638
      %v3670 = vadd.f32 %v3669, %v3639
      %v3671 = vadd.f32 %v3670, %v3640
      %v3672 = vadd.f32 %v3671, %v3641
      %v3673 = vadd.f32 %v3672, %v3642
      %v3674 = vadd.f32 %v3673, %v3643
      %v3675 = vadd.f32 %v3674, %v3644
      %v3676 = vadd.f32 %v3675, %v3645
      %v3677 = vadd.f32 %v3676, %v3646
      %v3678 = vadd.f32 %v3677, %v3647
      %v3679 = vadd.f32 %v3678, %v3648
      %v3680 = vadd.f32 %v3679, %v3649
      %v3681 = vadd.f32 %v3680, %v3650
      %v3682 = vadd.f32 %v3681, %v3651
      %v3683 = vadd.f32 %v3682, %v3652
      %v3684 = vadd.f32 %v3683, %v3653
      %v3685 = vadd.f32 %v3684, %v3654
      %v3686 = vadd.f32 %v3685, %v3655
      %v3687 = vadd.f32 %v3686, %v3656
      %v3688 = vadd.f32 %v3687, %v3657
      %v3689 = vadd.f32 %v3688, %v3658
      %v3690 = vadd.f32 %v3689, %v3659
      %v3691 = vadd.f32 %v3690, %v3660
      %v3692 = vadd.f32 %v3691, %v3661
      %v3693 = vadd.f32 %v3692, %v3662
      %v3694 = vadd.f32 %v3693, %v3663
      %v3695 = vadd.f32 %v3694, %v3664
      %v3696 = vadd.f32 %v3695, %v3665
      %v3697 = vrot.slane %v3696, 4
      %v3698 = vadd.f32 %v3696, %v3697
      %v3699 = vrot.slane %v3698, 2
      %v3700 = vadd.f32 %v3698, %v3699
      %v3701 = vrot.slane %v3700, 1
      %v3702 = vadd.f32 %v3700, %v3701
      %3703 = vst [vmem:[%s146 + $0x1] sm:$0x1] %v3702
      %p3704 = scmp.lt.s32.totalorder %s13, 1
      %s3705 = scalar_select %p3704, %s13, 1
      %s3706 = smul.addr %s3705, 2
      %s3707 = scalar_lea.vmem %s2, %s3706
      // Predicated region
      $region29: #{new_conv_layer.2} parent=27 // pred_check
        %p3708 = pneg %p78
      $region30: #{new_conv_layer.2} parent=27 // pred_check_branch
        %3710 = sbr.rel (%p3708) target = $region32
      $region31: #{new_conv_layer.2} parent=27 // pred_region
        _
      $region32: #{new_conv_layer.2} parent=27 // pred_fallthru
        _
    $region28: #{new_conv_layer.2} parent=5 // pred_fallthru
      _
    %p3711 = scmp.le.s32.totalorder 2, %s8
    // Predicated region
    $region33: #{new_conv_layer.2} parent=5 // pred_check
      %p3712 = pneg %p3711
    $region34: #{new_conv_layer.2} parent=5 // pred_check_branch
      %3714 = sbr.rel (%p3712) target = $region36
    $region35: #{new_conv_layer.2} parent=5 // pred_region
      %s3715 = ssub.s32 %s8, 2
      // Predicated region
      $region37: #{new_conv_layer.2} parent=35 // pred_check
        %p3716 = pneg %p84
      $region38: #{new_conv_layer.2} parent=35 // pred_check_branch
        %3718 = sbr.rel (%p3716) target = $region40
      $region39: #{new_conv_layer.2} parent=35 // pred_region
        %p3719 = scmp.lt.s32.totalorder %s14, 1
        %s3720 = scalar_select %p3719, %s14, 1
        %s3721 = smul.addr %s3720, 2
        %s3722 = scalar_lea.vmem %s2, %s3721
      $region40: #{new_conv_layer.2} parent=35 // pred_fallthru
        _
    $region36: #{new_conv_layer.2} parent=5 // pred_fallthru
      _
  $region6: #{new_conv_layer.2} parent=0 // loop_footer
    %s12 = sadd.s32 1, %s8
  $region7: #{new_conv_layer.2} parent=0 // loop_footer_branch
    %7 = sbr.rel target = $region3
  $region8: #{new_conv_layer.2} parent=0 // loop_exit
    _

// kernel: new_conv_layer.3
$region0: #{new_conv_layer.3}
  #allocation0 [shape = 'u32[]', space=smem, size = 0x4, offset = 0x4, fixed_abs, tag = 'smem constant byte address 0x4 - core index']
  #allocation1 [shape = 'u32[144,128]{1,0:T(1,128)}', space=vmem, size = 0x12000, scoped, tag = 'internal scratch']
  %s0 = inlined_call_operand.vmem [shape: f32[36,18,4], index: 0, kind: input, shape index: {}]
  %s1 = inlined_call_operand.vmem [shape: f32[9,4,128], index: 1, kind: input, shape index: {}]
  %s2 = inlined_call_operand.vmem [shape: f32[1,128], index: 2, kind: input, shape index: {}]
  %s3 = inlined_call_operand.vmem [shape: f32[1,128], index: 3, kind: input, shape index: {}]
  %s4 = inlined_call_operand.vmem [shape: f32[2,8,256], index: 4, kind: output, shape index: {}]
  %s5 = sld [smem:[#allocation0]]
  $region49: #{new_conv_layer.3} parent=0
    _
  %s7 = ssub.s32 1, %s5
  %s8 = scalar_select 0, %s7, %s5
  loop: start=0, step=1, limit=4
  $region2: #{new_conv_layer.3} parent=0 // loop_pre_header
    _
  $region3: #{new_conv_layer.3} parent=0 // loop_header
    %s10 = sphi 0, %s14
    %p11 = scmp.ge.s32.totalorder %s10, 4
    %s20 = sphi 0, %s22
    %s23 = sphi 0, %s20
    %s24 = sphi 0, %s23
    %s40 = sphi 0, %s24
    %s44 = sphi 0, %s44
    %s46 = sphi 0, %s44
    %s47 = sphi 0, %s46
    %s61 = sphi 0, %s47
    %s65 = sphi 0, %s65
    %s67 = sphi 0, %s65
    %s68 = sphi 0, %s67
    %s82 = sphi 0, %s68
    %s86 = sphi 0, %s86
    %s88 = sphi 0, %s86
    %s89 = sphi 0, %s88
    %s103 = sphi 0, %s89
    %s109 = sphi 0, %s111
    %s112 = sphi 0, %s109
    %s113 = sphi 0, %s112
    %s129 = sphi 0, %s113
  $region4: #{new_conv_layer.3} parent=0 // loop_header_branch
    %13 = sbr.rel (%p11) target = $region8
  $region5: #{new_conv_layer.3} parent=0 // loop_body
    %s15 = ssub.s32 %s10, 1
    %s16 = ssub.s32 %s10, 2
    %s17 = sadd.s32 %s10, 1
    %s18 = ssub.s32 %s10, %s17
    %p19 = scmp.eq.s32.totalorder %s18, 0
    %s21 = sadd.s32 %s20, 1
    %s22 = scalar_select %p19, %s20, %s21
    %p25 = pneg %p19
    %p26 = scmp.eq.s32.totalorder %s10, 1
    %p27 = por %p25, %p26
    %p28 = scmp.ne.s32.totalorder %s20, %s23
    %p29 = scmp.eq.s32.totalorder %s10, 0
    %p30 = por %p28, %p29
    %p31 = scmp.ne.s32.totalorder %s20, %s23
    %p32 = scmp.eq.s32.totalorder %s15, 1
    %p33 = por %p31, %p32
    %p34 = scmp.ne.s32.totalorder %s23, %s24
    %p35 = scmp.eq.s32.totalorder %s15, 0
    %p36 = por %p34, %p35
    %p37 = scmp.ne.s32.totalorder %s23, %s24
    %p38 = scmp.eq.s32.totalorder %s16, 1
    %p39 = por %p37, %p38
    %p41 = scmp.ne.s32.totalorder %s24, %s40
    %p42 = scmp.eq.s32.totalorder %s16, 0
    %p43 = por %p41, %p42
    %s45 = sadd.s32 %s44, 1
    %p48 = scmp.eq.s32.totalorder %s10, 1
    %p49 = scmp.ne.s32.totalorder %s44, %s46
    %p50 = scmp.eq.s32.totalorder %s10, 0
    %p51 = por %p49, %p50
    %p52 = scmp.ne.s32.totalorder %s44, %s46
    %p53 = scmp.eq.s32.totalorder %s15, 1
    %p54 = por %p52, %p53
    %p55 = scmp.ne.s32.totalorder %s46, %s47
    %p56 = scmp.eq.s32.totalorder %s15, 0
    %p57 = por %p55, %p56
    %p58 = scmp.ne.s32.totalorder %s46, %s47
    %p59 = scmp.eq.s32.totalorder %s16, 1
    %p60 = por %p58, %p59
    %p62 = scmp.ne.s32.totalorder %s47, %s61
    %p63 = scmp.eq.s32.totalorder %s16, 0
    %p64 = por %p62, %p63
    %s66 = sadd.s32 %s65, 1
    %p69 = scmp.eq.s32.totalorder %s10, 1
    %p70 = scmp.ne.s32.totalorder %s65, %s67
    %p71 = scmp.eq.s32.totalorder %s10, 0
    %p72 = por %p70, %p71
    %p73 = scmp.ne.s32.totalorder %s65, %s67
    %p74 = scmp.eq.s32.totalorder %s15, 1
    %p75 = por %p73, %p74
    %p76 = scmp.ne.s32.totalorder %s67, %s68
    %p77 = scmp.eq.s32.totalorder %s15, 0
    %p78 = por %p76, %p77
    %p79 = scmp.ne.s32.totalorder %s67, %s68
    %p80 = scmp.eq.s32.totalorder %s16, 1
    %p81 = por %p79, %p80
    %p83 = scmp.ne.s32.totalorder %s68, %s82
    %p84 = scmp.eq.s32.totalorder %s16, 0
    %p85 = por %p83, %p84
    %s87 = sadd.s32 %s86, 1
    %p90 = scmp.eq.s32.totalorder %s10, 1
    %p91 = scmp.ne.s32.totalorder %s86, %s88
    %p92 = scmp.eq.s32.totalorder %s10, 0
    %p93 = por %p91, %p92
    %p94 = scmp.ne.s32.totalorder %s86, %s88
    %p95 = scmp.eq.s32.totalorder %s15, 1
    %p96 = por %p94, %p95
    %p97 = scmp.ne.s32.totalorder %s88, %s89
    %p98 = scmp.eq.s32.totalorder %s15, 0
    %p99 = por %p97, %p98
    %p100 = scmp.ne.s32.totalorder %s88, %s89
    %p101 = scmp.eq.s32.totalorder %s16, 1
    %p102 = por %p100, %p101
    %p104 = scmp.ne.s32.totalorder %s89, %s103
    %p105 = scmp.eq.s32.totalorder %s16, 0
    %p106 = por %p104, %p105
    %s107 = ssub.s32 %s10, %s17
    %p108 = scmp.eq.s32.totalorder %s107, 0
    %s110 = sadd.s32 %s109, 1
    %s111 = scalar_select %p108, %s109, %s110
    %p114 = pneg %p108
    %p115 = scmp.eq.s32.totalorder %s10, 1
    %p116 = por %p114, %p115
    %p117 = scmp.ne.s32.totalorder %s109, %s112
    %p118 = scmp.eq.s32.totalorder %s10, 0
    %p119 = por %p117, %p118
    %p120 = scmp.ne.s32.totalorder %s109, %s112
    %p121 = scmp.eq.s32.totalorder %s15, 1
    %p122 = por %p120, %p121
    %p123 = scmp.ne.s32.totalorder %s112, %s113
    %p124 = scmp.eq.s32.totalorder %s15, 0
    %p125 = por %p123, %p124
    %p126 = scmp.ne.s32.totalorder %s112, %s113
    %p127 = scmp.eq.s32.totalorder %s16, 1
    %p128 = por %p126, %p127
    %p130 = scmp.ne.s32.totalorder %s113, %s129
    %p131 = scmp.eq.s32.totalorder %s16, 0
    %p132 = por %p130, %p131
    %p133 = scmp.le.s32.totalorder 1, %s10
    %p134 = scmp.lt.s32.totalorder %s10, 3
    %p135 = pnand %p133, %p134
    %p136 = pneg %p135
    // Predicated region
    $region9: #{new_conv_layer.3} parent=5 // pred_check
      _
    $region10: #{new_conv_layer.3} parent=5 // pred_check_branch
      %138 = sbr.rel (%p135) target = $region12
    $region11: #{new_conv_layer.3} parent=5 // pred_region
      %s139 = ssub.s32 %s10, 1
      // Predicated region
      $region13: #{new_conv_layer.3} parent=11 // pred_check
        %p140 = pneg %p57
      $region14: #{new_conv_layer.3} parent=11 // pred_check_branch
        %142 = sbr.rel (%p140) target = $region16
      $region15: #{new_conv_layer.3} parent=11 // pred_region
        _
      $region16: #{new_conv_layer.3} parent=11 // pred_fallthru
        _
      // Predicated region
      $region17: #{new_conv_layer.3} parent=11 // pred_check
        %p143 = pneg %p78
      $region18: #{new_conv_layer.3} parent=11 // pred_check_branch
        %145 = sbr.rel (%p143) target = $region20
      $region19: #{new_conv_layer.3} parent=11 // pred_region
        _
      $region20: #{new_conv_layer.3} parent=11 // pred_fallthru
        _
      // Predicated region
      $region21: #{new_conv_layer.3} parent=11 // pred_check
        %p146 = pneg %p99
      $region22: #{new_conv_layer.3} parent=11 // pred_check_branch
        %148 = sbr.rel (%p146) target = $region24
      $region23: #{new_conv_layer.3} parent=11 // pred_region
        _
      $region24: #{new_conv_layer.3} parent=11 // pred_fallthru
        _
    $region12: #{new_conv_layer.3} parent=5 // pred_fallthru
      _
    %p149 = scmp.lt.s32.totalorder %s10, 2
    // Predicated region
    $region25: #{new_conv_layer.3} parent=5 // pred_check
      %p150 = pneg %p149
    $region26: #{new_conv_layer.3} parent=5 // pred_check_branch
      %152 = sbr.rel (%p150) target = $region28
    $region27: #{new_conv_layer.3} parent=5 // pred_region
      // Predicated region
      $region29: #{new_conv_layer.3} parent=27 // pred_check
        %p153 = pneg %p30
      $region30: #{new_conv_layer.3} parent=27 // pred_check_branch
        %155 = sbr.rel (%p153) target = $region32
      $region31: #{new_conv_layer.3} parent=27 // pred_region
        %s156 = smul.u32 18, %s10
        %p157 = scmp.lt.s32.totalorder %s156, 35
        %s158 = scalar_select %p157, %s156, 35
        %s159 = smul.addr %s158, 3
        %s160 = smul.addr %s159, 8
        %s161 = scalar_lea.vmem %s0, %s160
        %s162 = smul.u32 18, %s10
      $region32: #{new_conv_layer.3} parent=27 // pred_fallthru
        _
    $region28: #{new_conv_layer.3} parent=5 // pred_fallthru
      _
    %p163 = scmp.le.s32.totalorder 1, %s10
    %p164 = scmp.lt.s32.totalorder %s10, 3
    %p165 = pnand %p163, %p164
    %p166 = pneg %p165
    // Predicated region
    $region33: #{new_conv_layer.3} parent=5 // pred_check
      _
    $region34: #{new_conv_layer.3} parent=5 // pred_check_branch
      %168 = sbr.rel (%p165) target = $region36
    $region35: #{new_conv_layer.3} parent=5 // pred_region
      %s169 = ssub.s32 %s10, 1
      %s170 = smul.u32 18, %s15
      %p171 = scmp.lt.s32.totalorder %s170, 35
      %s172 = scalar_select %p171, %s170, 35
      %s173 = smul.addr %s172, 3
      %s174 = smul.addr %s173, 8
      %s175 = scalar_lea.vmem %s0, %s174
      %p176 = pneg %p36
      %p177 = pneg %p33
      %p178 = pneg %p57
      %p179 = pneg %p54
      %p180 = pneg %p78
      %p181 = pneg %p75
      %p182 = pneg %p99
      %p183 = pneg %p96
      %p184 = pneg %p125
      %p185 = pneg %p122
      %p186 = scmp.lt.s32.totalorder %s15, 1
      %s187 = scalar_select %p186, %s15, 1
      %s188 = smul.addr %s187, 2
      %s189 = smul.addr %s188, 8
      %s190 = scalar_lea.vmem %s4, %s189
      %s191 = smul.u32 18, %s15
      %p192 = scmp.lt.s32.totalorder %s191, 35
      %s193 = scalar_select %p192, %s191, 35
      %s194 = smul.addr %s193, 3
      %s195 = smul.addr %s194, 8
      %s196 = scalar_lea.vmem %s0, %s195
      %s197 = smul.u32 18, %s15
      %p198 = scmp.lt.s32.totalorder %s15, 1
      %s199 = scalar_select %p198, %s15, 1
      %s200 = smul.addr %s199, 2
      %s201 = smul.addr %s200, 8
      %s202 = scalar_lea.vmem %s4, %s201
      %v203 = vld [vmem:[%s196] sm:$0xff]
      %v204 = vld [vmem:[%s196 + $0x8] sm:$0xff]
      %v205 = vld [vmem:[%s196 + $0x18] sm:$0xff]
      %v206 = vld [vmem:[%s196 + $0x20] sm:$0xff]
      %v207 = vld [vmem:[%s196 + $0x30] sm:$0xff]
      %v208 = vld [vmem:[%s196 + $0x38] sm:$0xff]
      %v209 = vld [vmem:[%s196 + $0x48] sm:$0xff]
      %v210 = vld [vmem:[%s196 + $0x50] sm:$0xff]
      %v211 = vld [vmem:[%s196 + $0x60] sm:$0xff]
      %v212 = vld [vmem:[%s196 + $0x68] sm:$0xff]
      %v213 = vld [vmem:[%s196 + $0x78] sm:$0xff]
      %v214 = vld [vmem:[%s196 + $0x80] sm:$0xff]
      %v215 = vld [vmem:[%s196 + $0x90] sm:$0xff]
      %v216 = vld [vmem:[%s196 + $0x98] sm:$0xff]
      %v217 = vld [vmem:[%s196 + $0xa8] sm:$0xff]
      %v218 = vld [vmem:[%s196 + $0xb0] sm:$0xff]
      %v219 = vld [vmem:[%s196 + $0xc0] sm:$0xff]
      %v220 = vld [vmem:[%s196 + $0xc8] sm:$0xff]
      %v221 = vld [vmem:[%s196 + $0xd8] sm:$0xff]
      %v222 = vld [vmem:[%s196 + $0xe0] sm:$0xff]
      %v223 = vld [vmem:[%s196 + $0xf0] sm:$0xff]
      %v224 = vld [vmem:[%s196 + $0xf8] sm:$0xff]
      %v225 = vld [vmem:[%s196 + $0x108] sm:$0xff]
      %v226 = vld [vmem:[%s196 + $0x110] sm:$0xff]
      %v227 = vld [vmem:[%s196 + $0x120] sm:$0xff]
      %v228 = vld [vmem:[%s196 + $0x128] sm:$0xff]
      %v229 = vld [vmem:[%s196 + $0x138] sm:$0xff]
      %v230 = vld [vmem:[%s196 + $0x140] sm:$0xff]
      %v231 = vld [vmem:[%s196 + $0x150] sm:$0xff]
      %v232 = vld [vmem:[%s196 + $0x158] sm:$0xff]
      %v233 = vld [vmem:[%s196 + $0x168] sm:$0xff]
      %v234 = vld [vmem:[%s196 + $0x170] sm:$0xff]
      %v235 = vld [vmem:[%s1] sm:$0xf]
      %v236 = vld [vmem:[%s196 + $0x1] sm:$0xff]
      %v237 = vld [vmem:[%s196 + $0x9] sm:$0xff]
      %v238 = vld [vmem:[%s196 + $0x19] sm:$0xff]
      %v239 = vld [vmem:[%s196 + $0x21] sm:$0xff]
      %v240 = vld [vmem:[%s196 + $0x31] sm:$0xff]
      %v241 = vld [vmem:[%s196 + $0x39] sm:$0xff]
      %v242 = vld [vmem:[%s196 + $0x49] sm:$0xff]
      %v243 = vld [vmem:[%s196 + $0x51] sm:$0xff]
      %v244 = vld [vmem:[%s196 + $0x61] sm:$0xff]
      %v245 = vld [vmem:[%s196 + $0x69] sm:$0xff]
      %v246 = vld [vmem:[%s196 + $0x79] sm:$0xff]
      %v247 = vld [vmem:[%s196 + $0x81] sm:$0xff]
      %v248 = vld [vmem:[%s196 + $0x91] sm:$0xff]
      %v249 = vld [vmem:[%s196 + $0x99] sm:$0xff]
      %v250 = vld [vmem:[%s196 + $0xa9] sm:$0xff]
      %v251 = vld [vmem:[%s196 + $0xb1] sm:$0xff]
      %v252 = vld [vmem:[%s196 + $0xc1] sm:$0xff]
      %v253 = vld [vmem:[%s196 + $0xc9] sm:$0xff]
      %v254 = vld [vmem:[%s196 + $0xd9] sm:$0xff]
      %v255 = vld [vmem:[%s196 + $0xe1] sm:$0xff]
      %v256 = vld [vmem:[%s196 + $0xf1] sm:$0xff]
      %v257 = vld [vmem:[%s196 + $0xf9] sm:$0xff]
      %v258 = vld [vmem:[%s196 + $0x109] sm:$0xff]
      %v259 = vld [vmem:[%s196 + $0x111] sm:$0xff]
      %v260 = vld [vmem:[%s196 + $0x121] sm:$0xff]
      %v261 = vld [vmem:[%s196 + $0x129] sm:$0xff]
      %v262 = vld [vmem:[%s196 + $0x139] sm:$0xff]
      %v263 = vld [vmem:[%s196 + $0x141] sm:$0xff]
      %v264 = vld [vmem:[%s196 + $0x151] sm:$0xff]
      %v265 = vld [vmem:[%s196 + $0x159] sm:$0xff]
      %v266 = vld [vmem:[%s196 + $0x169] sm:$0xff]
      %v267 = vld [vmem:[%s196 + $0x171] sm:$0xff]
      %s268 = scalar_lea.vmem %s1, 4
      %v269 = vld [vmem:[%s268] sm:$0xf]
      %vm270 = vcmask 31744
      %v272 = vsel %vm270, %v236, 0
      %v275 = vsel %vm270, %v237, 0
      %v278 = vsel %vm270, %v238, 0
      %v281 = vsel %vm270, %v239, 0
      %v284 = vsel %vm270, %v240, 0
      %v287 = vsel %vm270, %v241, 0
      %v290 = vsel %vm270, %v242, 0
      %v293 = vsel %vm270, %v243, 0
      %v296 = vsel %vm270, %v244, 0
      %v299 = vsel %vm270, %v245, 0
      %v302 = vsel %vm270, %v246, 0
      %v305 = vsel %vm270, %v247, 0
      %v308 = vsel %vm270, %v248, 0
      %v311 = vsel %vm270, %v249, 0
      %v314 = vsel %vm270, %v250, 0
      %v317 = vsel %vm270, %v251, 0
      %v320 = vsel %vm270, %v252, 0
      %v323 = vsel %vm270, %v253, 0
      %v326 = vsel %vm270, %v254, 0
      %v329 = vsel %vm270, %v255, 0
      %v332 = vsel %vm270, %v256, 0
      %v335 = vsel %vm270, %v257, 0
      %v338 = vsel %vm270, %v258, 0
      %v341 = vsel %vm270, %v259, 0
      %v344 = vsel %vm270, %v260, 0
      %v347 = vsel %vm270, %v261, 0
      %v350 = vsel %vm270, %v262, 0
      %v353 = vsel %vm270, %v263, 0
      %v356 = vsel %vm270, %v264, 0
      %v359 = vsel %vm270, %v265, 0
      %v362 = vsel %vm270, %v266, 0
      %v365 = vsel %vm270, %v267, 0
      %vm367 = vcmask 1043456
      %v369 = vsel %vm367, %v269, 0
      %371 = vmatprep.subr.mxu0 0.0
      %372 = vmatpush1.msra.mxu0 0.0
      %373 = vmatprep.subr.mxu0 0.0
      %374 = vmatpush1.msra.mxu0 0.0
      %375 = vmatprep.subr.mxu0 0.0
      %376 = vmatpush1.msra.mxu0 0.0
      %377 = vmatprep.subr.mxu0 0.0
      %378 = vmatpush1.msra.mxu0 0.0
      %379 = vmatprep.subr.mxu0 0.0
      %380 = vmatpush1.msra.mxu0 0.0
      %381 = vmatprep.subr.mxu0 0.0
      %382 = vmatpush1.msra.mxu0 0.0
      %383 = vmatprep.subr.mxu0 0.0
      %384 = vmatpush1.msra.mxu0 0.0
      %385 = vmatprep.subr.mxu0 0.0
      %386 = vmatpush1.msra.mxu0 0.0
      %387 = vmatprep.subr.mxu0 0.0
      %388 = vmatpush1.msra.mxu0 0.0
      %389 = vmatprep.subr.mxu0 0.0
      %390 = vmatpush1.msra.mxu0 0.0
      %391 = vmatprep.subr.mxu0 0.0
      %392 = vmatpush1.msra.mxu0 0.0
      %393 = vmatprep.subr.mxu0 0.0
      %394 = vmatpush1.msra.mxu0 0.0
      %395 = vmatprep.subr.mxu0 0.0
      %396 = vmatpush1.msra.mxu0 0.0
      %397 = vmatprep.subr.mxu0 0.0
      %398 = vmatpush1.msra.mxu0 0.0
      %399 = vmatprep.subr.mxu0 0.0
      %400 = vmatpush1.msra.mxu0 0.0
      %401 = vmatprep.subr.mxu0 0.0
      %402 = vmatpush1.msra.mxu0 %v369
      %403 = vmatprep.subr.mxu0 0.0
      %404 = vmatpush2.msra.mxu0 0.0
      %405 = vmatprep.subr.mxu0 0.0
      %406 = vmatpush2.msra.mxu0 0.0
      %407 = vmatprep.subr.mxu0 0.0
      %408 = vmatpush2.msra.mxu0 0.0
      %409 = vmatprep.subr.mxu0 0.0
      %410 = vmatpush2.msra.mxu0 0.0
      %411 = vmatprep.subr.mxu0 0.0
      %412 = vmatpush2.msra.mxu0 0.0
      %413 = vmatprep.subr.mxu0 0.0
      %414 = vmatpush2.msra.mxu0 0.0
      %415 = vmatprep.subr.mxu0 0.0
      %416 = vmatpush2.msra.mxu0 0.0
      %417 = vmatprep.subr.mxu0 0.0
      %418 = vmatpush2.msra.mxu0 0.0
      %419 = vmatprep.subr.mxu0 0.0
      %420 = vmatpush2.msra.mxu0 0.0
      %421 = vmatprep.subr.mxu0 0.0
      %422 = vmatpush2.msra.mxu0 0.0
      %423 = vmatprep.subr.mxu0 0.0
      %424 = vmatpush2.msra.mxu0 0.0
      %425 = vmatprep.subr.mxu0 0.0
      %426 = vmatpush2.msra.mxu0 0.0
      %427 = vmatprep.subr.mxu0 0.0
      %428 = vmatpush2.msra.mxu0 0.0
      %429 = vmatprep.subr.mxu0 0.0
      %430 = vmatpush2.msra.mxu0 0.0
      %431 = vmatprep.subr.mxu0 0.0
      %432 = vmatpush2.msra.mxu0 0.0
      %433 = vmatprep.subr.mxu0 0.0
      %434 = vmatpush2.msra.mxu0 0.0
      %435 = vmatprep.mubr.f32.mxu0 0.0
      %436 = vmatmul.mubr.f32.gmra.mxu0 %v272
      %v437 = vpop.f32.mrf.mxu0
      %v438 = vadd.f32 0.0, %v437
      %v439 = vpop.f32.mrf.mxu0
      %440 = vmatprep.mubr.f32.mxu0 0.0
      %441 = vmatmul.mubr.f32.gmra.mxu0 %v275
      %v442 = vpop.f32.mrf.mxu0
      %v443 = vadd.f32 0.0, %v442
      %v444 = vpop.f32.mrf.mxu0
      %445 = vmatprep.mubr.f32.mxu0 0.0
      %446 = vmatmul.mubr.f32.gmra.mxu0 %v278
      %v447 = vpop.f32.mrf.mxu0
      %v448 = vadd.f32 0.0, %v447
      %v449 = vpop.f32.mrf.mxu0
      %450 = vmatprep.mubr.f32.mxu0 0.0
      %451 = vmatmul.mubr.f32.gmra.mxu0 %v281
      %v452 = vpop.f32.mrf.mxu0
      %v453 = vadd.f32 0.0, %v452
      %v454 = vpop.f32.mrf.mxu0
      %455 = vmatprep.mubr.f32.mxu0 0.0
      %456 = vmatmul.mubr.f32.gmra.mxu0 %v284
      %v457 = vpop.f32.mrf.mxu0
      %v458 = vadd.f32 0.0, %v457
      %v459 = vpop.f32.mrf.mxu0
      %460 = vmatprep.mubr.f32.mxu0 0.0
      %461 = vmatmul.mubr.f32.gmra.mxu0 %v287
      %v462 = vpop.f32.mrf.mxu0
      %v463 = vadd.f32 0.0, %v462
      %v464 = vpop.f32.mrf.mxu0
      %465 = vmatprep.mubr.f32.mxu0 0.0
      %466 = vmatmul.mubr.f32.gmra.mxu0 %v290
      %v467 = vpop.f32.mrf.mxu0
      %v468 = vadd.f32 0.0, %v467
      %v469 = vpop.f32.mrf.mxu0
      %470 = vmatprep.mubr.f32.mxu0 0.0
      %471 = vmatmul.mubr.f32.gmra.mxu0 %v293
      %v472 = vpop.f32.mrf.mxu0
      %v473 = vadd.f32 0.0, %v472
      %v474 = vpop.f32.mrf.mxu0
      %475 = vmatprep.mubr.f32.mxu0 0.0
      %476 = vmatmul.mubr.f32.gmra.mxu0 %v296
      %v477 = vpop.f32.mrf.mxu0
      %v478 = vadd.f32 0.0, %v477
      %v479 = vpop.f32.mrf.mxu0
      %480 = vmatprep.mubr.f32.mxu0 0.0
      %481 = vmatmul.mubr.f32.gmra.mxu0 %v299
      %v482 = vpop.f32.mrf.mxu0
      %v483 = vadd.f32 0.0, %v482
      %v484 = vpop.f32.mrf.mxu0
      %485 = vmatprep.mubr.f32.mxu0 0.0
      %486 = vmatmul.mubr.f32.gmra.mxu0 %v302
      %v487 = vpop.f32.mrf.mxu0
      %v488 = vadd.f32 0.0, %v487
      %v489 = vpop.f32.mrf.mxu0
      %490 = vmatprep.mubr.f32.mxu0 0.0
      %491 = vmatmul.mubr.f32.gmra.mxu0 %v305
      %v492 = vpop.f32.mrf.mxu0
      %v493 = vadd.f32 0.0, %v492
      %v494 = vpop.f32.mrf.mxu0
      %495 = vmatprep.mubr.f32.mxu0 0.0
      %496 = vmatmul.mubr.f32.gmra.mxu0 %v308
      %v497 = vpop.f32.mrf.mxu0
      %v498 = vadd.f32 0.0, %v497
      %v499 = vpop.f32.mrf.mxu0
      %500 = vmatprep.mubr.f32.mxu0 0.0
      %501 = vmatmul.mubr.f32.gmra.mxu0 %v311
      %v502 = vpop.f32.mrf.mxu0
      %v503 = vadd.f32 0.0, %v502
      %v504 = vpop.f32.mrf.mxu0
      %505 = vmatprep.mubr.f32.mxu0 0.0
      %506 = vmatmul.mubr.f32.gmra.mxu0 %v314
      %v507 = vpop.f32.mrf.mxu0
      %v508 = vadd.f32 0.0, %v507
      %v509 = vpop.f32.mrf.mxu0
      %510 = vmatprep.mubr.f32.mxu0 0.0
      %511 = vmatmul.mubr.f32.gmra.mxu0 %v317
      %v512 = vpop.f32.mrf.mxu0
      %v513 = vadd.f32 0.0, %v512
      %v514 = vpop.f32.mrf.mxu0
      %515 = vmatprep.mubr.f32.mxu0 0.0
      %516 = vmatmul.mubr.f32.gmra.mxu0 %v320
      %v517 = vpop.f32.mrf.mxu0
      %v518 = vadd.f32 0.0, %v517
      %v519 = vpop.f32.mrf.mxu0
      %520 = vmatprep.mubr.f32.mxu0 0.0
      %521 = vmatmul.mubr.f32.gmra.mxu0 %v323
      %v522 = vpop.f32.mrf.mxu0
      %v523 = vadd.f32 0.0, %v522
      %v524 = vpop.f32.mrf.mxu0
      %525 = vmatprep.mubr.f32.mxu0 0.0
      %526 = vmatmul.mubr.f32.gmra.mxu0 %v326
      %v527 = vpop.f32.mrf.mxu0
      %v528 = vadd.f32 0.0, %v527
      %v529 = vpop.f32.mrf.mxu0
      %530 = vmatprep.mubr.f32.mxu0 0.0
      %531 = vmatmul.mubr.f32.gmra.mxu0 %v329
      %v532 = vpop.f32.mrf.mxu0
      %v533 = vadd.f32 0.0, %v532
      %v534 = vpop.f32.mrf.mxu0
      %535 = vmatprep.mubr.f32.mxu0 0.0
      %536 = vmatmul.mubr.f32.gmra.mxu0 %v332
      %v537 = vpop.f32.mrf.mxu0
      %v538 = vadd.f32 0.0, %v537
      %v539 = vpop.f32.mrf.mxu0
      %540 = vmatprep.mubr.f32.mxu0 0.0
      %541 = vmatmul.mubr.f32.gmra.mxu0 %v335
      %v542 = vpop.f32.mrf.mxu0
      %v543 = vadd.f32 0.0, %v542
      %v544 = vpop.f32.mrf.mxu0
      %545 = vmatprep.mubr.f32.mxu0 0.0
      %546 = vmatmul.mubr.f32.gmra.mxu0 %v338
      %v547 = vpop.f32.mrf.mxu0
      %v548 = vadd.f32 0.0, %v547
      %v549 = vpop.f32.mrf.mxu0
      %550 = vmatprep.mubr.f32.mxu0 0.0
      %551 = vmatmul.mubr.f32.gmra.mxu0 %v341
      %v552 = vpop.f32.mrf.mxu0
      %v553 = vadd.f32 0.0, %v552
      %v554 = vpop.f32.mrf.mxu0
      %555 = vmatprep.mubr.f32.mxu0 0.0
      %556 = vmatmul.mubr.f32.gmra.mxu0 %v344
      %v557 = vpop.f32.mrf.mxu0
      %v558 = vadd.f32 0.0, %v557
      %v559 = vpop.f32.mrf.mxu0
      %560 = vmatprep.mubr.f32.mxu0 0.0
      %561 = vmatmul.mubr.f32.gmra.mxu0 %v347
      %v562 = vpop.f32.mrf.mxu0
      %v563 = vadd.f32 0.0, %v562
      %v564 = vpop.f32.mrf.mxu0
      %565 = vmatprep.mubr.f32.mxu0 0.0
      %566 = vmatmul.mubr.f32.gmra.mxu0 %v350
      %v567 = vpop.f32.mrf.mxu0
      %v568 = vadd.f32 0.0, %v567
      %v569 = vpop.f32.mrf.mxu0
      %570 = vmatprep.mubr.f32.mxu0 0.0
      %571 = vmatmul.mubr.f32.gmra.mxu0 %v353
      %v572 = vpop.f32.mrf.mxu0
      %v573 = vadd.f32 0.0, %v572
      %v574 = vpop.f32.mrf.mxu0
      %575 = vmatprep.mubr.f32.mxu0 0.0
      %576 = vmatmul.mubr.f32.gmra.mxu0 %v356
      %v577 = vpop.f32.mrf.mxu0
      %v578 = vadd.f32 0.0, %v577
      %v579 = vpop.f32.mrf.mxu0
      %580 = vmatprep.mubr.f32.mxu0 0.0
      %581 = vmatmul.mubr.f32.gmra.mxu0 %v359
      %v582 = vpop.f32.mrf.mxu0
      %v583 = vadd.f32 0.0, %v582
      %v584 = vpop.f32.mrf.mxu0
      %585 = vmatprep.mubr.f32.mxu0 0.0
      %586 = vmatmul.mubr.f32.gmra.mxu0 %v362
      %v587 = vpop.f32.mrf.mxu0
      %v588 = vadd.f32 0.0, %v587
      %v589 = vpop.f32.mrf.mxu0
      %590 = vmatprep.mubr.f32.mxu0 0.0
      %591 = vmatmul.mubr.f32.gmra.mxu0 %v365
      %v592 = vpop.f32.mrf.mxu0
      %v593 = vadd.f32 0.0, %v592
      %v594 = vpop.f32.mrf.mxu0
      %595 = vdwg.mxu0
      %v597 = vsel %vm270, %v203, 0
      %v600 = vsel %vm270, %v204, 0
      %v603 = vsel %vm270, %v205, 0
      %v606 = vsel %vm270, %v206, 0
      %v609 = vsel %vm270, %v207, 0
      %v612 = vsel %vm270, %v208, 0
      %v615 = vsel %vm270, %v209, 0
      %v618 = vsel %vm270, %v210, 0
      %v621 = vsel %vm270, %v211, 0
      %v624 = vsel %vm270, %v212, 0
      %v627 = vsel %vm270, %v213, 0
      %v630 = vsel %vm270, %v214, 0
      %v633 = vsel %vm270, %v215, 0
      %v636 = vsel %vm270, %v216, 0
      %v639 = vsel %vm270, %v217, 0
      %v642 = vsel %vm270, %v218, 0
      %v645 = vsel %vm270, %v219, 0
      %v648 = vsel %vm270, %v220, 0
      %v651 = vsel %vm270, %v221, 0
      %v654 = vsel %vm270, %v222, 0
      %v657 = vsel %vm270, %v223, 0
      %v660 = vsel %vm270, %v224, 0
      %v663 = vsel %vm270, %v225, 0
      %v666 = vsel %vm270, %v226, 0
      %v669 = vsel %vm270, %v227, 0
      %v672 = vsel %vm270, %v228, 0
      %v675 = vsel %vm270, %v229, 0
      %v678 = vsel %vm270, %v230, 0
      %v681 = vsel %vm270, %v231, 0
      %v684 = vsel %vm270, %v232, 0
      %v687 = vsel %vm270, %v233, 0
      %v690 = vsel %vm270, %v234, 0
      %v693 = vsel %vm367, %v235, 0
      %695 = vmatprep.subr.mxu0 0.0
      %696 = vmatpush1.msra.mxu0 0.0
      %697 = vmatprep.subr.mxu0 0.0
      %698 = vmatpush1.msra.mxu0 0.0
      %699 = vmatprep.subr.mxu0 0.0
      %700 = vmatpush1.msra.mxu0 0.0
      %701 = vmatprep.subr.mxu0 0.0
      %702 = vmatpush1.msra.mxu0 0.0
      %703 = vmatprep.subr.mxu0 0.0
      %704 = vmatpush1.msra.mxu0 0.0
      %705 = vmatprep.subr.mxu0 0.0
      %706 = vmatpush1.msra.mxu0 0.0
      %707 = vmatprep.subr.mxu0 0.0
      %708 = vmatpush1.msra.mxu0 0.0
      %709 = vmatprep.subr.mxu0 0.0
      %710 = vmatpush1.msra.mxu0 0.0
      %711 = vmatprep.subr.mxu0 0.0
      %712 = vmatpush1.msra.mxu0 0.0
      %713 = vmatprep.subr.mxu0 0.0
      %714 = vmatpush1.msra.mxu0 0.0
      %715 = vmatprep.subr.mxu0 0.0
      %716 = vmatpush1.msra.mxu0 0.0
      %717 = vmatprep.subr.mxu0 0.0
      %718 = vmatpush1.msra.mxu0 0.0
      %719 = vmatprep.subr.mxu0 0.0
      %720 = vmatpush1.msra.mxu0 0.0
      %721 = vmatprep.subr.mxu0 0.0
      %722 = vmatpush1.msra.mxu0 0.0
      %723 = vmatprep.subr.mxu0 0.0
      %724 = vmatpush1.msra.mxu0 0.0
      %725 = vmatprep.subr.mxu0 0.0
      %726 = vmatpush1.msra.mxu0 %v693
      %727 = vmatprep.subr.mxu0 0.0
      %728 = vmatpush2.msra.mxu0 0.0
      %729 = vmatprep.subr.mxu0 0.0
      %730 = vmatpush2.msra.mxu0 0.0
      %731 = vmatprep.subr.mxu0 0.0
      %732 = vmatpush2.msra.mxu0 0.0
      %733 = vmatprep.subr.mxu0 0.0
      %734 = vmatpush2.msra.mxu0 0.0
      %735 = vmatprep.subr.mxu0 0.0
      %736 = vmatpush2.msra.mxu0 0.0
      %737 = vmatprep.subr.mxu0 0.0
      %738 = vmatpush2.msra.mxu0 0.0
      %739 = vmatprep.subr.mxu0 0.0
      %740 = vmatpush2.msra.mxu0 0.0
      %741 = vmatprep.subr.mxu0 0.0
      %742 = vmatpush2.msra.mxu0 0.0
      %743 = vmatprep.subr.mxu0 0.0
      %744 = vmatpush2.msra.mxu0 0.0
      %745 = vmatprep.subr.mxu0 0.0
      %746 = vmatpush2.msra.mxu0 0.0
      %747 = vmatprep.subr.mxu0 0.0
      %748 = vmatpush2.msra.mxu0 0.0
      %749 = vmatprep.subr.mxu0 0.0
      %750 = vmatpush2.msra.mxu0 0.0
      %751 = vmatprep.subr.mxu0 0.0
      %752 = vmatpush2.msra.mxu0 0.0
      %753 = vmatprep.subr.mxu0 0.0
      %754 = vmatpush2.msra.mxu0 0.0
      %755 = vmatprep.subr.mxu0 0.0
      %756 = vmatpush2.msra.mxu0 0.0
      %757 = vmatprep.subr.mxu0 0.0
      %758 = vmatpush2.msra.mxu0 0.0
      %759 = vmatprep.mubr.f32.mxu0 0.0
      %760 = vmatmul.mubr.f32.gmra.mxu0 %v597
      %v761 = vpop.f32.mrf.mxu0
      %v762 = vadd.f32 %v438, %v761
      %v763 = vpop.f32.mrf.mxu0
      %764 = vmatprep.mubr.f32.mxu0 0.0
      %765 = vmatmul.mubr.f32.gmra.mxu0 %v600
      %v766 = vpop.f32.mrf.mxu0
      %v767 = vadd.f32 %v443, %v766
      %v768 = vpop.f32.mrf.mxu0
      %769 = vmatprep.mubr.f32.mxu0 0.0
      %770 = vmatmul.mubr.f32.gmra.mxu0 %v603
      %v771 = vpop.f32.mrf.mxu0
      %v772 = vadd.f32 %v448, %v771
      %v773 = vpop.f32.mrf.mxu0
      %774 = vmatprep.mubr.f32.mxu0 0.0
      %775 = vmatmul.mubr.f32.gmra.mxu0 %v606
      %v776 = vpop.f32.mrf.mxu0
      %v777 = vadd.f32 %v453, %v776
      %v778 = vpop.f32.mrf.mxu0
      %779 = vmatprep.mubr.f32.mxu0 0.0
      %780 = vmatmul.mubr.f32.gmra.mxu0 %v609
      %v781 = vpop.f32.mrf.mxu0
      %v782 = vadd.f32 %v458, %v781
      %v783 = vpop.f32.mrf.mxu0
      %784 = vmatprep.mubr.f32.mxu0 0.0
      %785 = vmatmul.mubr.f32.gmra.mxu0 %v612
      %v786 = vpop.f32.mrf.mxu0
      %v787 = vadd.f32 %v463, %v786
      %v788 = vpop.f32.mrf.mxu0
      %789 = vmatprep.mubr.f32.mxu0 0.0
      %790 = vmatmul.mubr.f32.gmra.mxu0 %v615
      %v791 = vpop.f32.mrf.mxu0
      %v792 = vadd.f32 %v468, %v791
      %v793 = vpop.f32.mrf.mxu0
      %794 = vmatprep.mubr.f32.mxu0 0.0
      %795 = vmatmul.mubr.f32.gmra.mxu0 %v618
      %v796 = vpop.f32.mrf.mxu0
      %v797 = vadd.f32 %v473, %v796
      %v798 = vpop.f32.mrf.mxu0
      %799 = vmatprep.mubr.f32.mxu0 0.0
      %800 = vmatmul.mubr.f32.gmra.mxu0 %v621
      %v801 = vpop.f32.mrf.mxu0
      %v802 = vadd.f32 %v478, %v801
      %v803 = vpop.f32.mrf.mxu0
      %804 = vmatprep.mubr.f32.mxu0 0.0
      %805 = vmatmul.mubr.f32.gmra.mxu0 %v624
      %v806 = vpop.f32.mrf.mxu0
      %v807 = vadd.f32 %v483, %v806
      %v808 = vpop.f32.mrf.mxu0
      %809 = vmatprep.mubr.f32.mxu0 0.0
      %810 = vmatmul.mubr.f32.gmra.mxu0 %v627
      %v811 = vpop.f32.mrf.mxu0
      %v812 = vadd.f32 %v488, %v811
      %v813 = vpop.f32.mrf.mxu0
      %814 = vmatprep.mubr.f32.mxu0 0.0
      %815 = vmatmul.mubr.f32.gmra.mxu0 %v630
      %v816 = vpop.f32.mrf.mxu0
      %v817 = vadd.f32 %v493, %v816
      %v818 = vpop.f32.mrf.mxu0
      %819 = vmatprep.mubr.f32.mxu0 0.0
      %820 = vmatmul.mubr.f32.gmra.mxu0 %v633
      %v821 = vpop.f32.mrf.mxu0
      %v822 = vadd.f32 %v498, %v821
      %v823 = vpop.f32.mrf.mxu0
      %824 = vmatprep.mubr.f32.mxu0 0.0
      %825 = vmatmul.mubr.f32.gmra.mxu0 %v636
      %v826 = vpop.f32.mrf.mxu0
      %v827 = vadd.f32 %v503, %v826
      %v828 = vpop.f32.mrf.mxu0
      %829 = vmatprep.mubr.f32.mxu0 0.0
      %830 = vmatmul.mubr.f32.gmra.mxu0 %v639
      %v831 = vpop.f32.mrf.mxu0
      %v832 = vadd.f32 %v508, %v831
      %v833 = vpop.f32.mrf.mxu0
      %834 = vmatprep.mubr.f32.mxu0 0.0
      %835 = vmatmul.mubr.f32.gmra.mxu0 %v642
      %v836 = vpop.f32.mrf.mxu0
      %v837 = vadd.f32 %v513, %v836
      %v838 = vpop.f32.mrf.mxu0
      %839 = vmatprep.mubr.f32.mxu0 0.0
      %840 = vmatmul.mubr.f32.gmra.mxu0 %v645
      %v841 = vpop.f32.mrf.mxu0
      %v842 = vadd.f32 %v518, %v841
      %v843 = vpop.f32.mrf.mxu0
      %844 = vmatprep.mubr.f32.mxu0 0.0
      %845 = vmatmul.mubr.f32.gmra.mxu0 %v648
      %v846 = vpop.f32.mrf.mxu0
      %v847 = vadd.f32 %v523, %v846
      %v848 = vpop.f32.mrf.mxu0
      %849 = vmatprep.mubr.f32.mxu0 0.0
      %850 = vmatmul.mubr.f32.gmra.mxu0 %v651
      %v851 = vpop.f32.mrf.mxu0
      %v852 = vadd.f32 %v528, %v851
      %v853 = vpop.f32.mrf.mxu0
      %854 = vmatprep.mubr.f32.mxu0 0.0
      %855 = vmatmul.mubr.f32.gmra.mxu0 %v654
      %v856 = vpop.f32.mrf.mxu0
      %v857 = vadd.f32 %v533, %v856
      %v858 = vpop.f32.mrf.mxu0
      %859 = vmatprep.mubr.f32.mxu0 0.0
      %860 = vmatmul.mubr.f32.gmra.mxu0 %v657
      %v861 = vpop.f32.mrf.mxu0
      %v862 = vadd.f32 %v538, %v861
      %v863 = vpop.f32.mrf.mxu0
      %864 = vmatprep.mubr.f32.mxu0 0.0
      %865 = vmatmul.mubr.f32.gmra.mxu0 %v660
      %v866 = vpop.f32.mrf.mxu0
      %v867 = vadd.f32 %v543, %v866
      %v868 = vpop.f32.mrf.mxu0
      %869 = vmatprep.mubr.f32.mxu0 0.0
      %870 = vmatmul.mubr.f32.gmra.mxu0 %v663
      %v871 = vpop.f32.mrf.mxu0
      %v872 = vadd.f32 %v548, %v871
      %v873 = vpop.f32.mrf.mxu0
      %874 = vmatprep.mubr.f32.mxu0 0.0
      %875 = vmatmul.mubr.f32.gmra.mxu0 %v666
      %v876 = vpop.f32.mrf.mxu0
      %v877 = vadd.f32 %v553, %v876
      %v878 = vpop.f32.mrf.mxu0
      %879 = vmatprep.mubr.f32.mxu0 0.0
      %880 = vmatmul.mubr.f32.gmra.mxu0 %v669
      %v881 = vpop.f32.mrf.mxu0
      %v882 = vadd.f32 %v558, %v881
      %v883 = vpop.f32.mrf.mxu0
      %884 = vmatprep.mubr.f32.mxu0 0.0
      %885 = vmatmul.mubr.f32.gmra.mxu0 %v672
      %v886 = vpop.f32.mrf.mxu0
      %v887 = vadd.f32 %v563, %v886
      %v888 = vpop.f32.mrf.mxu0
      %889 = vmatprep.mubr.f32.mxu0 0.0
      %890 = vmatmul.mubr.f32.gmra.mxu0 %v675
      %v891 = vpop.f32.mrf.mxu0
      %v892 = vadd.f32 %v568, %v891
      %v893 = vpop.f32.mrf.mxu0
      %894 = vmatprep.mubr.f32.mxu0 0.0
      %895 = vmatmul.mubr.f32.gmra.mxu0 %v678
      %v896 = vpop.f32.mrf.mxu0
      %v897 = vadd.f32 %v573, %v896
      %v898 = vpop.f32.mrf.mxu0
      %899 = vmatprep.mubr.f32.mxu0 0.0
      %900 = vmatmul.mubr.f32.gmra.mxu0 %v681
      %v901 = vpop.f32.mrf.mxu0
      %v902 = vadd.f32 %v578, %v901
      %v903 = vpop.f32.mrf.mxu0
      %904 = vmatprep.mubr.f32.mxu0 0.0
      %905 = vmatmul.mubr.f32.gmra.mxu0 %v684
      %v906 = vpop.f32.mrf.mxu0
      %v907 = vadd.f32 %v583, %v906
      %v908 = vpop.f32.mrf.mxu0
      %909 = vmatprep.mubr.f32.mxu0 0.0
      %910 = vmatmul.mubr.f32.gmra.mxu0 %v687
      %v911 = vpop.f32.mrf.mxu0
      %v912 = vadd.f32 %v588, %v911
      %v913 = vpop.f32.mrf.mxu0
      %914 = vmatprep.mubr.f32.mxu0 0.0
      %915 = vmatmul.mubr.f32.gmra.mxu0 %v690
      %v916 = vpop.f32.mrf.mxu0
      %v917 = vadd.f32 %v593, %v916
      %v918 = vpop.f32.mrf.mxu0
      %919 = vdwg.mxu0
      %v920 = vld [vmem:[%s196 + $0x2] sm:$0xff]
      %v921 = vld [vmem:[%s196 + $0xa] sm:$0xff]
      %v922 = vld [vmem:[%s196 + $0x1a] sm:$0xff]
      %v923 = vld [vmem:[%s196 + $0x22] sm:$0xff]
      %v924 = vld [vmem:[%s196 + $0x32] sm:$0xff]
      %v925 = vld [vmem:[%s196 + $0x3a] sm:$0xff]
      %v926 = vld [vmem:[%s196 + $0x4a] sm:$0xff]
      %v927 = vld [vmem:[%s196 + $0x52] sm:$0xff]
      %v928 = vld [vmem:[%s196 + $0x62] sm:$0xff]
      %v929 = vld [vmem:[%s196 + $0x6a] sm:$0xff]
      %v930 = vld [vmem:[%s196 + $0x7a] sm:$0xff]
      %v931 = vld [vmem:[%s196 + $0x82] sm:$0xff]
      %v932 = vld [vmem:[%s196 + $0x92] sm:$0xff]
      %v933 = vld [vmem:[%s196 + $0x9a] sm:$0xff]
      %v934 = vld [vmem:[%s196 + $0xaa] sm:$0xff]
      %v935 = vld [vmem:[%s196 + $0xb2] sm:$0xff]
      %v936 = vld [vmem:[%s196 + $0xc2] sm:$0xff]
      %v937 = vld [vmem:[%s196 + $0xca] sm:$0xff]
      %v938 = vld [vmem:[%s196 + $0xda] sm:$0xff]
      %v939 = vld [vmem:[%s196 + $0xe2] sm:$0xff]
      %v940 = vld [vmem:[%s196 + $0xf2] sm:$0xff]
      %v941 = vld [vmem:[%s196 + $0xfa] sm:$0xff]
      %v942 = vld [vmem:[%s196 + $0x10a] sm:$0xff]
      %v943 = vld [vmem:[%s196 + $0x112] sm:$0xff]
      %v944 = vld [vmem:[%s196 + $0x122] sm:$0xff]
      %v945 = vld [vmem:[%s196 + $0x12a] sm:$0xff]
      %v946 = vld [vmem:[%s196 + $0x13a] sm:$0xff]
      %v947 = vld [vmem:[%s196 + $0x142] sm:$0xff]
      %v948 = vld [vmem:[%s196 + $0x152] sm:$0xff]
      %v949 = vld [vmem:[%s196 + $0x15a] sm:$0xff]
      %v950 = vld [vmem:[%s196 + $0x16a] sm:$0xff]
      %v951 = vld [vmem:[%s196 + $0x172] sm:$0xff]
      %s952 = scalar_lea.vmem %s1, 8
      %v953 = vld [vmem:[%s952] sm:$0xf]
      %v955 = vsel %vm270, %v920, 0
      %v958 = vsel %vm270, %v921, 0
      %v961 = vsel %vm270, %v922, 0
      %v964 = vsel %vm270, %v923, 0
      %v967 = vsel %vm270, %v924, 0
      %v970 = vsel %vm270, %v925, 0
      %v973 = vsel %vm270, %v926, 0
      %v976 = vsel %vm270, %v927, 0
      %v979 = vsel %vm270, %v928, 0
      %v982 = vsel %vm270, %v929, 0
      %v985 = vsel %vm270, %v930, 0
      %v988 = vsel %vm270, %v931, 0
      %v991 = vsel %vm270, %v932, 0
      %v994 = vsel %vm270, %v933, 0
      %v997 = vsel %vm270, %v934, 0
      %v1000 = vsel %vm270, %v935, 0
      %v1003 = vsel %vm270, %v936, 0
      %v1006 = vsel %vm270, %v937, 0
      %v1009 = vsel %vm270, %v938, 0
      %v1012 = vsel %vm270, %v939, 0
      %v1015 = vsel %vm270, %v940, 0
      %v1018 = vsel %vm270, %v941, 0
      %v1021 = vsel %vm270, %v942, 0
      %v1024 = vsel %vm270, %v943, 0
      %v1027 = vsel %vm270, %v944, 0
      %v1030 = vsel %vm270, %v945, 0
      %v1033 = vsel %vm270, %v946, 0
      %v1036 = vsel %vm270, %v947, 0
      %v1039 = vsel %vm270, %v948, 0
      %v1042 = vsel %vm270, %v949, 0
      %v1045 = vsel %vm270, %v950, 0
      %v1048 = vsel %vm270, %v951, 0
      %v1051 = vsel %vm367, %v953, 0
      %1053 = vmatprep.subr.mxu0 0.0
      %1054 = vmatpush1.msra.mxu0 0.0
      %1055 = vmatprep.subr.mxu0 0.0
      %1056 = vmatpush1.msra.mxu0 0.0
      %1057 = vmatprep.subr.mxu0 0.0
      %1058 = vmatpush1.msra.mxu0 0.0
      %1059 = vmatprep.subr.mxu0 0.0
      %1060 = vmatpush1.msra.mxu0 0.0
      %1061 = vmatprep.subr.mxu0 0.0
      %1062 = vmatpush1.msra.mxu0 0.0
      %1063 = vmatprep.subr.mxu0 0.0
      %1064 = vmatpush1.msra.mxu0 0.0
      %1065 = vmatprep.subr.mxu0 0.0
      %1066 = vmatpush1.msra.mxu0 0.0
      %1067 = vmatprep.subr.mxu0 0.0
      %1068 = vmatpush1.msra.mxu0 0.0
      %1069 = vmatprep.subr.mxu0 0.0
      %1070 = vmatpush1.msra.mxu0 0.0
      %1071 = vmatprep.subr.mxu0 0.0
      %1072 = vmatpush1.msra.mxu0 0.0
      %1073 = vmatprep.subr.mxu0 0.0
      %1074 = vmatpush1.msra.mxu0 0.0
      %1075 = vmatprep.subr.mxu0 0.0
      %1076 = vmatpush1.msra.mxu0 0.0
      %1077 = vmatprep.subr.mxu0 0.0
      %1078 = vmatpush1.msra.mxu0 0.0
      %1079 = vmatprep.subr.mxu0 0.0
      %1080 = vmatpush1.msra.mxu0 0.0
      %1081 = vmatprep.subr.mxu0 0.0
      %1082 = vmatpush1.msra.mxu0 0.0
      %1083 = vmatprep.subr.mxu0 0.0
      %1084 = vmatpush1.msra.mxu0 %v1051
      %1085 = vmatprep.subr.mxu0 0.0
      %1086 = vmatpush2.msra.mxu0 0.0
      %1087 = vmatprep.subr.mxu0 0.0
      %1088 = vmatpush2.msra.mxu0 0.0
      %1089 = vmatprep.subr.mxu0 0.0
      %1090 = vmatpush2.msra.mxu0 0.0
      %1091 = vmatprep.subr.mxu0 0.0
      %1092 = vmatpush2.msra.mxu0 0.0
      %1093 = vmatprep.subr.mxu0 0.0
      %1094 = vmatpush2.msra.mxu0 0.0
      %1095 = vmatprep.subr.mxu0 0.0
      %1096 = vmatpush2.msra.mxu0 0.0
      %1097 = vmatprep.subr.mxu0 0.0
      %1098 = vmatpush2.msra.mxu0 0.0
      %1099 = vmatprep.subr.mxu0 0.0
      %1100 = vmatpush2.msra.mxu0 0.0
      %1101 = vmatprep.subr.mxu0 0.0
      %1102 = vmatpush2.msra.mxu0 0.0
      %1103 = vmatprep.subr.mxu0 0.0
      %1104 = vmatpush2.msra.mxu0 0.0
      %1105 = vmatprep.subr.mxu0 0.0
      %1106 = vmatpush2.msra.mxu0 0.0
      %1107 = vmatprep.subr.mxu0 0.0
      %1108 = vmatpush2.msra.mxu0 0.0
      %1109 = vmatprep.subr.mxu0 0.0
      %1110 = vmatpush2.msra.mxu0 0.0
      %1111 = vmatprep.subr.mxu0 0.0
      %1112 = vmatpush2.msra.mxu0 0.0
      %1113 = vmatprep.subr.mxu0 0.0
      %1114 = vmatpush2.msra.mxu0 0.0
      %1115 = vmatprep.subr.mxu0 0.0
      %1116 = vmatpush2.msra.mxu0 0.0
      %1117 = vmatprep.mubr.f32.mxu0 0.0
      %1118 = vmatmul.mubr.f32.gmra.mxu0 %v955
      %v1119 = vpop.f32.mrf.mxu0
      %v1120 = vadd.f32 0.0, %v1119
      %v1121 = vpop.f32.mrf.mxu0
      %1122 = vmatprep.mubr.f32.mxu0 0.0
      %1123 = vmatmul.mubr.f32.gmra.mxu0 %v958
      %v1124 = vpop.f32.mrf.mxu0
      %v1125 = vadd.f32 0.0, %v1124
      %v1126 = vpop.f32.mrf.mxu0
      %1127 = vmatprep.mubr.f32.mxu0 0.0
      %1128 = vmatmul.mubr.f32.gmra.mxu0 %v961
      %v1129 = vpop.f32.mrf.mxu0
      %v1130 = vadd.f32 0.0, %v1129
      %v1131 = vpop.f32.mrf.mxu0
      %1132 = vmatprep.mubr.f32.mxu0 0.0
      %1133 = vmatmul.mubr.f32.gmra.mxu0 %v964
      %v1134 = vpop.f32.mrf.mxu0
      %v1135 = vadd.f32 0.0, %v1134
      %v1136 = vpop.f32.mrf.mxu0
      %1137 = vmatprep.mubr.f32.mxu0 0.0
      %1138 = vmatmul.mubr.f32.gmra.mxu0 %v967
      %v1139 = vpop.f32.mrf.mxu0
      %v1140 = vadd.f32 0.0, %v1139
      %v1141 = vpop.f32.mrf.mxu0
      %1142 = vmatprep.mubr.f32.mxu0 0.0
      %1143 = vmatmul.mubr.f32.gmra.mxu0 %v970
      %v1144 = vpop.f32.mrf.mxu0
      %v1145 = vadd.f32 0.0, %v1144
      %v1146 = vpop.f32.mrf.mxu0
      %1147 = vmatprep.mubr.f32.mxu0 0.0
      %1148 = vmatmul.mubr.f32.gmra.mxu0 %v973
      %v1149 = vpop.f32.mrf.mxu0
      %v1150 = vadd.f32 0.0, %v1149
      %v1151 = vpop.f32.mrf.mxu0
      %1152 = vmatprep.mubr.f32.mxu0 0.0
      %1153 = vmatmul.mubr.f32.gmra.mxu0 %v976
      %v1154 = vpop.f32.mrf.mxu0
      %v1155 = vadd.f32 0.0, %v1154
      %v1156 = vpop.f32.mrf.mxu0
      %1157 = vmatprep.mubr.f32.mxu0 0.0
      %1158 = vmatmul.mubr.f32.gmra.mxu0 %v979
      %v1159 = vpop.f32.mrf.mxu0
      %v1160 = vadd.f32 0.0, %v1159
      %v1161 = vpop.f32.mrf.mxu0
      %1162 = vmatprep.mubr.f32.mxu0 0.0
      %1163 = vmatmul.mubr.f32.gmra.mxu0 %v982
      %v1164 = vpop.f32.mrf.mxu0
      %v1165 = vadd.f32 0.0, %v1164
      %v1166 = vpop.f32.mrf.mxu0
      %1167 = vmatprep.mubr.f32.mxu0 0.0
      %1168 = vmatmul.mubr.f32.gmra.mxu0 %v985
      %v1169 = vpop.f32.mrf.mxu0
      %v1170 = vadd.f32 0.0, %v1169
      %v1171 = vpop.f32.mrf.mxu0
      %1172 = vmatprep.mubr.f32.mxu0 0.0
      %1173 = vmatmul.mubr.f32.gmra.mxu0 %v988
      %v1174 = vpop.f32.mrf.mxu0
      %v1175 = vadd.f32 0.0, %v1174
      %v1176 = vpop.f32.mrf.mxu0
      %1177 = vmatprep.mubr.f32.mxu0 0.0
      %1178 = vmatmul.mubr.f32.gmra.mxu0 %v991
      %v1179 = vpop.f32.mrf.mxu0
      %v1180 = vadd.f32 0.0, %v1179
      %v1181 = vpop.f32.mrf.mxu0
      %1182 = vmatprep.mubr.f32.mxu0 0.0
      %1183 = vmatmul.mubr.f32.gmra.mxu0 %v994
      %v1184 = vpop.f32.mrf.mxu0
      %v1185 = vadd.f32 0.0, %v1184
      %v1186 = vpop.f32.mrf.mxu0
      %1187 = vmatprep.mubr.f32.mxu0 0.0
      %1188 = vmatmul.mubr.f32.gmra.mxu0 %v997
      %v1189 = vpop.f32.mrf.mxu0
      %v1190 = vadd.f32 0.0, %v1189
      %v1191 = vpop.f32.mrf.mxu0
      %1192 = vmatprep.mubr.f32.mxu0 0.0
      %1193 = vmatmul.mubr.f32.gmra.mxu0 %v1000
      %v1194 = vpop.f32.mrf.mxu0
      %v1195 = vadd.f32 0.0, %v1194
      %v1196 = vpop.f32.mrf.mxu0
      %1197 = vmatprep.mubr.f32.mxu0 0.0
      %1198 = vmatmul.mubr.f32.gmra.mxu0 %v1003
      %v1199 = vpop.f32.mrf.mxu0
      %v1200 = vadd.f32 0.0, %v1199
      %v1201 = vpop.f32.mrf.mxu0
      %1202 = vmatprep.mubr.f32.mxu0 0.0
      %1203 = vmatmul.mubr.f32.gmra.mxu0 %v1006
      %v1204 = vpop.f32.mrf.mxu0
      %v1205 = vadd.f32 0.0, %v1204
      %v1206 = vpop.f32.mrf.mxu0
      %1207 = vmatprep.mubr.f32.mxu0 0.0
      %1208 = vmatmul.mubr.f32.gmra.mxu0 %v1009
      %v1209 = vpop.f32.mrf.mxu0
      %v1210 = vadd.f32 0.0, %v1209
      %v1211 = vpop.f32.mrf.mxu0
      %1212 = vmatprep.mubr.f32.mxu0 0.0
      %1213 = vmatmul.mubr.f32.gmra.mxu0 %v1012
      %v1214 = vpop.f32.mrf.mxu0
      %v1215 = vadd.f32 0.0, %v1214
      %v1216 = vpop.f32.mrf.mxu0
      %1217 = vmatprep.mubr.f32.mxu0 0.0
      %1218 = vmatmul.mubr.f32.gmra.mxu0 %v1015
      %v1219 = vpop.f32.mrf.mxu0
      %v1220 = vadd.f32 0.0, %v1219
      %v1221 = vpop.f32.mrf.mxu0
      %1222 = vmatprep.mubr.f32.mxu0 0.0
      %1223 = vmatmul.mubr.f32.gmra.mxu0 %v1018
      %v1224 = vpop.f32.mrf.mxu0
      %v1225 = vadd.f32 0.0, %v1224
      %v1226 = vpop.f32.mrf.mxu0
      %1227 = vmatprep.mubr.f32.mxu0 0.0
      %1228 = vmatmul.mubr.f32.gmra.mxu0 %v1021
      %v1229 = vpop.f32.mrf.mxu0
      %v1230 = vadd.f32 0.0, %v1229
      %v1231 = vpop.f32.mrf.mxu0
      %1232 = vmatprep.mubr.f32.mxu0 0.0
      %1233 = vmatmul.mubr.f32.gmra.mxu0 %v1024
      %v1234 = vpop.f32.mrf.mxu0
      %v1235 = vadd.f32 0.0, %v1234
      %v1236 = vpop.f32.mrf.mxu0
      %1237 = vmatprep.mubr.f32.mxu0 0.0
      %1238 = vmatmul.mubr.f32.gmra.mxu0 %v1027
      %v1239 = vpop.f32.mrf.mxu0
      %v1240 = vadd.f32 0.0, %v1239
      %v1241 = vpop.f32.mrf.mxu0
      %1242 = vmatprep.mubr.f32.mxu0 0.0
      %1243 = vmatmul.mubr.f32.gmra.mxu0 %v1030
      %v1244 = vpop.f32.mrf.mxu0
      %v1245 = vadd.f32 0.0, %v1244
      %v1246 = vpop.f32.mrf.mxu0
      %1247 = vmatprep.mubr.f32.mxu0 0.0
      %1248 = vmatmul.mubr.f32.gmra.mxu0 %v1033
      %v1249 = vpop.f32.mrf.mxu0
      %v1250 = vadd.f32 0.0, %v1249
      %v1251 = vpop.f32.mrf.mxu0
      %1252 = vmatprep.mubr.f32.mxu0 0.0
      %1253 = vmatmul.mubr.f32.gmra.mxu0 %v1036
      %v1254 = vpop.f32.mrf.mxu0
      %v1255 = vadd.f32 0.0, %v1254
      %v1256 = vpop.f32.mrf.mxu0
      %1257 = vmatprep.mubr.f32.mxu0 0.0
      %1258 = vmatmul.mubr.f32.gmra.mxu0 %v1039
      %v1259 = vpop.f32.mrf.mxu0
      %v1260 = vadd.f32 0.0, %v1259
      %v1261 = vpop.f32.mrf.mxu0
      %1262 = vmatprep.mubr.f32.mxu0 0.0
      %1263 = vmatmul.mubr.f32.gmra.mxu0 %v1042
      %v1264 = vpop.f32.mrf.mxu0
      %v1265 = vadd.f32 0.0, %v1264
      %v1266 = vpop.f32.mrf.mxu0
      %1267 = vmatprep.mubr.f32.mxu0 0.0
      %1268 = vmatmul.mubr.f32.gmra.mxu0 %v1045
      %v1269 = vpop.f32.mrf.mxu0
      %v1270 = vadd.f32 0.0, %v1269
      %v1271 = vpop.f32.mrf.mxu0
      %1272 = vmatprep.mubr.f32.mxu0 0.0
      %1273 = vmatmul.mubr.f32.gmra.mxu0 %v1048
      %v1274 = vpop.f32.mrf.mxu0
      %v1275 = vadd.f32 0.0, %v1274
      %v1276 = vpop.f32.mrf.mxu0
      %1277 = vdwg.mxu0
      %v1278 = vadd.f32 %v762, %v1120
      %v1279 = vadd.f32 %v767, %v1125
      %v1280 = vadd.f32 %v772, %v1130
      %v1281 = vadd.f32 %v777, %v1135
      %v1282 = vadd.f32 %v782, %v1140
      %v1283 = vadd.f32 %v787, %v1145
      %v1284 = vadd.f32 %v792, %v1150
      %v1285 = vadd.f32 %v797, %v1155
      %v1286 = vadd.f32 %v802, %v1160
      %v1287 = vadd.f32 %v807, %v1165
      %v1288 = vadd.f32 %v812, %v1170
      %v1289 = vadd.f32 %v817, %v1175
      %v1290 = vadd.f32 %v822, %v1180
      %v1291 = vadd.f32 %v827, %v1185
      %v1292 = vadd.f32 %v832, %v1190
      %v1293 = vadd.f32 %v837, %v1195
      %v1294 = vadd.f32 %v842, %v1200
      %v1295 = vadd.f32 %v847, %v1205
      %v1296 = vadd.f32 %v852, %v1210
      %v1297 = vadd.f32 %v857, %v1215
      %v1298 = vadd.f32 %v862, %v1220
      %v1299 = vadd.f32 %v867, %v1225
      %v1300 = vadd.f32 %v872, %v1230
      %v1301 = vadd.f32 %v877, %v1235
      %v1302 = vadd.f32 %v882, %v1240
      %v1303 = vadd.f32 %v887, %v1245
      %v1304 = vadd.f32 %v892, %v1250
      %v1305 = vadd.f32 %v897, %v1255
      %v1306 = vadd.f32 %v902, %v1260
      %v1307 = vadd.f32 %v907, %v1265
      %v1308 = vadd.f32 %v912, %v1270
      %v1309 = vadd.f32 %v917, %v1275
      %s1310 = scalar_lea.vmem %s196, 24
      %v1311 = vld [vmem:[%s1310] sm:$0xff]
      %v1312 = vld [vmem:[%s1310 + $0x8] sm:$0xff]
      %v1313 = vld [vmem:[%s1310 + $0x18] sm:$0xff]
      %v1314 = vld [vmem:[%s1310 + $0x20] sm:$0xff]
      %v1315 = vld [vmem:[%s1310 + $0x30] sm:$0xff]
      %v1316 = vld [vmem:[%s1310 + $0x38] sm:$0xff]
      %v1317 = vld [vmem:[%s1310 + $0x48] sm:$0xff]
      %v1318 = vld [vmem:[%s1310 + $0x50] sm:$0xff]
      %v1319 = vld [vmem:[%s1310 + $0x60] sm:$0xff]
      %v1320 = vld [vmem:[%s1310 + $0x68] sm:$0xff]
      %v1321 = vld [vmem:[%s1310 + $0x78] sm:$0xff]
      %v1322 = vld [vmem:[%s1310 + $0x80] sm:$0xff]
      %v1323 = vld [vmem:[%s1310 + $0x90] sm:$0xff]
      %v1324 = vld [vmem:[%s1310 + $0x98] sm:$0xff]
      %v1325 = vld [vmem:[%s1310 + $0xa8] sm:$0xff]
      %v1326 = vld [vmem:[%s1310 + $0xb0] sm:$0xff]
      %v1327 = vld [vmem:[%s1310 + $0xc0] sm:$0xff]
      %v1328 = vld [vmem:[%s1310 + $0xc8] sm:$0xff]
      %v1329 = vld [vmem:[%s1310 + $0xd8] sm:$0xff]
      %v1330 = vld [vmem:[%s1310 + $0xe0] sm:$0xff]
      %v1331 = vld [vmem:[%s1310 + $0xf0] sm:$0xff]
      %v1332 = vld [vmem:[%s1310 + $0xf8] sm:$0xff]
      %v1333 = vld [vmem:[%s1310 + $0x108] sm:$0xff]
      %v1334 = vld [vmem:[%s1310 + $0x110] sm:$0xff]
      %v1335 = vld [vmem:[%s1310 + $0x120] sm:$0xff]
      %v1336 = vld [vmem:[%s1310 + $0x128] sm:$0xff]
      %v1337 = vld [vmem:[%s1310 + $0x138] sm:$0xff]
      %v1338 = vld [vmem:[%s1310 + $0x140] sm:$0xff]
      %v1339 = vld [vmem:[%s1310 + $0x150] sm:$0xff]
      %v1340 = vld [vmem:[%s1310 + $0x158] sm:$0xff]
      %v1341 = vld [vmem:[%s1310 + $0x168] sm:$0xff]
      %v1342 = vld [vmem:[%s1310 + $0x170] sm:$0xff]
      %s1343 = scalar_lea.vmem %s1, 12
      %v1344 = vld [vmem:[%s1343] sm:$0xf]
      %v1346 = vsel %vm270, %v1311, 0
      %v1349 = vsel %vm270, %v1312, 0
      %v1352 = vsel %vm270, %v1313, 0
      %v1355 = vsel %vm270, %v1314, 0
      %v1358 = vsel %vm270, %v1315, 0
      %v1361 = vsel %vm270, %v1316, 0
      %v1364 = vsel %vm270, %v1317, 0
      %v1367 = vsel %vm270, %v1318, 0
      %v1370 = vsel %vm270, %v1319, 0
      %v1373 = vsel %vm270, %v1320, 0
      %v1376 = vsel %vm270, %v1321, 0
      %v1379 = vsel %vm270, %v1322, 0
      %v1382 = vsel %vm270, %v1323, 0
      %v1385 = vsel %vm270, %v1324, 0
      %v1388 = vsel %vm270, %v1325, 0
      %v1391 = vsel %vm270, %v1326, 0
      %v1394 = vsel %vm270, %v1327, 0
      %v1397 = vsel %vm270, %v1328, 0
      %v1400 = vsel %vm270, %v1329, 0
      %v1403 = vsel %vm270, %v1330, 0
      %v1406 = vsel %vm270, %v1331, 0
      %v1409 = vsel %vm270, %v1332, 0
      %v1412 = vsel %vm270, %v1333, 0
      %v1415 = vsel %vm270, %v1334, 0
      %v1418 = vsel %vm270, %v1335, 0
      %v1421 = vsel %vm270, %v1336, 0
      %v1424 = vsel %vm270, %v1337, 0
      %v1427 = vsel %vm270, %v1338, 0
      %v1430 = vsel %vm270, %v1339, 0
      %v1433 = vsel %vm270, %v1340, 0
      %v1436 = vsel %vm270, %v1341, 0
      %v1439 = vsel %vm270, %v1342, 0
      %v1442 = vsel %vm367, %v1344, 0
      %1444 = vmatprep.subr.mxu0 0.0
      %1445 = vmatpush1.msra.mxu0 0.0
      %1446 = vmatprep.subr.mxu0 0.0
      %1447 = vmatpush1.msra.mxu0 0.0
      %1448 = vmatprep.subr.mxu0 0.0
      %1449 = vmatpush1.msra.mxu0 0.0
      %1450 = vmatprep.subr.mxu0 0.0
      %1451 = vmatpush1.msra.mxu0 0.0
      %1452 = vmatprep.subr.mxu0 0.0
      %1453 = vmatpush1.msra.mxu0 0.0
      %1454 = vmatprep.subr.mxu0 0.0
      %1455 = vmatpush1.msra.mxu0 0.0
      %1456 = vmatprep.subr.mxu0 0.0
      %1457 = vmatpush1.msra.mxu0 0.0
      %1458 = vmatprep.subr.mxu0 0.0
      %1459 = vmatpush1.msra.mxu0 0.0
      %1460 = vmatprep.subr.mxu0 0.0
      %1461 = vmatpush1.msra.mxu0 0.0
      %1462 = vmatprep.subr.mxu0 0.0
      %1463 = vmatpush1.msra.mxu0 0.0
      %1464 = vmatprep.subr.mxu0 0.0
      %1465 = vmatpush1.msra.mxu0 0.0
      %1466 = vmatprep.subr.mxu0 0.0
      %1467 = vmatpush1.msra.mxu0 0.0
      %1468 = vmatprep.subr.mxu0 0.0
      %1469 = vmatpush1.msra.mxu0 0.0
      %1470 = vmatprep.subr.mxu0 0.0
      %1471 = vmatpush1.msra.mxu0 0.0
      %1472 = vmatprep.subr.mxu0 0.0
      %1473 = vmatpush1.msra.mxu0 0.0
      %1474 = vmatprep.subr.mxu0 0.0
      %1475 = vmatpush1.msra.mxu0 %v1442
      %1476 = vmatprep.subr.mxu0 0.0
      %1477 = vmatpush2.msra.mxu0 0.0
      %1478 = vmatprep.subr.mxu0 0.0
      %1479 = vmatpush2.msra.mxu0 0.0
      %1480 = vmatprep.subr.mxu0 0.0
      %1481 = vmatpush2.msra.mxu0 0.0
      %1482 = vmatprep.subr.mxu0 0.0
      %1483 = vmatpush2.msra.mxu0 0.0
      %1484 = vmatprep.subr.mxu0 0.0
      %1485 = vmatpush2.msra.mxu0 0.0
      %1486 = vmatprep.subr.mxu0 0.0
      %1487 = vmatpush2.msra.mxu0 0.0
      %1488 = vmatprep.subr.mxu0 0.0
      %1489 = vmatpush2.msra.mxu0 0.0
      %1490 = vmatprep.subr.mxu0 0.0
      %1491 = vmatpush2.msra.mxu0 0.0
      %1492 = vmatprep.subr.mxu0 0.0
      %1493 = vmatpush2.msra.mxu0 0.0
      %1494 = vmatprep.subr.mxu0 0.0
      %1495 = vmatpush2.msra.mxu0 0.0
      %1496 = vmatprep.subr.mxu0 0.0
      %1497 = vmatpush2.msra.mxu0 0.0
      %1498 = vmatprep.subr.mxu0 0.0
      %1499 = vmatpush2.msra.mxu0 0.0
      %1500 = vmatprep.subr.mxu0 0.0
      %1501 = vmatpush2.msra.mxu0 0.0
      %1502 = vmatprep.subr.mxu0 0.0
      %1503 = vmatpush2.msra.mxu0 0.0
      %1504 = vmatprep.subr.mxu0 0.0
      %1505 = vmatpush2.msra.mxu0 0.0
      %1506 = vmatprep.subr.mxu0 0.0
      %1507 = vmatpush2.msra.mxu0 0.0
      %1508 = vmatprep.mubr.f32.mxu0 0.0
      %1509 = vmatmul.mubr.f32.gmra.mxu0 %v1346
      %v1510 = vpop.f32.mrf.mxu0
      %v1511 = vadd.f32 0.0, %v1510
      %v1512 = vpop.f32.mrf.mxu0
      %1513 = vmatprep.mubr.f32.mxu0 0.0
      %1514 = vmatmul.mubr.f32.gmra.mxu0 %v1349
      %v1515 = vpop.f32.mrf.mxu0
      %v1516 = vadd.f32 0.0, %v1515
      %v1517 = vpop.f32.mrf.mxu0
      %1518 = vmatprep.mubr.f32.mxu0 0.0
      %1519 = vmatmul.mubr.f32.gmra.mxu0 %v1352
      %v1520 = vpop.f32.mrf.mxu0
      %v1521 = vadd.f32 0.0, %v1520
      %v1522 = vpop.f32.mrf.mxu0
      %1523 = vmatprep.mubr.f32.mxu0 0.0
      %1524 = vmatmul.mubr.f32.gmra.mxu0 %v1355
      %v1525 = vpop.f32.mrf.mxu0
      %v1526 = vadd.f32 0.0, %v1525
      %v1527 = vpop.f32.mrf.mxu0
      %1528 = vmatprep.mubr.f32.mxu0 0.0
      %1529 = vmatmul.mubr.f32.gmra.mxu0 %v1358
      %v1530 = vpop.f32.mrf.mxu0
      %v1531 = vadd.f32 0.0, %v1530
      %v1532 = vpop.f32.mrf.mxu0
      %1533 = vmatprep.mubr.f32.mxu0 0.0
      %1534 = vmatmul.mubr.f32.gmra.mxu0 %v1361
      %v1535 = vpop.f32.mrf.mxu0
      %v1536 = vadd.f32 0.0, %v1535
      %v1537 = vpop.f32.mrf.mxu0
      %1538 = vmatprep.mubr.f32.mxu0 0.0
      %1539 = vmatmul.mubr.f32.gmra.mxu0 %v1364
      %v1540 = vpop.f32.mrf.mxu0
      %v1541 = vadd.f32 0.0, %v1540
      %v1542 = vpop.f32.mrf.mxu0
      %1543 = vmatprep.mubr.f32.mxu0 0.0
      %1544 = vmatmul.mubr.f32.gmra.mxu0 %v1367
      %v1545 = vpop.f32.mrf.mxu0
      %v1546 = vadd.f32 0.0, %v1545
      %v1547 = vpop.f32.mrf.mxu0
      %1548 = vmatprep.mubr.f32.mxu0 0.0
      %1549 = vmatmul.mubr.f32.gmra.mxu0 %v1370
      %v1550 = vpop.f32.mrf.mxu0
      %v1551 = vadd.f32 0.0, %v1550
      %v1552 = vpop.f32.mrf.mxu0
      %1553 = vmatprep.mubr.f32.mxu0 0.0
      %1554 = vmatmul.mubr.f32.gmra.mxu0 %v1373
      %v1555 = vpop.f32.mrf.mxu0
      %v1556 = vadd.f32 0.0, %v1555
      %v1557 = vpop.f32.mrf.mxu0
      %1558 = vmatprep.mubr.f32.mxu0 0.0
      %1559 = vmatmul.mubr.f32.gmra.mxu0 %v1376
      %v1560 = vpop.f32.mrf.mxu0
      %v1561 = vadd.f32 0.0, %v1560
      %v1562 = vpop.f32.mrf.mxu0
      %1563 = vmatprep.mubr.f32.mxu0 0.0
      %1564 = vmatmul.mubr.f32.gmra.mxu0 %v1379
      %v1565 = vpop.f32.mrf.mxu0
      %v1566 = vadd.f32 0.0, %v1565
      %v1567 = vpop.f32.mrf.mxu0
      %1568 = vmatprep.mubr.f32.mxu0 0.0
      %1569 = vmatmul.mubr.f32.gmra.mxu0 %v1382
      %v1570 = vpop.f32.mrf.mxu0
      %v1571 = vadd.f32 0.0, %v1570
      %v1572 = vpop.f32.mrf.mxu0
      %1573 = vmatprep.mubr.f32.mxu0 0.0
      %1574 = vmatmul.mubr.f32.gmra.mxu0 %v1385
      %v1575 = vpop.f32.mrf.mxu0
      %v1576 = vadd.f32 0.0, %v1575
      %v1577 = vpop.f32.mrf.mxu0
      %1578 = vmatprep.mubr.f32.mxu0 0.0
      %1579 = vmatmul.mubr.f32.gmra.mxu0 %v1388
      %v1580 = vpop.f32.mrf.mxu0
      %v1581 = vadd.f32 0.0, %v1580
      %v1582 = vpop.f32.mrf.mxu0
      %1583 = vmatprep.mubr.f32.mxu0 0.0
      %1584 = vmatmul.mubr.f32.gmra.mxu0 %v1391
      %v1585 = vpop.f32.mrf.mxu0
      %v1586 = vadd.f32 0.0, %v1585
      %v1587 = vpop.f32.mrf.mxu0
      %1588 = vmatprep.mubr.f32.mxu0 0.0
      %1589 = vmatmul.mubr.f32.gmra.mxu0 %v1394
      %v1590 = vpop.f32.mrf.mxu0
      %v1591 = vadd.f32 0.0, %v1590
      %v1592 = vpop.f32.mrf.mxu0
      %1593 = vmatprep.mubr.f32.mxu0 0.0
      %1594 = vmatmul.mubr.f32.gmra.mxu0 %v1397
      %v1595 = vpop.f32.mrf.mxu0
      %v1596 = vadd.f32 0.0, %v1595
      %v1597 = vpop.f32.mrf.mxu0
      %1598 = vmatprep.mubr.f32.mxu0 0.0
      %1599 = vmatmul.mubr.f32.gmra.mxu0 %v1400
      %v1600 = vpop.f32.mrf.mxu0
      %v1601 = vadd.f32 0.0, %v1600
      %v1602 = vpop.f32.mrf.mxu0
      %1603 = vmatprep.mubr.f32.mxu0 0.0
      %1604 = vmatmul.mubr.f32.gmra.mxu0 %v1403
      %v1605 = vpop.f32.mrf.mxu0
      %v1606 = vadd.f32 0.0, %v1605
      %v1607 = vpop.f32.mrf.mxu0
      %1608 = vmatprep.mubr.f32.mxu0 0.0
      %1609 = vmatmul.mubr.f32.gmra.mxu0 %v1406
      %v1610 = vpop.f32.mrf.mxu0
      %v1611 = vadd.f32 0.0, %v1610
      %v1612 = vpop.f32.mrf.mxu0
      %1613 = vmatprep.mubr.f32.mxu0 0.0
      %1614 = vmatmul.mubr.f32.gmra.mxu0 %v1409
      %v1615 = vpop.f32.mrf.mxu0
      %v1616 = vadd.f32 0.0, %v1615
      %v1617 = vpop.f32.mrf.mxu0
      %1618 = vmatprep.mubr.f32.mxu0 0.0
      %1619 = vmatmul.mubr.f32.gmra.mxu0 %v1412
      %v1620 = vpop.f32.mrf.mxu0
      %v1621 = vadd.f32 0.0, %v1620
      %v1622 = vpop.f32.mrf.mxu0
      %1623 = vmatprep.mubr.f32.mxu0 0.0
      %1624 = vmatmul.mubr.f32.gmra.mxu0 %v1415
      %v1625 = vpop.f32.mrf.mxu0
      %v1626 = vadd.f32 0.0, %v1625
      %v1627 = vpop.f32.mrf.mxu0
      %1628 = vmatprep.mubr.f32.mxu0 0.0
      %1629 = vmatmul.mubr.f32.gmra.mxu0 %v1418
      %v1630 = vpop.f32.mrf.mxu0
      %v1631 = vadd.f32 0.0, %v1630
      %v1632 = vpop.f32.mrf.mxu0
      %1633 = vmatprep.mubr.f32.mxu0 0.0
      %1634 = vmatmul.mubr.f32.gmra.mxu0 %v1421
      %v1635 = vpop.f32.mrf.mxu0
      %v1636 = vadd.f32 0.0, %v1635
      %v1637 = vpop.f32.mrf.mxu0
      %1638 = vmatprep.mubr.f32.mxu0 0.0
      %1639 = vmatmul.mubr.f32.gmra.mxu0 %v1424
      %v1640 = vpop.f32.mrf.mxu0
      %v1641 = vadd.f32 0.0, %v1640
      %v1642 = vpop.f32.mrf.mxu0
      %1643 = vmatprep.mubr.f32.mxu0 0.0
      %1644 = vmatmul.mubr.f32.gmra.mxu0 %v1427
      %v1645 = vpop.f32.mrf.mxu0
      %v1646 = vadd.f32 0.0, %v1645
      %v1647 = vpop.f32.mrf.mxu0
      %1648 = vmatprep.mubr.f32.mxu0 0.0
      %1649 = vmatmul.mubr.f32.gmra.mxu0 %v1430
      %v1650 = vpop.f32.mrf.mxu0
      %v1651 = vadd.f32 0.0, %v1650
      %v1652 = vpop.f32.mrf.mxu0
      %1653 = vmatprep.mubr.f32.mxu0 0.0
      %1654 = vmatmul.mubr.f32.gmra.mxu0 %v1433
      %v1655 = vpop.f32.mrf.mxu0
      %v1656 = vadd.f32 0.0, %v1655
      %v1657 = vpop.f32.mrf.mxu0
      %1658 = vmatprep.mubr.f32.mxu0 0.0
      %1659 = vmatmul.mubr.f32.gmra.mxu0 %v1436
      %v1660 = vpop.f32.mrf.mxu0
      %v1661 = vadd.f32 0.0, %v1660
      %v1662 = vpop.f32.mrf.mxu0
      %1663 = vmatprep.mubr.f32.mxu0 0.0
      %1664 = vmatmul.mubr.f32.gmra.mxu0 %v1439
      %v1665 = vpop.f32.mrf.mxu0
      %v1666 = vadd.f32 0.0, %v1665
      %v1667 = vpop.f32.mrf.mxu0
      %1668 = vdwg.mxu0
      %v1669 = vadd.f32 %v1278, %v1511
      %v1670 = vadd.f32 %v1279, %v1516
      %v1671 = vadd.f32 %v1280, %v1521
      %v1672 = vadd.f32 %v1281, %v1526
      %v1673 = vadd.f32 %v1282, %v1531
      %v1674 = vadd.f32 %v1283, %v1536
      %v1675 = vadd.f32 %v1284, %v1541
      %v1676 = vadd.f32 %v1285, %v1546
      %v1677 = vadd.f32 %v1286, %v1551
      %v1678 = vadd.f32 %v1287, %v1556
      %v1679 = vadd.f32 %v1288, %v1561
      %v1680 = vadd.f32 %v1289, %v1566
      %v1681 = vadd.f32 %v1290, %v1571
      %v1682 = vadd.f32 %v1291, %v1576
      %v1683 = vadd.f32 %v1292, %v1581
      %v1684 = vadd.f32 %v1293, %v1586
      %v1685 = vadd.f32 %v1294, %v1591
      %v1686 = vadd.f32 %v1295, %v1596
      %v1687 = vadd.f32 %v1296, %v1601
      %v1688 = vadd.f32 %v1297, %v1606
      %v1689 = vadd.f32 %v1298, %v1611
      %v1690 = vadd.f32 %v1299, %v1616
      %v1691 = vadd.f32 %v1300, %v1621
      %v1692 = vadd.f32 %v1301, %v1626
      %v1693 = vadd.f32 %v1302, %v1631
      %v1694 = vadd.f32 %v1303, %v1636
      %v1695 = vadd.f32 %v1304, %v1641
      %v1696 = vadd.f32 %v1305, %v1646
      %v1697 = vadd.f32 %v1306, %v1651
      %v1698 = vadd.f32 %v1307, %v1656
      %v1699 = vadd.f32 %v1308, %v1661
      %v1700 = vadd.f32 %v1309, %v1666
      %v1701 = vld [vmem:[%s1310 + $0x1] sm:$0xff]
      %v1702 = vld [vmem:[%s1310 + $0x9] sm:$0xff]
      %v1703 = vld [vmem:[%s1310 + $0x19] sm:$0xff]
      %v1704 = vld [vmem:[%s1310 + $0x21] sm:$0xff]
      %v1705 = vld [vmem:[%s1310 + $0x31] sm:$0xff]
      %v1706 = vld [vmem:[%s1310 + $0x39] sm:$0xff]
      %v1707 = vld [vmem:[%s1310 + $0x49] sm:$0xff]
      %v1708 = vld [vmem:[%s1310 + $0x51] sm:$0xff]
      %v1709 = vld [vmem:[%s1310 + $0x61] sm:$0xff]
      %v1710 = vld [vmem:[%s1310 + $0x69] sm:$0xff]
      %v1711 = vld [vmem:[%s1310 + $0x79] sm:$0xff]
      %v1712 = vld [vmem:[%s1310 + $0x81] sm:$0xff]
      %v1713 = vld [vmem:[%s1310 + $0x91] sm:$0xff]
      %v1714 = vld [vmem:[%s1310 + $0x99] sm:$0xff]
      %v1715 = vld [vmem:[%s1310 + $0xa9] sm:$0xff]
      %v1716 = vld [vmem:[%s1310 + $0xb1] sm:$0xff]
      %v1717 = vld [vmem:[%s1310 + $0xc1] sm:$0xff]
      %v1718 = vld [vmem:[%s1310 + $0xc9] sm:$0xff]
      %v1719 = vld [vmem:[%s1310 + $0xd9] sm:$0xff]
      %v1720 = vld [vmem:[%s1310 + $0xe1] sm:$0xff]
      %v1721 = vld [vmem:[%s1310 + $0xf1] sm:$0xff]
      %v1722 = vld [vmem:[%s1310 + $0xf9] sm:$0xff]
      %v1723 = vld [vmem:[%s1310 + $0x109] sm:$0xff]
      %v1724 = vld [vmem:[%s1310 + $0x111] sm:$0xff]
      %v1725 = vld [vmem:[%s1310 + $0x121] sm:$0xff]
      %v1726 = vld [vmem:[%s1310 + $0x129] sm:$0xff]
      %v1727 = vld [vmem:[%s1310 + $0x139] sm:$0xff]
      %v1728 = vld [vmem:[%s1310 + $0x141] sm:$0xff]
      %v1729 = vld [vmem:[%s1310 + $0x151] sm:$0xff]
      %v1730 = vld [vmem:[%s1310 + $0x159] sm:$0xff]
      %v1731 = vld [vmem:[%s1310 + $0x169] sm:$0xff]
      %v1732 = vld [vmem:[%s1310 + $0x171] sm:$0xff]
      %s1733 = scalar_lea.vmem %s1, 16
      %v1734 = vld [vmem:[%s1733] sm:$0xf]
      %v1736 = vsel %vm270, %v1701, 0
      %v1739 = vsel %vm270, %v1702, 0
      %v1742 = vsel %vm270, %v1703, 0
      %v1745 = vsel %vm270, %v1704, 0
      %v1748 = vsel %vm270, %v1705, 0
      %v1751 = vsel %vm270, %v1706, 0
      %v1754 = vsel %vm270, %v1707, 0
      %v1757 = vsel %vm270, %v1708, 0
      %v1760 = vsel %vm270, %v1709, 0
      %v1763 = vsel %vm270, %v1710, 0
      %v1766 = vsel %vm270, %v1711, 0
      %v1769 = vsel %vm270, %v1712, 0
      %v1772 = vsel %vm270, %v1713, 0
      %v1775 = vsel %vm270, %v1714, 0
      %v1778 = vsel %vm270, %v1715, 0
      %v1781 = vsel %vm270, %v1716, 0
      %v1784 = vsel %vm270, %v1717, 0
      %v1787 = vsel %vm270, %v1718, 0
      %v1790 = vsel %vm270, %v1719, 0
      %v1793 = vsel %vm270, %v1720, 0
      %v1796 = vsel %vm270, %v1721, 0
      %v1799 = vsel %vm270, %v1722, 0
      %v1802 = vsel %vm270, %v1723, 0
      %v1805 = vsel %vm270, %v1724, 0
      %v1808 = vsel %vm270, %v1725, 0
      %v1811 = vsel %vm270, %v1726, 0
      %v1814 = vsel %vm270, %v1727, 0
      %v1817 = vsel %vm270, %v1728, 0
      %v1820 = vsel %vm270, %v1729, 0
      %v1823 = vsel %vm270, %v1730, 0
      %v1826 = vsel %vm270, %v1731, 0
      %v1829 = vsel %vm270, %v1732, 0
      %v1832 = vsel %vm367, %v1734, 0
      %1834 = vmatprep.subr.mxu0 0.0
      %1835 = vmatpush1.msra.mxu0 0.0
      %1836 = vmatprep.subr.mxu0 0.0
      %1837 = vmatpush1.msra.mxu0 0.0
      %1838 = vmatprep.subr.mxu0 0.0
      %1839 = vmatpush1.msra.mxu0 0.0
      %1840 = vmatprep.subr.mxu0 0.0
      %1841 = vmatpush1.msra.mxu0 0.0
      %1842 = vmatprep.subr.mxu0 0.0
      %1843 = vmatpush1.msra.mxu0 0.0
      %1844 = vmatprep.subr.mxu0 0.0
      %1845 = vmatpush1.msra.mxu0 0.0
      %1846 = vmatprep.subr.mxu0 0.0
      %1847 = vmatpush1.msra.mxu0 0.0
      %1848 = vmatprep.subr.mxu0 0.0
      %1849 = vmatpush1.msra.mxu0 0.0
      %1850 = vmatprep.subr.mxu0 0.0
      %1851 = vmatpush1.msra.mxu0 0.0
      %1852 = vmatprep.subr.mxu0 0.0
      %1853 = vmatpush1.msra.mxu0 0.0
      %1854 = vmatprep.subr.mxu0 0.0
      %1855 = vmatpush1.msra.mxu0 0.0
      %1856 = vmatprep.subr.mxu0 0.0
      %1857 = vmatpush1.msra.mxu0 0.0
      %1858 = vmatprep.subr.mxu0 0.0
      %1859 = vmatpush1.msra.mxu0 0.0
      %1860 = vmatprep.subr.mxu0 0.0
      %1861 = vmatpush1.msra.mxu0 0.0
      %1862 = vmatprep.subr.mxu0 0.0
      %1863 = vmatpush1.msra.mxu0 0.0
      %1864 = vmatprep.subr.mxu0 0.0
      %1865 = vmatpush1.msra.mxu0 %v1832
      %1866 = vmatprep.subr.mxu0 0.0
      %1867 = vmatpush2.msra.mxu0 0.0
      %1868 = vmatprep.subr.mxu0 0.0
      %1869 = vmatpush2.msra.mxu0 0.0
      %1870 = vmatprep.subr.mxu0 0.0
      %1871 = vmatpush2.msra.mxu0 0.0
      %1872 = vmatprep.subr.mxu0 0.0
      %1873 = vmatpush2.msra.mxu0 0.0
      %1874 = vmatprep.subr.mxu0 0.0
      %1875 = vmatpush2.msra.mxu0 0.0
      %1876 = vmatprep.subr.mxu0 0.0
      %1877 = vmatpush2.msra.mxu0 0.0
      %1878 = vmatprep.subr.mxu0 0.0
      %1879 = vmatpush2.msra.mxu0 0.0
      %1880 = vmatprep.subr.mxu0 0.0
      %1881 = vmatpush2.msra.mxu0 0.0
      %1882 = vmatprep.subr.mxu0 0.0
      %1883 = vmatpush2.msra.mxu0 0.0
      %1884 = vmatprep.subr.mxu0 0.0
      %1885 = vmatpush2.msra.mxu0 0.0
      %1886 = vmatprep.subr.mxu0 0.0
      %1887 = vmatpush2.msra.mxu0 0.0
      %1888 = vmatprep.subr.mxu0 0.0
      %1889 = vmatpush2.msra.mxu0 0.0
      %1890 = vmatprep.subr.mxu0 0.0
      %1891 = vmatpush2.msra.mxu0 0.0
      %1892 = vmatprep.subr.mxu0 0.0
      %1893 = vmatpush2.msra.mxu0 0.0
      %1894 = vmatprep.subr.mxu0 0.0
      %1895 = vmatpush2.msra.mxu0 0.0
      %1896 = vmatprep.subr.mxu0 0.0
      %1897 = vmatpush2.msra.mxu0 0.0
      %1898 = vmatprep.mubr.f32.mxu0 0.0
      %1899 = vmatmul.mubr.f32.gmra.mxu0 %v1736
      %v1900 = vpop.f32.mrf.mxu0
      %v1901 = vadd.f32 0.0, %v1900
      %v1902 = vpop.f32.mrf.mxu0
      %1903 = vmatprep.mubr.f32.mxu0 0.0
      %1904 = vmatmul.mubr.f32.gmra.mxu0 %v1739
      %v1905 = vpop.f32.mrf.mxu0
      %v1906 = vadd.f32 0.0, %v1905
      %v1907 = vpop.f32.mrf.mxu0
      %1908 = vmatprep.mubr.f32.mxu0 0.0
      %1909 = vmatmul.mubr.f32.gmra.mxu0 %v1742
      %v1910 = vpop.f32.mrf.mxu0
      %v1911 = vadd.f32 0.0, %v1910
      %v1912 = vpop.f32.mrf.mxu0
      %1913 = vmatprep.mubr.f32.mxu0 0.0
      %1914 = vmatmul.mubr.f32.gmra.mxu0 %v1745
      %v1915 = vpop.f32.mrf.mxu0
      %v1916 = vadd.f32 0.0, %v1915
      %v1917 = vpop.f32.mrf.mxu0
      %1918 = vmatprep.mubr.f32.mxu0 0.0
      %1919 = vmatmul.mubr.f32.gmra.mxu0 %v1748
      %v1920 = vpop.f32.mrf.mxu0
      %v1921 = vadd.f32 0.0, %v1920
      %v1922 = vpop.f32.mrf.mxu0
      %1923 = vmatprep.mubr.f32.mxu0 0.0
      %1924 = vmatmul.mubr.f32.gmra.mxu0 %v1751
      %v1925 = vpop.f32.mrf.mxu0
      %v1926 = vadd.f32 0.0, %v1925
      %v1927 = vpop.f32.mrf.mxu0
      %1928 = vmatprep.mubr.f32.mxu0 0.0
      %1929 = vmatmul.mubr.f32.gmra.mxu0 %v1754
      %v1930 = vpop.f32.mrf.mxu0
      %v1931 = vadd.f32 0.0, %v1930
      %v1932 = vpop.f32.mrf.mxu0
      %1933 = vmatprep.mubr.f32.mxu0 0.0
      %1934 = vmatmul.mubr.f32.gmra.mxu0 %v1757
      %v1935 = vpop.f32.mrf.mxu0
      %v1936 = vadd.f32 0.0, %v1935
      %v1937 = vpop.f32.mrf.mxu0
      %1938 = vmatprep.mubr.f32.mxu0 0.0
      %1939 = vmatmul.mubr.f32.gmra.mxu0 %v1760
      %v1940 = vpop.f32.mrf.mxu0
      %v1941 = vadd.f32 0.0, %v1940
      %v1942 = vpop.f32.mrf.mxu0
      %1943 = vmatprep.mubr.f32.mxu0 0.0
      %1944 = vmatmul.mubr.f32.gmra.mxu0 %v1763
      %v1945 = vpop.f32.mrf.mxu0
      %v1946 = vadd.f32 0.0, %v1945
      %v1947 = vpop.f32.mrf.mxu0
      %1948 = vmatprep.mubr.f32.mxu0 0.0
      %1949 = vmatmul.mubr.f32.gmra.mxu0 %v1766
      %v1950 = vpop.f32.mrf.mxu0
      %v1951 = vadd.f32 0.0, %v1950
      %v1952 = vpop.f32.mrf.mxu0
      %1953 = vmatprep.mubr.f32.mxu0 0.0
      %1954 = vmatmul.mubr.f32.gmra.mxu0 %v1769
      %v1955 = vpop.f32.mrf.mxu0
      %v1956 = vadd.f32 0.0, %v1955
      %v1957 = vpop.f32.mrf.mxu0
      %1958 = vmatprep.mubr.f32.mxu0 0.0
      %1959 = vmatmul.mubr.f32.gmra.mxu0 %v1772
      %v1960 = vpop.f32.mrf.mxu0
      %v1961 = vadd.f32 0.0, %v1960
      %v1962 = vpop.f32.mrf.mxu0
      %1963 = vmatprep.mubr.f32.mxu0 0.0
      %1964 = vmatmul.mubr.f32.gmra.mxu0 %v1775
      %v1965 = vpop.f32.mrf.mxu0
      %v1966 = vadd.f32 0.0, %v1965
      %v1967 = vpop.f32.mrf.mxu0
      %1968 = vmatprep.mubr.f32.mxu0 0.0
      %1969 = vmatmul.mubr.f32.gmra.mxu0 %v1778
      %v1970 = vpop.f32.mrf.mxu0
      %v1971 = vadd.f32 0.0, %v1970
      %v1972 = vpop.f32.mrf.mxu0
      %1973 = vmatprep.mubr.f32.mxu0 0.0
      %1974 = vmatmul.mubr.f32.gmra.mxu0 %v1781
      %v1975 = vpop.f32.mrf.mxu0
      %v1976 = vadd.f32 0.0, %v1975
      %v1977 = vpop.f32.mrf.mxu0
      %1978 = vmatprep.mubr.f32.mxu0 0.0
      %1979 = vmatmul.mubr.f32.gmra.mxu0 %v1784
      %v1980 = vpop.f32.mrf.mxu0
      %v1981 = vadd.f32 0.0, %v1980
      %v1982 = vpop.f32.mrf.mxu0
      %1983 = vmatprep.mubr.f32.mxu0 0.0
      %1984 = vmatmul.mubr.f32.gmra.mxu0 %v1787
      %v1985 = vpop.f32.mrf.mxu0
      %v1986 = vadd.f32 0.0, %v1985
      %v1987 = vpop.f32.mrf.mxu0
      %1988 = vmatprep.mubr.f32.mxu0 0.0
      %1989 = vmatmul.mubr.f32.gmra.mxu0 %v1790
      %v1990 = vpop.f32.mrf.mxu0
      %v1991 = vadd.f32 0.0, %v1990
      %v1992 = vpop.f32.mrf.mxu0
      %1993 = vmatprep.mubr.f32.mxu0 0.0
      %1994 = vmatmul.mubr.f32.gmra.mxu0 %v1793
      %v1995 = vpop.f32.mrf.mxu0
      %v1996 = vadd.f32 0.0, %v1995
      %v1997 = vpop.f32.mrf.mxu0
      %1998 = vmatprep.mubr.f32.mxu0 0.0
      %1999 = vmatmul.mubr.f32.gmra.mxu0 %v1796
      %v2000 = vpop.f32.mrf.mxu0
      %v2001 = vadd.f32 0.0, %v2000
      %v2002 = vpop.f32.mrf.mxu0
      %2003 = vmatprep.mubr.f32.mxu0 0.0
      %2004 = vmatmul.mubr.f32.gmra.mxu0 %v1799
      %v2005 = vpop.f32.mrf.mxu0
      %v2006 = vadd.f32 0.0, %v2005
      %v2007 = vpop.f32.mrf.mxu0
      %2008 = vmatprep.mubr.f32.mxu0 0.0
      %2009 = vmatmul.mubr.f32.gmra.mxu0 %v1802
      %v2010 = vpop.f32.mrf.mxu0
      %v2011 = vadd.f32 0.0, %v2010
      %v2012 = vpop.f32.mrf.mxu0
      %2013 = vmatprep.mubr.f32.mxu0 0.0
      %2014 = vmatmul.mubr.f32.gmra.mxu0 %v1805
      %v2015 = vpop.f32.mrf.mxu0
      %v2016 = vadd.f32 0.0, %v2015
      %v2017 = vpop.f32.mrf.mxu0
      %2018 = vmatprep.mubr.f32.mxu0 0.0
      %2019 = vmatmul.mubr.f32.gmra.mxu0 %v1808
      %v2020 = vpop.f32.mrf.mxu0
      %v2021 = vadd.f32 0.0, %v2020
      %v2022 = vpop.f32.mrf.mxu0
      %2023 = vmatprep.mubr.f32.mxu0 0.0
      %2024 = vmatmul.mubr.f32.gmra.mxu0 %v1811
      %v2025 = vpop.f32.mrf.mxu0
      %v2026 = vadd.f32 0.0, %v2025
      %v2027 = vpop.f32.mrf.mxu0
      %2028 = vmatprep.mubr.f32.mxu0 0.0
      %2029 = vmatmul.mubr.f32.gmra.mxu0 %v1814
      %v2030 = vpop.f32.mrf.mxu0
      %v2031 = vadd.f32 0.0, %v2030
      %v2032 = vpop.f32.mrf.mxu0
      %2033 = vmatprep.mubr.f32.mxu0 0.0
      %2034 = vmatmul.mubr.f32.gmra.mxu0 %v1817
      %v2035 = vpop.f32.mrf.mxu0
      %v2036 = vadd.f32 0.0, %v2035
      %v2037 = vpop.f32.mrf.mxu0
      %2038 = vmatprep.mubr.f32.mxu0 0.0
      %2039 = vmatmul.mubr.f32.gmra.mxu0 %v1820
      %v2040 = vpop.f32.mrf.mxu0
      %v2041 = vadd.f32 0.0, %v2040
      %v2042 = vpop.f32.mrf.mxu0
      %2043 = vmatprep.mubr.f32.mxu0 0.0
      %2044 = vmatmul.mubr.f32.gmra.mxu0 %v1823
      %v2045 = vpop.f32.mrf.mxu0
      %v2046 = vadd.f32 0.0, %v2045
      %v2047 = vpop.f32.mrf.mxu0
      %2048 = vmatprep.mubr.f32.mxu0 0.0
      %2049 = vmatmul.mubr.f32.gmra.mxu0 %v1826
      %v2050 = vpop.f32.mrf.mxu0
      %v2051 = vadd.f32 0.0, %v2050
      %v2052 = vpop.f32.mrf.mxu0
      %2053 = vmatprep.mubr.f32.mxu0 0.0
      %2054 = vmatmul.mubr.f32.gmra.mxu0 %v1829
      %v2055 = vpop.f32.mrf.mxu0
      %v2056 = vadd.f32 0.0, %v2055
      %v2057 = vpop.f32.mrf.mxu0
      %2058 = vdwg.mxu0
      %v2059 = vadd.f32 %v1669, %v1901
      %v2060 = vadd.f32 %v1670, %v1906
      %v2061 = vadd.f32 %v1671, %v1911
      %v2062 = vadd.f32 %v1672, %v1916
      %v2063 = vadd.f32 %v1673, %v1921
      %v2064 = vadd.f32 %v1674, %v1926
      %v2065 = vadd.f32 %v1675, %v1931
      %v2066 = vadd.f32 %v1676, %v1936
      %v2067 = vadd.f32 %v1677, %v1941
      %v2068 = vadd.f32 %v1678, %v1946
      %v2069 = vadd.f32 %v1679, %v1951
      %v2070 = vadd.f32 %v1680, %v1956
      %v2071 = vadd.f32 %v1681, %v1961
      %v2072 = vadd.f32 %v1682, %v1966
      %v2073 = vadd.f32 %v1683, %v1971
      %v2074 = vadd.f32 %v1684, %v1976
      %v2075 = vadd.f32 %v1685, %v1981
      %v2076 = vadd.f32 %v1686, %v1986
      %v2077 = vadd.f32 %v1687, %v1991
      %v2078 = vadd.f32 %v1688, %v1996
      %v2079 = vadd.f32 %v1689, %v2001
      %v2080 = vadd.f32 %v1690, %v2006
      %v2081 = vadd.f32 %v1691, %v2011
      %v2082 = vadd.f32 %v1692, %v2016
      %v2083 = vadd.f32 %v1693, %v2021
      %v2084 = vadd.f32 %v1694, %v2026
      %v2085 = vadd.f32 %v1695, %v2031
      %v2086 = vadd.f32 %v1696, %v2036
      %v2087 = vadd.f32 %v1697, %v2041
      %v2088 = vadd.f32 %v1698, %v2046
      %v2089 = vadd.f32 %v1699, %v2051
      %v2090 = vadd.f32 %v1700, %v2056
      %v2091 = vld [vmem:[%s1310 + $0x2] sm:$0xff]
      %v2092 = vld [vmem:[%s1310 + $0xa] sm:$0xff]
      %v2093 = vld [vmem:[%s1310 + $0x1a] sm:$0xff]
      %v2094 = vld [vmem:[%s1310 + $0x22] sm:$0xff]
      %v2095 = vld [vmem:[%s1310 + $0x32] sm:$0xff]
      %v2096 = vld [vmem:[%s1310 + $0x3a] sm:$0xff]
      %v2097 = vld [vmem:[%s1310 + $0x4a] sm:$0xff]
      %v2098 = vld [vmem:[%s1310 + $0x52] sm:$0xff]
      %v2099 = vld [vmem:[%s1310 + $0x62] sm:$0xff]
      %v2100 = vld [vmem:[%s1310 + $0x6a] sm:$0xff]
      %v2101 = vld [vmem:[%s1310 + $0x7a] sm:$0xff]
      %v2102 = vld [vmem:[%s1310 + $0x82] sm:$0xff]
      %v2103 = vld [vmem:[%s1310 + $0x92] sm:$0xff]
      %v2104 = vld [vmem:[%s1310 + $0x9a] sm:$0xff]
      %v2105 = vld [vmem:[%s1310 + $0xaa] sm:$0xff]
      %v2106 = vld [vmem:[%s1310 + $0xb2] sm:$0xff]
      %v2107 = vld [vmem:[%s1310 + $0xc2] sm:$0xff]
      %v2108 = vld [vmem:[%s1310 + $0xca] sm:$0xff]
      %v2109 = vld [vmem:[%s1310 + $0xda] sm:$0xff]
      %v2110 = vld [vmem:[%s1310 + $0xe2] sm:$0xff]
      %v2111 = vld [vmem:[%s1310 + $0xf2] sm:$0xff]
      %v2112 = vld [vmem:[%s1310 + $0xfa] sm:$0xff]
      %v2113 = vld [vmem:[%s1310 + $0x10a] sm:$0xff]
      %v2114 = vld [vmem:[%s1310 + $0x112] sm:$0xff]
      %v2115 = vld [vmem:[%s1310 + $0x122] sm:$0xff]
      %v2116 = vld [vmem:[%s1310 + $0x12a] sm:$0xff]
      %v2117 = vld [vmem:[%s1310 + $0x13a] sm:$0xff]
      %v2118 = vld [vmem:[%s1310 + $0x142] sm:$0xff]
      %v2119 = vld [vmem:[%s1310 + $0x152] sm:$0xff]
      %v2120 = vld [vmem:[%s1310 + $0x15a] sm:$0xff]
      %v2121 = vld [vmem:[%s1310 + $0x16a] sm:$0xff]
      %v2122 = vld [vmem:[%s1310 + $0x172] sm:$0xff]
      %s2123 = scalar_lea.vmem %s1, 20
      %v2124 = vld [vmem:[%s2123] sm:$0xf]
      %v2126 = vsel %vm270, %v2091, 0
      %v2129 = vsel %vm270, %v2092, 0
      %v2132 = vsel %vm270, %v2093, 0
      %v2135 = vsel %vm270, %v2094, 0
      %v2138 = vsel %vm270, %v2095, 0
      %v2141 = vsel %vm270, %v2096, 0
      %v2144 = vsel %vm270, %v2097, 0
      %v2147 = vsel %vm270, %v2098, 0
      %v2150 = vsel %vm270, %v2099, 0
      %v2153 = vsel %vm270, %v2100, 0
      %v2156 = vsel %vm270, %v2101, 0
      %v2159 = vsel %vm270, %v2102, 0
      %v2162 = vsel %vm270, %v2103, 0
      %v2165 = vsel %vm270, %v2104, 0
      %v2168 = vsel %vm270, %v2105, 0
      %v2171 = vsel %vm270, %v2106, 0
      %v2174 = vsel %vm270, %v2107, 0
      %v2177 = vsel %vm270, %v2108, 0
      %v2180 = vsel %vm270, %v2109, 0
      %v2183 = vsel %vm270, %v2110, 0
      %v2186 = vsel %vm270, %v2111, 0
      %v2189 = vsel %vm270, %v2112, 0
      %v2192 = vsel %vm270, %v2113, 0
      %v2195 = vsel %vm270, %v2114, 0
      %v2198 = vsel %vm270, %v2115, 0
      %v2201 = vsel %vm270, %v2116, 0
      %v2204 = vsel %vm270, %v2117, 0
      %v2207 = vsel %vm270, %v2118, 0
      %v2210 = vsel %vm270, %v2119, 0
      %v2213 = vsel %vm270, %v2120, 0
      %v2216 = vsel %vm270, %v2121, 0
      %v2219 = vsel %vm270, %v2122, 0
      %v2222 = vsel %vm367, %v2124, 0
      %2224 = vmatprep.subr.mxu0 0.0
      %2225 = vmatpush1.msra.mxu0 0.0
      %2226 = vmatprep.subr.mxu0 0.0
      %2227 = vmatpush1.msra.mxu0 0.0
      %2228 = vmatprep.subr.mxu0 0.0
      %2229 = vmatpush1.msra.mxu0 0.0
      %2230 = vmatprep.subr.mxu0 0.0
      %2231 = vmatpush1.msra.mxu0 0.0
      %2232 = vmatprep.subr.mxu0 0.0
      %2233 = vmatpush1.msra.mxu0 0.0
      %2234 = vmatprep.subr.mxu0 0.0
      %2235 = vmatpush1.msra.mxu0 0.0
      %2236 = vmatprep.subr.mxu0 0.0
      %2237 = vmatpush1.msra.mxu0 0.0
      %2238 = vmatprep.subr.mxu0 0.0
      %2239 = vmatpush1.msra.mxu0 0.0
      %2240 = vmatprep.subr.mxu0 0.0
      %2241 = vmatpush1.msra.mxu0 0.0
      %2242 = vmatprep.subr.mxu0 0.0
      %2243 = vmatpush1.msra.mxu0 0.0
      %2244 = vmatprep.subr.mxu0 0.0
      %2245 = vmatpush1.msra.mxu0 0.0
      %2246 = vmatprep.subr.mxu0 0.0
      %2247 = vmatpush1.msra.mxu0 0.0
      %2248 = vmatprep.subr.mxu0 0.0
      %2249 = vmatpush1.msra.mxu0 0.0
      %2250 = vmatprep.subr.mxu0 0.0
      %2251 = vmatpush1.msra.mxu0 0.0
      %2252 = vmatprep.subr.mxu0 0.0
      %2253 = vmatpush1.msra.mxu0 0.0
      %2254 = vmatprep.subr.mxu0 0.0
      %2255 = vmatpush1.msra.mxu0 %v2222
      %2256 = vmatprep.subr.mxu0 0.0
      %2257 = vmatpush2.msra.mxu0 0.0
      %2258 = vmatprep.subr.mxu0 0.0
      %2259 = vmatpush2.msra.mxu0 0.0
      %2260 = vmatprep.subr.mxu0 0.0
      %2261 = vmatpush2.msra.mxu0 0.0
      %2262 = vmatprep.subr.mxu0 0.0
      %2263 = vmatpush2.msra.mxu0 0.0
      %2264 = vmatprep.subr.mxu0 0.0
      %2265 = vmatpush2.msra.mxu0 0.0
      %2266 = vmatprep.subr.mxu0 0.0
      %2267 = vmatpush2.msra.mxu0 0.0
      %2268 = vmatprep.subr.mxu0 0.0
      %2269 = vmatpush2.msra.mxu0 0.0
      %2270 = vmatprep.subr.mxu0 0.0
      %2271 = vmatpush2.msra.mxu0 0.0
      %2272 = vmatprep.subr.mxu0 0.0
      %2273 = vmatpush2.msra.mxu0 0.0
      %2274 = vmatprep.subr.mxu0 0.0
      %2275 = vmatpush2.msra.mxu0 0.0
      %2276 = vmatprep.subr.mxu0 0.0
      %2277 = vmatpush2.msra.mxu0 0.0
      %2278 = vmatprep.subr.mxu0 0.0
      %2279 = vmatpush2.msra.mxu0 0.0
      %2280 = vmatprep.subr.mxu0 0.0
      %2281 = vmatpush2.msra.mxu0 0.0
      %2282 = vmatprep.subr.mxu0 0.0
      %2283 = vmatpush2.msra.mxu0 0.0
      %2284 = vmatprep.subr.mxu0 0.0
      %2285 = vmatpush2.msra.mxu0 0.0
      %2286 = vmatprep.subr.mxu0 0.0
      %2287 = vmatpush2.msra.mxu0 0.0
      %2288 = vmatprep.mubr.f32.mxu0 0.0
      %2289 = vmatmul.mubr.f32.gmra.mxu0 %v2126
      %v2290 = vpop.f32.mrf.mxu0
      %v2291 = vadd.f32 0.0, %v2290
      %v2292 = vpop.f32.mrf.mxu0
      %2293 = vmatprep.mubr.f32.mxu0 0.0
      %2294 = vmatmul.mubr.f32.gmra.mxu0 %v2129
      %v2295 = vpop.f32.mrf.mxu0
      %v2296 = vadd.f32 0.0, %v2295
      %v2297 = vpop.f32.mrf.mxu0
      %2298 = vmatprep.mubr.f32.mxu0 0.0
      %2299 = vmatmul.mubr.f32.gmra.mxu0 %v2132
      %v2300 = vpop.f32.mrf.mxu0
      %v2301 = vadd.f32 0.0, %v2300
      %v2302 = vpop.f32.mrf.mxu0
      %2303 = vmatprep.mubr.f32.mxu0 0.0
      %2304 = vmatmul.mubr.f32.gmra.mxu0 %v2135
      %v2305 = vpop.f32.mrf.mxu0
      %v2306 = vadd.f32 0.0, %v2305
      %v2307 = vpop.f32.mrf.mxu0
      %2308 = vmatprep.mubr.f32.mxu0 0.0
      %2309 = vmatmul.mubr.f32.gmra.mxu0 %v2138
      %v2310 = vpop.f32.mrf.mxu0
      %v2311 = vadd.f32 0.0, %v2310
      %v2312 = vpop.f32.mrf.mxu0
      %2313 = vmatprep.mubr.f32.mxu0 0.0
      %2314 = vmatmul.mubr.f32.gmra.mxu0 %v2141
      %v2315 = vpop.f32.mrf.mxu0
      %v2316 = vadd.f32 0.0, %v2315
      %v2317 = vpop.f32.mrf.mxu0
      %2318 = vmatprep.mubr.f32.mxu0 0.0
      %2319 = vmatmul.mubr.f32.gmra.mxu0 %v2144
      %v2320 = vpop.f32.mrf.mxu0
      %v2321 = vadd.f32 0.0, %v2320
      %v2322 = vpop.f32.mrf.mxu0
      %2323 = vmatprep.mubr.f32.mxu0 0.0
      %2324 = vmatmul.mubr.f32.gmra.mxu0 %v2147
      %v2325 = vpop.f32.mrf.mxu0
      %v2326 = vadd.f32 0.0, %v2325
      %v2327 = vpop.f32.mrf.mxu0
      %2328 = vmatprep.mubr.f32.mxu0 0.0
      %2329 = vmatmul.mubr.f32.gmra.mxu0 %v2150
      %v2330 = vpop.f32.mrf.mxu0
      %v2331 = vadd.f32 0.0, %v2330
      %v2332 = vpop.f32.mrf.mxu0
      %2333 = vmatprep.mubr.f32.mxu0 0.0
      %2334 = vmatmul.mubr.f32.gmra.mxu0 %v2153
      %v2335 = vpop.f32.mrf.mxu0
      %v2336 = vadd.f32 0.0, %v2335
      %v2337 = vpop.f32.mrf.mxu0
      %2338 = vmatprep.mubr.f32.mxu0 0.0
      %2339 = vmatmul.mubr.f32.gmra.mxu0 %v2156
      %v2340 = vpop.f32.mrf.mxu0
      %v2341 = vadd.f32 0.0, %v2340
      %v2342 = vpop.f32.mrf.mxu0
      %2343 = vmatprep.mubr.f32.mxu0 0.0
      %2344 = vmatmul.mubr.f32.gmra.mxu0 %v2159
      %v2345 = vpop.f32.mrf.mxu0
      %v2346 = vadd.f32 0.0, %v2345
      %v2347 = vpop.f32.mrf.mxu0
      %2348 = vmatprep.mubr.f32.mxu0 0.0
      %2349 = vmatmul.mubr.f32.gmra.mxu0 %v2162
      %v2350 = vpop.f32.mrf.mxu0
      %v2351 = vadd.f32 0.0, %v2350
      %v2352 = vpop.f32.mrf.mxu0
      %2353 = vmatprep.mubr.f32.mxu0 0.0
      %2354 = vmatmul.mubr.f32.gmra.mxu0 %v2165
      %v2355 = vpop.f32.mrf.mxu0
      %v2356 = vadd.f32 0.0, %v2355
      %v2357 = vpop.f32.mrf.mxu0
      %2358 = vmatprep.mubr.f32.mxu0 0.0
      %2359 = vmatmul.mubr.f32.gmra.mxu0 %v2168
      %v2360 = vpop.f32.mrf.mxu0
      %v2361 = vadd.f32 0.0, %v2360
      %v2362 = vpop.f32.mrf.mxu0
      %2363 = vmatprep.mubr.f32.mxu0 0.0
      %2364 = vmatmul.mubr.f32.gmra.mxu0 %v2171
      %v2365 = vpop.f32.mrf.mxu0
      %v2366 = vadd.f32 0.0, %v2365
      %v2367 = vpop.f32.mrf.mxu0
      %2368 = vmatprep.mubr.f32.mxu0 0.0
      %2369 = vmatmul.mubr.f32.gmra.mxu0 %v2174
      %v2370 = vpop.f32.mrf.mxu0
      %v2371 = vadd.f32 0.0, %v2370
      %v2372 = vpop.f32.mrf.mxu0
      %2373 = vmatprep.mubr.f32.mxu0 0.0
      %2374 = vmatmul.mubr.f32.gmra.mxu0 %v2177
      %v2375 = vpop.f32.mrf.mxu0
      %v2376 = vadd.f32 0.0, %v2375
      %v2377 = vpop.f32.mrf.mxu0
      %2378 = vmatprep.mubr.f32.mxu0 0.0
      %2379 = vmatmul.mubr.f32.gmra.mxu0 %v2180
      %v2380 = vpop.f32.mrf.mxu0
      %v2381 = vadd.f32 0.0, %v2380
      %v2382 = vpop.f32.mrf.mxu0
      %2383 = vmatprep.mubr.f32.mxu0 0.0
      %2384 = vmatmul.mubr.f32.gmra.mxu0 %v2183
      %v2385 = vpop.f32.mrf.mxu0
      %v2386 = vadd.f32 0.0, %v2385
      %v2387 = vpop.f32.mrf.mxu0
      %2388 = vmatprep.mubr.f32.mxu0 0.0
      %2389 = vmatmul.mubr.f32.gmra.mxu0 %v2186
      %v2390 = vpop.f32.mrf.mxu0
      %v2391 = vadd.f32 0.0, %v2390
      %v2392 = vpop.f32.mrf.mxu0
      %2393 = vmatprep.mubr.f32.mxu0 0.0
      %2394 = vmatmul.mubr.f32.gmra.mxu0 %v2189
      %v2395 = vpop.f32.mrf.mxu0
      %v2396 = vadd.f32 0.0, %v2395
      %v2397 = vpop.f32.mrf.mxu0
      %2398 = vmatprep.mubr.f32.mxu0 0.0
      %2399 = vmatmul.mubr.f32.gmra.mxu0 %v2192
      %v2400 = vpop.f32.mrf.mxu0
      %v2401 = vadd.f32 0.0, %v2400
      %v2402 = vpop.f32.mrf.mxu0
      %2403 = vmatprep.mubr.f32.mxu0 0.0
      %2404 = vmatmul.mubr.f32.gmra.mxu0 %v2195
      %v2405 = vpop.f32.mrf.mxu0
      %v2406 = vadd.f32 0.0, %v2405
      %v2407 = vpop.f32.mrf.mxu0
      %2408 = vmatprep.mubr.f32.mxu0 0.0
      %2409 = vmatmul.mubr.f32.gmra.mxu0 %v2198
      %v2410 = vpop.f32.mrf.mxu0
      %v2411 = vadd.f32 0.0, %v2410
      %v2412 = vpop.f32.mrf.mxu0
      %2413 = vmatprep.mubr.f32.mxu0 0.0
      %2414 = vmatmul.mubr.f32.gmra.mxu0 %v2201
      %v2415 = vpop.f32.mrf.mxu0
      %v2416 = vadd.f32 0.0, %v2415
      %v2417 = vpop.f32.mrf.mxu0
      %2418 = vmatprep.mubr.f32.mxu0 0.0
      %2419 = vmatmul.mubr.f32.gmra.mxu0 %v2204
      %v2420 = vpop.f32.mrf.mxu0
      %v2421 = vadd.f32 0.0, %v2420
      %v2422 = vpop.f32.mrf.mxu0
      %2423 = vmatprep.mubr.f32.mxu0 0.0
      %2424 = vmatmul.mubr.f32.gmra.mxu0 %v2207
      %v2425 = vpop.f32.mrf.mxu0
      %v2426 = vadd.f32 0.0, %v2425
      %v2427 = vpop.f32.mrf.mxu0
      %2428 = vmatprep.mubr.f32.mxu0 0.0
      %2429 = vmatmul.mubr.f32.gmra.mxu0 %v2210
      %v2430 = vpop.f32.mrf.mxu0
      %v2431 = vadd.f32 0.0, %v2430
      %v2432 = vpop.f32.mrf.mxu0
      %2433 = vmatprep.mubr.f32.mxu0 0.0
      %2434 = vmatmul.mubr.f32.gmra.mxu0 %v2213
      %v2435 = vpop.f32.mrf.mxu0
      %v2436 = vadd.f32 0.0, %v2435
      %v2437 = vpop.f32.mrf.mxu0
      %2438 = vmatprep.mubr.f32.mxu0 0.0
      %2439 = vmatmul.mubr.f32.gmra.mxu0 %v2216
      %v2440 = vpop.f32.mrf.mxu0
      %v2441 = vadd.f32 0.0, %v2440
      %v2442 = vpop.f32.mrf.mxu0
      %2443 = vmatprep.mubr.f32.mxu0 0.0
      %2444 = vmatmul.mubr.f32.gmra.mxu0 %v2219
      %v2445 = vpop.f32.mrf.mxu0
      %v2446 = vadd.f32 0.0, %v2445
      %v2447 = vpop.f32.mrf.mxu0
      %2448 = vdwg.mxu0
      %v2449 = vadd.f32 %v2059, %v2291
      %v2450 = vadd.f32 %v2060, %v2296
      %v2451 = vadd.f32 %v2061, %v2301
      %v2452 = vadd.f32 %v2062, %v2306
      %v2453 = vadd.f32 %v2063, %v2311
      %v2454 = vadd.f32 %v2064, %v2316
      %v2455 = vadd.f32 %v2065, %v2321
      %v2456 = vadd.f32 %v2066, %v2326
      %v2457 = vadd.f32 %v2067, %v2331
      %v2458 = vadd.f32 %v2068, %v2336
      %v2459 = vadd.f32 %v2069, %v2341
      %v2460 = vadd.f32 %v2070, %v2346
      %v2461 = vadd.f32 %v2071, %v2351
      %v2462 = vadd.f32 %v2072, %v2356
      %v2463 = vadd.f32 %v2073, %v2361
      %v2464 = vadd.f32 %v2074, %v2366
      %v2465 = vadd.f32 %v2075, %v2371
      %v2466 = vadd.f32 %v2076, %v2376
      %v2467 = vadd.f32 %v2077, %v2381
      %v2468 = vadd.f32 %v2078, %v2386
      %v2469 = vadd.f32 %v2079, %v2391
      %v2470 = vadd.f32 %v2080, %v2396
      %v2471 = vadd.f32 %v2081, %v2401
      %v2472 = vadd.f32 %v2082, %v2406
      %v2473 = vadd.f32 %v2083, %v2411
      %v2474 = vadd.f32 %v2084, %v2416
      %v2475 = vadd.f32 %v2085, %v2421
      %v2476 = vadd.f32 %v2086, %v2426
      %v2477 = vadd.f32 %v2087, %v2431
      %v2478 = vadd.f32 %v2088, %v2436
      %v2479 = vadd.f32 %v2089, %v2441
      %v2480 = vadd.f32 %v2090, %v2446
      %s2481 = scalar_lea.vmem %s196, 48
      %v2482 = vld [vmem:[%s2481] sm:$0xff]
      %v2483 = vld [vmem:[%s2481 + $0x8] sm:$0xff]
      %v2484 = vld [vmem:[%s2481 + $0x18] sm:$0xff]
      %v2485 = vld [vmem:[%s2481 + $0x20] sm:$0xff]
      %v2486 = vld [vmem:[%s2481 + $0x30] sm:$0xff]
      %v2487 = vld [vmem:[%s2481 + $0x38] sm:$0xff]
      %v2488 = vld [vmem:[%s2481 + $0x48] sm:$0xff]
      %v2489 = vld [vmem:[%s2481 + $0x50] sm:$0xff]
      %v2490 = vld [vmem:[%s2481 + $0x60] sm:$0xff]
      %v2491 = vld [vmem:[%s2481 + $0x68] sm:$0xff]
      %v2492 = vld [vmem:[%s2481 + $0x78] sm:$0xff]
      %v2493 = vld [vmem:[%s2481 + $0x80] sm:$0xff]
      %v2494 = vld [vmem:[%s2481 + $0x90] sm:$0xff]
      %v2495 = vld [vmem:[%s2481 + $0x98] sm:$0xff]
      %v2496 = vld [vmem:[%s2481 + $0xa8] sm:$0xff]
      %v2497 = vld [vmem:[%s2481 + $0xb0] sm:$0xff]
      %v2498 = vld [vmem:[%s2481 + $0xc0] sm:$0xff]
      %v2499 = vld [vmem:[%s2481 + $0xc8] sm:$0xff]
      %v2500 = vld [vmem:[%s2481 + $0xd8] sm:$0xff]
      %v2501 = vld [vmem:[%s2481 + $0xe0] sm:$0xff]
      %v2502 = vld [vmem:[%s2481 + $0xf0] sm:$0xff]
      %v2503 = vld [vmem:[%s2481 + $0xf8] sm:$0xff]
      %v2504 = vld [vmem:[%s2481 + $0x108] sm:$0xff]
      %v2505 = vld [vmem:[%s2481 + $0x110] sm:$0xff]
      %v2506 = vld [vmem:[%s2481 + $0x120] sm:$0xff]
      %v2507 = vld [vmem:[%s2481 + $0x128] sm:$0xff]
      %v2508 = vld [vmem:[%s2481 + $0x138] sm:$0xff]
      %v2509 = vld [vmem:[%s2481 + $0x140] sm:$0xff]
      %v2510 = vld [vmem:[%s2481 + $0x150] sm:$0xff]
      %v2511 = vld [vmem:[%s2481 + $0x158] sm:$0xff]
      %v2512 = vld [vmem:[%s2481 + $0x168] sm:$0xff]
      %v2513 = vld [vmem:[%s2481 + $0x170] sm:$0xff]
      %s2514 = scalar_lea.vmem %s1, 24
      %v2515 = vld [vmem:[%s2514] sm:$0xf]
      %v2517 = vsel %vm270, %v2482, 0
      %v2520 = vsel %vm270, %v2483, 0
      %v2523 = vsel %vm270, %v2484, 0
      %v2526 = vsel %vm270, %v2485, 0
      %v2529 = vsel %vm270, %v2486, 0
      %v2532 = vsel %vm270, %v2487, 0
      %v2535 = vsel %vm270, %v2488, 0
      %v2538 = vsel %vm270, %v2489, 0
      %v2541 = vsel %vm270, %v2490, 0
      %v2544 = vsel %vm270, %v2491, 0
      %v2547 = vsel %vm270, %v2492, 0
      %v2550 = vsel %vm270, %v2493, 0
      %v2553 = vsel %vm270, %v2494, 0
      %v2556 = vsel %vm270, %v2495, 0
      %v2559 = vsel %vm270, %v2496, 0
      %v2562 = vsel %vm270, %v2497, 0
      %v2565 = vsel %vm270, %v2498, 0
      %v2568 = vsel %vm270, %v2499, 0
      %v2571 = vsel %vm270, %v2500, 0
      %v2574 = vsel %vm270, %v2501, 0
      %v2577 = vsel %vm270, %v2502, 0
      %v2580 = vsel %vm270, %v2503, 0
      %v2583 = vsel %vm270, %v2504, 0
      %v2586 = vsel %vm270, %v2505, 0
      %v2589 = vsel %vm270, %v2506, 0
      %v2592 = vsel %vm270, %v2507, 0
      %v2595 = vsel %vm270, %v2508, 0
      %v2598 = vsel %vm270, %v2509, 0
      %v2601 = vsel %vm270, %v2510, 0
      %v2604 = vsel %vm270, %v2511, 0
      %v2607 = vsel %vm270, %v2512, 0
      %v2610 = vsel %vm270, %v2513, 0
      %v2613 = vsel %vm367, %v2515, 0
      %2615 = vmatprep.subr.mxu0 0.0
      %2616 = vmatpush1.msra.mxu0 0.0
      %2617 = vmatprep.subr.mxu0 0.0
      %2618 = vmatpush1.msra.mxu0 0.0
      %2619 = vmatprep.subr.mxu0 0.0
      %2620 = vmatpush1.msra.mxu0 0.0
      %2621 = vmatprep.subr.mxu0 0.0
      %2622 = vmatpush1.msra.mxu0 0.0
      %2623 = vmatprep.subr.mxu0 0.0
      %2624 = vmatpush1.msra.mxu0 0.0
      %2625 = vmatprep.subr.mxu0 0.0
      %2626 = vmatpush1.msra.mxu0 0.0
      %2627 = vmatprep.subr.mxu0 0.0
      %2628 = vmatpush1.msra.mxu0 0.0
      %2629 = vmatprep.subr.mxu0 0.0
      %2630 = vmatpush1.msra.mxu0 0.0
      %2631 = vmatprep.subr.mxu0 0.0
      %2632 = vmatpush1.msra.mxu0 0.0
      %2633 = vmatprep.subr.mxu0 0.0
      %2634 = vmatpush1.msra.mxu0 0.0
      %2635 = vmatprep.subr.mxu0 0.0
      %2636 = vmatpush1.msra.mxu0 0.0
      %2637 = vmatprep.subr.mxu0 0.0
      %2638 = vmatpush1.msra.mxu0 0.0
      %2639 = vmatprep.subr.mxu0 0.0
      %2640 = vmatpush1.msra.mxu0 0.0
      %2641 = vmatprep.subr.mxu0 0.0
      %2642 = vmatpush1.msra.mxu0 0.0
      %2643 = vmatprep.subr.mxu0 0.0
      %2644 = vmatpush1.msra.mxu0 0.0
      %2645 = vmatprep.subr.mxu0 0.0
      %2646 = vmatpush1.msra.mxu0 %v2613
      %2647 = vmatprep.subr.mxu0 0.0
      %2648 = vmatpush2.msra.mxu0 0.0
      %2649 = vmatprep.subr.mxu0 0.0
      %2650 = vmatpush2.msra.mxu0 0.0
      %2651 = vmatprep.subr.mxu0 0.0
      %2652 = vmatpush2.msra.mxu0 0.0
      %2653 = vmatprep.subr.mxu0 0.0
      %2654 = vmatpush2.msra.mxu0 0.0
      %2655 = vmatprep.subr.mxu0 0.0
      %2656 = vmatpush2.msra.mxu0 0.0
      %2657 = vmatprep.subr.mxu0 0.0
      %2658 = vmatpush2.msra.mxu0 0.0
      %2659 = vmatprep.subr.mxu0 0.0
      %2660 = vmatpush2.msra.mxu0 0.0
      %2661 = vmatprep.subr.mxu0 0.0
      %2662 = vmatpush2.msra.mxu0 0.0
      %2663 = vmatprep.subr.mxu0 0.0
      %2664 = vmatpush2.msra.mxu0 0.0
      %2665 = vmatprep.subr.mxu0 0.0
      %2666 = vmatpush2.msra.mxu0 0.0
      %2667 = vmatprep.subr.mxu0 0.0
      %2668 = vmatpush2.msra.mxu0 0.0
      %2669 = vmatprep.subr.mxu0 0.0
      %2670 = vmatpush2.msra.mxu0 0.0
      %2671 = vmatprep.subr.mxu0 0.0
      %2672 = vmatpush2.msra.mxu0 0.0
      %2673 = vmatprep.subr.mxu0 0.0
      %2674 = vmatpush2.msra.mxu0 0.0
      %2675 = vmatprep.subr.mxu0 0.0
      %2676 = vmatpush2.msra.mxu0 0.0
      %2677 = vmatprep.subr.mxu0 0.0
      %2678 = vmatpush2.msra.mxu0 0.0
      %2679 = vmatprep.mubr.f32.mxu0 0.0
      %2680 = vmatmul.mubr.f32.gmra.mxu0 %v2517
      %v2681 = vpop.f32.mrf.mxu0
      %v2682 = vadd.f32 0.0, %v2681
      %v2683 = vpop.f32.mrf.mxu0
      %2684 = vmatprep.mubr.f32.mxu0 0.0
      %2685 = vmatmul.mubr.f32.gmra.mxu0 %v2520
      %v2686 = vpop.f32.mrf.mxu0
      %v2687 = vadd.f32 0.0, %v2686
      %v2688 = vpop.f32.mrf.mxu0
      %2689 = vmatprep.mubr.f32.mxu0 0.0
      %2690 = vmatmul.mubr.f32.gmra.mxu0 %v2523
      %v2691 = vpop.f32.mrf.mxu0
      %v2692 = vadd.f32 0.0, %v2691
      %v2693 = vpop.f32.mrf.mxu0
      %2694 = vmatprep.mubr.f32.mxu0 0.0
      %2695 = vmatmul.mubr.f32.gmra.mxu0 %v2526
      %v2696 = vpop.f32.mrf.mxu0
      %v2697 = vadd.f32 0.0, %v2696
      %v2698 = vpop.f32.mrf.mxu0
      %2699 = vmatprep.mubr.f32.mxu0 0.0
      %2700 = vmatmul.mubr.f32.gmra.mxu0 %v2529
      %v2701 = vpop.f32.mrf.mxu0
      %v2702 = vadd.f32 0.0, %v2701
      %v2703 = vpop.f32.mrf.mxu0
      %2704 = vmatprep.mubr.f32.mxu0 0.0
      %2705 = vmatmul.mubr.f32.gmra.mxu0 %v2532
      %v2706 = vpop.f32.mrf.mxu0
      %v2707 = vadd.f32 0.0, %v2706
      %v2708 = vpop.f32.mrf.mxu0
      %2709 = vmatprep.mubr.f32.mxu0 0.0
      %2710 = vmatmul.mubr.f32.gmra.mxu0 %v2535
      %v2711 = vpop.f32.mrf.mxu0
      %v2712 = vadd.f32 0.0, %v2711
      %v2713 = vpop.f32.mrf.mxu0
      %2714 = vmatprep.mubr.f32.mxu0 0.0
      %2715 = vmatmul.mubr.f32.gmra.mxu0 %v2538
      %v2716 = vpop.f32.mrf.mxu0
      %v2717 = vadd.f32 0.0, %v2716
      %v2718 = vpop.f32.mrf.mxu0
      %2719 = vmatprep.mubr.f32.mxu0 0.0
      %2720 = vmatmul.mubr.f32.gmra.mxu0 %v2541
      %v2721 = vpop.f32.mrf.mxu0
      %v2722 = vadd.f32 0.0, %v2721
      %v2723 = vpop.f32.mrf.mxu0
      %2724 = vmatprep.mubr.f32.mxu0 0.0
      %2725 = vmatmul.mubr.f32.gmra.mxu0 %v2544
      %v2726 = vpop.f32.mrf.mxu0
      %v2727 = vadd.f32 0.0, %v2726
      %v2728 = vpop.f32.mrf.mxu0
      %2729 = vmatprep.mubr.f32.mxu0 0.0
      %2730 = vmatmul.mubr.f32.gmra.mxu0 %v2547
      %v2731 = vpop.f32.mrf.mxu0
      %v2732 = vadd.f32 0.0, %v2731
      %v2733 = vpop.f32.mrf.mxu0
      %2734 = vmatprep.mubr.f32.mxu0 0.0
      %2735 = vmatmul.mubr.f32.gmra.mxu0 %v2550
      %v2736 = vpop.f32.mrf.mxu0
      %v2737 = vadd.f32 0.0, %v2736
      %v2738 = vpop.f32.mrf.mxu0
      %2739 = vmatprep.mubr.f32.mxu0 0.0
      %2740 = vmatmul.mubr.f32.gmra.mxu0 %v2553
      %v2741 = vpop.f32.mrf.mxu0
      %v2742 = vadd.f32 0.0, %v2741
      %v2743 = vpop.f32.mrf.mxu0
      %2744 = vmatprep.mubr.f32.mxu0 0.0
      %2745 = vmatmul.mubr.f32.gmra.mxu0 %v2556
      %v2746 = vpop.f32.mrf.mxu0
      %v2747 = vadd.f32 0.0, %v2746
      %v2748 = vpop.f32.mrf.mxu0
      %2749 = vmatprep.mubr.f32.mxu0 0.0
      %2750 = vmatmul.mubr.f32.gmra.mxu0 %v2559
      %v2751 = vpop.f32.mrf.mxu0
      %v2752 = vadd.f32 0.0, %v2751
      %v2753 = vpop.f32.mrf.mxu0
      %2754 = vmatprep.mubr.f32.mxu0 0.0
      %2755 = vmatmul.mubr.f32.gmra.mxu0 %v2562
      %v2756 = vpop.f32.mrf.mxu0
      %v2757 = vadd.f32 0.0, %v2756
      %v2758 = vpop.f32.mrf.mxu0
      %2759 = vmatprep.mubr.f32.mxu0 0.0
      %2760 = vmatmul.mubr.f32.gmra.mxu0 %v2565
      %v2761 = vpop.f32.mrf.mxu0
      %v2762 = vadd.f32 0.0, %v2761
      %v2763 = vpop.f32.mrf.mxu0
      %2764 = vmatprep.mubr.f32.mxu0 0.0
      %2765 = vmatmul.mubr.f32.gmra.mxu0 %v2568
      %v2766 = vpop.f32.mrf.mxu0
      %v2767 = vadd.f32 0.0, %v2766
      %v2768 = vpop.f32.mrf.mxu0
      %2769 = vmatprep.mubr.f32.mxu0 0.0
      %2770 = vmatmul.mubr.f32.gmra.mxu0 %v2571
      %v2771 = vpop.f32.mrf.mxu0
      %v2772 = vadd.f32 0.0, %v2771
      %v2773 = vpop.f32.mrf.mxu0
      %2774 = vmatprep.mubr.f32.mxu0 0.0
      %2775 = vmatmul.mubr.f32.gmra.mxu0 %v2574
      %v2776 = vpop.f32.mrf.mxu0
      %v2777 = vadd.f32 0.0, %v2776
      %v2778 = vpop.f32.mrf.mxu0
      %2779 = vmatprep.mubr.f32.mxu0 0.0
      %2780 = vmatmul.mubr.f32.gmra.mxu0 %v2577
      %v2781 = vpop.f32.mrf.mxu0
      %v2782 = vadd.f32 0.0, %v2781
      %v2783 = vpop.f32.mrf.mxu0
      %2784 = vmatprep.mubr.f32.mxu0 0.0
      %2785 = vmatmul.mubr.f32.gmra.mxu0 %v2580
      %v2786 = vpop.f32.mrf.mxu0
      %v2787 = vadd.f32 0.0, %v2786
      %v2788 = vpop.f32.mrf.mxu0
      %2789 = vmatprep.mubr.f32.mxu0 0.0
      %2790 = vmatmul.mubr.f32.gmra.mxu0 %v2583
      %v2791 = vpop.f32.mrf.mxu0
      %v2792 = vadd.f32 0.0, %v2791
      %v2793 = vpop.f32.mrf.mxu0
      %2794 = vmatprep.mubr.f32.mxu0 0.0
      %2795 = vmatmul.mubr.f32.gmra.mxu0 %v2586
      %v2796 = vpop.f32.mrf.mxu0
      %v2797 = vadd.f32 0.0, %v2796
      %v2798 = vpop.f32.mrf.mxu0
      %2799 = vmatprep.mubr.f32.mxu0 0.0
      %2800 = vmatmul.mubr.f32.gmra.mxu0 %v2589
      %v2801 = vpop.f32.mrf.mxu0
      %v2802 = vadd.f32 0.0, %v2801
      %v2803 = vpop.f32.mrf.mxu0
      %2804 = vmatprep.mubr.f32.mxu0 0.0
      %2805 = vmatmul.mubr.f32.gmra.mxu0 %v2592
      %v2806 = vpop.f32.mrf.mxu0
      %v2807 = vadd.f32 0.0, %v2806
      %v2808 = vpop.f32.mrf.mxu0
      %2809 = vmatprep.mubr.f32.mxu0 0.0
      %2810 = vmatmul.mubr.f32.gmra.mxu0 %v2595
      %v2811 = vpop.f32.mrf.mxu0
      %v2812 = vadd.f32 0.0, %v2811
      %v2813 = vpop.f32.mrf.mxu0
      %2814 = vmatprep.mubr.f32.mxu0 0.0
      %2815 = vmatmul.mubr.f32.gmra.mxu0 %v2598
      %v2816 = vpop.f32.mrf.mxu0
      %v2817 = vadd.f32 0.0, %v2816
      %v2818 = vpop.f32.mrf.mxu0
      %2819 = vmatprep.mubr.f32.mxu0 0.0
      %2820 = vmatmul.mubr.f32.gmra.mxu0 %v2601
      %v2821 = vpop.f32.mrf.mxu0
      %v2822 = vadd.f32 0.0, %v2821
      %v2823 = vpop.f32.mrf.mxu0
      %2824 = vmatprep.mubr.f32.mxu0 0.0
      %2825 = vmatmul.mubr.f32.gmra.mxu0 %v2604
      %v2826 = vpop.f32.mrf.mxu0
      %v2827 = vadd.f32 0.0, %v2826
      %v2828 = vpop.f32.mrf.mxu0
      %2829 = vmatprep.mubr.f32.mxu0 0.0
      %2830 = vmatmul.mubr.f32.gmra.mxu0 %v2607
      %v2831 = vpop.f32.mrf.mxu0
      %v2832 = vadd.f32 0.0, %v2831
      %v2833 = vpop.f32.mrf.mxu0
      %2834 = vmatprep.mubr.f32.mxu0 0.0
      %2835 = vmatmul.mubr.f32.gmra.mxu0 %v2610
      %v2836 = vpop.f32.mrf.mxu0
      %v2837 = vadd.f32 0.0, %v2836
      %v2838 = vpop.f32.mrf.mxu0
      %2839 = vdwg.mxu0
      %v2840 = vadd.f32 %v2449, %v2682
      %v2841 = vadd.f32 %v2450, %v2687
      %v2842 = vadd.f32 %v2451, %v2692
      %v2843 = vadd.f32 %v2452, %v2697
      %v2844 = vadd.f32 %v2453, %v2702
      %v2845 = vadd.f32 %v2454, %v2707
      %v2846 = vadd.f32 %v2455, %v2712
      %v2847 = vadd.f32 %v2456, %v2717
      %v2848 = vadd.f32 %v2457, %v2722
      %v2849 = vadd.f32 %v2458, %v2727
      %v2850 = vadd.f32 %v2459, %v2732
      %v2851 = vadd.f32 %v2460, %v2737
      %v2852 = vadd.f32 %v2461, %v2742
      %v2853 = vadd.f32 %v2462, %v2747
      %v2854 = vadd.f32 %v2463, %v2752
      %v2855 = vadd.f32 %v2464, %v2757
      %v2856 = vadd.f32 %v2465, %v2762
      %v2857 = vadd.f32 %v2466, %v2767
      %v2858 = vadd.f32 %v2467, %v2772
      %v2859 = vadd.f32 %v2468, %v2777
      %v2860 = vadd.f32 %v2469, %v2782
      %v2861 = vadd.f32 %v2470, %v2787
      %v2862 = vadd.f32 %v2471, %v2792
      %v2863 = vadd.f32 %v2472, %v2797
      %v2864 = vadd.f32 %v2473, %v2802
      %v2865 = vadd.f32 %v2474, %v2807
      %v2866 = vadd.f32 %v2475, %v2812
      %v2867 = vadd.f32 %v2476, %v2817
      %v2868 = vadd.f32 %v2477, %v2822
      %v2869 = vadd.f32 %v2478, %v2827
      %v2870 = vadd.f32 %v2479, %v2832
      %v2871 = vadd.f32 %v2480, %v2837
      %v2872 = vld [vmem:[%s2481 + $0x1] sm:$0xff]
      %v2873 = vld [vmem:[%s2481 + $0x9] sm:$0xff]
      %v2874 = vld [vmem:[%s2481 + $0x19] sm:$0xff]
      %v2875 = vld [vmem:[%s2481 + $0x21] sm:$0xff]
      %v2876 = vld [vmem:[%s2481 + $0x31] sm:$0xff]
      %v2877 = vld [vmem:[%s2481 + $0x39] sm:$0xff]
      %v2878 = vld [vmem:[%s2481 + $0x49] sm:$0xff]
      %v2879 = vld [vmem:[%s2481 + $0x51] sm:$0xff]
      %v2880 = vld [vmem:[%s2481 + $0x61] sm:$0xff]
      %v2881 = vld [vmem:[%s2481 + $0x69] sm:$0xff]
      %v2882 = vld [vmem:[%s2481 + $0x79] sm:$0xff]
      %v2883 = vld [vmem:[%s2481 + $0x81] sm:$0xff]
      %v2884 = vld [vmem:[%s2481 + $0x91] sm:$0xff]
      %v2885 = vld [vmem:[%s2481 + $0x99] sm:$0xff]
      %v2886 = vld [vmem:[%s2481 + $0xa9] sm:$0xff]
      %v2887 = vld [vmem:[%s2481 + $0xb1] sm:$0xff]
      %v2888 = vld [vmem:[%s2481 + $0xc1] sm:$0xff]
      %v2889 = vld [vmem:[%s2481 + $0xc9] sm:$0xff]
      %v2890 = vld [vmem:[%s2481 + $0xd9] sm:$0xff]
      %v2891 = vld [vmem:[%s2481 + $0xe1] sm:$0xff]
      %v2892 = vld [vmem:[%s2481 + $0xf1] sm:$0xff]
      %v2893 = vld [vmem:[%s2481 + $0xf9] sm:$0xff]
      %v2894 = vld [vmem:[%s2481 + $0x109] sm:$0xff]
      %v2895 = vld [vmem:[%s2481 + $0x111] sm:$0xff]
      %v2896 = vld [vmem:[%s2481 + $0x121] sm:$0xff]
      %v2897 = vld [vmem:[%s2481 + $0x129] sm:$0xff]
      %v2898 = vld [vmem:[%s2481 + $0x139] sm:$0xff]
      %v2899 = vld [vmem:[%s2481 + $0x141] sm:$0xff]
      %v2900 = vld [vmem:[%s2481 + $0x151] sm:$0xff]
      %v2901 = vld [vmem:[%s2481 + $0x159] sm:$0xff]
      %v2902 = vld [vmem:[%s2481 + $0x169] sm:$0xff]
      %v2903 = vld [vmem:[%s2481 + $0x171] sm:$0xff]
      %s2904 = scalar_lea.vmem %s1, 28
      %v2905 = vld [vmem:[%s2904] sm:$0xf]
      %v2907 = vsel %vm270, %v2872, 0
      %v2910 = vsel %vm270, %v2873, 0
      %v2913 = vsel %vm270, %v2874, 0
      %v2916 = vsel %vm270, %v2875, 0
      %v2919 = vsel %vm270, %v2876, 0
      %v2922 = vsel %vm270, %v2877, 0
      %v2925 = vsel %vm270, %v2878, 0
      %v2928 = vsel %vm270, %v2879, 0
      %v2931 = vsel %vm270, %v2880, 0
      %v2934 = vsel %vm270, %v2881, 0
      %v2937 = vsel %vm270, %v2882, 0
      %v2940 = vsel %vm270, %v2883, 0
      %v2943 = vsel %vm270, %v2884, 0
      %v2946 = vsel %vm270, %v2885, 0
      %v2949 = vsel %vm270, %v2886, 0
      %v2952 = vsel %vm270, %v2887, 0
      %v2955 = vsel %vm270, %v2888, 0
      %v2958 = vsel %vm270, %v2889, 0
      %v2961 = vsel %vm270, %v2890, 0
      %v2964 = vsel %vm270, %v2891, 0
      %v2967 = vsel %vm270, %v2892, 0
      %v2970 = vsel %vm270, %v2893, 0
      %v2973 = vsel %vm270, %v2894, 0
      %v2976 = vsel %vm270, %v2895, 0
      %v2979 = vsel %vm270, %v2896, 0
      %v2982 = vsel %vm270, %v2897, 0
      %v2985 = vsel %vm270, %v2898, 0
      %v2988 = vsel %vm270, %v2899, 0
      %v2991 = vsel %vm270, %v2900, 0
      %v2994 = vsel %vm270, %v2901, 0
      %v2997 = vsel %vm270, %v2902, 0
      %v3000 = vsel %vm270, %v2903, 0
      %v3003 = vsel %vm367, %v2905, 0
      %3005 = vmatprep.subr.mxu0 0.0
      %3006 = vmatpush1.msra.mxu0 0.0
      %3007 = vmatprep.subr.mxu0 0.0
      %3008 = vmatpush1.msra.mxu0 0.0
      %3009 = vmatprep.subr.mxu0 0.0
      %3010 = vmatpush1.msra.mxu0 0.0
      %3011 = vmatprep.subr.mxu0 0.0
      %3012 = vmatpush1.msra.mxu0 0.0
      %3013 = vmatprep.subr.mxu0 0.0
      %3014 = vmatpush1.msra.mxu0 0.0
      %3015 = vmatprep.subr.mxu0 0.0
      %3016 = vmatpush1.msra.mxu0 0.0
      %3017 = vmatprep.subr.mxu0 0.0
      %3018 = vmatpush1.msra.mxu0 0.0
      %3019 = vmatprep.subr.mxu0 0.0
      %3020 = vmatpush1.msra.mxu0 0.0
      %3021 = vmatprep.subr.mxu0 0.0
      %3022 = vmatpush1.msra.mxu0 0.0
      %3023 = vmatprep.subr.mxu0 0.0
      %3024 = vmatpush1.msra.mxu0 0.0
      %3025 = vmatprep.subr.mxu0 0.0
      %3026 = vmatpush1.msra.mxu0 0.0
      %3027 = vmatprep.subr.mxu0 0.0
      %3028 = vmatpush1.msra.mxu0 0.0
      %3029 = vmatprep.subr.mxu0 0.0
      %3030 = vmatpush1.msra.mxu0 0.0
      %3031 = vmatprep.subr.mxu0 0.0
      %3032 = vmatpush1.msra.mxu0 0.0
      %3033 = vmatprep.subr.mxu0 0.0
      %3034 = vmatpush1.msra.mxu0 0.0
      %3035 = vmatprep.subr.mxu0 0.0
      %3036 = vmatpush1.msra.mxu0 %v3003
      %3037 = vmatprep.subr.mxu0 0.0
      %3038 = vmatpush2.msra.mxu0 0.0
      %3039 = vmatprep.subr.mxu0 0.0
      %3040 = vmatpush2.msra.mxu0 0.0
      %3041 = vmatprep.subr.mxu0 0.0
      %3042 = vmatpush2.msra.mxu0 0.0
      %3043 = vmatprep.subr.mxu0 0.0
      %3044 = vmatpush2.msra.mxu0 0.0
      %3045 = vmatprep.subr.mxu0 0.0
      %3046 = vmatpush2.msra.mxu0 0.0
      %3047 = vmatprep.subr.mxu0 0.0
      %3048 = vmatpush2.msra.mxu0 0.0
      %3049 = vmatprep.subr.mxu0 0.0
      %3050 = vmatpush2.msra.mxu0 0.0
      %3051 = vmatprep.subr.mxu0 0.0
      %3052 = vmatpush2.msra.mxu0 0.0
      %3053 = vmatprep.subr.mxu0 0.0
      %3054 = vmatpush2.msra.mxu0 0.0
      %3055 = vmatprep.subr.mxu0 0.0
      %3056 = vmatpush2.msra.mxu0 0.0
      %3057 = vmatprep.subr.mxu0 0.0
      %3058 = vmatpush2.msra.mxu0 0.0
      %3059 = vmatprep.subr.mxu0 0.0
      %3060 = vmatpush2.msra.mxu0 0.0
      %3061 = vmatprep.subr.mxu0 0.0
      %3062 = vmatpush2.msra.mxu0 0.0
      %3063 = vmatprep.subr.mxu0 0.0
      %3064 = vmatpush2.msra.mxu0 0.0
      %3065 = vmatprep.subr.mxu0 0.0
      %3066 = vmatpush2.msra.mxu0 0.0
      %3067 = vmatprep.subr.mxu0 0.0
      %3068 = vmatpush2.msra.mxu0 0.0
      %3069 = vmatprep.mubr.f32.mxu0 0.0
      %3070 = vmatmul.mubr.f32.gmra.mxu0 %v2907
      %v3071 = vpop.f32.mrf.mxu0
      %v3072 = vadd.f32 0.0, %v3071
      %v3073 = vpop.f32.mrf.mxu0
      %3074 = vmatprep.mubr.f32.mxu0 0.0
      %3075 = vmatmul.mubr.f32.gmra.mxu0 %v2910
      %v3076 = vpop.f32.mrf.mxu0
      %v3077 = vadd.f32 0.0, %v3076
      %v3078 = vpop.f32.mrf.mxu0
      %3079 = vmatprep.mubr.f32.mxu0 0.0
      %3080 = vmatmul.mubr.f32.gmra.mxu0 %v2913
      %v3081 = vpop.f32.mrf.mxu0
      %v3082 = vadd.f32 0.0, %v3081
      %v3083 = vpop.f32.mrf.mxu0
      %3084 = vmatprep.mubr.f32.mxu0 0.0
      %3085 = vmatmul.mubr.f32.gmra.mxu0 %v2916
      %v3086 = vpop.f32.mrf.mxu0
      %v3087 = vadd.f32 0.0, %v3086
      %v3088 = vpop.f32.mrf.mxu0
      %3089 = vmatprep.mubr.f32.mxu0 0.0
      %3090 = vmatmul.mubr.f32.gmra.mxu0 %v2919
      %v3091 = vpop.f32.mrf.mxu0
      %v3092 = vadd.f32 0.0, %v3091
      %v3093 = vpop.f32.mrf.mxu0
      %3094 = vmatprep.mubr.f32.mxu0 0.0
      %3095 = vmatmul.mubr.f32.gmra.mxu0 %v2922
      %v3096 = vpop.f32.mrf.mxu0
      %v3097 = vadd.f32 0.0, %v3096
      %v3098 = vpop.f32.mrf.mxu0
      %3099 = vmatprep.mubr.f32.mxu0 0.0
      %3100 = vmatmul.mubr.f32.gmra.mxu0 %v2925
      %v3101 = vpop.f32.mrf.mxu0
      %v3102 = vadd.f32 0.0, %v3101
      %v3103 = vpop.f32.mrf.mxu0
      %3104 = vmatprep.mubr.f32.mxu0 0.0
      %3105 = vmatmul.mubr.f32.gmra.mxu0 %v2928
      %v3106 = vpop.f32.mrf.mxu0
      %v3107 = vadd.f32 0.0, %v3106
      %v3108 = vpop.f32.mrf.mxu0
      %3109 = vmatprep.mubr.f32.mxu0 0.0
      %3110 = vmatmul.mubr.f32.gmra.mxu0 %v2931
      %v3111 = vpop.f32.mrf.mxu0
      %v3112 = vadd.f32 0.0, %v3111
      %v3113 = vpop.f32.mrf.mxu0
      %3114 = vmatprep.mubr.f32.mxu0 0.0
      %3115 = vmatmul.mubr.f32.gmra.mxu0 %v2934
      %v3116 = vpop.f32.mrf.mxu0
      %v3117 = vadd.f32 0.0, %v3116
      %v3118 = vpop.f32.mrf.mxu0
      %3119 = vmatprep.mubr.f32.mxu0 0.0
      %3120 = vmatmul.mubr.f32.gmra.mxu0 %v2937
      %v3121 = vpop.f32.mrf.mxu0
      %v3122 = vadd.f32 0.0, %v3121
      %v3123 = vpop.f32.mrf.mxu0
      %3124 = vmatprep.mubr.f32.mxu0 0.0
      %3125 = vmatmul.mubr.f32.gmra.mxu0 %v2940
      %v3126 = vpop.f32.mrf.mxu0
      %v3127 = vadd.f32 0.0, %v3126
      %v3128 = vpop.f32.mrf.mxu0
      %3129 = vmatprep.mubr.f32.mxu0 0.0
      %3130 = vmatmul.mubr.f32.gmra.mxu0 %v2943
      %v3131 = vpop.f32.mrf.mxu0
      %v3132 = vadd.f32 0.0, %v3131
      %v3133 = vpop.f32.mrf.mxu0
      %3134 = vmatprep.mubr.f32.mxu0 0.0
      %3135 = vmatmul.mubr.f32.gmra.mxu0 %v2946
      %v3136 = vpop.f32.mrf.mxu0
      %v3137 = vadd.f32 0.0, %v3136
      %v3138 = vpop.f32.mrf.mxu0
      %3139 = vmatprep.mubr.f32.mxu0 0.0
      %3140 = vmatmul.mubr.f32.gmra.mxu0 %v2949
      %v3141 = vpop.f32.mrf.mxu0
      %v3142 = vadd.f32 0.0, %v3141
      %v3143 = vpop.f32.mrf.mxu0
      %3144 = vmatprep.mubr.f32.mxu0 0.0
      %3145 = vmatmul.mubr.f32.gmra.mxu0 %v2952
      %v3146 = vpop.f32.mrf.mxu0
      %v3147 = vadd.f32 0.0, %v3146
      %v3148 = vpop.f32.mrf.mxu0
      %3149 = vmatprep.mubr.f32.mxu0 0.0
      %3150 = vmatmul.mubr.f32.gmra.mxu0 %v2955
      %v3151 = vpop.f32.mrf.mxu0
      %v3152 = vadd.f32 0.0, %v3151
      %v3153 = vpop.f32.mrf.mxu0
      %3154 = vmatprep.mubr.f32.mxu0 0.0
      %3155 = vmatmul.mubr.f32.gmra.mxu0 %v2958
      %v3156 = vpop.f32.mrf.mxu0
      %v3157 = vadd.f32 0.0, %v3156
      %v3158 = vpop.f32.mrf.mxu0
      %3159 = vmatprep.mubr.f32.mxu0 0.0
      %3160 = vmatmul.mubr.f32.gmra.mxu0 %v2961
      %v3161 = vpop.f32.mrf.mxu0
      %v3162 = vadd.f32 0.0, %v3161
      %v3163 = vpop.f32.mrf.mxu0
      %3164 = vmatprep.mubr.f32.mxu0 0.0
      %3165 = vmatmul.mubr.f32.gmra.mxu0 %v2964
      %v3166 = vpop.f32.mrf.mxu0
      %v3167 = vadd.f32 0.0, %v3166
      %v3168 = vpop.f32.mrf.mxu0
      %3169 = vmatprep.mubr.f32.mxu0 0.0
      %3170 = vmatmul.mubr.f32.gmra.mxu0 %v2967
      %v3171 = vpop.f32.mrf.mxu0
      %v3172 = vadd.f32 0.0, %v3171
      %v3173 = vpop.f32.mrf.mxu0
      %3174 = vmatprep.mubr.f32.mxu0 0.0
      %3175 = vmatmul.mubr.f32.gmra.mxu0 %v2970
      %v3176 = vpop.f32.mrf.mxu0
      %v3177 = vadd.f32 0.0, %v3176
      %v3178 = vpop.f32.mrf.mxu0
      %3179 = vmatprep.mubr.f32.mxu0 0.0
      %3180 = vmatmul.mubr.f32.gmra.mxu0 %v2973
      %v3181 = vpop.f32.mrf.mxu0
      %v3182 = vadd.f32 0.0, %v3181
      %v3183 = vpop.f32.mrf.mxu0
      %3184 = vmatprep.mubr.f32.mxu0 0.0
      %3185 = vmatmul.mubr.f32.gmra.mxu0 %v2976
      %v3186 = vpop.f32.mrf.mxu0
      %v3187 = vadd.f32 0.0, %v3186
      %v3188 = vpop.f32.mrf.mxu0
      %3189 = vmatprep.mubr.f32.mxu0 0.0
      %3190 = vmatmul.mubr.f32.gmra.mxu0 %v2979
      %v3191 = vpop.f32.mrf.mxu0
      %v3192 = vadd.f32 0.0, %v3191
      %v3193 = vpop.f32.mrf.mxu0
      %3194 = vmatprep.mubr.f32.mxu0 0.0
      %3195 = vmatmul.mubr.f32.gmra.mxu0 %v2982
      %v3196 = vpop.f32.mrf.mxu0
      %v3197 = vadd.f32 0.0, %v3196
      %v3198 = vpop.f32.mrf.mxu0
      %3199 = vmatprep.mubr.f32.mxu0 0.0
      %3200 = vmatmul.mubr.f32.gmra.mxu0 %v2985
      %v3201 = vpop.f32.mrf.mxu0
      %v3202 = vadd.f32 0.0, %v3201
      %v3203 = vpop.f32.mrf.mxu0
      %3204 = vmatprep.mubr.f32.mxu0 0.0
      %3205 = vmatmul.mubr.f32.gmra.mxu0 %v2988
      %v3206 = vpop.f32.mrf.mxu0
      %v3207 = vadd.f32 0.0, %v3206
      %v3208 = vpop.f32.mrf.mxu0
      %3209 = vmatprep.mubr.f32.mxu0 0.0
      %3210 = vmatmul.mubr.f32.gmra.mxu0 %v2991
      %v3211 = vpop.f32.mrf.mxu0
      %v3212 = vadd.f32 0.0, %v3211
      %v3213 = vpop.f32.mrf.mxu0
      %3214 = vmatprep.mubr.f32.mxu0 0.0
      %3215 = vmatmul.mubr.f32.gmra.mxu0 %v2994
      %v3216 = vpop.f32.mrf.mxu0
      %v3217 = vadd.f32 0.0, %v3216
      %v3218 = vpop.f32.mrf.mxu0
      %3219 = vmatprep.mubr.f32.mxu0 0.0
      %3220 = vmatmul.mubr.f32.gmra.mxu0 %v2997
      %v3221 = vpop.f32.mrf.mxu0
      %v3222 = vadd.f32 0.0, %v3221
      %v3223 = vpop.f32.mrf.mxu0
      %3224 = vmatprep.mubr.f32.mxu0 0.0
      %3225 = vmatmul.mubr.f32.gmra.mxu0 %v3000
      %v3226 = vpop.f32.mrf.mxu0
      %v3227 = vadd.f32 0.0, %v3226
      %v3228 = vpop.f32.mrf.mxu0
      %3229 = vdwg.mxu0
      %v3230 = vadd.f32 %v2840, %v3072
      %v3231 = vadd.f32 %v2841, %v3077
      %v3232 = vadd.f32 %v2842, %v3082
      %v3233 = vadd.f32 %v2843, %v3087
      %v3234 = vadd.f32 %v2844, %v3092
      %v3235 = vadd.f32 %v2845, %v3097
      %v3236 = vadd.f32 %v2846, %v3102
      %v3237 = vadd.f32 %v2847, %v3107
      %v3238 = vadd.f32 %v2848, %v3112
      %v3239 = vadd.f32 %v2849, %v3117
      %v3240 = vadd.f32 %v2850, %v3122
      %v3241 = vadd.f32 %v2851, %v3127
      %v3242 = vadd.f32 %v2852, %v3132
      %v3243 = vadd.f32 %v2853, %v3137
      %v3244 = vadd.f32 %v2854, %v3142
      %v3245 = vadd.f32 %v2855, %v3147
      %v3246 = vadd.f32 %v2856, %v3152
      %v3247 = vadd.f32 %v2857, %v3157
      %v3248 = vadd.f32 %v2858, %v3162
      %v3249 = vadd.f32 %v2859, %v3167
      %v3250 = vadd.f32 %v2860, %v3172
      %v3251 = vadd.f32 %v2861, %v3177
      %v3252 = vadd.f32 %v2862, %v3182
      %v3253 = vadd.f32 %v2863, %v3187
      %v3254 = vadd.f32 %v2864, %v3192
      %v3255 = vadd.f32 %v2865, %v3197
      %v3256 = vadd.f32 %v2866, %v3202
      %v3257 = vadd.f32 %v2867, %v3207
      %v3258 = vadd.f32 %v2868, %v3212
      %v3259 = vadd.f32 %v2869, %v3217
      %v3260 = vadd.f32 %v2870, %v3222
      %v3261 = vadd.f32 %v2871, %v3227
      %v3262 = vld [vmem:[%s2481 + $0x2] sm:$0xff]
      %v3263 = vld [vmem:[%s2481 + $0xa] sm:$0xff]
      %v3264 = vld [vmem:[%s2481 + $0x1a] sm:$0xff]
      %v3265 = vld [vmem:[%s2481 + $0x22] sm:$0xff]
      %v3266 = vld [vmem:[%s2481 + $0x32] sm:$0xff]
      %v3267 = vld [vmem:[%s2481 + $0x3a] sm:$0xff]
      %v3268 = vld [vmem:[%s2481 + $0x4a] sm:$0xff]
      %v3269 = vld [vmem:[%s2481 + $0x52] sm:$0xff]
      %v3270 = vld [vmem:[%s2481 + $0x62] sm:$0xff]
      %v3271 = vld [vmem:[%s2481 + $0x6a] sm:$0xff]
      %v3272 = vld [vmem:[%s2481 + $0x7a] sm:$0xff]
      %v3273 = vld [vmem:[%s2481 + $0x82] sm:$0xff]
      %v3274 = vld [vmem:[%s2481 + $0x92] sm:$0xff]
      %v3275 = vld [vmem:[%s2481 + $0x9a] sm:$0xff]
      %v3276 = vld [vmem:[%s2481 + $0xaa] sm:$0xff]
      %v3277 = vld [vmem:[%s2481 + $0xb2] sm:$0xff]
      %v3278 = vld [vmem:[%s2481 + $0xc2] sm:$0xff]
      %v3279 = vld [vmem:[%s2481 + $0xca] sm:$0xff]
      %v3280 = vld [vmem:[%s2481 + $0xda] sm:$0xff]
      %v3281 = vld [vmem:[%s2481 + $0xe2] sm:$0xff]
      %v3282 = vld [vmem:[%s2481 + $0xf2] sm:$0xff]
      %v3283 = vld [vmem:[%s2481 + $0xfa] sm:$0xff]
      %v3284 = vld [vmem:[%s2481 + $0x10a] sm:$0xff]
      %v3285 = vld [vmem:[%s2481 + $0x112] sm:$0xff]
      %v3286 = vld [vmem:[%s2481 + $0x122] sm:$0xff]
      %v3287 = vld [vmem:[%s2481 + $0x12a] sm:$0xff]
      %v3288 = vld [vmem:[%s2481 + $0x13a] sm:$0xff]
      %v3289 = vld [vmem:[%s2481 + $0x142] sm:$0xff]
      %v3290 = vld [vmem:[%s2481 + $0x152] sm:$0xff]
      %v3291 = vld [vmem:[%s2481 + $0x15a] sm:$0xff]
      %v3292 = vld [vmem:[%s2481 + $0x16a] sm:$0xff]
      %v3293 = vld [vmem:[%s2481 + $0x172] sm:$0xff]
      %s3294 = scalar_lea.vmem %s1, 32
      %v3295 = vld [vmem:[%s3294] sm:$0xf]
      %v3297 = vsel %vm270, %v3262, 0
      %v3300 = vsel %vm270, %v3263, 0
      %v3303 = vsel %vm270, %v3264, 0
      %v3306 = vsel %vm270, %v3265, 0
      %v3309 = vsel %vm270, %v3266, 0
      %v3312 = vsel %vm270, %v3267, 0
      %v3315 = vsel %vm270, %v3268, 0
      %v3318 = vsel %vm270, %v3269, 0
      %v3321 = vsel %vm270, %v3270, 0
      %v3324 = vsel %vm270, %v3271, 0
      %v3327 = vsel %vm270, %v3272, 0
      %v3330 = vsel %vm270, %v3273, 0
      %v3333 = vsel %vm270, %v3274, 0
      %v3336 = vsel %vm270, %v3275, 0
      %v3339 = vsel %vm270, %v3276, 0
      %v3342 = vsel %vm270, %v3277, 0
      %v3345 = vsel %vm270, %v3278, 0
      %v3348 = vsel %vm270, %v3279, 0
      %v3351 = vsel %vm270, %v3280, 0
      %v3354 = vsel %vm270, %v3281, 0
      %v3357 = vsel %vm270, %v3282, 0
      %v3360 = vsel %vm270, %v3283, 0
      %v3363 = vsel %vm270, %v3284, 0
      %v3366 = vsel %vm270, %v3285, 0
      %v3369 = vsel %vm270, %v3286, 0
      %v3372 = vsel %vm270, %v3287, 0
      %v3375 = vsel %vm270, %v3288, 0
      %v3378 = vsel %vm270, %v3289, 0
      %v3381 = vsel %vm270, %v3290, 0
      %v3384 = vsel %vm270, %v3291, 0
      %v3387 = vsel %vm270, %v3292, 0
      %v3390 = vsel %vm270, %v3293, 0
      %v3393 = vsel %vm367, %v3295, 0
      %3395 = vmatprep.subr.mxu0 0.0
      %3396 = vmatpush1.msra.mxu0 0.0
      %3397 = vmatprep.subr.mxu0 0.0
      %3398 = vmatpush1.msra.mxu0 0.0
      %3399 = vmatprep.subr.mxu0 0.0
      %3400 = vmatpush1.msra.mxu0 0.0
      %3401 = vmatprep.subr.mxu0 0.0
      %3402 = vmatpush1.msra.mxu0 0.0
      %3403 = vmatprep.subr.mxu0 0.0
      %3404 = vmatpush1.msra.mxu0 0.0
      %3405 = vmatprep.subr.mxu0 0.0
      %3406 = vmatpush1.msra.mxu0 0.0
      %3407 = vmatprep.subr.mxu0 0.0
      %3408 = vmatpush1.msra.mxu0 0.0
      %3409 = vmatprep.subr.mxu0 0.0
      %3410 = vmatpush1.msra.mxu0 0.0
      %3411 = vmatprep.subr.mxu0 0.0
      %3412 = vmatpush1.msra.mxu0 0.0
      %3413 = vmatprep.subr.mxu0 0.0
      %3414 = vmatpush1.msra.mxu0 0.0
      %3415 = vmatprep.subr.mxu0 0.0
      %3416 = vmatpush1.msra.mxu0 0.0
      %3417 = vmatprep.subr.mxu0 0.0
      %3418 = vmatpush1.msra.mxu0 0.0
      %3419 = vmatprep.subr.mxu0 0.0
      %3420 = vmatpush1.msra.mxu0 0.0
      %3421 = vmatprep.subr.mxu0 0.0
      %3422 = vmatpush1.msra.mxu0 0.0
      %3423 = vmatprep.subr.mxu0 0.0
      %3424 = vmatpush1.msra.mxu0 0.0
      %3425 = vmatprep.subr.mxu0 0.0
      %3426 = vmatpush1.msra.mxu0 %v3393
      %3427 = vmatprep.subr.mxu0 0.0
      %3428 = vmatpush2.msra.mxu0 0.0
      %3429 = vmatprep.subr.mxu0 0.0
      %3430 = vmatpush2.msra.mxu0 0.0
      %3431 = vmatprep.subr.mxu0 0.0
      %3432 = vmatpush2.msra.mxu0 0.0
      %3433 = vmatprep.subr.mxu0 0.0
      %3434 = vmatpush2.msra.mxu0 0.0
      %3435 = vmatprep.subr.mxu0 0.0
      %3436 = vmatpush2.msra.mxu0 0.0
      %3437 = vmatprep.subr.mxu0 0.0
      %3438 = vmatpush2.msra.mxu0 0.0
      %3439 = vmatprep.subr.mxu0 0.0
      %3440 = vmatpush2.msra.mxu0 0.0
      %3441 = vmatprep.subr.mxu0 0.0
      %3442 = vmatpush2.msra.mxu0 0.0
      %3443 = vmatprep.subr.mxu0 0.0
      %3444 = vmatpush2.msra.mxu0 0.0
      %3445 = vmatprep.subr.mxu0 0.0
      %3446 = vmatpush2.msra.mxu0 0.0
      %3447 = vmatprep.subr.mxu0 0.0
      %3448 = vmatpush2.msra.mxu0 0.0
      %3449 = vmatprep.subr.mxu0 0.0
      %3450 = vmatpush2.msra.mxu0 0.0
      %3451 = vmatprep.subr.mxu0 0.0
      %3452 = vmatpush2.msra.mxu0 0.0
      %3453 = vmatprep.subr.mxu0 0.0
      %3454 = vmatpush2.msra.mxu0 0.0
      %3455 = vmatprep.subr.mxu0 0.0
      %3456 = vmatpush2.msra.mxu0 0.0
      %3457 = vmatprep.subr.mxu0 0.0
      %3458 = vmatpush2.msra.mxu0 0.0
      %3459 = vmatprep.mubr.f32.mxu0 0.0
      %3460 = vmatmul.mubr.f32.gmra.mxu0 %v3297
      %v3461 = vpop.f32.mrf.mxu0
      %v3462 = vadd.f32 0.0, %v3461
      %v3463 = vpop.f32.mrf.mxu0
      %3464 = vmatprep.mubr.f32.mxu0 0.0
      %3465 = vmatmul.mubr.f32.gmra.mxu0 %v3300
      %v3466 = vpop.f32.mrf.mxu0
      %v3467 = vadd.f32 0.0, %v3466
      %v3468 = vpop.f32.mrf.mxu0
      %3469 = vmatprep.mubr.f32.mxu0 0.0
      %3470 = vmatmul.mubr.f32.gmra.mxu0 %v3303
      %v3471 = vpop.f32.mrf.mxu0
      %v3472 = vadd.f32 0.0, %v3471
      %v3473 = vpop.f32.mrf.mxu0
      %3474 = vmatprep.mubr.f32.mxu0 0.0
      %3475 = vmatmul.mubr.f32.gmra.mxu0 %v3306
      %v3476 = vpop.f32.mrf.mxu0
      %v3477 = vadd.f32 0.0, %v3476
      %v3478 = vpop.f32.mrf.mxu0
      %3479 = vmatprep.mubr.f32.mxu0 0.0
      %3480 = vmatmul.mubr.f32.gmra.mxu0 %v3309
      %v3481 = vpop.f32.mrf.mxu0
      %v3482 = vadd.f32 0.0, %v3481
      %v3483 = vpop.f32.mrf.mxu0
      %3484 = vmatprep.mubr.f32.mxu0 0.0
      %3485 = vmatmul.mubr.f32.gmra.mxu0 %v3312
      %v3486 = vpop.f32.mrf.mxu0
      %v3487 = vadd.f32 0.0, %v3486
      %v3488 = vpop.f32.mrf.mxu0
      %3489 = vmatprep.mubr.f32.mxu0 0.0
      %3490 = vmatmul.mubr.f32.gmra.mxu0 %v3315
      %v3491 = vpop.f32.mrf.mxu0
      %v3492 = vadd.f32 0.0, %v3491
      %v3493 = vpop.f32.mrf.mxu0
      %3494 = vmatprep.mubr.f32.mxu0 0.0
      %3495 = vmatmul.mubr.f32.gmra.mxu0 %v3318
      %v3496 = vpop.f32.mrf.mxu0
      %v3497 = vadd.f32 0.0, %v3496
      %v3498 = vpop.f32.mrf.mxu0
      %3499 = vmatprep.mubr.f32.mxu0 0.0
      %3500 = vmatmul.mubr.f32.gmra.mxu0 %v3321
      %v3501 = vpop.f32.mrf.mxu0
      %v3502 = vadd.f32 0.0, %v3501
      %v3503 = vpop.f32.mrf.mxu0
      %3504 = vmatprep.mubr.f32.mxu0 0.0
      %3505 = vmatmul.mubr.f32.gmra.mxu0 %v3324
      %v3506 = vpop.f32.mrf.mxu0
      %v3507 = vadd.f32 0.0, %v3506
      %v3508 = vpop.f32.mrf.mxu0
      %3509 = vmatprep.mubr.f32.mxu0 0.0
      %3510 = vmatmul.mubr.f32.gmra.mxu0 %v3327
      %v3511 = vpop.f32.mrf.mxu0
      %v3512 = vadd.f32 0.0, %v3511
      %v3513 = vpop.f32.mrf.mxu0
      %3514 = vmatprep.mubr.f32.mxu0 0.0
      %3515 = vmatmul.mubr.f32.gmra.mxu0 %v3330
      %v3516 = vpop.f32.mrf.mxu0
      %v3517 = vadd.f32 0.0, %v3516
      %v3518 = vpop.f32.mrf.mxu0
      %3519 = vmatprep.mubr.f32.mxu0 0.0
      %3520 = vmatmul.mubr.f32.gmra.mxu0 %v3333
      %v3521 = vpop.f32.mrf.mxu0
      %v3522 = vadd.f32 0.0, %v3521
      %v3523 = vpop.f32.mrf.mxu0
      %3524 = vmatprep.mubr.f32.mxu0 0.0
      %3525 = vmatmul.mubr.f32.gmra.mxu0 %v3336
      %v3526 = vpop.f32.mrf.mxu0
      %v3527 = vadd.f32 0.0, %v3526
      %v3528 = vpop.f32.mrf.mxu0
      %3529 = vmatprep.mubr.f32.mxu0 0.0
      %3530 = vmatmul.mubr.f32.gmra.mxu0 %v3339
      %v3531 = vpop.f32.mrf.mxu0
      %v3532 = vadd.f32 0.0, %v3531
      %v3533 = vpop.f32.mrf.mxu0
      %3534 = vmatprep.mubr.f32.mxu0 0.0
      %3535 = vmatmul.mubr.f32.gmra.mxu0 %v3342
      %v3536 = vpop.f32.mrf.mxu0
      %v3537 = vadd.f32 0.0, %v3536
      %v3538 = vpop.f32.mrf.mxu0
      %3539 = vmatprep.mubr.f32.mxu0 0.0
      %3540 = vmatmul.mubr.f32.gmra.mxu0 %v3345
      %v3541 = vpop.f32.mrf.mxu0
      %v3542 = vadd.f32 0.0, %v3541
      %v3543 = vpop.f32.mrf.mxu0
      %3544 = vmatprep.mubr.f32.mxu0 0.0
      %3545 = vmatmul.mubr.f32.gmra.mxu0 %v3348
      %v3546 = vpop.f32.mrf.mxu0
      %v3547 = vadd.f32 0.0, %v3546
      %v3548 = vpop.f32.mrf.mxu0
      %3549 = vmatprep.mubr.f32.mxu0 0.0
      %3550 = vmatmul.mubr.f32.gmra.mxu0 %v3351
      %v3551 = vpop.f32.mrf.mxu0
      %v3552 = vadd.f32 0.0, %v3551
      %v3553 = vpop.f32.mrf.mxu0
      %3554 = vmatprep.mubr.f32.mxu0 0.0
      %3555 = vmatmul.mubr.f32.gmra.mxu0 %v3354
      %v3556 = vpop.f32.mrf.mxu0
      %v3557 = vadd.f32 0.0, %v3556
      %v3558 = vpop.f32.mrf.mxu0
      %3559 = vmatprep.mubr.f32.mxu0 0.0
      %3560 = vmatmul.mubr.f32.gmra.mxu0 %v3357
      %v3561 = vpop.f32.mrf.mxu0
      %v3562 = vadd.f32 0.0, %v3561
      %v3563 = vpop.f32.mrf.mxu0
      %3564 = vmatprep.mubr.f32.mxu0 0.0
      %3565 = vmatmul.mubr.f32.gmra.mxu0 %v3360
      %v3566 = vpop.f32.mrf.mxu0
      %v3567 = vadd.f32 0.0, %v3566
      %v3568 = vpop.f32.mrf.mxu0
      %3569 = vmatprep.mubr.f32.mxu0 0.0
      %3570 = vmatmul.mubr.f32.gmra.mxu0 %v3363
      %v3571 = vpop.f32.mrf.mxu0
      %v3572 = vadd.f32 0.0, %v3571
      %v3573 = vpop.f32.mrf.mxu0
      %3574 = vmatprep.mubr.f32.mxu0 0.0
      %3575 = vmatmul.mubr.f32.gmra.mxu0 %v3366
      %v3576 = vpop.f32.mrf.mxu0
      %v3577 = vadd.f32 0.0, %v3576
      %v3578 = vpop.f32.mrf.mxu0
      %3579 = vmatprep.mubr.f32.mxu0 0.0
      %3580 = vmatmul.mubr.f32.gmra.mxu0 %v3369
      %v3581 = vpop.f32.mrf.mxu0
      %v3582 = vadd.f32 0.0, %v3581
      %v3583 = vpop.f32.mrf.mxu0
      %3584 = vmatprep.mubr.f32.mxu0 0.0
      %3585 = vmatmul.mubr.f32.gmra.mxu0 %v3372
      %v3586 = vpop.f32.mrf.mxu0
      %v3587 = vadd.f32 0.0, %v3586
      %v3588 = vpop.f32.mrf.mxu0
      %3589 = vmatprep.mubr.f32.mxu0 0.0
      %3590 = vmatmul.mubr.f32.gmra.mxu0 %v3375
      %v3591 = vpop.f32.mrf.mxu0
      %v3592 = vadd.f32 0.0, %v3591
      %v3593 = vpop.f32.mrf.mxu0
      %3594 = vmatprep.mubr.f32.mxu0 0.0
      %3595 = vmatmul.mubr.f32.gmra.mxu0 %v3378
      %v3596 = vpop.f32.mrf.mxu0
      %v3597 = vadd.f32 0.0, %v3596
      %v3598 = vpop.f32.mrf.mxu0
      %3599 = vmatprep.mubr.f32.mxu0 0.0
      %3600 = vmatmul.mubr.f32.gmra.mxu0 %v3381
      %v3601 = vpop.f32.mrf.mxu0
      %v3602 = vadd.f32 0.0, %v3601
      %v3603 = vpop.f32.mrf.mxu0
      %3604 = vmatprep.mubr.f32.mxu0 0.0
      %3605 = vmatmul.mubr.f32.gmra.mxu0 %v3384
      %v3606 = vpop.f32.mrf.mxu0
      %v3607 = vadd.f32 0.0, %v3606
      %v3608 = vpop.f32.mrf.mxu0
      %3609 = vmatprep.mubr.f32.mxu0 0.0
      %3610 = vmatmul.mubr.f32.gmra.mxu0 %v3387
      %v3611 = vpop.f32.mrf.mxu0
      %v3612 = vadd.f32 0.0, %v3611
      %v3613 = vpop.f32.mrf.mxu0
      %3614 = vmatprep.mubr.f32.mxu0 0.0
      %3615 = vmatmul.mubr.f32.gmra.mxu0 %v3390
      %v3616 = vpop.f32.mrf.mxu0
      %v3617 = vadd.f32 0.0, %v3616
      %v3618 = vpop.f32.mrf.mxu0
      %3619 = vdwg.mxu0
      %v3620 = vadd.f32 %v3230, %v3462
      %v3621 = vadd.f32 %v3231, %v3467
      %v3622 = vadd.f32 %v3232, %v3472
      %v3623 = vadd.f32 %v3233, %v3477
      %v3624 = vadd.f32 %v3234, %v3482
      %v3625 = vadd.f32 %v3235, %v3487
      %v3626 = vadd.f32 %v3236, %v3492
      %v3627 = vadd.f32 %v3237, %v3497
      %v3628 = vadd.f32 %v3238, %v3502
      %v3629 = vadd.f32 %v3239, %v3507
      %v3630 = vadd.f32 %v3240, %v3512
      %v3631 = vadd.f32 %v3241, %v3517
      %v3632 = vadd.f32 %v3242, %v3522
      %v3633 = vadd.f32 %v3243, %v3527
      %v3634 = vadd.f32 %v3244, %v3532
      %v3635 = vadd.f32 %v3245, %v3537
      %v3636 = vadd.f32 %v3246, %v3542
      %v3637 = vadd.f32 %v3247, %v3547
      %v3638 = vadd.f32 %v3248, %v3552
      %v3639 = vadd.f32 %v3249, %v3557
      %v3640 = vadd.f32 %v3250, %v3562
      %v3641 = vadd.f32 %v3251, %v3567
      %v3642 = vadd.f32 %v3252, %v3572
      %v3643 = vadd.f32 %v3253, %v3577
      %v3644 = vadd.f32 %v3254, %v3582
      %v3645 = vadd.f32 %v3255, %v3587
      %v3646 = vadd.f32 %v3256, %v3592
      %v3647 = vadd.f32 %v3257, %v3597
      %v3648 = vadd.f32 %v3258, %v3602
      %v3649 = vadd.f32 %v3259, %v3607
      %v3650 = vadd.f32 %v3260, %v3612
      %v3651 = vadd.f32 %v3261, %v3617
      %v3652 = vld [vmem:[%s2] sm:$0x1]
      %v3654 = vlaneseq
      %v3655 = vshrl.u32 %v3654, 7
      %v3656 = vsub.s32 0, %v3655
      %v3657 = vrot.slane %v3652, %v3656
      %v3659 = vmul.f32 %v3620, %v3657
      %v3660 = vmul.f32 %v3621, %v3657
      %v3661 = vmul.f32 %v3622, %v3657
      %v3662 = vmul.f32 %v3623, %v3657
      %v3663 = vmul.f32 %v3624, %v3657
      %v3664 = vmul.f32 %v3625, %v3657
      %v3665 = vmul.f32 %v3626, %v3657
      %v3666 = vmul.f32 %v3627, %v3657
      %v3667 = vmul.f32 %v3628, %v3657
      %v3668 = vmul.f32 %v3629, %v3657
      %v3669 = vmul.f32 %v3630, %v3657
      %v3670 = vmul.f32 %v3631, %v3657
      %v3671 = vmul.f32 %v3632, %v3657
      %v3672 = vmul.f32 %v3633, %v3657
      %v3673 = vmul.f32 %v3634, %v3657
      %v3674 = vmul.f32 %v3635, %v3657
      %v3675 = vmul.f32 %v3636, %v3657
      %v3676 = vmul.f32 %v3637, %v3657
      %v3677 = vmul.f32 %v3638, %v3657
      %v3678 = vmul.f32 %v3639, %v3657
      %v3679 = vmul.f32 %v3640, %v3657
      %v3680 = vmul.f32 %v3641, %v3657
      %v3681 = vmul.f32 %v3642, %v3657
      %v3682 = vmul.f32 %v3643, %v3657
      %v3683 = vmul.f32 %v3644, %v3657
      %v3684 = vmul.f32 %v3645, %v3657
      %v3685 = vmul.f32 %v3646, %v3657
      %v3686 = vmul.f32 %v3647, %v3657
      %v3687 = vmul.f32 %v3648, %v3657
      %v3688 = vmul.f32 %v3649, %v3657
      %v3689 = vmul.f32 %v3650, %v3657
      %v3690 = vmul.f32 %v3651, %v3657
      %v3691 = vld [vmem:[%s3] sm:$0x1]
      %v3693 = vlaneseq
      %v3694 = vshrl.u32 %v3693, 7
      %v3695 = vsub.s32 0, %v3694
      %v3696 = vrot.slane %v3691, %v3695
      %v3698 = vadd.f32 %v3659, %v3696
      %v3699 = vadd.f32 %v3660, %v3696
      %v3700 = vadd.f32 %v3661, %v3696
      %v3701 = vadd.f32 %v3662, %v3696
      %v3702 = vadd.f32 %v3663, %v3696
      %v3703 = vadd.f32 %v3664, %v3696
      %v3704 = vadd.f32 %v3665, %v3696
      %v3705 = vadd.f32 %v3666, %v3696
      %v3706 = vadd.f32 %v3667, %v3696
      %v3707 = vadd.f32 %v3668, %v3696
      %v3708 = vadd.f32 %v3669, %v3696
      %v3709 = vadd.f32 %v3670, %v3696
      %v3710 = vadd.f32 %v3671, %v3696
      %v3711 = vadd.f32 %v3672, %v3696
      %v3712 = vadd.f32 %v3673, %v3696
      %v3713 = vadd.f32 %v3674, %v3696
      %v3714 = vadd.f32 %v3675, %v3696
      %v3715 = vadd.f32 %v3676, %v3696
      %v3716 = vadd.f32 %v3677, %v3696
      %v3717 = vadd.f32 %v3678, %v3696
      %v3718 = vadd.f32 %v3679, %v3696
      %v3719 = vadd.f32 %v3680, %v3696
      %v3720 = vadd.f32 %v3681, %v3696
      %v3721 = vadd.f32 %v3682, %v3696
      %v3722 = vadd.f32 %v3683, %v3696
      %v3723 = vadd.f32 %v3684, %v3696
      %v3724 = vadd.f32 %v3685, %v3696
      %v3725 = vadd.f32 %v3686, %v3696
      %v3726 = vadd.f32 %v3687, %v3696
      %v3727 = vadd.f32 %v3688, %v3696
      %v3728 = vadd.f32 %v3689, %v3696
      %v3729 = vadd.f32 %v3690, %v3696
      %v3730 = vmax.f32 %v3698, 0.0
      %v3731 = vmax.f32 %v3699, 0.0
      %v3732 = vmax.f32 %v3700, 0.0
      %v3733 = vmax.f32 %v3701, 0.0
      %v3734 = vmax.f32 %v3702, 0.0
      %v3735 = vmax.f32 %v3703, 0.0
      %v3736 = vmax.f32 %v3704, 0.0
      %v3737 = vmax.f32 %v3705, 0.0
      %v3738 = vmax.f32 %v3706, 0.0
      %v3739 = vmax.f32 %v3707, 0.0
      %v3740 = vmax.f32 %v3708, 0.0
      %v3741 = vmax.f32 %v3709, 0.0
      %v3742 = vmax.f32 %v3710, 0.0
      %v3743 = vmax.f32 %v3711, 0.0
      %v3744 = vmax.f32 %v3712, 0.0
      %v3745 = vmax.f32 %v3713, 0.0
      %v3746 = vmax.f32 %v3714, 0.0
      %v3747 = vmax.f32 %v3715, 0.0
      %v3748 = vmax.f32 %v3716, 0.0
      %v3749 = vmax.f32 %v3717, 0.0
      %v3750 = vmax.f32 %v3718, 0.0
      %v3751 = vmax.f32 %v3719, 0.0
      %v3752 = vmax.f32 %v3720, 0.0
      %v3753 = vmax.f32 %v3721, 0.0
      %v3754 = vmax.f32 %v3722, 0.0
      %v3755 = vmax.f32 %v3723, 0.0
      %v3756 = vmax.f32 %v3724, 0.0
      %v3757 = vmax.f32 %v3725, 0.0
      %v3758 = vmax.f32 %v3726, 0.0
      %v3759 = vmax.f32 %v3727, 0.0
      %v3760 = vmax.f32 %v3728, 0.0
      %v3761 = vmax.f32 %v3729, 0.0
      %3762 = vxpose.xlu0.b32.start [1/16] %v3730, 128
      %3763 = vxpose.xlu0.b32.cont [2/16] %v3731, 128
      %3764 = vxpose.xlu0.b32.cont [3/16] %v3732, 128
      %3765 = vxpose.xlu0.b32.cont [4/16] %v3733, 128
      %3766 = vxpose.xlu0.b32.cont [5/16] %v3734, 128
      %3767 = vxpose.xlu0.b32.cont [6/16] %v3735, 128
      %3768 = vxpose.xlu0.b32.cont [7/16] %v3736, 128
      %3769 = vxpose.xlu0.b32.cont [8/16] %v3737, 128
      %3770 = vxpose.xlu0.b32.cont [9/16] %v3738, 128
      %3771 = vxpose.xlu0.b32.cont [10/16] %v3739, 128
      %3772 = vxpose.xlu0.b32.cont [11/16] %v3740, 128
      %3773 = vxpose.xlu0.b32.cont [12/16] %v3741, 128
      %3774 = vxpose.xlu0.b32.cont [13/16] %v3742, 128
      %3775 = vxpose.xlu0.b32.cont [14/16] %v3743, 128
      %3776 = vxpose.xlu0.b32.cont [15/16] %v3744, 128
      %3777 = vxpose.xlu0.b32.end [16/16] %v3745, 128
      %v3778 = vpop.trf.xlu0
      %v3779 = vpop.trf.xlu0
      %v3780 = vpop.trf.xlu0
      %v3781 = vpop.trf.xlu0
      %v3782 = vpop.trf.xlu0
      %v3783 = vpop.trf.xlu0
      %v3784 = vpop.trf.xlu0
      %v3785 = vpop.trf.xlu0
      %v3786 = vpop.trf.xlu0
      %v3787 = vpop.trf.xlu0
      %v3788 = vpop.trf.xlu0
      %v3789 = vpop.trf.xlu0
      %v3790 = vpop.trf.xlu0
      %v3791 = vpop.trf.xlu0
      %v3792 = vpop.trf.xlu0
      %v3793 = vpop.trf.xlu0
      %3794 = vxpose.xlu0.b32.start [1/16] %v3746, 128
      %3795 = vxpose.xlu0.b32.cont [2/16] %v3747, 128
      %3796 = vxpose.xlu0.b32.cont [3/16] %v3748, 128
      %3797 = vxpose.xlu0.b32.cont [4/16] %v3749, 128
      %3798 = vxpose.xlu0.b32.cont [5/16] %v3750, 128
      %3799 = vxpose.xlu0.b32.cont [6/16] %v3751, 128
      %3800 = vxpose.xlu0.b32.cont [7/16] %v3752, 128
      %3801 = vxpose.xlu0.b32.cont [8/16] %v3753, 128
      %3802 = vxpose.xlu0.b32.cont [9/16] %v3754, 128
      %3803 = vxpose.xlu0.b32.cont [10/16] %v3755, 128
      %3804 = vxpose.xlu0.b32.cont [11/16] %v3756, 128
      %3805 = vxpose.xlu0.b32.cont [12/16] %v3757, 128
      %3806 = vxpose.xlu0.b32.cont [13/16] %v3758, 128
      %3807 = vxpose.xlu0.b32.cont [14/16] %v3759, 128
      %3808 = vxpose.xlu0.b32.cont [15/16] %v3760, 128
      %3809 = vxpose.xlu0.b32.end [16/16] %v3761, 128
      %v3810 = vpop.trf.xlu0
      %v3811 = vpop.trf.xlu0
      %v3812 = vpop.trf.xlu0
      %v3813 = vpop.trf.xlu0
      %v3814 = vpop.trf.xlu0
      %v3815 = vpop.trf.xlu0
      %v3816 = vpop.trf.xlu0
      %v3817 = vpop.trf.xlu0
      %v3818 = vpop.trf.xlu0
      %v3819 = vpop.trf.xlu0
      %v3820 = vpop.trf.xlu0
      %v3821 = vpop.trf.xlu0
      %v3822 = vpop.trf.xlu0
      %v3823 = vpop.trf.xlu0
      %v3824 = vpop.trf.xlu0
      %v3825 = vpop.trf.xlu0
      %3826 = vst [vmem:[%s202] sm:$0xff] %v3778
      %3827 = vst [vmem:[%s202 + $0x8] sm:$0xff] %v3810
      %p3828 = scmp.lt.s32.totalorder %s15, 1
      %s3829 = scalar_select %p3828, %s15, 1
      %s3830 = smul.addr %s3829, 2
      %s3831 = smul.addr %s3830, 8
      %s3832 = scalar_lea.vmem %s4, %s3831
      // Predicated region
      $region37: #{new_conv_layer.3} parent=35 // pred_check
        %p3833 = pneg %p122
      $region38: #{new_conv_layer.3} parent=35 // pred_check_branch
        %3835 = sbr.rel (%p3833) target = $region40
      $region39: #{new_conv_layer.3} parent=35 // pred_region
        _
      $region40: #{new_conv_layer.3} parent=35 // pred_fallthru
        _
    $region36: #{new_conv_layer.3} parent=5 // pred_fallthru
      _
    %p3836 = scmp.le.s32.totalorder 2, %s10
    // Predicated region
    $region41: #{new_conv_layer.3} parent=5 // pred_check
      %p3837 = pneg %p3836
    $region42: #{new_conv_layer.3} parent=5 // pred_check_branch
      %3839 = sbr.rel (%p3837) target = $region44
    $region43: #{new_conv_layer.3} parent=5 // pred_region
      %s3840 = ssub.s32 %s10, 2
      // Predicated region
      $region45: #{new_conv_layer.3} parent=43 // pred_check
        %p3841 = pneg %p128
      $region46: #{new_conv_layer.3} parent=43 // pred_check_branch
        %3843 = sbr.rel (%p3841) target = $region48
      $region47: #{new_conv_layer.3} parent=43 // pred_region
        %p3844 = scmp.lt.s32.totalorder %s16, 1
        %s3845 = scalar_select %p3844, %s16, 1
        %s3846 = smul.addr %s3845, 2
        %s3847 = smul.addr %s3846, 8
        %s3848 = scalar_lea.vmem %s4, %s3847
      $region48: #{new_conv_layer.3} parent=43 // pred_fallthru
        _
    $region44: #{new_conv_layer.3} parent=5 // pred_fallthru
      _
  $region6: #{new_conv_layer.3} parent=0 // loop_footer
    %s14 = sadd.s32 1, %s10
  $region7: #{new_conv_layer.3} parent=0 // loop_footer_branch
    %9 = sbr.rel target = $region3
  $region8: #{new_conv_layer.3} parent=0 // loop_exit
    _

</llo_original>
